<compile_context>
chip_gen: v7x
topology: tpu7x:2x2x1
jax: 0.10.0
libtpu: 0.0.40
codegen_flags: <defaults>
</compile_context>

<pallas_src>
import functools

import jax
import jax.numpy as jnp
from jax.experimental import pallas as pl
from jax.experimental.pallas import tpu as pltpu

SMALL_EMBEDDING_SIZE = 20
BIG_EMBEDDING_SIZE = 120
EMB_TOTAL = SMALL_EMBEDDING_SIZE * 7 + BIG_EMBEDDING_SIZE   # 260

LEAKY_SLOPE = 0.01
BN_EPS = 1e-5


def _mlp_kernel(sk, emb_dim, hidden, sketch_dim, groups_per_slab,
                xh_ref, xs_ref, xhv_ref, xqv_ref,   # (B, sk) bf16 sketch blocks
                xe_ref,                             # (B, emb_dim) bf16 embeddings
                wpf_ref,    # (input_dim, 2H) bf16  rows [hist|sess|hview|qview|emb], cols [wp|w1]
                wch_ref,    # (2H, 5H) bf16  [W2p | W3p | W4p]  (K-augmented chain weights)
                vecs_ref,   # (16, 2H) f32   packed biases / gammas / betas
                wo_ref,     # (H, slab) bf16 output-weight column slab
                bo_ref,     # (1, slab) f32
                o_ref,      # (B, slab) f32  output slab
                x4_ref):    # scratch (B, H) bf16, persists across grid steps
    H = hidden

    # ---------------- front network: runs only on the first grid step -------
    @pl.when(pl.program_id(0) == 0)
    def _front():
        vecs = vecs_ref[...]
        b2p, b3p = vecs[0:1, :], vecs[1:2, :]
        b4 = vecs[2:3, 0:H]
        g1p, be1p = vecs[3:4, :], vecs[4:5, :]
        g2p, be2p = vecs[5:6, :], vecs[6:7, :]
        g3p, be3p = vecs[7:8, :], vecs[8:9, :]
        g4, be4 = vecs[9:10, 0:H], vecs[10:11, 0:H]
        bpf = vecs[11:12, :]

        # lanes [H, 2H) carry the "new" pre-activation, lanes [0, H) carry the
        # packed residual passthrough (identity under leaky_relu / BN).
        hi = jax.lax.broadcasted_iota(jnp.int32, (1, 2 * H), 1) >= H
        slope = jnp.where(hi, LEAKY_SLOPE, 1.0).astype(jnp.float32)

        def lrelu_p(v):                 # packed leaky_relu (identity on low lanes)
            return jnp.where(v >= 0, v, slope * v)

        def bn_p(v, g, be):             # packed training-mode BN, identity on low lanes
            mean = jnp.mean(v, axis=0, keepdims=True)
            var = jnp.mean((v - mean) * (v - mean), axis=0, keepdims=True)
            scale = jnp.where(hi, g * jax.lax.rsqrt(var + BN_EPS), 1.0)
            shift = jnp.where(hi, be - mean * scale, 0.0)
            return v * scale + shift

        def lrelu(v):
            return jnp.where(v >= 0, v, LEAKY_SLOPE * v)

        def bn(v, g, be):
            mean = jnp.mean(v, axis=0, keepdims=True)
            var = jnp.mean((v - mean) * (v - mean), axis=0, keepdims=True)
            scale = g * jax.lax.rsqrt(var + BN_EPS)
            return v * scale + (be - mean * scale)

        def dotf(a, b):
            return jnp.dot(a, b, preferred_element_type=jnp.float32)

        # fused projection + l1, split over K row-segments (no x concat in HBM)
        y = dotf(xh_ref[...], wpf_ref[0:sk, :])
        y = y + dotf(xs_ref[...], wpf_ref[sk:2 * sk, :])
        y = y + dotf(xhv_ref[...], wpf_ref[2 * sk:3 * sk, :])
        y = y + dotf(xqv_ref[...], wpf_ref[3 * sk:4 * sk, :])
        y = y + dotf(xe_ref[...], wpf_ref[4 * sk:4 * sk + emb_dim, :])
        y = y + bpf                                  # [x_proj | l1 pre-act]

        z1 = bn_p(lrelu_p(y), g1p, be1p)             # [x_proj | x1]  (f32)
        x1 = z1[:, H:2 * H]                          # f32 residual for stage 4

        # K-augmented chain: residual adds ride through the MXU
        u2 = dotf(z1.astype(jnp.bfloat16), wch_ref[:, 0:2 * H]) + b2p
        z2 = bn_p(lrelu_p(u2), g2p, be2p)            # [x_proj | x2]
        u3 = dotf(z2.astype(jnp.bfloat16), wch_ref[:, 2 * H:4 * H]) + b3p
        z3 = bn_p(lrelu_p(u3), g3p, be3p)            # [x_proj | x3]
        u4 = dotf(z3.astype(jnp.bfloat16), wch_ref[:, 4 * H:5 * H]) + b4 + x1
        x4 = bn(lrelu(u4), g4, be4)                  # (B, H)
        x4_ref[...] = x4.astype(x4_ref.dtype)

    # ------------- per-slab output projection fused with softmax ------------
    logits = jnp.dot(x4_ref[...], wo_ref[...],
                     preferred_element_type=jnp.float32) + bo_ref[...]
    # TODO(synk): emit o_ref as bfloat16 if downstream consumers tolerate it
    # (halves output writeback bytes); kept f32 to match the module contract.
    for g in range(groups_per_slab):
        blk = logits[:, g * sketch_dim:(g + 1) * sketch_dim]
        m = jnp.max(blk, axis=-1, keepdims=True)
        e = jnp.exp(blk - m)
        inv = pl.reciprocal(jnp.sum(e, axis=-1, keepdims=True), approx=True)
        o_ref[:, g * sketch_dim:(g + 1) * sketch_dim] = (e * inv).astype(o_ref.dtype)


def pack_params(params, sketch_feat):
    """Pack / cast parameters once (outside the hot path)."""
    f32, bf16 = jnp.float32, jnp.bfloat16
    H = params["w2"].shape[0]
    sk = sketch_feat

    def reorder_rows(w):
        # PyTorch cat order:  [hist, sess, emb(260), hview, qview]
        # kernel input order: [hist, sess, hview, qview, emb]
        hist = w[0:sk]
        sess = w[sk:2 * sk]
        emb = w[2 * sk:2 * sk + EMB_TOTAL]
        hview = w[2 * sk + EMB_TOTAL:3 * sk + EMB_TOTAL]
        qview = w[3 * sk + EMB_TOTAL:4 * sk + EMB_TOTAL]
        return jnp.concatenate([hist, sess, hview, qview, emb], axis=0)

    wpf = jnp.concatenate(
        [reorder_rows(params["wp"]), reorder_rows(params["w1"])], axis=1
    ).astype(bf16)

    eye = jnp.eye(H, dtype=f32)
    zer = jnp.zeros((H, H), f32)
    # [x_proj | x_prev] @ [[I, I], [0, w]]  ->  [x_proj | x_prev @ w + x_proj]
    w2p = jnp.concatenate([jnp.concatenate([eye, eye], 1),
                           jnp.concatenate([zer, params["w2"]], 1)], 0)
    w3p = jnp.concatenate([jnp.concatenate([eye, eye], 1),
                           jnp.concatenate([zer, params["w3"]], 1)], 0)
    w4p = jnp.concatenate([zer, params["w4"]], 0)          # (2H, H): x3 @ w4
    wchain = jnp.concatenate([w2p, w3p, w4p], axis=1).astype(bf16)   # (2H, 5H)

    z1r = jnp.zeros((1, H), f32)
    o1r = jnp.ones((1, H), f32)
    rows = [
        jnp.concatenate([z1r, params["b2"]], 1),     # 0: b2 packed
        jnp.concatenate([z1r, params["b3"]], 1),     # 1: b3 packed
        jnp.concatenate([params["b4"], z1r], 1),     # 2: b4 (lanes 0:H)
        jnp.concatenate([o1r, params["g1"]], 1),     # 3
        jnp.concatenate([z1r, params["be1"]], 1),    # 4
        jnp.concatenate([o1r, params["g2"]], 1),     # 5
        jnp.concatenate([z1r, params["be2"]], 1),    # 6
        jnp.concatenate([o1r, params["g3"]], 1),     # 7
        jnp.concatenate([z1r, params["be3"]], 1),    # 8
        jnp.concatenate([params["g4"], o1r], 1),     # 9: g4 (lanes 0:H)
        jnp.concatenate([params["be4"], z1r], 1),    # 10: be4 (lanes 0:H)
        jnp.concatenate([params["bp"], params["b1"]], 1),  # 11: [bp | b1]
    ]
    rows += [jnp.zeros((1, 2 * H), f32)] * (16 - len(rows))
    vecs = jnp.concatenate(rows, axis=0).astype(f32)

    return dict(wpf=wpf, wchain=wchain, vecs=vecs,
                wo=params["wo"].astype(bf16), bo=params["bo"].astype(f32),
                hidden=H, out_dim=params["wo"].shape[1])


def model_forward_pallas(blocks, packed, sketch_dim, sketch_feat):
    xh, xs, xhv, xqv, xe = blocks
    B = xh.shape[0]
    H = packed["hidden"]
    out_dim = packed["out_dim"]
    emb_dim = xe.shape[1]
    input_dim = 4 * sketch_feat + emb_dim
    assert out_dim % sketch_dim == 0, "output_dim must be a multiple of sketch_dim"

    # Output slab: >= 128 lanes (lane-dense stores) holding a whole number of
    # softmax groups so the softmax fuses per slab.
    n_groups = out_dim // sketch_dim
    groups_per_slab = 1
    if sketch_dim % 128 != 0:
        groups_per_slab = max(1, (128 + sketch_dim - 1) // sketch_dim)
        while n_groups % groups_per_slab:
            groups_per_slab += 1
    slab = groups_per_slab * sketch_dim
    n_slabs = out_dim // slab

    kernel = functools.partial(_mlp_kernel, sketch_feat, emb_dim, H,
                               sketch_dim, groups_per_slab)

    # Whole batch stays VMEM-resident (a few MB at B=512).
    # TODO(synk): for B beyond a few thousand rows (esp. v7x 64 MiB VMEM / v5e
    # 16 MiB scoped default) add a batch grid with a two-phase BatchNorm.
    grid_spec = pltpu.PrefetchScalarGridSpec(
        num_scalar_prefetch=0,
        grid=(n_slabs,),
        in_specs=[
            pl.BlockSpec((B, sketch_feat), lambda k: (0, 0)),
            pl.BlockSpec((B, sketch_feat), lambda k: (0, 0)),
            pl.BlockSpec((B, sketch_feat), lambda k: (0, 0)),
            pl.BlockSpec((B, sketch_feat), lambda k: (0, 0)),
            pl.BlockSpec((B, emb_dim), lambda k: (0, 0)),
            pl.BlockSpec((input_dim, 2 * H), lambda k: (0, 0)),
            pl.BlockSpec((2 * H, 5 * H), lambda k: (0, 0)),
            pl.BlockSpec((16, 2 * H), lambda k: (0, 0)),
            pl.BlockSpec((H, slab), lambda k: (0, k)),     # wo slab (pipelined)
            pl.BlockSpec((1, slab), lambda k: (0, k)),     # bo slab
        ],
        out_specs=pl.BlockSpec((B, slab), lambda k: (0, k)),
        scratch_shapes=[pltpu.VMEM((B, H), jnp.bfloat16)],  # x4 (matmul operand only)
    )
    return pl.pallas_call(
        kernel,
        out_shape=jax.ShapeDtypeStruct((B, out_dim), jnp.float32),
        grid_spec=grid_spec,
        compiler_params=pltpu.CompilerParams(
            dimension_semantics=("arbitrary",)),   # step 0 feeds later steps via scratch
    )(xh, xs, xhv, xqv, xe,
      packed["wpf"], packed["wchain"], packed["vecs"], packed["wo"], packed["bo"])


def model_forward_ref(blocks, params, sketch_dim):
    """Pure-JAX reference mirroring the kernel numerics (bf16 matmul operands,
    f32 accumulation / elementwise math, bf16-rounded x_proj residual)."""
    bf = jnp.bfloat16
    xh, xs, xhv, xqv, xe = blocks
    x_input = jnp.concatenate(
        [xh.astype(jnp.float32), xs.astype(jnp.float32), xe.astype(jnp.float32),
         xhv.astype(jnp.float32), xqv.astype(jnp.float32)], axis=-1)

    def dot(a, b):
        return jnp.dot(a.astype(bf), b.astype(bf), preferred_element_type=jnp.float32)

    def lrelu(v):
        return jnp.where(v >= 0, v, LEAKY_SLOPE * v)

    def bn(v, g, b):
        mean = jnp.mean(v, axis=0, keepdims=True)
        var = jnp.mean((v - mean) ** 2, axis=0, keepdims=True)
        return (v - mean) / jnp.sqrt(var + BN_EPS) * g + b

    p = params
    x_proj = dot(x_input, p["wp"]) + p["bp"]
    xpb = x_proj.astype(bf).astype(jnp.float32)   # MXU identity-passthrough rounding
    x1 = bn(lrelu(dot(x_input, p["w1"]) + p["b1"]), p["g1"], p["be1"])
    x2 = bn(lrelu(dot(x1, p["w2"]) + p["b2"] + xpb), p["g2"], p["be2"])
    x3 = bn(lrelu(dot(x2, p["w3"]) + p["b3"] + xpb), p["g3"], p["be3"])
    x4 = bn(lrelu(dot(x3, p["w4"]) + p["b4"] + x1), p["g4"], p["be4"])
    logits = dot(x4, p["wo"]) + p["bo"]
    B, OD = logits.shape
    lg = logits.reshape(B, OD // sketch_dim, sketch_dim)
    return jax.nn.softmax(lg, axis=-1).reshape(B, OD)


if __name__ == "__main__":
    # ----- model hyperparameters (TPU-lane-friendly sketch_dim) -----
    n_sketches_all = 2
    sketch_dim = 128
    num_count_sketches_input = 4
    hidden_size = 64
    n_sketches_output = 2
    n_page_type, n_previous_page_type = 5, 5
    n_device_category, n_device_platform = 4, 6
    n_user_tier, n_user_country = 3, 10
    n_context_type, n_context_value = 7, 12

    sketch_feat = n_sketches_all * sketch_dim                       # 256
    input_dim = sketch_feat * num_count_sketches_input + EMB_TOTAL  # 1284
    output_dim = n_sketches_all * sketch_dim * n_sketches_output    # 512
    # Large batch per call amortizes the weight HBM->VMEM DMA (mem-bound op).
    B = 512

    key = jax.random.PRNGKey(0)
    keys = iter(jax.random.split(key, 64))

    def nxt():
        return next(keys)

    # ----- deterministic parameter init -----
    def linear(fan_in, fan_out):
        bound = 1.0 / jnp.sqrt(fan_in)
        w = jax.random.uniform(nxt(), (fan_in, fan_out), jnp.float32, -bound, bound)
        b = jax.random.uniform(nxt(), (1, fan_out), jnp.float32, -bound, bound)
        return w, b

    def embedding(ni, nf, std=0.01):
        # approximation of trunc_normal_(std=std)
        return jnp.clip(jax.random.normal(nxt(), (ni, nf), jnp.float32), -2.0, 2.0) * std

    params = {}
    params["wp"], params["bp"] = linear(input_dim, hidden_size)
    params["w1"], params["b1"] = linear(input_dim, hidden_size)
    params["w2"], params["b2"] = linear(hidden_size, hidden_size)
    params["w3"], params["b3"] = linear(hidden_size, hidden_size)
    params["w4"], params["b4"] = linear(hidden_size, hidden_size)
    params["wo"], params["bo"] = linear(hidden_size, output_dim)
    for i in (1, 2, 3, 4):
        params[f"g{i}"] = jnp.ones((1, hidden_size), jnp.float32)
        params[f"be{i}"] = jnp.zeros((1, hidden_size), jnp.float32)

    emb_page_type = embedding(n_page_type, SMALL_EMBEDDING_SIZE)
    emb_prev_page_type = embedding(n_previous_page_type, SMALL_EMBEDDING_SIZE)
    emb_device_category = embedding(n_device_category, SMALL_EMBEDDING_SIZE)
    emb_device_platform = embedding(n_device_platform, SMALL_EMBEDDING_SIZE)
    emb_user_tier = embedding(n_user_tier, SMALL_EMBEDDING_SIZE)
    emb_user_country = embedding(n_user_country, SMALL_EMBEDDING_SIZE)
    emb_context_type = embedding(n_context_type, SMALL_EMBEDDING_SIZE)
    emb_context_value = embedding(n_context_value, BIG_EMBEDDING_SIZE)

    # ----- example inputs -----
    # Sketch inputs produced directly in bf16: the matmul-operand cast is fused
    # into the producer instead of an x_input concat+cast HBM round-trip.
    history_sketches = jax.random.normal(nxt(), (B, sketch_feat), jnp.bfloat16)
    session_sketches = jax.random.normal(nxt(), (B, sketch_feat), jnp.bfloat16)
    history_sketches_viewed = jax.random.normal(nxt(), (B, sketch_feat), jnp.bfloat16)
    query_viewed_sketches = jax.random.normal(nxt(), (B, sketch_feat), jnp.bfloat16)

    def rand_idx(n):
        return jax.random.randint(nxt(), (B,), 0, n, jnp.int32)

    page_type = rand_idx(n_page_type)
    previous_page_type = rand_idx(n_previous_page_type)
    device_category = rand_idx(n_device_category)
    device_platform = rand_idx(n_device_platform)
    user_tier = rand_idx(n_user_tier)
    user_country = rand_idx(n_user_country)
    contex_type = rand_idx(n_context_type)
    context_value = rand_idx(n_context_value)

    # ----- glue: embedding lookups (same order as torch.cat), small concat -----
    x_emb = jnp.concatenate(
        [
            jnp.take(emb_page_type, page_type, axis=0),
            jnp.take(emb_prev_page_type, previous_page_type, axis=0),
            jnp.take(emb_device_category, device_category, axis=0),
            jnp.take(emb_device_platform, device_platform, axis=0),
            jnp.take(emb_user_tier, user_tier, axis=0),
            jnp.take(emb_user_country, user_country, axis=0),
            jnp.take(emb_context_type, contex_type, axis=0),
            jnp.take(emb_context_value, context_value, axis=0),
        ],
        axis=-1,
    ).astype(jnp.bfloat16)
    assert x_emb.shape == (B, EMB_TOTAL)

    blocks = (history_sketches, session_sketches,
              history_sketches_viewed, query_viewed_sketches, x_emb)

    packed = pack_params(params, sketch_feat)
    out = model_forward_pallas(blocks, packed, sketch_dim, sketch_feat)
    out = jax.block_until_ready(out)
    assert out.shape == (B, output_dim)

    ref = model_forward_ref(blocks, params, sketch_dim)
    # Reference mirrors the kernel's bf16-operand matmuls and bf16 x_proj
    # residual; remaining delta is f32-accumulation reassociation plus the EUP
    # approx reciprocal in the softmax.
    assert jnp.allclose(out, ref, atol=2e-3, rtol=1e-2), "mismatch vs JAX reference"

    print("KERNEL_OK")
</pallas_src>

<mosaic_0001>
module attributes {stable_mosaic.version = 11 : i64} {
  func.func @_mlp_kernel(%arg0: i32, %arg1: memref<512x256xbf16, #tpu.memory_space<vmem>>, %arg2: memref<512x256xbf16, #tpu.memory_space<vmem>>, %arg3: memref<512x256xbf16, #tpu.memory_space<vmem>>, %arg4: memref<512x256xbf16, #tpu.memory_space<vmem>>, %arg5: memref<512x260xbf16, #tpu.memory_space<vmem>>, %arg6: memref<1284x128xbf16, #tpu.memory_space<vmem>>, %arg7: memref<128x320xbf16, #tpu.memory_space<vmem>>, %arg8: memref<16x128xf32, #tpu.memory_space<vmem>>, %arg9: memref<64x128xbf16, #tpu.memory_space<vmem>>, %arg10: memref<1x128xf32, #tpu.memory_space<vmem>>, %arg11: memref<512x128xf32, #tpu.memory_space<vmem>>, %arg12: memref<512x64xbf16, #tpu.memory_space<vmem>>) attributes {dimension_semantics = [#tpu.dimension_semantics<arbitrary>], iteration_bounds = array<i64: 4>, scalar_prefetch = 0 : i64, scratch_operands = 1 : i64, tpu.core_type = #tpu.core_type<tc>, window_params = [{pipeline_mode = #tpu.pipeline_mode<synchronous>, transform_indices = @transform_0, window_bounds = array<i64: 512, 256>}, {pipeline_mode = #tpu.pipeline_mode<synchronous>, transform_indices = @transform_1, window_bounds = array<i64: 512, 256>}, {pipeline_mode = #tpu.pipeline_mode<synchronous>, transform_indices = @transform_2, window_bounds = array<i64: 512, 256>}, {pipeline_mode = #tpu.pipeline_mode<synchronous>, transform_indices = @transform_3, window_bounds = array<i64: 512, 256>}, {pipeline_mode = #tpu.pipeline_mode<synchronous>, transform_indices = @transform_4, window_bounds = array<i64: 512, 260>}, {pipeline_mode = #tpu.pipeline_mode<synchronous>, transform_indices = @transform_5, window_bounds = array<i64: 1284, 128>}, {pipeline_mode = #tpu.pipeline_mode<synchronous>, transform_indices = @transform_6, window_bounds = array<i64: 128, 320>}, {pipeline_mode = #tpu.pipeline_mode<synchronous>, transform_indices = @transform_7, window_bounds = array<i64: 16, 128>}, {transform_indices = @transform_8, window_bounds = array<i64: 64, 128>}, {transform_indices = @transform_9, window_bounds = array<i64: 1, 128>}, {transform_indices = @transform_10, window_bounds = array<i64: 512, 128>}]} {
    %c0_i32 = arith.constant 0 : i32
    %0 = arith.cmpi eq, %arg0, %c0_i32 : i32
    %1 = arith.extui %0 : i1 to i32
    %c0_i32_0 = arith.constant 0 : i32
    %2 = arith.cmpi ne, %1, %c0_i32_0 : i32
    scf.if %2 {
      %c0_10 = arith.constant 0 : index
      %c0_11 = arith.constant 0 : index
      %20 = vector.load %arg8[%c0_10, %c0_11] : memref<16x128xf32, #tpu.memory_space<vmem>>, vector<16x128xf32>
      %21 = vector.extract_strided_slice %20 {offsets = [0, 0], sizes = [1, 128], strides = [1, 1]} : vector<16x128xf32> to vector<1x128xf32>
      %22 = vector.extract_strided_slice %20 {offsets = [1, 0], sizes = [1, 128], strides = [1, 1]} : vector<16x128xf32> to vector<1x128xf32>
      %23 = vector.extract_strided_slice %20 {offsets = [2, 0], sizes = [1, 64], strides = [1, 1]} : vector<16x128xf32> to vector<1x64xf32>
      %24 = vector.extract_strided_slice %20 {offsets = [3, 0], sizes = [1, 128], strides = [1, 1]} : vector<16x128xf32> to vector<1x128xf32>
      %25 = vector.extract_strided_slice %20 {offsets = [4, 0], sizes = [1, 128], strides = [1, 1]} : vector<16x128xf32> to vector<1x128xf32>
      %26 = vector.extract_strided_slice %20 {offsets = [5, 0], sizes = [1, 128], strides = [1, 1]} : vector<16x128xf32> to vector<1x128xf32>
      %27 = vector.extract_strided_slice %20 {offsets = [6, 0], sizes = [1, 128], strides = [1, 1]} : vector<16x128xf32> to vector<1x128xf32>
      %28 = vector.extract_strided_slice %20 {offsets = [7, 0], sizes = [1, 128], strides = [1, 1]} : vector<16x128xf32> to vector<1x128xf32>
      %29 = vector.extract_strided_slice %20 {offsets = [8, 0], sizes = [1, 128], strides = [1, 1]} : vector<16x128xf32> to vector<1x128xf32>
      %30 = vector.extract_strided_slice %20 {offsets = [9, 0], sizes = [1, 64], strides = [1, 1]} : vector<16x128xf32> to vector<1x64xf32>
      %31 = vector.extract_strided_slice %20 {offsets = [10, 0], sizes = [1, 64], strides = [1, 1]} : vector<16x128xf32> to vector<1x64xf32>
      %32 = vector.extract_strided_slice %20 {offsets = [11, 0], sizes = [1, 128], strides = [1, 1]} : vector<16x128xf32> to vector<1x128xf32>
      %33 = tpu.iota {dimensions = array<i32: 1>} : vector<1x128xi32>
      %c64_i32 = arith.constant 64 : i32
      %34 = vector.broadcast %c64_i32 : i32 to vector<1x128xi32>
      %35 = arith.cmpi sge, %33, %34 : vector<1x128xi32>
      %cst_12 = arith.constant 0.00999999977 : f32
      %cst_13 = arith.constant 1.000000e+00 : f32
      %36 = vector.broadcast %cst_12 : f32 to vector<1x128xf32>
      %37 = vector.broadcast %cst_13 : f32 to vector<1x128xf32>
      %38 = arith.select %35, %36, %37 : vector<1x128xi1>, vector<1x128xf32>
      %c0_14 = arith.constant 0 : index
      %c0_15 = arith.constant 0 : index
      %39 = vector.load %arg1[%c0_14, %c0_15] : memref<512x256xbf16, #tpu.memory_space<vmem>>, vector<512x256xbf16>
      %c0_16 = arith.constant 0 : index
      %c0_17 = arith.constant 0 : index
      %40 = vector.load %arg6[%c0_16, %c0_17] : memref<1284x128xbf16, #tpu.memory_space<vmem>>, vector<256x128xbf16>
      %cst_18 = arith.constant dense<0.000000e+00> : vector<512x128xf32>
      %41 = tpu.matmul %39, %40, %cst_18 {dimension_numbers = #tpu.dot_dimension_numbers<[1], [0], [0], [1], [0, 0, 1, 1], [], []>} : vector<512x256xbf16>, vector<256x128xbf16>, vector<512x128xf32> -> vector<512x128xf32>
      %c0_19 = arith.constant 0 : index
      %c0_20 = arith.constant 0 : index
      %42 = vector.load %arg2[%c0_19, %c0_20] : memref<512x256xbf16, #tpu.memory_space<vmem>>, vector<512x256xbf16>
      %c256 = arith.constant 256 : index
      %c0_21 = arith.constant 0 : index
      %43 = vector.load %arg6[%c256, %c0_21] : memref<1284x128xbf16, #tpu.memory_space<vmem>>, vector<256x128xbf16>
      %cst_22 = arith.constant dense<0.000000e+00> : vector<512x128xf32>
      %44 = tpu.matmul %42, %43, %cst_22 {dimension_numbers = #tpu.dot_dimension_numbers<[1], [0], [0], [1], [0, 0, 1, 1], [], []>} : vector<512x256xbf16>, vector<256x128xbf16>, vector<512x128xf32> -> vector<512x128xf32>
      %45 = arith.addf %41, %44 : vector<512x128xf32>
      %c0_23 = arith.constant 0 : index
      %c0_24 = arith.constant 0 : index
      %46 = vector.load %arg3[%c0_23, %c0_24] : memref<512x256xbf16, #tpu.memory_space<vmem>>, vector<512x256xbf16>
      %c512 = arith.constant 512 : index
      %c0_25 = arith.constant 0 : index
      %47 = vector.load %arg6[%c512, %c0_25] : memref<1284x128xbf16, #tpu.memory_space<vmem>>, vector<256x128xbf16>
      %cst_26 = arith.constant dense<0.000000e+00> : vector<512x128xf32>
      %48 = tpu.matmul %46, %47, %cst_26 {dimension_numbers = #tpu.dot_dimension_numbers<[1], [0], [0], [1], [0, 0, 1, 1], [], []>} : vector<512x256xbf16>, vector<256x128xbf16>, vector<512x128xf32> -> vector<512x128xf32>
      %49 = arith.addf %45, %48 : vector<512x128xf32>
      %c0_27 = arith.constant 0 : index
      %c0_28 = arith.constant 0 : index
      %50 = vector.load %arg4[%c0_27, %c0_28] : memref<512x256xbf16, #tpu.memory_space<vmem>>, vector<512x256xbf16>
      %c768 = arith.constant 768 : index
      %c0_29 = arith.constant 0 : index
      %51 = vector.load %arg6[%c768, %c0_29] : memref<1284x128xbf16, #tpu.memory_space<vmem>>, vector<256x128xbf16>
      %cst_30 = arith.constant dense<0.000000e+00> : vector<512x128xf32>
      %52 = tpu.matmul %50, %51, %cst_30 {dimension_numbers = #tpu.dot_dimension_numbers<[1], [0], [0], [1], [0, 0, 1, 1], [], []>} : vector<512x256xbf16>, vector<256x128xbf16>, vector<512x128xf32> -> vector<512x128xf32>
      %53 = arith.addf %49, %52 : vector<512x128xf32>
      %c0_31 = arith.constant 0 : index
      %c0_32 = arith.constant 0 : index
      %54 = vector.load %arg5[%c0_31, %c0_32] : memref<512x260xbf16, #tpu.memory_space<vmem>>, vector<512x260xbf16>
      %c1024 = arith.constant 1024 : index
      %c0_33 = arith.constant 0 : index
      %55 = vector.load %arg6[%c1024, %c0_33] : memref<1284x128xbf16, #tpu.memory_space<vmem>>, vector<260x128xbf16>
      %cst_34 = arith.constant dense<0.000000e+00> : vector<512x128xf32>
      %56 = tpu.matmul %54, %55, %cst_34 {dimension_numbers = #tpu.dot_dimension_numbers<[1], [0], [0], [1], [0, 0, 1, 1], [], []>} : vector<512x260xbf16>, vector<260x128xbf16>, vector<512x128xf32> -> vector<512x128xf32>
      %57 = arith.addf %53, %56 : vector<512x128xf32>
      %58 = vector.broadcast %32 : vector<1x128xf32> to vector<512x128xf32>
      %59 = arith.addf %57, %58 : vector<512x128xf32>
      %cst_35 = arith.constant 0.000000e+00 : f32
      %60 = vector.broadcast %cst_35 : f32 to vector<512x128xf32>
      %61 = arith.cmpf oge, %59, %60 : vector<512x128xf32>
      %62 = vector.broadcast %38 : vector<1x128xf32> to vector<512x128xf32>
      %63 = arith.mulf %62, %59 : vector<512x128xf32>
      %64 = arith.select %61, %59, %63 : vector<512x128xi1>, vector<512x128xf32>
      %cst_36 = arith.constant dense<0.000000e+00> : vector<128xf32>
      %65 = vector.multi_reduction <add>, %64, %cst_36 [0] : vector<512x128xf32> to vector<128xf32>
      %66 = vector.shape_cast %65 : vector<128xf32> to vector<1x128xf32>
      %cst_37 = arith.constant 5.120000e+02 : f32
      %67 = vector.broadcast %cst_37 : f32 to vector<1x128xf32>
      %68 = arith.divf %66, %67 : vector<1x128xf32>
      %69 = vector.broadcast %68 : vector<1x128xf32> to vector<512x128xf32>
      %70 = arith.subf %64, %69 : vector<512x128xf32>
      %71 = vector.broadcast %68 : vector<1x128xf32> to vector<512x128xf32>
      %72 = arith.subf %64, %71 : vector<512x128xf32>
      %73 = arith.mulf %70, %72 : vector<512x128xf32>
      %cst_38 = arith.constant dense<0.000000e+00> : vector<128xf32>
      %74 = vector.multi_reduction <add>, %73, %cst_38 [0] : vector<512x128xf32> to vector<128xf32>
      %75 = vector.shape_cast %74 : vector<128xf32> to vector<1x128xf32>
      %cst_39 = arith.constant 5.120000e+02 : f32
      %76 = vector.broadcast %cst_39 : f32 to vector<1x128xf32>
      %77 = arith.divf %75, %76 : vector<1x128xf32>
      %cst_40 = arith.constant 9.99999974E-6 : f32
      %78 = vector.broadcast %cst_40 : f32 to vector<1x128xf32>
      %79 = arith.addf %77, %78 : vector<1x128xf32>
      %80 = math.rsqrt %79 : vector<1x128xf32>
      %81 = arith.mulf %24, %80 : vector<1x128xf32>
      %cst_41 = arith.constant 1.000000e+00 : f32
      %82 = vector.broadcast %cst_41 : f32 to vector<1x128xf32>
      %83 = arith.select %35, %81, %82 : vector<1x128xi1>, vector<1x128xf32>
      %84 = arith.mulf %68, %83 : vector<1x128xf32>
      %85 = arith.subf %25, %84 : vector<1x128xf32>
      %cst_42 = arith.constant 0.000000e+00 : f32
      %86 = vector.broadcast %cst_42 : f32 to vector<1x128xf32>
      %87 = arith.select %35, %85, %86 : vector<1x128xi1>, vector<1x128xf32>
      %88 = vector.broadcast %83 : vector<1x128xf32> to vector<512x128xf32>
      %89 = arith.mulf %64, %88 : vector<512x128xf32>
      %90 = vector.broadcast %87 : vector<1x128xf32> to vector<512x128xf32>
      %91 = arith.addf %89, %90 : vector<512x128xf32>
      %92 = vector.extract_strided_slice %91 {offsets = [0, 64], sizes = [512, 64], strides = [1, 1]} : vector<512x128xf32> to vector<512x64xf32>
      %93 = arith.truncf %91 : vector<512x128xf32> to vector<512x128xbf16>
      %c0_43 = arith.constant 0 : index
      %c0_44 = arith.constant 0 : index
      %94 = vector.load %arg7[%c0_43, %c0_44] : memref<128x320xbf16, #tpu.memory_space<vmem>>, vector<128x128xbf16>
      %cst_45 = arith.constant dense<0.000000e+00> : vector<512x128xf32>
      %95 = tpu.matmul %93, %94, %cst_45 {dimension_numbers = #tpu.dot_dimension_numbers<[1], [0], [0], [1], [0, 0, 1, 1], [], []>} : vector<512x128xbf16>, vector<128x128xbf16>, vector<512x128xf32> -> vector<512x128xf32>
      %96 = vector.broadcast %21 : vector<1x128xf32> to vector<512x128xf32>
      %97 = arith.addf %95, %96 : vector<512x128xf32>
      %cst_46 = arith.constant 0.000000e+00 : f32
      %98 = vector.broadcast %cst_46 : f32 to vector<512x128xf32>
      %99 = arith.cmpf oge, %97, %98 : vector<512x128xf32>
      %100 = vector.broadcast %38 : vector<1x128xf32> to vector<512x128xf32>
      %101 = arith.mulf %100, %97 : vector<512x128xf32>
      %102 = arith.select %99, %97, %101 : vector<512x128xi1>, vector<512x128xf32>
      %cst_47 = arith.constant dense<0.000000e+00> : vector<128xf32>
      %103 = vector.multi_reduction <add>, %102, %cst_47 [0] : vector<512x128xf32> to vector<128xf32>
      %104 = vector.shape_cast %103 : vector<128xf32> to vector<1x128xf32>
      %cst_48 = arith.constant 5.120000e+02 : f32
      %105 = vector.broadcast %cst_48 : f32 to vector<1x128xf32>
      %106 = arith.divf %104, %105 : vector<1x128xf32>
      %107 = vector.broadcast %106 : vector<1x128xf32> to vector<512x128xf32>
      %108 = arith.subf %102, %107 : vector<512x128xf32>
      %109 = vector.broadcast %106 : vector<1x128xf32> to vector<512x128xf32>
      %110 = arith.subf %102, %109 : vector<512x128xf32>
      %111 = arith.mulf %108, %110 : vector<512x128xf32>
      %cst_49 = arith.constant dense<0.000000e+00> : vector<128xf32>
      %112 = vector.multi_reduction <add>, %111, %cst_49 [0] : vector<512x128xf32> to vector<128xf32>
      %113 = vector.shape_cast %112 : vector<128xf32> to vector<1x128xf32>
      %cst_50 = arith.constant 5.120000e+02 : f32
      %114 = vector.broadcast %cst_50 : f32 to vector<1x128xf32>
      %115 = arith.divf %113, %114 : vector<1x128xf32>
      %cst_51 = arith.constant 9.99999974E-6 : f32
      %116 = vector.broadcast %cst_51 : f32 to vector<1x128xf32>
      %117 = arith.addf %115, %116 : vector<1x128xf32>
      %118 = math.rsqrt %117 : vector<1x128xf32>
      %119 = arith.mulf %26, %118 : vector<1x128xf32>
      %cst_52 = arith.constant 1.000000e+00 : f32
      %120 = vector.broadcast %cst_52 : f32 to vector<1x128xf32>
      %121 = arith.select %35, %119, %120 : vector<1x128xi1>, vector<1x128xf32>
      %122 = arith.mulf %106, %121 : vector<1x128xf32>
      %123 = arith.subf %27, %122 : vector<1x128xf32>
      %cst_53 = arith.constant 0.000000e+00 : f32
      %124 = vector.broadcast %cst_53 : f32 to vector<1x128xf32>
      %125 = arith.select %35, %123, %124 : vector<1x128xi1>, vector<1x128xf32>
      %126 = vector.broadcast %121 : vector<1x128xf32> to vector<512x128xf32>
      %127 = arith.mulf %102, %126 : vector<512x128xf32>
      %128 = vector.broadcast %125 : vector<1x128xf32> to vector<512x128xf32>
      %129 = arith.addf %127, %128 : vector<512x128xf32>
      %130 = arith.truncf %129 : vector<512x128xf32> to vector<512x128xbf16>
      %c0_54 = arith.constant 0 : index
      %c128 = arith.constant 128 : index
      %131 = vector.load %arg7[%c0_54, %c128] : memref<128x320xbf16, #tpu.memory_space<vmem>>, vector<128x128xbf16>
      %cst_55 = arith.constant dense<0.000000e+00> : vector<512x128xf32>
      %132 = tpu.matmul %130, %131, %cst_55 {dimension_numbers = #tpu.dot_dimension_numbers<[1], [0], [0], [1], [0, 0, 1, 1], [], []>} : vector<512x128xbf16>, vector<128x128xbf16>, vector<512x128xf32> -> vector<512x128xf32>
      %133 = vector.broadcast %22 : vector<1x128xf32> to vector<512x128xf32>
      %134 = arith.addf %132, %133 : vector<512x128xf32>
      %cst_56 = arith.constant 0.000000e+00 : f32
      %135 = vector.broadcast %cst_56 : f32 to vector<512x128xf32>
      %136 = arith.cmpf oge, %134, %135 : vector<512x128xf32>
      %137 = vector.broadcast %38 : vector<1x128xf32> to vector<512x128xf32>
      %138 = arith.mulf %137, %134 : vector<512x128xf32>
      %139 = arith.select %136, %134, %138 : vector<512x128xi1>, vector<512x128xf32>
      %cst_57 = arith.constant dense<0.000000e+00> : vector<128xf32>
      %140 = vector.multi_reduction <add>, %139, %cst_57 [0] : vector<512x128xf32> to vector<128xf32>
      %141 = vector.shape_cast %140 : vector<128xf32> to vector<1x128xf32>
      %cst_58 = arith.constant 5.120000e+02 : f32
      %142 = vector.broadcast %cst_58 : f32 to vector<1x128xf32>
      %143 = arith.divf %141, %142 : vector<1x128xf32>
      %144 = vector.broadcast %143 : vector<1x128xf32> to vector<512x128xf32>
      %145 = arith.subf %139, %144 : vector<512x128xf32>
      %146 = vector.broadcast %143 : vector<1x128xf32> to vector<512x128xf32>
      %147 = arith.subf %139, %146 : vector<512x128xf32>
      %148 = arith.mulf %145, %147 : vector<512x128xf32>
      %cst_59 = arith.constant dense<0.000000e+00> : vector<128xf32>
      %149 = vector.multi_reduction <add>, %148, %cst_59 [0] : vector<512x128xf32> to vector<128xf32>
      %150 = vector.shape_cast %149 : vector<128xf32> to vector<1x128xf32>
      %cst_60 = arith.constant 5.120000e+02 : f32
      %151 = vector.broadcast %cst_60 : f32 to vector<1x128xf32>
      %152 = arith.divf %150, %151 : vector<1x128xf32>
      %cst_61 = arith.constant 9.99999974E-6 : f32
      %153 = vector.broadcast %cst_61 : f32 to vector<1x128xf32>
      %154 = arith.addf %152, %153 : vector<1x128xf32>
      %155 = math.rsqrt %154 : vector<1x128xf32>
      %156 = arith.mulf %28, %155 : vector<1x128xf32>
      %cst_62 = arith.constant 1.000000e+00 : f32
      %157 = vector.broadcast %cst_62 : f32 to vector<1x128xf32>
      %158 = arith.select %35, %156, %157 : vector<1x128xi1>, vector<1x128xf32>
      %159 = arith.mulf %143, %158 : vector<1x128xf32>
      %160 = arith.subf %29, %159 : vector<1x128xf32>
      %cst_63 = arith.constant 0.000000e+00 : f32
      %161 = vector.broadcast %cst_63 : f32 to vector<1x128xf32>
      %162 = arith.select %35, %160, %161 : vector<1x128xi1>, vector<1x128xf32>
      %163 = vector.broadcast %158 : vector<1x128xf32> to vector<512x128xf32>
      %164 = arith.mulf %139, %163 : vector<512x128xf32>
      %165 = vector.broadcast %162 : vector<1x128xf32> to vector<512x128xf32>
      %166 = arith.addf %164, %165 : vector<512x128xf32>
      %167 = arith.truncf %166 : vector<512x128xf32> to vector<512x128xbf16>
      %c0_64 = arith.constant 0 : index
      %c256_65 = arith.constant 256 : index
      %168 = vector.load %arg7[%c0_64, %c256_65] : memref<128x320xbf16, #tpu.memory_space<vmem>>, vector<128x64xbf16>
      %cst_66 = arith.constant dense<0.000000e+00> : vector<512x64xf32>
      %169 = tpu.matmul %167, %168, %cst_66 {dimension_numbers = #tpu.dot_dimension_numbers<[1], [0], [0], [1], [0, 0, 1, 1], [], []>} : vector<512x128xbf16>, vector<128x64xbf16>, vector<512x64xf32> -> vector<512x64xf32>
      %170 = vector.broadcast %23 : vector<1x64xf32> to vector<512x64xf32>
      %171 = arith.addf %169, %170 : vector<512x64xf32>
      %172 = arith.addf %171, %92 : vector<512x64xf32>
      %cst_67 = arith.constant 0.000000e+00 : f32
      %173 = vector.broadcast %cst_67 : f32 to vector<512x64xf32>
      %174 = arith.cmpf oge, %172, %173 : vector<512x64xf32>
      %cst_68 = arith.constant 0.00999999977 : f32
      %175 = vector.broadcast %cst_68 : f32 to vector<512x64xf32>
      %176 = arith.mulf %175, %172 : vector<512x64xf32>
      %177 = arith.select %174, %172, %176 : vector<512x64xi1>, vector<512x64xf32>
      %cst_69 = arith.constant dense<0.000000e+00> : vector<64xf32>
      %178 = vector.multi_reduction <add>, %177, %cst_69 [0] : vector<512x64xf32> to vector<64xf32>
      %179 = vector.shape_cast %178 : vector<64xf32> to vector<1x64xf32>
      %cst_70 = arith.constant 5.120000e+02 : f32
      %180 = vector.broadcast %cst_70 : f32 to vector<1x64xf32>
      %181 = arith.divf %179, %180 : vector<1x64xf32>
      %182 = vector.broadcast %181 : vector<1x64xf32> to vector<512x64xf32>
      %183 = arith.subf %177, %182 : vector<512x64xf32>
      %184 = vector.broadcast %181 : vector<1x64xf32> to vector<512x64xf32>
      %185 = arith.subf %177, %184 : vector<512x64xf32>
      %186 = arith.mulf %183, %185 : vector<512x64xf32>
      %cst_71 = arith.constant dense<0.000000e+00> : vector<64xf32>
      %187 = vector.multi_reduction <add>, %186, %cst_71 [0] : vector<512x64xf32> to vector<64xf32>
      %188 = vector.shape_cast %187 : vector<64xf32> to vector<1x64xf32>
      %cst_72 = arith.constant 5.120000e+02 : f32
      %189 = vector.broadcast %cst_72 : f32 to vector<1x64xf32>
      %190 = arith.divf %188, %189 : vector<1x64xf32>
      %cst_73 = arith.constant 9.99999974E-6 : f32
      %191 = vector.broadcast %cst_73 : f32 to vector<1x64xf32>
      %192 = arith.addf %190, %191 : vector<1x64xf32>
      %193 = math.rsqrt %192 : vector<1x64xf32>
      %194 = arith.mulf %30, %193 : vector<1x64xf32>
      %195 = vector.broadcast %194 : vector<1x64xf32> to vector<512x64xf32>
      %196 = arith.mulf %177, %195 : vector<512x64xf32>
      %197 = arith.mulf %181, %194 : vector<1x64xf32>
      %198 = arith.subf %31, %197 : vector<1x64xf32>
      %199 = vector.broadcast %198 : vector<1x64xf32> to vector<512x64xf32>
      %200 = arith.addf %196, %199 : vector<512x64xf32>
      %201 = arith.truncf %200 : vector<512x64xf32> to vector<512x64xbf16>
      %c0_74 = arith.constant 0 : index
      %c0_75 = arith.constant 0 : index
      %202 = vector.load %arg12[%c0_74, %c0_75] : memref<512x64xbf16, #tpu.memory_space<vmem>>, vector<512x64xbf16>
      tpu.vector_store %arg12[%c0_74, %c0_75], %201 {strides = array<i32>} : memref<512x64xbf16, #tpu.memory_space<vmem>>, vector<512x64xbf16>,
    } else {
    }
    %c0 = arith.constant 0 : index
    %c0_1 = arith.constant 0 : index
    %3 = vector.load %arg12[%c0, %c0_1] : memref<512x64xbf16, #tpu.memory_space<vmem>>, vector<512x64xbf16>
    %c0_2 = arith.constant 0 : index
    %c0_3 = arith.constant 0 : index
    %4 = vector.load %arg9[%c0_2, %c0_3] : memref<64x128xbf16, #tpu.memory_space<vmem>>, vector<64x128xbf16>
    %cst = arith.constant dense<0.000000e+00> : vector<512x128xf32>
    %5 = tpu.matmul %3, %4, %cst {dimension_numbers = #tpu.dot_dimension_numbers<[1], [0], [0], [1], [0, 0, 1, 1], [], []>} : vector<512x64xbf16>, vector<64x128xbf16>, vector<512x128xf32> -> vector<512x128xf32>
    %c0_4 = arith.constant 0 : index
    %c0_5 = arith.constant 0 : index
    %6 = vector.load %arg10[%c0_4, %c0_5] : memref<1x128xf32, #tpu.memory_space<vmem>>, vector<1x128xf32>
    %7 = vector.broadcast %6 : vector<1x128xf32> to vector<512x128xf32>
    %8 = arith.addf %5, %7 : vector<512x128xf32>
    %cst_6 = arith.constant dense<0xFF800000> : vector<512xf32>
    %9 = vector.multi_reduction <maximumf>, %8, %cst_6 [1] : vector<512x128xf32> to vector<512xf32>
    %10 = vector.shape_cast %9 : vector<512xf32> to vector<512x1xf32>
    %11 = vector.broadcast %10 : vector<512x1xf32> to vector<512x128xf32>
    %12 = arith.subf %8, %11 : vector<512x128xf32>
    %13 = math.exp %12 : vector<512x128xf32>
    %cst_7 = arith.constant dense<0.000000e+00> : vector<512xf32>
    %14 = vector.multi_reduction <add>, %13, %cst_7 [1] : vector<512x128xf32> to vector<512xf32>
    %15 = vector.shape_cast %14 : vector<512xf32> to vector<512x1xf32>
    %16 = tpu.reciprocal %15 {approx = true} : vector<512x1xf32> -> vector<512x1xf32>
    %17 = vector.broadcast %16 : vector<512x1xf32> to vector<512x128xf32>
    %18 = arith.mulf %13, %17 : vector<512x128xf32>
    %c0_8 = arith.constant 0 : index
    %c0_9 = arith.constant 0 : index
    %19 = vector.load %arg11[%c0_8, %c0_9] : memref<512x128xf32, #tpu.memory_space<vmem>>, vector<512x128xf32>
    tpu.vector_store %arg11[%c0_8, %c0_9], %18 {strides = array<i32>} : memref<512x128xf32, #tpu.memory_space<vmem>>, vector<512x128xf32>,
    return
  }
  func.func @transform_0(%arg0: i32) -> (i32, i32) {
    %c0_i32 = arith.constant 0 : i32
    %c0_i32_0 = arith.constant 0 : i32
    %c0_i32_1 = arith.constant 0 : i32
    return %c0_i32, %c0_i32_0 : i32, i32
  }
  func.func @transform_1(%arg0: i32) -> (i32, i32) {
    %c0_i32 = arith.constant 0 : i32
    %c0_i32_0 = arith.constant 0 : i32
    %c0_i32_1 = arith.constant 0 : i32
    return %c0_i32, %c0_i32_0 : i32, i32
  }
  func.func @transform_2(%arg0: i32) -> (i32, i32) {
    %c0_i32 = arith.constant 0 : i32
    %c0_i32_0 = arith.constant 0 : i32
    %c0_i32_1 = arith.constant 0 : i32
    return %c0_i32, %c0_i32_0 : i32, i32
  }
  func.func @transform_3(%arg0: i32) -> (i32, i32) {
    %c0_i32 = arith.constant 0 : i32
    %c0_i32_0 = arith.constant 0 : i32
    %c0_i32_1 = arith.constant 0 : i32
    return %c0_i32, %c0_i32_0 : i32, i32
  }
  func.func @transform_4(%arg0: i32) -> (i32, i32) {
    %c0_i32 = arith.constant 0 : i32
    %c0_i32_0 = arith.constant 0 : i32
    %c0_i32_1 = arith.constant 0 : i32
    return %c0_i32, %c0_i32_0 : i32, i32
  }
  func.func @transform_5(%arg0: i32) -> (i32, i32) {
    %c0_i32 = arith.constant 0 : i32
    %c0_i32_0 = arith.constant 0 : i32
    %c0_i32_1 = arith.constant 0 : i32
    return %c0_i32, %c0_i32_0 : i32, i32
  }
  func.func @transform_6(%arg0: i32) -> (i32, i32) {
    %c0_i32 = arith.constant 0 : i32
    %c0_i32_0 = arith.constant 0 : i32
    %c0_i32_1 = arith.constant 0 : i32
    return %c0_i32, %c0_i32_0 : i32, i32
  }
  func.func @transform_7(%arg0: i32) -> (i32, i32) {
    %c0_i32 = arith.constant 0 : i32
    %c0_i32_0 = arith.constant 0 : i32
    %c0_i32_1 = arith.constant 0 : i32
    return %c0_i32, %c0_i32_0 : i32, i32
  }
  func.func @transform_8(%arg0: i32) -> (i32, i32) {
    %c0_i32 = arith.constant 0 : i32
    %c0_i32_0 = arith.constant 0 : i32
    return %c0_i32, %arg0 : i32, i32
  }
  func.func @transform_9(%arg0: i32) -> (i32, i32) {
    %c0_i32 = arith.constant 0 : i32
    %c0_i32_0 = arith.constant 0 : i32
    return %c0_i32, %arg0 : i32, i32
  }
  func.func @transform_10(%arg0: i32) -> (i32, i32) {
    %c0_i32 = arith.constant 0 : i32
    %c0_i32_0 = arith.constant 0 : i32
    return %c0_i32, %arg0 : i32, i32
  }
}

</mosaic_0001>

<llo_original>
// kernel: tpu_custom_call.1
$region0: #{tpu_custom_call.1}
  #allocation0 [shape = 'u32[]', space=smem, size = 0x4, offset = 0x4, fixed_abs, tag = 'smem constant byte address 0x4 - core index']
  #allocation1 [shape = 'u32[144,128]{1,0:T(1,128)}', space=vmem, size = 0x12000, scoped, tag = 'internal scratch']
  #allocation2 [shape = 'bf16[512,64]{1,0:T(16,128)(2,1)}', space=vmem, size = 0x20000, scoped, tag = 'scratch operand']
  %s0 = inlined_call_operand.vmem [shape: bf16[512,256], index: 0, kind: input, shape index: {}]
  %s1 = inlined_call_operand.hbm [shape: bf16[512,256], index: 1, kind: input, shape index: {}]
  %s2 = inlined_call_operand.hbm [shape: bf16[512,256], index: 2, kind: input, shape index: {}]
  %s3 = inlined_call_operand.hbm [shape: bf16[512,256], index: 3, kind: input, shape index: {}]
  %s4 = inlined_call_operand.vmem [shape: bf16[512,260], index: 4, kind: input, shape index: {}]
  %s5 = inlined_call_operand.vmem [shape: bf16[1284,128], index: 5, kind: input, shape index: {}]
  %s6 = inlined_call_operand.vmem [shape: bf16[128,320], index: 6, kind: input, shape index: {}]
  %s7 = inlined_call_operand.vmem [shape: f32[16,128], index: 7, kind: input, shape index: {}]
  %s8 = inlined_call_operand.vmem [shape: bf16[64,512], index: 8, kind: input, shape index: {}]
  %s9 = inlined_call_operand.vmem [shape: f32[1,512], index: 9, kind: input, shape index: {}]
  %s10 = inlined_call_operand.hbm [shape: f32[512,512], index: 10, kind: output, shape index: {}]
  %s11 = sld [smem:[#allocation0]]
  $region130: #{tpu_custom_call.1} parent=0
    _
  %s13 = ssub.s32 1, %s11
  %s14 = scalar_select 0, %s13, %s11
  $region1: #{tpu_custom_call.1} parent=0
    #allocation3 [shape = 'u8[262144]{0}', space=vmem, size = 0x40000, scoped, tag = 'input window, operand 1, single buffered']
    #allocation4 [shape = 's32[2]{0}', space=sflag, size = 0x8, scoped, tag = 'scoped memory for tpu_custom_call.1']
    #allocation5 [shape = 's32[2]{0}', space=sflag, size = 0x8, scoped, tag = 'scoped memory for tpu_custom_call.1']
    #allocation6 [shape = 'u8[262144]{0}', space=vmem, size = 0x40000, scoped, tag = 'input window, operand 2, single buffered']
    #allocation7 [shape = 's32[1]{0}', space=sflag, size = 0x4, scoped, tag = 'scoped memory for tpu_custom_call.1']
    #allocation8 [shape = 'u8[262144]{0}', space=vmem, size = 0x40000, scoped, tag = 'input window, operand 3, single buffered']
    #allocation9 [shape = 'u8[32768]{0}', space=vmem, size = 0x8000, scoped, tag = 'input window, operand 8']
    #allocation10 [shape = 'u8[524288]{0}', space=vmem, size = 0x80000, scoped, tag = 'output window, operand 0']
    %15 = vsyncpa [#allocation4], 0
    %16 = vsyncpa [#allocation7], 0
    %17 = vsyncpa [#allocation5], 0
    %s18 = scalar_lea.sflag [#allocation5], 1
    %19 = vsyncpa %s18, 0
    loop: start=0, step=1, limit=6
    $region2: #{tpu_custom_call.1} parent=1 // loop_pre_header
      _
    $region3: #{tpu_custom_call.1} parent=1 // loop_header
      %s21 = sphi 0, %s25
      %p22 = scmp.ge.s32.totalorder %s21, 6
      %s29 = sphi 0, %s29
      %s31 = sphi 0, %s29
      %s32 = sphi 0, %s31
      %s46 = sphi 0, %s32
      %s50 = sphi 0, %s50
      %s52 = sphi 0, %s50
      %s53 = sphi 0, %s52
      %s67 = sphi 0, %s53
      %s71 = sphi 0, %s71
      %s73 = sphi 0, %s71
      %s74 = sphi 0, %s73
      %s88 = sphi 0, %s74
      %s92 = sphi 0, %s92
      %s94 = sphi 0, %s92
      %s95 = sphi 0, %s94
      %s109 = sphi 0, %s95
      %s113 = sphi 0, %s113
      %s115 = sphi 0, %s113
      %s116 = sphi 0, %s115
      %s130 = sphi 0, %s116
      %s134 = sphi 0, %s134
      %s136 = sphi 0, %s134
      %s137 = sphi 0, %s136
      %s151 = sphi 0, %s137
      %s155 = sphi 0, %s155
      %s157 = sphi 0, %s155
      %s158 = sphi 0, %s157
      %s172 = sphi 0, %s158
      %s176 = sphi 0, %s176
      %s178 = sphi 0, %s176
      %s179 = sphi 0, %s178
      %s193 = sphi 0, %s179
      %s199 = sphi 0, %s201
      %s202 = sphi 0, %s199
      %s203 = sphi 0, %s202
      %s219 = sphi 0, %s203
      %s225 = sphi 0, %s227
      %s228 = sphi 0, %s225
      %s229 = sphi 0, %s228
      %s245 = sphi 0, %s229
      %s251 = sphi 0, %s253
      %s254 = sphi 0, %s251
      %s255 = sphi 0, %s254
      %s271 = sphi 0, %s255
    $region4: #{tpu_custom_call.1} parent=1 // loop_header_branch
      %24 = sbr.rel (%p22) target = $region8
    $region5: #{tpu_custom_call.1} parent=1 // loop_body
      %s26 = ssub.s32 %s21, 1
      %s27 = ssub.s32 %s21, 2
      %s28 = sadd.s32 %s21, 1
      %s30 = sadd.s32 %s29, 1
      %p33 = scmp.eq.s32.totalorder %s21, 3
      %p34 = scmp.ne.s32.totalorder %s29, %s31
      %p35 = scmp.eq.s32.totalorder %s21, 0
      %p36 = por %p34, %p35
      %p37 = scmp.ne.s32.totalorder %s29, %s31
      %p38 = scmp.eq.s32.totalorder %s26, 3
      %p39 = por %p37, %p38
      %p40 = scmp.ne.s32.totalorder %s31, %s32
      %p41 = scmp.eq.s32.totalorder %s26, 0
      %p42 = por %p40, %p41
      %p43 = scmp.ne.s32.totalorder %s31, %s32
      %p44 = scmp.eq.s32.totalorder %s27, 3
      %p45 = por %p43, %p44
      %p47 = scmp.ne.s32.totalorder %s32, %s46
      %p48 = scmp.eq.s32.totalorder %s27, 0
      %p49 = por %p47, %p48
      %s51 = sadd.s32 %s50, 1
      %p54 = scmp.eq.s32.totalorder %s21, 3
      %p55 = scmp.ne.s32.totalorder %s50, %s52
      %p56 = scmp.eq.s32.totalorder %s21, 0
      %p57 = por %p55, %p56
      %p58 = scmp.ne.s32.totalorder %s50, %s52
      %p59 = scmp.eq.s32.totalorder %s26, 3
      %p60 = por %p58, %p59
      %p61 = scmp.ne.s32.totalorder %s52, %s53
      %p62 = scmp.eq.s32.totalorder %s26, 0
      %p63 = por %p61, %p62
      %p64 = scmp.ne.s32.totalorder %s52, %s53
      %p65 = scmp.eq.s32.totalorder %s27, 3
      %p66 = por %p64, %p65
      %p68 = scmp.ne.s32.totalorder %s53, %s67
      %p69 = scmp.eq.s32.totalorder %s27, 0
      %p70 = por %p68, %p69
      %s72 = sadd.s32 %s71, 1
      %p75 = scmp.eq.s32.totalorder %s21, 3
      %p76 = scmp.ne.s32.totalorder %s71, %s73
      %p77 = scmp.eq.s32.totalorder %s21, 0
      %p78 = por %p76, %p77
      %p79 = scmp.ne.s32.totalorder %s71, %s73
      %p80 = scmp.eq.s32.totalorder %s26, 3
      %p81 = por %p79, %p80
      %p82 = scmp.ne.s32.totalorder %s73, %s74
      %p83 = scmp.eq.s32.totalorder %s26, 0
      %p84 = por %p82, %p83
      %p85 = scmp.ne.s32.totalorder %s73, %s74
      %p86 = scmp.eq.s32.totalorder %s27, 3
      %p87 = por %p85, %p86
      %p89 = scmp.ne.s32.totalorder %s74, %s88
      %p90 = scmp.eq.s32.totalorder %s27, 0
      %p91 = por %p89, %p90
      %s93 = sadd.s32 %s92, 1
      %p96 = scmp.eq.s32.totalorder %s21, 3
      %p97 = scmp.ne.s32.totalorder %s92, %s94
      %p98 = scmp.eq.s32.totalorder %s21, 0
      %p99 = por %p97, %p98
      %p100 = scmp.ne.s32.totalorder %s92, %s94
      %p101 = scmp.eq.s32.totalorder %s26, 3
      %p102 = por %p100, %p101
      %p103 = scmp.ne.s32.totalorder %s94, %s95
      %p104 = scmp.eq.s32.totalorder %s26, 0
      %p105 = por %p103, %p104
      %p106 = scmp.ne.s32.totalorder %s94, %s95
      %p107 = scmp.eq.s32.totalorder %s27, 3
      %p108 = por %p106, %p107
      %p110 = scmp.ne.s32.totalorder %s95, %s109
      %p111 = scmp.eq.s32.totalorder %s27, 0
      %p112 = por %p110, %p111
      %s114 = sadd.s32 %s113, 1
      %p117 = scmp.eq.s32.totalorder %s21, 3
      %p118 = scmp.ne.s32.totalorder %s113, %s115
      %p119 = scmp.eq.s32.totalorder %s21, 0
      %p120 = por %p118, %p119
      %p121 = scmp.ne.s32.totalorder %s113, %s115
      %p122 = scmp.eq.s32.totalorder %s26, 3
      %p123 = por %p121, %p122
      %p124 = scmp.ne.s32.totalorder %s115, %s116
      %p125 = scmp.eq.s32.totalorder %s26, 0
      %p126 = por %p124, %p125
      %p127 = scmp.ne.s32.totalorder %s115, %s116
      %p128 = scmp.eq.s32.totalorder %s27, 3
      %p129 = por %p127, %p128
      %p131 = scmp.ne.s32.totalorder %s116, %s130
      %p132 = scmp.eq.s32.totalorder %s27, 0
      %p133 = por %p131, %p132
      %s135 = sadd.s32 %s134, 1
      %p138 = scmp.eq.s32.totalorder %s21, 3
      %p139 = scmp.ne.s32.totalorder %s134, %s136
      %p140 = scmp.eq.s32.totalorder %s21, 0
      %p141 = por %p139, %p140
      %p142 = scmp.ne.s32.totalorder %s134, %s136
      %p143 = scmp.eq.s32.totalorder %s26, 3
      %p144 = por %p142, %p143
      %p145 = scmp.ne.s32.totalorder %s136, %s137
      %p146 = scmp.eq.s32.totalorder %s26, 0
      %p147 = por %p145, %p146
      %p148 = scmp.ne.s32.totalorder %s136, %s137
      %p149 = scmp.eq.s32.totalorder %s27, 3
      %p150 = por %p148, %p149
      %p152 = scmp.ne.s32.totalorder %s137, %s151
      %p153 = scmp.eq.s32.totalorder %s27, 0
      %p154 = por %p152, %p153
      %s156 = sadd.s32 %s155, 1
      %p159 = scmp.eq.s32.totalorder %s21, 3
      %p160 = scmp.ne.s32.totalorder %s155, %s157
      %p161 = scmp.eq.s32.totalorder %s21, 0
      %p162 = por %p160, %p161
      %p163 = scmp.ne.s32.totalorder %s155, %s157
      %p164 = scmp.eq.s32.totalorder %s26, 3
      %p165 = por %p163, %p164
      %p166 = scmp.ne.s32.totalorder %s157, %s158
      %p167 = scmp.eq.s32.totalorder %s26, 0
      %p168 = por %p166, %p167
      %p169 = scmp.ne.s32.totalorder %s157, %s158
      %p170 = scmp.eq.s32.totalorder %s27, 3
      %p171 = por %p169, %p170
      %p173 = scmp.ne.s32.totalorder %s158, %s172
      %p174 = scmp.eq.s32.totalorder %s27, 0
      %p175 = por %p173, %p174
      %s177 = sadd.s32 %s176, 1
      %p180 = scmp.eq.s32.totalorder %s21, 3
      %p181 = scmp.ne.s32.totalorder %s176, %s178
      %p182 = scmp.eq.s32.totalorder %s21, 0
      %p183 = por %p181, %p182
      %p184 = scmp.ne.s32.totalorder %s176, %s178
      %p185 = scmp.eq.s32.totalorder %s26, 3
      %p186 = por %p184, %p185
      %p187 = scmp.ne.s32.totalorder %s178, %s179
      %p188 = scmp.eq.s32.totalorder %s26, 0
      %p189 = por %p187, %p188
      %p190 = scmp.ne.s32.totalorder %s178, %s179
      %p191 = scmp.eq.s32.totalorder %s27, 3
      %p192 = por %p190, %p191
      %p194 = scmp.ne.s32.totalorder %s179, %s193
      %p195 = scmp.eq.s32.totalorder %s27, 0
      %p196 = por %p194, %p195
      %s197 = ssub.s32 %s21, %s28
      %p198 = scmp.eq.s32.totalorder %s197, 0
      %s200 = sadd.s32 %s199, 1
      %s201 = scalar_select %p198, %s199, %s200
      %p204 = pneg %p198
      %p205 = scmp.eq.s32.totalorder %s21, 3
      %p206 = por %p204, %p205
      %p207 = scmp.ne.s32.totalorder %s199, %s202
      %p208 = scmp.eq.s32.totalorder %s21, 0
      %p209 = por %p207, %p208
      %p210 = scmp.ne.s32.totalorder %s199, %s202
      %p211 = scmp.eq.s32.totalorder %s26, 3
      %p212 = por %p210, %p211
      %p213 = scmp.ne.s32.totalorder %s202, %s203
      %p214 = scmp.eq.s32.totalorder %s26, 0
      %p215 = por %p213, %p214
      %p216 = scmp.ne.s32.totalorder %s202, %s203
      %p217 = scmp.eq.s32.totalorder %s27, 3
      %p218 = por %p216, %p217
      %p220 = scmp.ne.s32.totalorder %s203, %s219
      %p221 = scmp.eq.s32.totalorder %s27, 0
      %p222 = por %p220, %p221
      %s223 = ssub.s32 %s21, %s28
      %p224 = scmp.eq.s32.totalorder %s223, 0
      %s226 = sadd.s32 %s225, 1
      %s227 = scalar_select %p224, %s225, %s226
      %p230 = pneg %p224
      %p231 = scmp.eq.s32.totalorder %s21, 3
      %p232 = por %p230, %p231
      %p233 = scmp.ne.s32.totalorder %s225, %s228
      %p234 = scmp.eq.s32.totalorder %s21, 0
      %p235 = por %p233, %p234
      %p236 = scmp.ne.s32.totalorder %s225, %s228
      %p237 = scmp.eq.s32.totalorder %s26, 3
      %p238 = por %p236, %p237
      %p239 = scmp.ne.s32.totalorder %s228, %s229
      %p240 = scmp.eq.s32.totalorder %s26, 0
      %p241 = por %p239, %p240
      %p242 = scmp.ne.s32.totalorder %s228, %s229
      %p243 = scmp.eq.s32.totalorder %s27, 3
      %p244 = por %p242, %p243
      %p246 = scmp.ne.s32.totalorder %s229, %s245
      %p247 = scmp.eq.s32.totalorder %s27, 0
      %p248 = por %p246, %p247
      %s249 = ssub.s32 %s21, %s28
      %p250 = scmp.eq.s32.totalorder %s249, 0
      %s252 = sadd.s32 %s251, 1
      %s253 = scalar_select %p250, %s251, %s252
      %p256 = pneg %p250
      %p257 = scmp.eq.s32.totalorder %s21, 3
      %p258 = por %p256, %p257
      %p259 = scmp.ne.s32.totalorder %s251, %s254
      %p260 = scmp.eq.s32.totalorder %s21, 0
      %p261 = por %p259, %p260
      %p262 = scmp.ne.s32.totalorder %s251, %s254
      %p263 = scmp.eq.s32.totalorder %s26, 3
      %p264 = por %p262, %p263
      %p265 = scmp.ne.s32.totalorder %s254, %s255
      %p266 = scmp.eq.s32.totalorder %s26, 0
      %p267 = por %p265, %p266
      %p268 = scmp.ne.s32.totalorder %s254, %s255
      %p269 = scmp.eq.s32.totalorder %s27, 3
      %p270 = por %p268, %p269
      %p272 = scmp.ne.s32.totalorder %s255, %s271
      %p273 = scmp.eq.s32.totalorder %s27, 0
      %p274 = por %p272, %p273
      %p275 = scmp.le.s32.totalorder 1, %s21
      %p276 = scmp.lt.s32.totalorder %s21, 5
      %p277 = pnand %p275, %p276
      %p278 = pneg %p277
      // Predicated region
      $region9: #{tpu_custom_call.1} parent=5 // pred_check
        _
      $region10: #{tpu_custom_call.1} parent=5 // pred_check_branch
        %280 = sbr.rel (%p277) target = $region12
      $region11: #{tpu_custom_call.1} parent=5 // pred_region
        %s281 = ssub.s32 %s21, 1
        // Predicated region
        $region13: #{tpu_custom_call.1} parent=11 // pred_check
          %p282 = pneg %p42
        $region14: #{tpu_custom_call.1} parent=11 // pred_check_branch
          %284 = sbr.rel (%p282) target = $region16
        $region15: #{tpu_custom_call.1} parent=11 // pred_region
          _
        $region16: #{tpu_custom_call.1} parent=11 // pred_fallthru
          _
        // Predicated region
        $region17: #{tpu_custom_call.1} parent=11 // pred_check
          %p285 = pneg %p63
        $region18: #{tpu_custom_call.1} parent=11 // pred_check_branch
          %287 = sbr.rel (%p285) target = $region20
        $region19: #{tpu_custom_call.1} parent=11 // pred_region
          %s289 = ssub.s32 8192, 8192
          %290 = vsyncadd [#allocation4], %s289
          %s291 = sshll.u32 [#allocation3], 4
          %s292 = int_to_ptr.vmem [resolvable:$true] %s291
          %297 = dma.hbm_to_vmem [thread:$0]  %s1, 8192, %s292, [#allocation4], 128, 128, 8
        $region20: #{tpu_custom_call.1} parent=11 // pred_fallthru
          _
        // Predicated region
        $region21: #{tpu_custom_call.1} parent=11 // pred_check
          %p298 = pneg %p84
        $region22: #{tpu_custom_call.1} parent=11 // pred_check_branch
          %300 = sbr.rel (%p298) target = $region24
        $region23: #{tpu_custom_call.1} parent=11 // pred_region
          %s302 = ssub.s32 8192, 8192
          %303 = vsyncadd [#allocation7], %s302
          %s304 = sshll.u32 [#allocation6], 4
          %s305 = int_to_ptr.vmem [resolvable:$true] %s304
          %310 = dma.hbm_to_vmem [thread:$0]  %s2, 8192, %s305, [#allocation7], 128, 128, 8
        $region24: #{tpu_custom_call.1} parent=11 // pred_fallthru
          _
        // Predicated region
        $region25: #{tpu_custom_call.1} parent=11 // pred_check
          %p311 = pneg %p105
        $region26: #{tpu_custom_call.1} parent=11 // pred_check_branch
          %313 = sbr.rel (%p311) target = $region28
        $region27: #{tpu_custom_call.1} parent=11 // pred_region
          %s315 = ssub.s32 8192, 8192
          %316 = vsyncadd [#allocation7], %s315
          %s317 = sshll.u32 [#allocation8], 4
          %s318 = int_to_ptr.vmem [resolvable:$true] %s317
          %323 = dma.hbm_to_vmem [thread:$0]  %s3, 8192, %s318, [#allocation7], 128, 128, 8
        $region28: #{tpu_custom_call.1} parent=11 // pred_fallthru
          _
        // Predicated region
        $region29: #{tpu_custom_call.1} parent=11 // pred_check
          %p324 = pneg %p126
        $region30: #{tpu_custom_call.1} parent=11 // pred_check_branch
          %326 = sbr.rel (%p324) target = $region32
        $region31: #{tpu_custom_call.1} parent=11 // pred_region
          _
        $region32: #{tpu_custom_call.1} parent=11 // pred_fallthru
          _
        // Predicated region
        $region33: #{tpu_custom_call.1} parent=11 // pred_check
          %p327 = pneg %p147
        $region34: #{tpu_custom_call.1} parent=11 // pred_check_branch
          %329 = sbr.rel (%p327) target = $region36
        $region35: #{tpu_custom_call.1} parent=11 // pred_region
          _
        $region36: #{tpu_custom_call.1} parent=11 // pred_fallthru
          _
        // Predicated region
        $region37: #{tpu_custom_call.1} parent=11 // pred_check
          %p330 = pneg %p168
        $region38: #{tpu_custom_call.1} parent=11 // pred_check_branch
          %332 = sbr.rel (%p330) target = $region40
        $region39: #{tpu_custom_call.1} parent=11 // pred_region
          _
        $region40: #{tpu_custom_call.1} parent=11 // pred_fallthru
          _
        // Predicated region
        $region41: #{tpu_custom_call.1} parent=11 // pred_check
          %p333 = pneg %p189
        $region42: #{tpu_custom_call.1} parent=11 // pred_check_branch
          %335 = sbr.rel (%p333) target = $region44
        $region43: #{tpu_custom_call.1} parent=11 // pred_region
          _
        $region44: #{tpu_custom_call.1} parent=11 // pred_fallthru
          _
      $region12: #{tpu_custom_call.1} parent=5 // pred_fallthru
        _
      %p336 = scmp.lt.s32.totalorder %s21, 4
      // Predicated region
      $region45: #{tpu_custom_call.1} parent=5 // pred_check
        %p337 = pneg %p336
      $region46: #{tpu_custom_call.1} parent=5 // pred_check_branch
        %339 = sbr.rel (%p337) target = $region48
      $region47: #{tpu_custom_call.1} parent=5 // pred_region
        // Predicated region
        $region49: #{tpu_custom_call.1} parent=47 // pred_check
          %p340 = pneg %p209
        $region50: #{tpu_custom_call.1} parent=47 // pred_check_branch
          %342 = sbr.rel (%p340) target = $region52
        $region51: #{tpu_custom_call.1} parent=47 // pred_region
          %s343 = sand.u32 %s199, 1
          %s344 = sand.u32 %s199, 1
          %s345 = smul.addr %s344, 32
          %s346 = scalar_lea.vmem [#allocation9], %s345
          %s347 = smul.addr %s21, 4
          %s348 = scalar_lea.vmem %s8, %s347
          // Predicated region
          $region53: #{tpu_custom_call.1} parent=51 // pred_check
            _
          $region54: #{tpu_custom_call.1} parent=51 // pred_check_branch
            %350 = sbr.rel (0) target = $region56
          $region55: #{tpu_custom_call.1} parent=51 // pred_region
            // Predicated region
            $region57: #{tpu_custom_call.1} parent=55 // pred_check
              _
            $region58: #{tpu_custom_call.1} parent=55 // pred_check_branch
              %352 = sbr.rel target = $region60
            $region59: #{tpu_custom_call.1} parent=55 // pred_region
              // Predicated region
              $region72: #{tpu_custom_call.1} parent=59 // pred_check
                _
              $region73: #{tpu_custom_call.1} parent=59 // pred_check_branch
                %381 = sbr.rel (0) target = $region75
              $region74: #{tpu_custom_call.1} parent=59 // pred_region
                loop: start=0, step=1, limit=1
                $region76: #{tpu_custom_call.1} parent=74 // loop_pre_header
                  _
                $region77: #{tpu_custom_call.1} parent=74 // loop_header
                  %s383 = sphi 0, %s387
                  %p384 = scmp.ge.s32.totalorder %s383, 1
                  %s388 = sphi %s348, %s348
                  %s389 = sphi %s346, %s346
                $region78: #{tpu_custom_call.1} parent=74 // loop_header_branch
                  %386 = sbr.rel (%p384) target = $region82
                $region79: #{tpu_custom_call.1} parent=74 // loop_body
                  _
                $region80: #{tpu_custom_call.1} parent=74 // loop_footer
                  %s387 = sadd.s32 1, %s383
                $region81: #{tpu_custom_call.1} parent=74 // loop_footer_branch
                  %382 = sbr.rel target = $region77
                $region82: #{tpu_custom_call.1} parent=74 // loop_exit
                  _
                loop: start=0, step=1, limit=1
                $region83: #{tpu_custom_call.1} parent=74 // loop_pre_header
                  _
                $region84: #{tpu_custom_call.1} parent=74 // loop_header
                  %s392 = sphi 0, %s396
                  %p393 = scmp.ge.s32.totalorder %s392, 1
                  %s397 = sphi %s348, %s348
                  %s398 = sphi %s346, %s346
                $region85: #{tpu_custom_call.1} parent=74 // loop_header_branch
                  %395 = sbr.rel (%p393) target = $region89
                $region86: #{tpu_custom_call.1} parent=74 // loop_body
                  %v399 = vld [vmem:[%s397] sm:$0xf]
                  %400 = vst [vmem:[%s398] sm:$0xf] %v399
                  %v401 = vld [vmem:[%s397 + $0x10] sm:$0xf]
                  %402 = vst [vmem:[%s398 + $0x4] sm:$0xf] %v401
                  %v403 = vld [vmem:[%s397 + $0x20] sm:$0xf]
                  %404 = vst [vmem:[%s398 + $0x8] sm:$0xf] %v403
                  %v405 = vld [vmem:[%s397 + $0x30] sm:$0xf]
                  %406 = vst [vmem:[%s398 + $0xc] sm:$0xf] %v405
                  %v407 = vld [vmem:[%s397 + $0x40] sm:$0xf]
                  %408 = vst [vmem:[%s398 + $0x10] sm:$0xf] %v407
                  %v409 = vld [vmem:[%s397 + $0x50] sm:$0xf]
                  %410 = vst [vmem:[%s398 + $0x14] sm:$0xf] %v409
                  %v411 = vld [vmem:[%s397 + $0x60] sm:$0xf]
                  %412 = vst [vmem:[%s398 + $0x18] sm:$0xf] %v411
                  %v413 = vld [vmem:[%s397 + $0x70] sm:$0xf]
                  %414 = vst [vmem:[%s398 + $0x1c] sm:$0xf] %v413
                $region87: #{tpu_custom_call.1} parent=74 // loop_footer
                  %s396 = sadd.s32 1, %s392
                $region88: #{tpu_custom_call.1} parent=74 // loop_footer_branch
                  %391 = sbr.rel target = $region84
                $region89: #{tpu_custom_call.1} parent=74 // loop_exit
                  _
              $region75: #{tpu_custom_call.1} parent=59 // pred_fallthru
                _
            $region60: #{tpu_custom_call.1} parent=55 // pred_fallthru
              _
            // Predicated region
            $region61: #{tpu_custom_call.1} parent=55 // pred_check
              _
            $region62: #{tpu_custom_call.1} parent=55 // pred_check_branch
              %354 = sbr.rel (0) target = $region64
            $region63: #{tpu_custom_call.1} parent=55 // pred_region
              loop: start=0, step=1, limit=1
              $region65: #{tpu_custom_call.1} parent=63 // loop_pre_header
                _
              $region66: #{tpu_custom_call.1} parent=63 // loop_header
                %s357 = sphi 0, %s361
                %p358 = scmp.ge.s32.totalorder %s357, 1
                %s362 = sphi %s348, %s348
                %s363 = sphi %s346, %s346
              $region67: #{tpu_custom_call.1} parent=63 // loop_header_branch
                %360 = sbr.rel (%p358) target = $region71
              $region68: #{tpu_custom_call.1} parent=63 // loop_body
                %v364 = vld [vmem:[%s362] sm:$0xf]
                %365 = vst [vmem:[%s363] sm:$0xf] %v364
                %v366 = vld [vmem:[%s362 + $0x10] sm:$0xf]
                %367 = vst [vmem:[%s363 + $0x4] sm:$0xf] %v366
                %v368 = vld [vmem:[%s362 + $0x20] sm:$0xf]
                %369 = vst [vmem:[%s363 + $0x8] sm:$0xf] %v368
                %v370 = vld [vmem:[%s362 + $0x30] sm:$0xf]
                %371 = vst [vmem:[%s363 + $0xc] sm:$0xf] %v370
                %v372 = vld [vmem:[%s362 + $0x40] sm:$0xf]
                %373 = vst [vmem:[%s363 + $0x10] sm:$0xf] %v372
                %v374 = vld [vmem:[%s362 + $0x50] sm:$0xf]
                %375 = vst [vmem:[%s363 + $0x14] sm:$0xf] %v374
                %v376 = vld [vmem:[%s362 + $0x60] sm:$0xf]
                %377 = vst [vmem:[%s363 + $0x18] sm:$0xf] %v376
                %v378 = vld [vmem:[%s362 + $0x70] sm:$0xf]
                %379 = vst [vmem:[%s363 + $0x1c] sm:$0xf] %v378
              $region69: #{tpu_custom_call.1} parent=63 // loop_footer
                %s361 = sadd.s32 1, %s357
              $region70: #{tpu_custom_call.1} parent=63 // loop_footer_branch
                %356 = sbr.rel target = $region66
              $region71: #{tpu_custom_call.1} parent=63 // loop_exit
                _
            $region64: #{tpu_custom_call.1} parent=55 // pred_fallthru
              _
          $region56: #{tpu_custom_call.1} parent=51 // pred_fallthru
            _
          %415 = vnop
        $region52: #{tpu_custom_call.1} parent=47 // pred_fallthru
          _
        // Predicated region
        $region90: #{tpu_custom_call.1} parent=47 // pred_check
          %p416 = pneg %p235
        $region91: #{tpu_custom_call.1} parent=47 // pred_check_branch
          %418 = sbr.rel (%p416) target = $region93
        $region92: #{tpu_custom_call.1} parent=47 // pred_region
          %p419 = scmp.lt.s32.totalorder %s21, 3
          %s420 = scalar_select %p419, %s21, 3
          %s421 = scalar_lea.vmem %s9, %s420
        $region93: #{tpu_custom_call.1} parent=47 // pred_fallthru
          _
      $region48: #{tpu_custom_call.1} parent=5 // pred_fallthru
        _
      %p422 = scmp.le.s32.totalorder 1, %s21
      %p423 = scmp.lt.s32.totalorder %s21, 5
      %p424 = pnand %p422, %p423
      %p425 = pneg %p424
      // Predicated region
      $region94: #{tpu_custom_call.1} parent=5 // pred_check
        _
      $region95: #{tpu_custom_call.1} parent=5 // pred_check_branch
        %427 = sbr.rel (%p424) target = $region97
      $region96: #{tpu_custom_call.1} parent=5 // pred_region
        %s428 = ssub.s32 %s21, 1
        // Predicated region
        $region98: #{tpu_custom_call.1} parent=96 // pred_check
          %p429 = pneg %p63
        $region99: #{tpu_custom_call.1} parent=96 // pred_check_branch
          %431 = sbr.rel (%p429) target = $region101
        $region100: #{tpu_custom_call.1} parent=96 // pred_region
          %432 = dma.done [#allocation4], 8192
        $region101: #{tpu_custom_call.1} parent=96 // pred_fallthru
          _
        // Predicated region
        $region102: #{tpu_custom_call.1} parent=96 // pred_check
          %p433 = pneg %p84
        $region103: #{tpu_custom_call.1} parent=96 // pred_check_branch
          %435 = sbr.rel (%p433) target = $region105
        $region104: #{tpu_custom_call.1} parent=96 // pred_region
          %436 = dma.done [#allocation7], 8192
        $region105: #{tpu_custom_call.1} parent=96 // pred_fallthru
          _
        // Predicated region
        $region106: #{tpu_custom_call.1} parent=96 // pred_check
          %p437 = pneg %p105
        $region107: #{tpu_custom_call.1} parent=96 // pred_check_branch
          %439 = sbr.rel (%p437) target = $region109
        $region108: #{tpu_custom_call.1} parent=96 // pred_region
          %440 = dma.done [#allocation7], 8192
        $region109: #{tpu_custom_call.1} parent=96 // pred_fallthru
          _
        %s441 = sand.u32 %s202, 1
        %s442 = sand.u32 %s202, 1
        %s443 = smul.addr %s442, 32
        %s444 = scalar_lea.vmem [#allocation9], %s443
        // Predicated region
        $region110: #{tpu_custom_call.1} parent=96 // pred_check
          %p445 = pneg %p215
        $region111: #{tpu_custom_call.1} parent=96 // pred_check_branch
          %447 = sbr.rel (%p445) target = $region113
        $region112: #{tpu_custom_call.1} parent=96 // pred_region
          _
        $region113: #{tpu_custom_call.1} parent=96 // pred_fallthru
          _
        %p448 = pneg %p42
        %p449 = pneg %p39
        %p450 = pneg %p63
        %p451 = pneg %p60
        %p452 = pneg %p84
        %p453 = pneg %p81
        %p454 = pneg %p105
        %p455 = pneg %p102
        %p456 = pneg %p126
        %p457 = pneg %p123
        %p458 = pneg %p147
        %p459 = pneg %p144
        %p460 = pneg %p168
        %p461 = pneg %p165
        %p462 = pneg %p189
        %p463 = pneg %p186
        %s464 = sand.u32 %s202, 1
        %s465 = sand.u32 %s202, 1
        %s466 = smul.addr %s465, 32
        %s467 = scalar_lea.vmem [#allocation9], %s466
        %p468 = pneg %p215
        %p469 = pneg %p212
        %p470 = scmp.lt.s32.totalorder %s26, 3
        %s471 = scalar_select %p470, %s26, 3
        %s472 = scalar_lea.vmem %s9, %s471
        %p473 = pneg %p241
        %p474 = pneg %p238
        %p475 = pneg %p267
        %p476 = pneg %p264
        %s477 = sand.u32 %s254, 1
        %s478 = scalar_lea.sflag [#allocation5], %s477
        %s479 = sand.u32 %s254, 1
        %s480 = smul.addr %s479, 512
        %s481 = scalar_lea.vmem [#allocation10], %s480
        %p482 = scmp.lt.s32.totalorder %s26, 3
        %s483 = scalar_select %p482, %s26, 3
        %s484 = scalar_lea.vmem %s9, %s483
        %p486 = scmp.eq.s32.totalorder %s26, 0
        // Predicated region
        $region114: #{tpu_custom_call.1} parent=96 // pred_check
          %p487 = pneg %p486
        $region115: #{tpu_custom_call.1} parent=96 // pred_check_branch
          %489 = sbr.rel (%p487) target = $region117
        $region116: #{tpu_custom_call.1} parent=96 // pred_region
          %v490 = vld [vmem:[%s7] sm:$0xff]
          %v491 = vld [vmem:[%s7 + $0x8] sm:$0xff]
          %v492 = vlaneseq
          %v493 = vand.u32 %v492, 127
          %vm494 = vcmp.ge.s32.totalorder %v493, 64
          %v495 = vsel %vm494, 0.01, 1.0
          %v496 = vld [vmem:[%s0] sm:$0xff]
          %v497 = vld [vmem:[%s0 + $0x8] sm:$0xff]
          %v498 = vld [vmem:[%s0 + $0x10] sm:$0xff]
          %v499 = vld [vmem:[%s0 + $0x18] sm:$0xff]
          %v500 = vld [vmem:[%s0 + $0x20] sm:$0xff]
          %v501 = vld [vmem:[%s0 + $0x28] sm:$0xff]
          %v502 = vld [vmem:[%s0 + $0x30] sm:$0xff]
          %v503 = vld [vmem:[%s0 + $0x38] sm:$0xff]
          %v504 = vld [vmem:[%s0 + $0x40] sm:$0xff]
          %v505 = vld [vmem:[%s0 + $0x48] sm:$0xff]
          %v506 = vld [vmem:[%s0 + $0x50] sm:$0xff]
          %v507 = vld [vmem:[%s0 + $0x58] sm:$0xff]
          %v508 = vld [vmem:[%s0 + $0x60] sm:$0xff]
          %v509 = vld [vmem:[%s0 + $0x68] sm:$0xff]
          %v510 = vld [vmem:[%s0 + $0x70] sm:$0xff]
          %v511 = vld [vmem:[%s0 + $0x78] sm:$0xff]
          %v512 = vld [vmem:[%s0 + $0x80] sm:$0xff]
          %v513 = vld [vmem:[%s0 + $0x88] sm:$0xff]
          %v514 = vld [vmem:[%s0 + $0x90] sm:$0xff]
          %v515 = vld [vmem:[%s0 + $0x98] sm:$0xff]
          %v516 = vld [vmem:[%s0 + $0xa0] sm:$0xff]
          %v517 = vld [vmem:[%s0 + $0xa8] sm:$0xff]
          %v518 = vld [vmem:[%s0 + $0xb0] sm:$0xff]
          %v519 = vld [vmem:[%s0 + $0xb8] sm:$0xff]
          %v520 = vld [vmem:[%s0 + $0xc0] sm:$0xff]
          %v521 = vld [vmem:[%s0 + $0xc8] sm:$0xff]
          %v522 = vld [vmem:[%s0 + $0xd0] sm:$0xff]
          %v523 = vld [vmem:[%s0 + $0xd8] sm:$0xff]
          %v524 = vld [vmem:[%s0 + $0xe0] sm:$0xff]
          %v525 = vld [vmem:[%s0 + $0xe8] sm:$0xff]
          %v526 = vld [vmem:[%s0 + $0xf0] sm:$0xff]
          %v527 = vld [vmem:[%s0 + $0xf8] sm:$0xff]
          %v528 = vld [vmem:[%s0 + $0x100] sm:$0xff]
          %v529 = vld [vmem:[%s0 + $0x108] sm:$0xff]
          %v530 = vld [vmem:[%s0 + $0x110] sm:$0xff]
          %v531 = vld [vmem:[%s0 + $0x118] sm:$0xff]
          %v532 = vld [vmem:[%s0 + $0x120] sm:$0xff]
          %v533 = vld [vmem:[%s0 + $0x128] sm:$0xff]
          %v534 = vld [vmem:[%s0 + $0x130] sm:$0xff]
          %v535 = vld [vmem:[%s0 + $0x138] sm:$0xff]
          %v536 = vld [vmem:[%s0 + $0x140] sm:$0xff]
          %v537 = vld [vmem:[%s0 + $0x148] sm:$0xff]
          %v538 = vld [vmem:[%s0 + $0x150] sm:$0xff]
          %v539 = vld [vmem:[%s0 + $0x158] sm:$0xff]
          %v540 = vld [vmem:[%s0 + $0x160] sm:$0xff]
          %v541 = vld [vmem:[%s0 + $0x168] sm:$0xff]
          %v542 = vld [vmem:[%s0 + $0x170] sm:$0xff]
          %v543 = vld [vmem:[%s0 + $0x178] sm:$0xff]
          %v544 = vld [vmem:[%s0 + $0x180] sm:$0xff]
          %v545 = vld [vmem:[%s0 + $0x188] sm:$0xff]
          %v546 = vld [vmem:[%s0 + $0x190] sm:$0xff]
          %v547 = vld [vmem:[%s0 + $0x198] sm:$0xff]
          %v548 = vld [vmem:[%s0 + $0x1a0] sm:$0xff]
          %v549 = vld [vmem:[%s0 + $0x1a8] sm:$0xff]
          %v550 = vld [vmem:[%s0 + $0x1b0] sm:$0xff]
          %v551 = vld [vmem:[%s0 + $0x1b8] sm:$0xff]
          %v552 = vld [vmem:[%s0 + $0x1c0] sm:$0xff]
          %v553 = vld [vmem:[%s0 + $0x1c8] sm:$0xff]
          %v554 = vld [vmem:[%s0 + $0x1d0] sm:$0xff]
          %v555 = vld [vmem:[%s0 + $0x1d8] sm:$0xff]
          %v556 = vld [vmem:[%s0 + $0x1e0] sm:$0xff]
          %v557 = vld [vmem:[%s0 + $0x1e8] sm:$0xff]
          %v558 = vld [vmem:[%s0 + $0x1f0] sm:$0xff]
          %v559 = vld [vmem:[%s0 + $0x1f8] sm:$0xff]
          %v560 = vld [vmem:[%s5] sm:$0xf]
          %v561 = vld [vmem:[%s5 + $0x4] sm:$0xf]
          %v562 = vld [vmem:[%s5 + $0x8] sm:$0xf]
          %v563 = vld [vmem:[%s5 + $0xc] sm:$0xf]
          %v564 = vld [vmem:[%s5 + $0x10] sm:$0xf]
          %v565 = vld [vmem:[%s5 + $0x14] sm:$0xf]
          %v566 = vld [vmem:[%s5 + $0x18] sm:$0xf]
          %v567 = vld [vmem:[%s5 + $0x1c] sm:$0xf]
          %v568 = vld [vmem:[%s5 + $0x20] sm:$0xf]
          %v569 = vld [vmem:[%s5 + $0x24] sm:$0xf]
          %v570 = vld [vmem:[%s5 + $0x28] sm:$0xf]
          %v571 = vld [vmem:[%s5 + $0x2c] sm:$0xf]
          %v572 = vld [vmem:[%s5 + $0x30] sm:$0xf]
          %v573 = vld [vmem:[%s5 + $0x34] sm:$0xf]
          %v574 = vld [vmem:[%s5 + $0x38] sm:$0xf]
          %v575 = vld [vmem:[%s5 + $0x3c] sm:$0xf]
          %v576 = vld [vmem:[%s5 + $0x40] sm:$0xf]
          %v577 = vld [vmem:[%s5 + $0x44] sm:$0xf]
          %v578 = vld [vmem:[%s5 + $0x48] sm:$0xf]
          %v579 = vld [vmem:[%s5 + $0x4c] sm:$0xf]
          %v580 = vld [vmem:[%s5 + $0x50] sm:$0xf]
          %v581 = vld [vmem:[%s5 + $0x54] sm:$0xf]
          %v582 = vld [vmem:[%s5 + $0x58] sm:$0xf]
          %v583 = vld [vmem:[%s5 + $0x5c] sm:$0xf]
          %v584 = vld [vmem:[%s5 + $0x60] sm:$0xf]
          %v585 = vld [vmem:[%s5 + $0x64] sm:$0xf]
          %v586 = vld [vmem:[%s5 + $0x68] sm:$0xf]
          %v587 = vld [vmem:[%s5 + $0x6c] sm:$0xf]
          %v588 = vld [vmem:[%s5 + $0x70] sm:$0xf]
          %v589 = vld [vmem:[%s5 + $0x74] sm:$0xf]
          %v590 = vld [vmem:[%s5 + $0x78] sm:$0xf]
          %v591 = vld [vmem:[%s5 + $0x7c] sm:$0xf]
          %v592 = vld [vmem:[#allocation3] sm:$0xff]
          %v593 = vld [vmem:[#allocation3 + $0x8] sm:$0xff]
          %v594 = vld [vmem:[#allocation3 + $0x10] sm:$0xff]
          %v595 = vld [vmem:[#allocation3 + $0x18] sm:$0xff]
          %v596 = vld [vmem:[#allocation3 + $0x20] sm:$0xff]
          %v597 = vld [vmem:[#allocation3 + $0x28] sm:$0xff]
          %v598 = vld [vmem:[#allocation3 + $0x30] sm:$0xff]
          %v599 = vld [vmem:[#allocation3 + $0x38] sm:$0xff]
          %v600 = vld [vmem:[#allocation3 + $0x40] sm:$0xff]
          %v601 = vld [vmem:[#allocation3 + $0x48] sm:$0xff]
          %v602 = vld [vmem:[#allocation3 + $0x50] sm:$0xff]
          %v603 = vld [vmem:[#allocation3 + $0x58] sm:$0xff]
          %v604 = vld [vmem:[#allocation3 + $0x60] sm:$0xff]
          %v605 = vld [vmem:[#allocation3 + $0x68] sm:$0xff]
          %v606 = vld [vmem:[#allocation3 + $0x70] sm:$0xff]
          %v607 = vld [vmem:[#allocation3 + $0x78] sm:$0xff]
          %v608 = vld [vmem:[#allocation3 + $0x80] sm:$0xff]
          %v609 = vld [vmem:[#allocation3 + $0x88] sm:$0xff]
          %v610 = vld [vmem:[#allocation3 + $0x90] sm:$0xff]
          %v611 = vld [vmem:[#allocation3 + $0x98] sm:$0xff]
          %v612 = vld [vmem:[#allocation3 + $0xa0] sm:$0xff]
          %v613 = vld [vmem:[#allocation3 + $0xa8] sm:$0xff]
          %v614 = vld [vmem:[#allocation3 + $0xb0] sm:$0xff]
          %v615 = vld [vmem:[#allocation3 + $0xb8] sm:$0xff]
          %v616 = vld [vmem:[#allocation3 + $0xc0] sm:$0xff]
          %v617 = vld [vmem:[#allocation3 + $0xc8] sm:$0xff]
          %v618 = vld [vmem:[#allocation3 + $0xd0] sm:$0xff]
          %v619 = vld [vmem:[#allocation3 + $0xd8] sm:$0xff]
          %v620 = vld [vmem:[#allocation3 + $0xe0] sm:$0xff]
          %v621 = vld [vmem:[#allocation3 + $0xe8] sm:$0xff]
          %v622 = vld [vmem:[#allocation3 + $0xf0] sm:$0xff]
          %v623 = vld [vmem:[#allocation3 + $0xf8] sm:$0xff]
          %v624 = vld [vmem:[#allocation3 + $0x100] sm:$0xff]
          %v625 = vld [vmem:[#allocation3 + $0x108] sm:$0xff]
          %v626 = vld [vmem:[#allocation3 + $0x110] sm:$0xff]
          %v627 = vld [vmem:[#allocation3 + $0x118] sm:$0xff]
          %v628 = vld [vmem:[#allocation3 + $0x120] sm:$0xff]
          %v629 = vld [vmem:[#allocation3 + $0x128] sm:$0xff]
          %v630 = vld [vmem:[#allocation3 + $0x130] sm:$0xff]
          %v631 = vld [vmem:[#allocation3 + $0x138] sm:$0xff]
          %v632 = vld [vmem:[#allocation3 + $0x140] sm:$0xff]
          %v633 = vld [vmem:[#allocation3 + $0x148] sm:$0xff]
          %v634 = vld [vmem:[#allocation3 + $0x150] sm:$0xff]
          %v635 = vld [vmem:[#allocation3 + $0x158] sm:$0xff]
          %v636 = vld [vmem:[#allocation3 + $0x160] sm:$0xff]
          %v637 = vld [vmem:[#allocation3 + $0x168] sm:$0xff]
          %v638 = vld [vmem:[#allocation3 + $0x170] sm:$0xff]
          %v639 = vld [vmem:[#allocation3 + $0x178] sm:$0xff]
          %v640 = vld [vmem:[#allocation3 + $0x180] sm:$0xff]
          %v641 = vld [vmem:[#allocation3 + $0x188] sm:$0xff]
          %v642 = vld [vmem:[#allocation3 + $0x190] sm:$0xff]
          %v643 = vld [vmem:[#allocation3 + $0x198] sm:$0xff]
          %v644 = vld [vmem:[#allocation3 + $0x1a0] sm:$0xff]
          %v645 = vld [vmem:[#allocation3 + $0x1a8] sm:$0xff]
          %v646 = vld [vmem:[#allocation3 + $0x1b0] sm:$0xff]
          %v647 = vld [vmem:[#allocation3 + $0x1b8] sm:$0xff]
          %v648 = vld [vmem:[#allocation3 + $0x1c0] sm:$0xff]
          %v649 = vld [vmem:[#allocation3 + $0x1c8] sm:$0xff]
          %v650 = vld [vmem:[#allocation3 + $0x1d0] sm:$0xff]
          %v651 = vld [vmem:[#allocation3 + $0x1d8] sm:$0xff]
          %v652 = vld [vmem:[#allocation3 + $0x1e0] sm:$0xff]
          %v653 = vld [vmem:[#allocation3 + $0x1e8] sm:$0xff]
          %v654 = vld [vmem:[#allocation3 + $0x1f0] sm:$0xff]
          %v655 = vld [vmem:[#allocation3 + $0x1f8] sm:$0xff]
          %v656 = vld [vmem:[%s5 + $0x80] sm:$0xf]
          %v657 = vld [vmem:[%s5 + $0x84] sm:$0xf]
          %v658 = vld [vmem:[%s5 + $0x88] sm:$0xf]
          %v659 = vld [vmem:[%s5 + $0x8c] sm:$0xf]
          %v660 = vld [vmem:[%s5 + $0x90] sm:$0xf]
          %v661 = vld [vmem:[%s5 + $0x94] sm:$0xf]
          %v662 = vld [vmem:[%s5 + $0x98] sm:$0xf]
          %v663 = vld [vmem:[%s5 + $0x9c] sm:$0xf]
          %v664 = vld [vmem:[%s5 + $0xa0] sm:$0xf]
          %v665 = vld [vmem:[%s5 + $0xa4] sm:$0xf]
          %v666 = vld [vmem:[%s5 + $0xa8] sm:$0xf]
          %v667 = vld [vmem:[%s5 + $0xac] sm:$0xf]
          %v668 = vld [vmem:[%s5 + $0xb0] sm:$0xf]
          %v669 = vld [vmem:[%s5 + $0xb4] sm:$0xf]
          %v670 = vld [vmem:[%s5 + $0xb8] sm:$0xf]
          %v671 = vld [vmem:[%s5 + $0xbc] sm:$0xf]
          %v672 = vld [vmem:[%s5 + $0xc0] sm:$0xf]
          %v673 = vld [vmem:[%s5 + $0xc4] sm:$0xf]
          %v674 = vld [vmem:[%s5 + $0xc8] sm:$0xf]
          %v675 = vld [vmem:[%s5 + $0xcc] sm:$0xf]
          %v676 = vld [vmem:[%s5 + $0xd0] sm:$0xf]
          %v677 = vld [vmem:[%s5 + $0xd4] sm:$0xf]
          %v678 = vld [vmem:[%s5 + $0xd8] sm:$0xf]
          %v679 = vld [vmem:[%s5 + $0xdc] sm:$0xf]
          %v680 = vld [vmem:[%s5 + $0xe0] sm:$0xf]
          %v681 = vld [vmem:[%s5 + $0xe4] sm:$0xf]
          %v682 = vld [vmem:[%s5 + $0xe8] sm:$0xf]
          %v683 = vld [vmem:[%s5 + $0xec] sm:$0xf]
          %v684 = vld [vmem:[%s5 + $0xf0] sm:$0xf]
          %v685 = vld [vmem:[%s5 + $0xf4] sm:$0xf]
          %v686 = vld [vmem:[%s5 + $0xf8] sm:$0xf]
          %v687 = vld [vmem:[%s5 + $0xfc] sm:$0xf]
          %v752 = vunpack.c.l.b16 %v592
          %v753 = vunpack.c.h.b16 %v592
          %v754 = vunpack.c.l.b16 %v593
          %v755 = vunpack.c.h.b16 %v593
          %v756 = vunpack.c.l.b16 %v594
          %v757 = vunpack.c.h.b16 %v594
          %v758 = vunpack.c.l.b16 %v595
          %v759 = vunpack.c.h.b16 %v595
          %v760 = vunpack.c.l.b16 %v596
          %v761 = vunpack.c.h.b16 %v596
          %v762 = vunpack.c.l.b16 %v597
          %v763 = vunpack.c.h.b16 %v597
          %v764 = vunpack.c.l.b16 %v598
          %v765 = vunpack.c.h.b16 %v598
          %v766 = vunpack.c.l.b16 %v599
          %v767 = vunpack.c.h.b16 %v599
          %v768 = vunpack.c.l.b16 %v600
          %v769 = vunpack.c.h.b16 %v600
          %v770 = vunpack.c.l.b16 %v601
          %v771 = vunpack.c.h.b16 %v601
          %v772 = vunpack.c.l.b16 %v602
          %v773 = vunpack.c.h.b16 %v602
          %v774 = vunpack.c.l.b16 %v603
          %v775 = vunpack.c.h.b16 %v603
          %v776 = vunpack.c.l.b16 %v604
          %v777 = vunpack.c.h.b16 %v604
          %v778 = vunpack.c.l.b16 %v605
          %v779 = vunpack.c.h.b16 %v605
          %v780 = vunpack.c.l.b16 %v606
          %v781 = vunpack.c.h.b16 %v606
          %v782 = vunpack.c.l.b16 %v607
          %v783 = vunpack.c.h.b16 %v607
          %v784 = vunpack.c.l.b16 %v608
          %v785 = vunpack.c.h.b16 %v608
          %v786 = vunpack.c.l.b16 %v609
          %v787 = vunpack.c.h.b16 %v609
          %v788 = vunpack.c.l.b16 %v610
          %v789 = vunpack.c.h.b16 %v610
          %v790 = vunpack.c.l.b16 %v611
          %v791 = vunpack.c.h.b16 %v611
          %v792 = vunpack.c.l.b16 %v612
          %v793 = vunpack.c.h.b16 %v612
          %v794 = vunpack.c.l.b16 %v613
          %v795 = vunpack.c.h.b16 %v613
          %v796 = vunpack.c.l.b16 %v614
          %v797 = vunpack.c.h.b16 %v614
          %v798 = vunpack.c.l.b16 %v615
          %v799 = vunpack.c.h.b16 %v615
          %v800 = vunpack.c.l.b16 %v616
          %v801 = vunpack.c.h.b16 %v616
          %v802 = vunpack.c.l.b16 %v617
          %v803 = vunpack.c.h.b16 %v617
          %v804 = vunpack.c.l.b16 %v618
          %v805 = vunpack.c.h.b16 %v618
          %v806 = vunpack.c.l.b16 %v619
          %v807 = vunpack.c.h.b16 %v619
          %v808 = vunpack.c.l.b16 %v620
          %v809 = vunpack.c.h.b16 %v620
          %v810 = vunpack.c.l.b16 %v621
          %v811 = vunpack.c.h.b16 %v621
          %v812 = vunpack.c.l.b16 %v622
          %v813 = vunpack.c.h.b16 %v622
          %v814 = vunpack.c.l.b16 %v623
          %v815 = vunpack.c.h.b16 %v623
          %v816 = vunpack.c.l.b16 %v624
          %v817 = vunpack.c.h.b16 %v624
          %v818 = vunpack.c.l.b16 %v625
          %v819 = vunpack.c.h.b16 %v625
          %v820 = vunpack.c.l.b16 %v626
          %v821 = vunpack.c.h.b16 %v626
          %v822 = vunpack.c.l.b16 %v627
          %v823 = vunpack.c.h.b16 %v627
          %v824 = vunpack.c.l.b16 %v628
          %v825 = vunpack.c.h.b16 %v628
          %v826 = vunpack.c.l.b16 %v629
          %v827 = vunpack.c.h.b16 %v629
          %v828 = vunpack.c.l.b16 %v630
          %v829 = vunpack.c.h.b16 %v630
          %v830 = vunpack.c.l.b16 %v631
          %v831 = vunpack.c.h.b16 %v631
          %v832 = vunpack.c.l.b16 %v632
          %v833 = vunpack.c.h.b16 %v632
          %v834 = vunpack.c.l.b16 %v633
          %v835 = vunpack.c.h.b16 %v633
          %v836 = vunpack.c.l.b16 %v634
          %v837 = vunpack.c.h.b16 %v634
          %v838 = vunpack.c.l.b16 %v635
          %v839 = vunpack.c.h.b16 %v635
          %v840 = vunpack.c.l.b16 %v636
          %v841 = vunpack.c.h.b16 %v636
          %v842 = vunpack.c.l.b16 %v637
          %v843 = vunpack.c.h.b16 %v637
          %v844 = vunpack.c.l.b16 %v638
          %v845 = vunpack.c.h.b16 %v638
          %v846 = vunpack.c.l.b16 %v639
          %v847 = vunpack.c.h.b16 %v639
          %v848 = vunpack.c.l.b16 %v640
          %v849 = vunpack.c.h.b16 %v640
          %v850 = vunpack.c.l.b16 %v641
          %v851 = vunpack.c.h.b16 %v641
          %v852 = vunpack.c.l.b16 %v642
          %v853 = vunpack.c.h.b16 %v642
          %v854 = vunpack.c.l.b16 %v643
          %v855 = vunpack.c.h.b16 %v643
          %v856 = vunpack.c.l.b16 %v644
          %v857 = vunpack.c.h.b16 %v644
          %v858 = vunpack.c.l.b16 %v645
          %v859 = vunpack.c.h.b16 %v645
          %v860 = vunpack.c.l.b16 %v646
          %v861 = vunpack.c.h.b16 %v646
          %v862 = vunpack.c.l.b16 %v647
          %v863 = vunpack.c.h.b16 %v647
          %v864 = vunpack.c.l.b16 %v648
          %v865 = vunpack.c.h.b16 %v648
          %v866 = vunpack.c.l.b16 %v649
          %v867 = vunpack.c.h.b16 %v649
          %v868 = vunpack.c.l.b16 %v650
          %v869 = vunpack.c.h.b16 %v650
          %v870 = vunpack.c.l.b16 %v651
          %v871 = vunpack.c.h.b16 %v651
          %v872 = vunpack.c.l.b16 %v652
          %v873 = vunpack.c.h.b16 %v652
          %v874 = vunpack.c.l.b16 %v653
          %v875 = vunpack.c.h.b16 %v653
          %v876 = vunpack.c.l.b16 %v654
          %v877 = vunpack.c.h.b16 %v654
          %v878 = vunpack.c.l.b16 %v655
          %v879 = vunpack.c.h.b16 %v655
          %v880 = vpack.c.b16 %v754, %v752
          %v881 = vpack.c.b16 %v755, %v753
          %v882 = vpack.c.b16 %v758, %v756
          %v883 = vpack.c.b16 %v759, %v757
          %v884 = vpack.c.b16 %v762, %v760
          %v885 = vpack.c.b16 %v763, %v761
          %v886 = vpack.c.b16 %v766, %v764
          %v887 = vpack.c.b16 %v767, %v765
          %v888 = vpack.c.b16 %v770, %v768
          %v889 = vpack.c.b16 %v771, %v769
          %v890 = vpack.c.b16 %v774, %v772
          %v891 = vpack.c.b16 %v775, %v773
          %v892 = vpack.c.b16 %v778, %v776
          %v893 = vpack.c.b16 %v779, %v777
          %v894 = vpack.c.b16 %v782, %v780
          %v895 = vpack.c.b16 %v783, %v781
          %v896 = vpack.c.b16 %v786, %v784
          %v897 = vpack.c.b16 %v787, %v785
          %v898 = vpack.c.b16 %v790, %v788
          %v899 = vpack.c.b16 %v791, %v789
          %v900 = vpack.c.b16 %v794, %v792
          %v901 = vpack.c.b16 %v795, %v793
          %v902 = vpack.c.b16 %v798, %v796
          %v903 = vpack.c.b16 %v799, %v797
          %v904 = vpack.c.b16 %v802, %v800
          %v905 = vpack.c.b16 %v803, %v801
          %v906 = vpack.c.b16 %v806, %v804
          %v907 = vpack.c.b16 %v807, %v805
          %v908 = vpack.c.b16 %v810, %v808
          %v909 = vpack.c.b16 %v811, %v809
          %v910 = vpack.c.b16 %v814, %v812
          %v911 = vpack.c.b16 %v815, %v813
          %v912 = vpack.c.b16 %v818, %v816
          %v913 = vpack.c.b16 %v819, %v817
          %v914 = vpack.c.b16 %v822, %v820
          %v915 = vpack.c.b16 %v823, %v821
          %v916 = vpack.c.b16 %v826, %v824
          %v917 = vpack.c.b16 %v827, %v825
          %v918 = vpack.c.b16 %v830, %v828
          %v919 = vpack.c.b16 %v831, %v829
          %v920 = vpack.c.b16 %v834, %v832
          %v921 = vpack.c.b16 %v835, %v833
          %v922 = vpack.c.b16 %v838, %v836
          %v923 = vpack.c.b16 %v839, %v837
          %v924 = vpack.c.b16 %v842, %v840
          %v925 = vpack.c.b16 %v843, %v841
          %v926 = vpack.c.b16 %v846, %v844
          %v927 = vpack.c.b16 %v847, %v845
          %v928 = vpack.c.b16 %v850, %v848
          %v929 = vpack.c.b16 %v851, %v849
          %v930 = vpack.c.b16 %v854, %v852
          %v931 = vpack.c.b16 %v855, %v853
          %v932 = vpack.c.b16 %v858, %v856
          %v933 = vpack.c.b16 %v859, %v857
          %v934 = vpack.c.b16 %v862, %v860
          %v935 = vpack.c.b16 %v863, %v861
          %v936 = vpack.c.b16 %v866, %v864
          %v937 = vpack.c.b16 %v867, %v865
          %v938 = vpack.c.b16 %v870, %v868
          %v939 = vpack.c.b16 %v871, %v869
          %v940 = vpack.c.b16 %v874, %v872
          %v941 = vpack.c.b16 %v875, %v873
          %v942 = vpack.c.b16 %v878, %v876
          %v943 = vpack.c.b16 %v879, %v877
          %v1040 = vunpack.c.l.b16 %v656
          %v1041 = vunpack.c.l.b16 %v657
          %v1042 = vunpack.c.l.b16 %v658
          %v1043 = vunpack.c.l.b16 %v659
          %v1044 = vunpack.c.l.b16 %v660
          %v1045 = vunpack.c.l.b16 %v661
          %v1046 = vunpack.c.l.b16 %v662
          %v1047 = vunpack.c.l.b16 %v663
          %v1048 = vunpack.c.l.b16 %v664
          %v1049 = vunpack.c.l.b16 %v665
          %v1050 = vunpack.c.l.b16 %v666
          %v1051 = vunpack.c.l.b16 %v667
          %v1052 = vunpack.c.l.b16 %v668
          %v1053 = vunpack.c.l.b16 %v669
          %v1054 = vunpack.c.l.b16 %v670
          %v1055 = vunpack.c.l.b16 %v671
          %v1056 = vunpack.c.l.b16 %v672
          %v1057 = vunpack.c.l.b16 %v673
          %v1058 = vunpack.c.l.b16 %v674
          %v1059 = vunpack.c.l.b16 %v675
          %v1060 = vunpack.c.l.b16 %v676
          %v1061 = vunpack.c.l.b16 %v677
          %v1062 = vunpack.c.l.b16 %v678
          %v1063 = vunpack.c.l.b16 %v679
          %v1064 = vunpack.c.l.b16 %v680
          %v1065 = vunpack.c.l.b16 %v681
          %v1066 = vunpack.c.l.b16 %v682
          %v1067 = vunpack.c.l.b16 %v683
          %v1068 = vunpack.c.l.b16 %v684
          %v1069 = vunpack.c.l.b16 %v685
          %v1070 = vunpack.c.l.b16 %v686
          %v1071 = vunpack.c.l.b16 %v687
          %v1072 = vpack.c.b16 %v1041, %v1040
          %v1073 = vpack.c.b16 %v1043, %v1042
          %v1074 = vpack.c.b16 %v1045, %v1044
          %v1075 = vpack.c.b16 %v1047, %v1046
          %v1076 = vpack.c.b16 %v1049, %v1048
          %v1077 = vpack.c.b16 %v1051, %v1050
          %v1078 = vpack.c.b16 %v1053, %v1052
          %v1079 = vpack.c.b16 %v1055, %v1054
          %v1080 = vpack.c.b16 %v1057, %v1056
          %v1081 = vpack.c.b16 %v1059, %v1058
          %v1082 = vpack.c.b16 %v1061, %v1060
          %v1083 = vpack.c.b16 %v1063, %v1062
          %v1084 = vpack.c.b16 %v1065, %v1064
          %v1085 = vpack.c.b16 %v1067, %v1066
          %v1086 = vpack.c.b16 %v1069, %v1068
          %v1087 = vpack.c.b16 %v1071, %v1070
          %1104 = vmatprep.subr.bf16.mxu0 0
          %1105 = vmatpush1.bf16.msra.mxu0 %v1072
          %1106 = vmatprep.subr.bf16.mxu0 0
          %1107 = vmatpush1.bf16.msra.mxu0 %v1073
          %1108 = vmatprep.subr.bf16.mxu0 0
          %1109 = vmatpush1.bf16.msra.mxu0 %v1074
          %1110 = vmatprep.subr.bf16.mxu0 0
          %1111 = vmatpush1.bf16.msra.mxu0 %v1075
          %1112 = vmatprep.subr.bf16.mxu0 0
          %1113 = vmatpush1.bf16.msra.mxu0 %v1076
          %1114 = vmatprep.subr.bf16.mxu0 0
          %1115 = vmatpush1.bf16.msra.mxu0 %v1077
          %1116 = vmatprep.subr.bf16.mxu0 0
          %1117 = vmatpush1.bf16.msra.mxu0 %v1078
          %1118 = vmatprep.subr.bf16.mxu0 0
          %1119 = vmatpush1.bf16.msra.mxu0 %v1079
          %1120 = vmatprep.subr.bf16.mxu0 0
          %1121 = vmatpush1.bf16.msra.mxu0 %v1080
          %1122 = vmatprep.subr.bf16.mxu0 0
          %1123 = vmatpush1.bf16.msra.mxu0 %v1081
          %1124 = vmatprep.subr.bf16.mxu0 0
          %1125 = vmatpush1.bf16.msra.mxu0 %v1082
          %1126 = vmatprep.subr.bf16.mxu0 0
          %1127 = vmatpush1.bf16.msra.mxu0 %v1083
          %1128 = vmatprep.subr.bf16.mxu0 0
          %1129 = vmatpush1.bf16.msra.mxu0 %v1084
          %1130 = vmatprep.subr.bf16.mxu0 0
          %1131 = vmatpush1.bf16.msra.mxu0 %v1085
          %1132 = vmatprep.subr.bf16.mxu0 0
          %1133 = vmatpush1.bf16.msra.mxu0 %v1086
          %1134 = vmatprep.subr.bf16.mxu0 0
          %1135 = vmatpush1.bf16.msra.mxu0 %v1087
          %1136 = vmatprep.mubr.bf16.mxu0 %v881
          %1137 = vmatmul.mubr.bf16.gmra.mrb[0].mxu0 %v880
          %v1138 = vpop.f32.mrb[0].mxu0
          %v1139 = vadd.f32 0.0, %v1138
          %v1140 = vpop.f32.mrb[0].mxu0
          %v1141 = vpop.f32.mrb[0].mxu0
          %v1142 = vadd.f32 0.0, %v1141
          %v1143 = vpop.f32.mrb[0].mxu0
          %1144 = vmatprep.mubr.bf16.mxu0 %v883
          %1145 = vmatmul.mubr.bf16.gmra.mrb[0].mxu0 %v882
          %v1146 = vpop.f32.mrb[0].mxu0
          %v1147 = vadd.f32 0.0, %v1146
          %v1148 = vpop.f32.mrb[0].mxu0
          %v1149 = vpop.f32.mrb[0].mxu0
          %v1150 = vadd.f32 0.0, %v1149
          %v1151 = vpop.f32.mrb[0].mxu0
          %1152 = vmatprep.mubr.bf16.mxu0 %v885
          %1153 = vmatmul.mubr.bf16.gmra.mrb[0].mxu0 %v884
          %v1154 = vpop.f32.mrb[0].mxu0
          %v1155 = vadd.f32 0.0, %v1154
          %v1156 = vpop.f32.mrb[0].mxu0
          %v1157 = vpop.f32.mrb[0].mxu0
          %v1158 = vadd.f32 0.0, %v1157
          %v1159 = vpop.f32.mrb[0].mxu0
          %1160 = vmatprep.mubr.bf16.mxu0 %v887
          %1161 = vmatmul.mubr.bf16.gmra.mrb[0].mxu0 %v886
          %v1162 = vpop.f32.mrb[0].mxu0
          %v1163 = vadd.f32 0.0, %v1162
          %v1164 = vpop.f32.mrb[0].mxu0
          %v1165 = vpop.f32.mrb[0].mxu0
          %v1166 = vadd.f32 0.0, %v1165
          %v1167 = vpop.f32.mrb[0].mxu0
          %1168 = vmatprep.mubr.bf16.mxu0 %v889
          %1169 = vmatmul.mubr.bf16.gmra.mrb[0].mxu0 %v888
          %v1170 = vpop.f32.mrb[0].mxu0
          %v1171 = vadd.f32 0.0, %v1170
          %v1172 = vpop.f32.mrb[0].mxu0
          %v1173 = vpop.f32.mrb[0].mxu0
          %v1174 = vadd.f32 0.0, %v1173
          %v1175 = vpop.f32.mrb[0].mxu0
          %1176 = vmatprep.mubr.bf16.mxu0 %v891
          %1177 = vmatmul.mubr.bf16.gmra.mrb[0].mxu0 %v890
          %v1178 = vpop.f32.mrb[0].mxu0
          %v1179 = vadd.f32 0.0, %v1178
          %v1180 = vpop.f32.mrb[0].mxu0
          %v1181 = vpop.f32.mrb[0].mxu0
          %v1182 = vadd.f32 0.0, %v1181
          %v1183 = vpop.f32.mrb[0].mxu0
          %1184 = vmatprep.mubr.bf16.mxu0 %v893
          %1185 = vmatmul.mubr.bf16.gmra.mrb[0].mxu0 %v892
          %v1186 = vpop.f32.mrb[0].mxu0
          %v1187 = vadd.f32 0.0, %v1186
          %v1188 = vpop.f32.mrb[0].mxu0
          %v1189 = vpop.f32.mrb[0].mxu0
          %v1190 = vadd.f32 0.0, %v1189
          %v1191 = vpop.f32.mrb[0].mxu0
          %1192 = vmatprep.mubr.bf16.mxu0 %v895
          %1193 = vmatmul.mubr.bf16.gmra.mrb[0].mxu0 %v894
          %v1194 = vpop.f32.mrb[0].mxu0
          %v1195 = vadd.f32 0.0, %v1194
          %v1196 = vpop.f32.mrb[0].mxu0
          %v1197 = vpop.f32.mrb[0].mxu0
          %v1198 = vadd.f32 0.0, %v1197
          %v1199 = vpop.f32.mrb[0].mxu0
          %1200 = vmatprep.mubr.bf16.mxu0 %v897
          %1201 = vmatmul.mubr.bf16.gmra.mrb[0].mxu0 %v896
          %v1202 = vpop.f32.mrb[0].mxu0
          %v1203 = vadd.f32 0.0, %v1202
          %v1204 = vpop.f32.mrb[0].mxu0
          %v1205 = vpop.f32.mrb[0].mxu0
          %v1206 = vadd.f32 0.0, %v1205
          %v1207 = vpop.f32.mrb[0].mxu0
          %1208 = vmatprep.mubr.bf16.mxu0 %v899
          %1209 = vmatmul.mubr.bf16.gmra.mrb[0].mxu0 %v898
          %v1210 = vpop.f32.mrb[0].mxu0
          %v1211 = vadd.f32 0.0, %v1210
          %v1212 = vpop.f32.mrb[0].mxu0
          %v1213 = vpop.f32.mrb[0].mxu0
          %v1214 = vadd.f32 0.0, %v1213
          %v1215 = vpop.f32.mrb[0].mxu0
          %1216 = vmatprep.mubr.bf16.mxu0 %v901
          %1217 = vmatmul.mubr.bf16.gmra.mrb[0].mxu0 %v900
          %v1218 = vpop.f32.mrb[0].mxu0
          %v1219 = vadd.f32 0.0, %v1218
          %v1220 = vpop.f32.mrb[0].mxu0
          %v1221 = vpop.f32.mrb[0].mxu0
          %v1222 = vadd.f32 0.0, %v1221
          %v1223 = vpop.f32.mrb[0].mxu0
          %1224 = vmatprep.mubr.bf16.mxu0 %v903
          %1225 = vmatmul.mubr.bf16.gmra.mrb[0].mxu0 %v902
          %v1226 = vpop.f32.mrb[0].mxu0
          %v1227 = vadd.f32 0.0, %v1226
          %v1228 = vpop.f32.mrb[0].mxu0
          %v1229 = vpop.f32.mrb[0].mxu0
          %v1230 = vadd.f32 0.0, %v1229
          %v1231 = vpop.f32.mrb[0].mxu0
          %1232 = vmatprep.mubr.bf16.mxu0 %v905
          %1233 = vmatmul.mubr.bf16.gmra.mrb[0].mxu0 %v904
          %v1234 = vpop.f32.mrb[0].mxu0
          %v1235 = vadd.f32 0.0, %v1234
          %v1236 = vpop.f32.mrb[0].mxu0
          %v1237 = vpop.f32.mrb[0].mxu0
          %v1238 = vadd.f32 0.0, %v1237
          %v1239 = vpop.f32.mrb[0].mxu0
          %1240 = vmatprep.mubr.bf16.mxu0 %v907
          %1241 = vmatmul.mubr.bf16.gmra.mrb[0].mxu0 %v906
          %v1242 = vpop.f32.mrb[0].mxu0
          %v1243 = vadd.f32 0.0, %v1242
          %v1244 = vpop.f32.mrb[0].mxu0
          %v1245 = vpop.f32.mrb[0].mxu0
          %v1246 = vadd.f32 0.0, %v1245
          %v1247 = vpop.f32.mrb[0].mxu0
          %1248 = vmatprep.mubr.bf16.mxu0 %v909
          %1249 = vmatmul.mubr.bf16.gmra.mrb[0].mxu0 %v908
          %v1250 = vpop.f32.mrb[0].mxu0
          %v1251 = vadd.f32 0.0, %v1250
          %v1252 = vpop.f32.mrb[0].mxu0
          %v1253 = vpop.f32.mrb[0].mxu0
          %v1254 = vadd.f32 0.0, %v1253
          %v1255 = vpop.f32.mrb[0].mxu0
          %1256 = vmatprep.mubr.bf16.mxu0 %v911
          %1257 = vmatmul.mubr.bf16.gmra.mrb[0].mxu0 %v910
          %v1258 = vpop.f32.mrb[0].mxu0
          %v1259 = vadd.f32 0.0, %v1258
          %v1260 = vpop.f32.mrb[0].mxu0
          %v1261 = vpop.f32.mrb[0].mxu0
          %v1262 = vadd.f32 0.0, %v1261
          %v1263 = vpop.f32.mrb[0].mxu0
          %1264 = vmatprep.mubr.bf16.mxu0 %v913
          %1265 = vmatmul.mubr.bf16.gmra.mrb[0].mxu0 %v912
          %v1266 = vpop.f32.mrb[0].mxu0
          %v1267 = vadd.f32 0.0, %v1266
          %v1268 = vpop.f32.mrb[0].mxu0
          %v1269 = vpop.f32.mrb[0].mxu0
          %v1270 = vadd.f32 0.0, %v1269
          %v1271 = vpop.f32.mrb[0].mxu0
          %1272 = vmatprep.mubr.bf16.mxu0 %v915
          %1273 = vmatmul.mubr.bf16.gmra.mrb[0].mxu0 %v914
          %v1274 = vpop.f32.mrb[0].mxu0
          %v1275 = vadd.f32 0.0, %v1274
          %v1276 = vpop.f32.mrb[0].mxu0
          %v1277 = vpop.f32.mrb[0].mxu0
          %v1278 = vadd.f32 0.0, %v1277
          %v1279 = vpop.f32.mrb[0].mxu0
          %1280 = vmatprep.mubr.bf16.mxu0 %v917
          %1281 = vmatmul.mubr.bf16.gmra.mrb[0].mxu0 %v916
          %v1282 = vpop.f32.mrb[0].mxu0
          %v1283 = vadd.f32 0.0, %v1282
          %v1284 = vpop.f32.mrb[0].mxu0
          %v1285 = vpop.f32.mrb[0].mxu0
          %v1286 = vadd.f32 0.0, %v1285
          %v1287 = vpop.f32.mrb[0].mxu0
          %1288 = vmatprep.mubr.bf16.mxu0 %v919
          %1289 = vmatmul.mubr.bf16.gmra.mrb[0].mxu0 %v918
          %v1290 = vpop.f32.mrb[0].mxu0
          %v1291 = vadd.f32 0.0, %v1290
          %v1292 = vpop.f32.mrb[0].mxu0
          %v1293 = vpop.f32.mrb[0].mxu0
          %v1294 = vadd.f32 0.0, %v1293
          %v1295 = vpop.f32.mrb[0].mxu0
          %1296 = vmatprep.mubr.bf16.mxu0 %v921
          %1297 = vmatmul.mubr.bf16.gmra.mrb[0].mxu0 %v920
          %v1298 = vpop.f32.mrb[0].mxu0
          %v1299 = vadd.f32 0.0, %v1298
          %v1300 = vpop.f32.mrb[0].mxu0
          %v1301 = vpop.f32.mrb[0].mxu0
          %v1302 = vadd.f32 0.0, %v1301
          %v1303 = vpop.f32.mrb[0].mxu0
          %1304 = vmatprep.mubr.bf16.mxu0 %v923
          %1305 = vmatmul.mubr.bf16.gmra.mrb[0].mxu0 %v922
          %v1306 = vpop.f32.mrb[0].mxu0
          %v1307 = vadd.f32 0.0, %v1306
          %v1308 = vpop.f32.mrb[0].mxu0
          %v1309 = vpop.f32.mrb[0].mxu0
          %v1310 = vadd.f32 0.0, %v1309
          %v1311 = vpop.f32.mrb[0].mxu0
          %1312 = vmatprep.mubr.bf16.mxu0 %v925
          %1313 = vmatmul.mubr.bf16.gmra.mrb[0].mxu0 %v924
          %v1314 = vpop.f32.mrb[0].mxu0
          %v1315 = vadd.f32 0.0, %v1314
          %v1316 = vpop.f32.mrb[0].mxu0
          %v1317 = vpop.f32.mrb[0].mxu0
          %v1318 = vadd.f32 0.0, %v1317
          %v1319 = vpop.f32.mrb[0].mxu0
          %1320 = vmatprep.mubr.bf16.mxu0 %v927
          %1321 = vmatmul.mubr.bf16.gmra.mrb[0].mxu0 %v926
          %v1322 = vpop.f32.mrb[0].mxu0
          %v1323 = vadd.f32 0.0, %v1322
          %v1324 = vpop.f32.mrb[0].mxu0
          %v1325 = vpop.f32.mrb[0].mxu0
          %v1326 = vadd.f32 0.0, %v1325
          %v1327 = vpop.f32.mrb[0].mxu0
          %1328 = vmatprep.mubr.bf16.mxu0 %v929
          %1329 = vmatmul.mubr.bf16.gmra.mrb[0].mxu0 %v928
          %v1330 = vpop.f32.mrb[0].mxu0
          %v1331 = vadd.f32 0.0, %v1330
          %v1332 = vpop.f32.mrb[0].mxu0
          %v1333 = vpop.f32.mrb[0].mxu0
          %v1334 = vadd.f32 0.0, %v1333
          %v1335 = vpop.f32.mrb[0].mxu0
          %1336 = vmatprep.mubr.bf16.mxu0 %v931
          %1337 = vmatmul.mubr.bf16.gmra.mrb[0].mxu0 %v930
          %v1338 = vpop.f32.mrb[0].mxu0
          %v1339 = vadd.f32 0.0, %v1338
          %v1340 = vpop.f32.mrb[0].mxu0
          %v1341 = vpop.f32.mrb[0].mxu0
          %v1342 = vadd.f32 0.0, %v1341
          %v1343 = vpop.f32.mrb[0].mxu0
          %1344 = vmatprep.mubr.bf16.mxu0 %v933
          %1345 = vmatmul.mubr.bf16.gmra.mrb[0].mxu0 %v932
          %v1346 = vpop.f32.mrb[0].mxu0
          %v1347 = vadd.f32 0.0, %v1346
          %v1348 = vpop.f32.mrb[0].mxu0
          %v1349 = vpop.f32.mrb[0].mxu0
          %v1350 = vadd.f32 0.0, %v1349
          %v1351 = vpop.f32.mrb[0].mxu0
          %1352 = vmatprep.mubr.bf16.mxu0 %v935
          %1353 = vmatmul.mubr.bf16.gmra.mrb[0].mxu0 %v934
          %v1354 = vpop.f32.mrb[0].mxu0
          %v1355 = vadd.f32 0.0, %v1354
          %v1356 = vpop.f32.mrb[0].mxu0
          %v1357 = vpop.f32.mrb[0].mxu0
          %v1358 = vadd.f32 0.0, %v1357
          %v1359 = vpop.f32.mrb[0].mxu0
          %1360 = vmatprep.mubr.bf16.mxu0 %v937
          %1361 = vmatmul.mubr.bf16.gmra.mrb[0].mxu0 %v936
          %v1362 = vpop.f32.mrb[0].mxu0
          %v1363 = vadd.f32 0.0, %v1362
          %v1364 = vpop.f32.mrb[0].mxu0
          %v1365 = vpop.f32.mrb[0].mxu0
          %v1366 = vadd.f32 0.0, %v1365
          %v1367 = vpop.f32.mrb[0].mxu0
          %1368 = vmatprep.mubr.bf16.mxu0 %v939
          %1369 = vmatmul.mubr.bf16.gmra.mrb[0].mxu0 %v938
          %v1370 = vpop.f32.mrb[0].mxu0
          %v1371 = vadd.f32 0.0, %v1370
          %v1372 = vpop.f32.mrb[0].mxu0
          %v1373 = vpop.f32.mrb[0].mxu0
          %v1374 = vadd.f32 0.0, %v1373
          %v1375 = vpop.f32.mrb[0].mxu0
          %1376 = vmatprep.mubr.bf16.mxu0 %v941
          %1377 = vmatmul.mubr.bf16.gmra.mrb[0].mxu0 %v940
          %v1378 = vpop.f32.mrb[0].mxu0
          %v1379 = vadd.f32 0.0, %v1378
          %v1380 = vpop.f32.mrb[0].mxu0
          %v1381 = vpop.f32.mrb[0].mxu0
          %v1382 = vadd.f32 0.0, %v1381
          %v1383 = vpop.f32.mrb[0].mxu0
          %1384 = vmatprep.mubr.bf16.mxu0 %v943
          %1385 = vmatmul.mubr.bf16.gmra.mrb[0].mxu0 %v942
          %v1386 = vpop.f32.mrb[0].mxu0
          %v1387 = vadd.f32 0.0, %v1386
          %v1388 = vpop.f32.mrb[0].mxu0
          %v1389 = vpop.f32.mrb[0].mxu0
          %v1390 = vadd.f32 0.0, %v1389
          %v1391 = vpop.f32.mrb[0].mxu0
          %1392 = vdwg.mxu0
          %v1457 = vunpack.c.l.b16 %v496
          %v1458 = vunpack.c.h.b16 %v496
          %v1459 = vunpack.c.l.b16 %v497
          %v1460 = vunpack.c.h.b16 %v497
          %v1461 = vunpack.c.l.b16 %v498
          %v1462 = vunpack.c.h.b16 %v498
          %v1463 = vunpack.c.l.b16 %v499
          %v1464 = vunpack.c.h.b16 %v499
          %v1465 = vunpack.c.l.b16 %v500
          %v1466 = vunpack.c.h.b16 %v500
          %v1467 = vunpack.c.l.b16 %v501
          %v1468 = vunpack.c.h.b16 %v501
          %v1469 = vunpack.c.l.b16 %v502
          %v1470 = vunpack.c.h.b16 %v502
          %v1471 = vunpack.c.l.b16 %v503
          %v1472 = vunpack.c.h.b16 %v503
          %v1473 = vunpack.c.l.b16 %v504
          %v1474 = vunpack.c.h.b16 %v504
          %v1475 = vunpack.c.l.b16 %v505
          %v1476 = vunpack.c.h.b16 %v505
          %v1477 = vunpack.c.l.b16 %v506
          %v1478 = vunpack.c.h.b16 %v506
          %v1479 = vunpack.c.l.b16 %v507
          %v1480 = vunpack.c.h.b16 %v507
          %v1481 = vunpack.c.l.b16 %v508
          %v1482 = vunpack.c.h.b16 %v508
          %v1483 = vunpack.c.l.b16 %v509
          %v1484 = vunpack.c.h.b16 %v509
          %v1485 = vunpack.c.l.b16 %v510
          %v1486 = vunpack.c.h.b16 %v510
          %v1487 = vunpack.c.l.b16 %v511
          %v1488 = vunpack.c.h.b16 %v511
          %v1489 = vunpack.c.l.b16 %v512
          %v1490 = vunpack.c.h.b16 %v512
          %v1491 = vunpack.c.l.b16 %v513
          %v1492 = vunpack.c.h.b16 %v513
          %v1493 = vunpack.c.l.b16 %v514
          %v1494 = vunpack.c.h.b16 %v514
          %v1495 = vunpack.c.l.b16 %v515
          %v1496 = vunpack.c.h.b16 %v515
          %v1497 = vunpack.c.l.b16 %v516
          %v1498 = vunpack.c.h.b16 %v516
          %v1499 = vunpack.c.l.b16 %v517
          %v1500 = vunpack.c.h.b16 %v517
          %v1501 = vunpack.c.l.b16 %v518
          %v1502 = vunpack.c.h.b16 %v518
          %v1503 = vunpack.c.l.b16 %v519
          %v1504 = vunpack.c.h.b16 %v519
          %v1505 = vunpack.c.l.b16 %v520
          %v1506 = vunpack.c.h.b16 %v520
          %v1507 = vunpack.c.l.b16 %v521
          %v1508 = vunpack.c.h.b16 %v521
          %v1509 = vunpack.c.l.b16 %v522
          %v1510 = vunpack.c.h.b16 %v522
          %v1511 = vunpack.c.l.b16 %v523
          %v1512 = vunpack.c.h.b16 %v523
          %v1513 = vunpack.c.l.b16 %v524
          %v1514 = vunpack.c.h.b16 %v524
          %v1515 = vunpack.c.l.b16 %v525
          %v1516 = vunpack.c.h.b16 %v525
          %v1517 = vunpack.c.l.b16 %v526
          %v1518 = vunpack.c.h.b16 %v526
          %v1519 = vunpack.c.l.b16 %v527
          %v1520 = vunpack.c.h.b16 %v527
          %v1521 = vunpack.c.l.b16 %v528
          %v1522 = vunpack.c.h.b16 %v528
          %v1523 = vunpack.c.l.b16 %v529
          %v1524 = vunpack.c.h.b16 %v529
          %v1525 = vunpack.c.l.b16 %v530
          %v1526 = vunpack.c.h.b16 %v530
          %v1527 = vunpack.c.l.b16 %v531
          %v1528 = vunpack.c.h.b16 %v531
          %v1529 = vunpack.c.l.b16 %v532
          %v1530 = vunpack.c.h.b16 %v532
          %v1531 = vunpack.c.l.b16 %v533
          %v1532 = vunpack.c.h.b16 %v533
          %v1533 = vunpack.c.l.b16 %v534
          %v1534 = vunpack.c.h.b16 %v534
          %v1535 = vunpack.c.l.b16 %v535
          %v1536 = vunpack.c.h.b16 %v535
          %v1537 = vunpack.c.l.b16 %v536
          %v1538 = vunpack.c.h.b16 %v536
          %v1539 = vunpack.c.l.b16 %v537
          %v1540 = vunpack.c.h.b16 %v537
          %v1541 = vunpack.c.l.b16 %v538
          %v1542 = vunpack.c.h.b16 %v538
          %v1543 = vunpack.c.l.b16 %v539
          %v1544 = vunpack.c.h.b16 %v539
          %v1545 = vunpack.c.l.b16 %v540
          %v1546 = vunpack.c.h.b16 %v540
          %v1547 = vunpack.c.l.b16 %v541
          %v1548 = vunpack.c.h.b16 %v541
          %v1549 = vunpack.c.l.b16 %v542
          %v1550 = vunpack.c.h.b16 %v542
          %v1551 = vunpack.c.l.b16 %v543
          %v1552 = vunpack.c.h.b16 %v543
          %v1553 = vunpack.c.l.b16 %v544
          %v1554 = vunpack.c.h.b16 %v544
          %v1555 = vunpack.c.l.b16 %v545
          %v1556 = vunpack.c.h.b16 %v545
          %v1557 = vunpack.c.l.b16 %v546
          %v1558 = vunpack.c.h.b16 %v546
          %v1559 = vunpack.c.l.b16 %v547
          %v1560 = vunpack.c.h.b16 %v547
          %v1561 = vunpack.c.l.b16 %v548
          %v1562 = vunpack.c.h.b16 %v548
          %v1563 = vunpack.c.l.b16 %v549
          %v1564 = vunpack.c.h.b16 %v549
          %v1565 = vunpack.c.l.b16 %v550
          %v1566 = vunpack.c.h.b16 %v550
          %v1567 = vunpack.c.l.b16 %v551
          %v1568 = vunpack.c.h.b16 %v551
          %v1569 = vunpack.c.l.b16 %v552
          %v1570 = vunpack.c.h.b16 %v552
          %v1571 = vunpack.c.l.b16 %v553
          %v1572 = vunpack.c.h.b16 %v553
          %v1573 = vunpack.c.l.b16 %v554
          %v1574 = vunpack.c.h.b16 %v554
          %v1575 = vunpack.c.l.b16 %v555
          %v1576 = vunpack.c.h.b16 %v555
          %v1577 = vunpack.c.l.b16 %v556
          %v1578 = vunpack.c.h.b16 %v556
          %v1579 = vunpack.c.l.b16 %v557
          %v1580 = vunpack.c.h.b16 %v557
          %v1581 = vunpack.c.l.b16 %v558
          %v1582 = vunpack.c.h.b16 %v558
          %v1583 = vunpack.c.l.b16 %v559
          %v1584 = vunpack.c.h.b16 %v559
          %v1585 = vpack.c.b16 %v1459, %v1457
          %v1586 = vpack.c.b16 %v1460, %v1458
          %v1587 = vpack.c.b16 %v1463, %v1461
          %v1588 = vpack.c.b16 %v1464, %v1462
          %v1589 = vpack.c.b16 %v1467, %v1465
          %v1590 = vpack.c.b16 %v1468, %v1466
          %v1591 = vpack.c.b16 %v1471, %v1469
          %v1592 = vpack.c.b16 %v1472, %v1470
          %v1593 = vpack.c.b16 %v1475, %v1473
          %v1594 = vpack.c.b16 %v1476, %v1474
          %v1595 = vpack.c.b16 %v1479, %v1477
          %v1596 = vpack.c.b16 %v1480, %v1478
          %v1597 = vpack.c.b16 %v1483, %v1481
          %v1598 = vpack.c.b16 %v1484, %v1482
          %v1599 = vpack.c.b16 %v1487, %v1485
          %v1600 = vpack.c.b16 %v1488, %v1486
          %v1601 = vpack.c.b16 %v1491, %v1489
          %v1602 = vpack.c.b16 %v1492, %v1490
          %v1603 = vpack.c.b16 %v1495, %v1493
          %v1604 = vpack.c.b16 %v1496, %v1494
          %v1605 = vpack.c.b16 %v1499, %v1497
          %v1606 = vpack.c.b16 %v1500, %v1498
          %v1607 = vpack.c.b16 %v1503, %v1501
          %v1608 = vpack.c.b16 %v1504, %v1502
          %v1609 = vpack.c.b16 %v1507, %v1505
          %v1610 = vpack.c.b16 %v1508, %v1506
          %v1611 = vpack.c.b16 %v1511, %v1509
          %v1612 = vpack.c.b16 %v1512, %v1510
          %v1613 = vpack.c.b16 %v1515, %v1513
          %v1614 = vpack.c.b16 %v1516, %v1514
          %v1615 = vpack.c.b16 %v1519, %v1517
          %v1616 = vpack.c.b16 %v1520, %v1518
          %v1617 = vpack.c.b16 %v1523, %v1521
          %v1618 = vpack.c.b16 %v1524, %v1522
          %v1619 = vpack.c.b16 %v1527, %v1525
          %v1620 = vpack.c.b16 %v1528, %v1526
          %v1621 = vpack.c.b16 %v1531, %v1529
          %v1622 = vpack.c.b16 %v1532, %v1530
          %v1623 = vpack.c.b16 %v1535, %v1533
          %v1624 = vpack.c.b16 %v1536, %v1534
          %v1625 = vpack.c.b16 %v1539, %v1537
          %v1626 = vpack.c.b16 %v1540, %v1538
          %v1627 = vpack.c.b16 %v1543, %v1541
          %v1628 = vpack.c.b16 %v1544, %v1542
          %v1629 = vpack.c.b16 %v1547, %v1545
          %v1630 = vpack.c.b16 %v1548, %v1546
          %v1631 = vpack.c.b16 %v1551, %v1549
          %v1632 = vpack.c.b16 %v1552, %v1550
          %v1633 = vpack.c.b16 %v1555, %v1553
          %v1634 = vpack.c.b16 %v1556, %v1554
          %v1635 = vpack.c.b16 %v1559, %v1557
          %v1636 = vpack.c.b16 %v1560, %v1558
          %v1637 = vpack.c.b16 %v1563, %v1561
          %v1638 = vpack.c.b16 %v1564, %v1562
          %v1639 = vpack.c.b16 %v1567, %v1565
          %v1640 = vpack.c.b16 %v1568, %v1566
          %v1641 = vpack.c.b16 %v1571, %v1569
          %v1642 = vpack.c.b16 %v1572, %v1570
          %v1643 = vpack.c.b16 %v1575, %v1573
          %v1644 = vpack.c.b16 %v1576, %v1574
          %v1645 = vpack.c.b16 %v1579, %v1577
          %v1646 = vpack.c.b16 %v1580, %v1578
          %v1647 = vpack.c.b16 %v1583, %v1581
          %v1648 = vpack.c.b16 %v1584, %v1582
          %v1745 = vunpack.c.l.b16 %v560
          %v1746 = vunpack.c.l.b16 %v561
          %v1747 = vunpack.c.l.b16 %v562
          %v1748 = vunpack.c.l.b16 %v563
          %v1749 = vunpack.c.l.b16 %v564
          %v1750 = vunpack.c.l.b16 %v565
          %v1751 = vunpack.c.l.b16 %v566
          %v1752 = vunpack.c.l.b16 %v567
          %v1753 = vunpack.c.l.b16 %v568
          %v1754 = vunpack.c.l.b16 %v569
          %v1755 = vunpack.c.l.b16 %v570
          %v1756 = vunpack.c.l.b16 %v571
          %v1757 = vunpack.c.l.b16 %v572
          %v1758 = vunpack.c.l.b16 %v573
          %v1759 = vunpack.c.l.b16 %v574
          %v1760 = vunpack.c.l.b16 %v575
          %v1761 = vunpack.c.l.b16 %v576
          %v1762 = vunpack.c.l.b16 %v577
          %v1763 = vunpack.c.l.b16 %v578
          %v1764 = vunpack.c.l.b16 %v579
          %v1765 = vunpack.c.l.b16 %v580
          %v1766 = vunpack.c.l.b16 %v581
          %v1767 = vunpack.c.l.b16 %v582
          %v1768 = vunpack.c.l.b16 %v583
          %v1769 = vunpack.c.l.b16 %v584
          %v1770 = vunpack.c.l.b16 %v585
          %v1771 = vunpack.c.l.b16 %v586
          %v1772 = vunpack.c.l.b16 %v587
          %v1773 = vunpack.c.l.b16 %v588
          %v1774 = vunpack.c.l.b16 %v589
          %v1775 = vunpack.c.l.b16 %v590
          %v1776 = vunpack.c.l.b16 %v591
          %v1777 = vpack.c.b16 %v1746, %v1745
          %v1778 = vpack.c.b16 %v1748, %v1747
          %v1779 = vpack.c.b16 %v1750, %v1749
          %v1780 = vpack.c.b16 %v1752, %v1751
          %v1781 = vpack.c.b16 %v1754, %v1753
          %v1782 = vpack.c.b16 %v1756, %v1755
          %v1783 = vpack.c.b16 %v1758, %v1757
          %v1784 = vpack.c.b16 %v1760, %v1759
          %v1785 = vpack.c.b16 %v1762, %v1761
          %v1786 = vpack.c.b16 %v1764, %v1763
          %v1787 = vpack.c.b16 %v1766, %v1765
          %v1788 = vpack.c.b16 %v1768, %v1767
          %v1789 = vpack.c.b16 %v1770, %v1769
          %v1790 = vpack.c.b16 %v1772, %v1771
          %v1791 = vpack.c.b16 %v1774, %v1773
          %v1792 = vpack.c.b16 %v1776, %v1775
          %1809 = vmatprep.subr.bf16.mxu0 0
          %1810 = vmatpush1.bf16.msra.mxu0 %v1777
          %1811 = vmatprep.subr.bf16.mxu0 0
          %1812 = vmatpush1.bf16.msra.mxu0 %v1778
          %1813 = vmatprep.subr.bf16.mxu0 0
          %1814 = vmatpush1.bf16.msra.mxu0 %v1779
          %1815 = vmatprep.subr.bf16.mxu0 0
          %1816 = vmatpush1.bf16.msra.mxu0 %v1780
          %1817 = vmatprep.subr.bf16.mxu0 0
          %1818 = vmatpush1.bf16.msra.mxu0 %v1781
          %1819 = vmatprep.subr.bf16.mxu0 0
          %1820 = vmatpush1.bf16.msra.mxu0 %v1782
          %1821 = vmatprep.subr.bf16.mxu0 0
          %1822 = vmatpush1.bf16.msra.mxu0 %v1783
          %1823 = vmatprep.subr.bf16.mxu0 0
          %1824 = vmatpush1.bf16.msra.mxu0 %v1784
          %1825 = vmatprep.subr.bf16.mxu0 0
          %1826 = vmatpush1.bf16.msra.mxu0 %v1785
          %1827 = vmatprep.subr.bf16.mxu0 0
          %1828 = vmatpush1.bf16.msra.mxu0 %v1786
          %1829 = vmatprep.subr.bf16.mxu0 0
          %1830 = vmatpush1.bf16.msra.mxu0 %v1787
          %1831 = vmatprep.subr.bf16.mxu0 0
          %1832 = vmatpush1.bf16.msra.mxu0 %v1788
          %1833 = vmatprep.subr.bf16.mxu0 0
          %1834 = vmatpush1.bf16.msra.mxu0 %v1789
          %1835 = vmatprep.subr.bf16.mxu0 0
          %1836 = vmatpush1.bf16.msra.mxu0 %v1790
          %1837 = vmatprep.subr.bf16.mxu0 0
          %1838 = vmatpush1.bf16.msra.mxu0 %v1791
          %1839 = vmatprep.subr.bf16.mxu0 0
          %1840 = vmatpush1.bf16.msra.mxu0 %v1792
          %1841 = vmatprep.mubr.bf16.mxu0 %v1586
          %1842 = vmatmul.mubr.bf16.gmra.mrb[0].mxu0 %v1585
          %v1843 = vpop.f32.mrb[0].mxu0
          %v1844 = vadd.f32 %v1139, %v1843
          %v1845 = vpop.f32.mrb[0].mxu0
          %v1846 = vpop.f32.mrb[0].mxu0
          %v1847 = vadd.f32 %v1142, %v1846
          %v1848 = vpop.f32.mrb[0].mxu0
          %1849 = vmatprep.mubr.bf16.mxu0 %v1588
          %1850 = vmatmul.mubr.bf16.gmra.mrb[0].mxu0 %v1587
          %v1851 = vpop.f32.mrb[0].mxu0
          %v1852 = vadd.f32 %v1147, %v1851
          %v1853 = vpop.f32.mrb[0].mxu0
          %v1854 = vpop.f32.mrb[0].mxu0
          %v1855 = vadd.f32 %v1150, %v1854
          %v1856 = vpop.f32.mrb[0].mxu0
          %1857 = vmatprep.mubr.bf16.mxu0 %v1590
          %1858 = vmatmul.mubr.bf16.gmra.mrb[0].mxu0 %v1589
          %v1859 = vpop.f32.mrb[0].mxu0
          %v1860 = vadd.f32 %v1155, %v1859
          %v1861 = vpop.f32.mrb[0].mxu0
          %v1862 = vpop.f32.mrb[0].mxu0
          %v1863 = vadd.f32 %v1158, %v1862
          %v1864 = vpop.f32.mrb[0].mxu0
          %1865 = vmatprep.mubr.bf16.mxu0 %v1592
          %1866 = vmatmul.mubr.bf16.gmra.mrb[0].mxu0 %v1591
          %v1867 = vpop.f32.mrb[0].mxu0
          %v1868 = vadd.f32 %v1163, %v1867
          %v1869 = vpop.f32.mrb[0].mxu0
          %v1870 = vpop.f32.mrb[0].mxu0
          %v1871 = vadd.f32 %v1166, %v1870
          %v1872 = vpop.f32.mrb[0].mxu0
          %1873 = vmatprep.mubr.bf16.mxu0 %v1594
          %1874 = vmatmul.mubr.bf16.gmra.mrb[0].mxu0 %v1593
          %v1875 = vpop.f32.mrb[0].mxu0
          %v1876 = vadd.f32 %v1171, %v1875
          %v1877 = vpop.f32.mrb[0].mxu0
          %v1878 = vpop.f32.mrb[0].mxu0
          %v1879 = vadd.f32 %v1174, %v1878
          %v1880 = vpop.f32.mrb[0].mxu0
          %1881 = vmatprep.mubr.bf16.mxu0 %v1596
          %1882 = vmatmul.mubr.bf16.gmra.mrb[0].mxu0 %v1595
          %v1883 = vpop.f32.mrb[0].mxu0
          %v1884 = vadd.f32 %v1179, %v1883
          %v1885 = vpop.f32.mrb[0].mxu0
          %v1886 = vpop.f32.mrb[0].mxu0
          %v1887 = vadd.f32 %v1182, %v1886
          %v1888 = vpop.f32.mrb[0].mxu0
          %1889 = vmatprep.mubr.bf16.mxu0 %v1598
          %1890 = vmatmul.mubr.bf16.gmra.mrb[0].mxu0 %v1597
          %v1891 = vpop.f32.mrb[0].mxu0
          %v1892 = vadd.f32 %v1187, %v1891
          %v1893 = vpop.f32.mrb[0].mxu0
          %v1894 = vpop.f32.mrb[0].mxu0
          %v1895 = vadd.f32 %v1190, %v1894
          %v1896 = vpop.f32.mrb[0].mxu0
          %1897 = vmatprep.mubr.bf16.mxu0 %v1600
          %1898 = vmatmul.mubr.bf16.gmra.mrb[0].mxu0 %v1599
          %v1899 = vpop.f32.mrb[0].mxu0
          %v1900 = vadd.f32 %v1195, %v1899
          %v1901 = vpop.f32.mrb[0].mxu0
          %v1902 = vpop.f32.mrb[0].mxu0
          %v1903 = vadd.f32 %v1198, %v1902
          %v1904 = vpop.f32.mrb[0].mxu0
          %1905 = vmatprep.mubr.bf16.mxu0 %v1602
          %1906 = vmatmul.mubr.bf16.gmra.mrb[0].mxu0 %v1601
          %v1907 = vpop.f32.mrb[0].mxu0
          %v1908 = vadd.f32 %v1203, %v1907
          %v1909 = vpop.f32.mrb[0].mxu0
          %v1910 = vpop.f32.mrb[0].mxu0
          %v1911 = vadd.f32 %v1206, %v1910
          %v1912 = vpop.f32.mrb[0].mxu0
          %1913 = vmatprep.mubr.bf16.mxu0 %v1604
          %1914 = vmatmul.mubr.bf16.gmra.mrb[0].mxu0 %v1603
          %v1915 = vpop.f32.mrb[0].mxu0
          %v1916 = vadd.f32 %v1211, %v1915
          %v1917 = vpop.f32.mrb[0].mxu0
          %v1918 = vpop.f32.mrb[0].mxu0
          %v1919 = vadd.f32 %v1214, %v1918
          %v1920 = vpop.f32.mrb[0].mxu0
          %1921 = vmatprep.mubr.bf16.mxu0 %v1606
          %1922 = vmatmul.mubr.bf16.gmra.mrb[0].mxu0 %v1605
          %v1923 = vpop.f32.mrb[0].mxu0
          %v1924 = vadd.f32 %v1219, %v1923
          %v1925 = vpop.f32.mrb[0].mxu0
          %v1926 = vpop.f32.mrb[0].mxu0
          %v1927 = vadd.f32 %v1222, %v1926
          %v1928 = vpop.f32.mrb[0].mxu0
          %1929 = vmatprep.mubr.bf16.mxu0 %v1608
          %1930 = vmatmul.mubr.bf16.gmra.mrb[0].mxu0 %v1607
          %v1931 = vpop.f32.mrb[0].mxu0
          %v1932 = vadd.f32 %v1227, %v1931
          %v1933 = vpop.f32.mrb[0].mxu0
          %v1934 = vpop.f32.mrb[0].mxu0
          %v1935 = vadd.f32 %v1230, %v1934
          %v1936 = vpop.f32.mrb[0].mxu0
          %1937 = vmatprep.mubr.bf16.mxu0 %v1610
          %1938 = vmatmul.mubr.bf16.gmra.mrb[0].mxu0 %v1609
          %v1939 = vpop.f32.mrb[0].mxu0
          %v1940 = vadd.f32 %v1235, %v1939
          %v1941 = vpop.f32.mrb[0].mxu0
          %v1942 = vpop.f32.mrb[0].mxu0
          %v1943 = vadd.f32 %v1238, %v1942
          %v1944 = vpop.f32.mrb[0].mxu0
          %1945 = vmatprep.mubr.bf16.mxu0 %v1612
          %1946 = vmatmul.mubr.bf16.gmra.mrb[0].mxu0 %v1611
          %v1947 = vpop.f32.mrb[0].mxu0
          %v1948 = vadd.f32 %v1243, %v1947
          %v1949 = vpop.f32.mrb[0].mxu0
          %v1950 = vpop.f32.mrb[0].mxu0
          %v1951 = vadd.f32 %v1246, %v1950
          %v1952 = vpop.f32.mrb[0].mxu0
          %1953 = vmatprep.mubr.bf16.mxu0 %v1614
          %1954 = vmatmul.mubr.bf16.gmra.mrb[0].mxu0 %v1613
          %v1955 = vpop.f32.mrb[0].mxu0
          %v1956 = vadd.f32 %v1251, %v1955
          %v1957 = vpop.f32.mrb[0].mxu0
          %v1958 = vpop.f32.mrb[0].mxu0
          %v1959 = vadd.f32 %v1254, %v1958
          %v1960 = vpop.f32.mrb[0].mxu0
          %1961 = vmatprep.mubr.bf16.mxu0 %v1616
          %1962 = vmatmul.mubr.bf16.gmra.mrb[0].mxu0 %v1615
          %v1963 = vpop.f32.mrb[0].mxu0
          %v1964 = vadd.f32 %v1259, %v1963
          %v1965 = vpop.f32.mrb[0].mxu0
          %v1966 = vpop.f32.mrb[0].mxu0
          %v1967 = vadd.f32 %v1262, %v1966
          %v1968 = vpop.f32.mrb[0].mxu0
          %1969 = vmatprep.mubr.bf16.mxu0 %v1618
          %1970 = vmatmul.mubr.bf16.gmra.mrb[0].mxu0 %v1617
          %v1971 = vpop.f32.mrb[0].mxu0
          %v1972 = vadd.f32 %v1267, %v1971
          %v1973 = vpop.f32.mrb[0].mxu0
          %v1974 = vpop.f32.mrb[0].mxu0
          %v1975 = vadd.f32 %v1270, %v1974
          %v1976 = vpop.f32.mrb[0].mxu0
          %1977 = vmatprep.mubr.bf16.mxu0 %v1620
          %1978 = vmatmul.mubr.bf16.gmra.mrb[0].mxu0 %v1619
          %v1979 = vpop.f32.mrb[0].mxu0
          %v1980 = vadd.f32 %v1275, %v1979
          %v1981 = vpop.f32.mrb[0].mxu0
          %v1982 = vpop.f32.mrb[0].mxu0
          %v1983 = vadd.f32 %v1278, %v1982
          %v1984 = vpop.f32.mrb[0].mxu0
          %1985 = vmatprep.mubr.bf16.mxu0 %v1622
          %1986 = vmatmul.mubr.bf16.gmra.mrb[0].mxu0 %v1621
          %v1987 = vpop.f32.mrb[0].mxu0
          %v1988 = vadd.f32 %v1283, %v1987
          %v1989 = vpop.f32.mrb[0].mxu0
          %v1990 = vpop.f32.mrb[0].mxu0
          %v1991 = vadd.f32 %v1286, %v1990
          %v1992 = vpop.f32.mrb[0].mxu0
          %1993 = vmatprep.mubr.bf16.mxu0 %v1624
          %1994 = vmatmul.mubr.bf16.gmra.mrb[0].mxu0 %v1623
          %v1995 = vpop.f32.mrb[0].mxu0
          %v1996 = vadd.f32 %v1291, %v1995
          %v1997 = vpop.f32.mrb[0].mxu0
          %v1998 = vpop.f32.mrb[0].mxu0
          %v1999 = vadd.f32 %v1294, %v1998
          %v2000 = vpop.f32.mrb[0].mxu0
          %2001 = vmatprep.mubr.bf16.mxu0 %v1626
          %2002 = vmatmul.mubr.bf16.gmra.mrb[0].mxu0 %v1625
          %v2003 = vpop.f32.mrb[0].mxu0
          %v2004 = vadd.f32 %v1299, %v2003
          %v2005 = vpop.f32.mrb[0].mxu0
          %v2006 = vpop.f32.mrb[0].mxu0
          %v2007 = vadd.f32 %v1302, %v2006
          %v2008 = vpop.f32.mrb[0].mxu0
          %2009 = vmatprep.mubr.bf16.mxu0 %v1628
          %2010 = vmatmul.mubr.bf16.gmra.mrb[0].mxu0 %v1627
          %v2011 = vpop.f32.mrb[0].mxu0
          %v2012 = vadd.f32 %v1307, %v2011
          %v2013 = vpop.f32.mrb[0].mxu0
          %v2014 = vpop.f32.mrb[0].mxu0
          %v2015 = vadd.f32 %v1310, %v2014
          %v2016 = vpop.f32.mrb[0].mxu0
          %2017 = vmatprep.mubr.bf16.mxu0 %v1630
          %2018 = vmatmul.mubr.bf16.gmra.mrb[0].mxu0 %v1629
          %v2019 = vpop.f32.mrb[0].mxu0
          %v2020 = vadd.f32 %v1315, %v2019
          %v2021 = vpop.f32.mrb[0].mxu0
          %v2022 = vpop.f32.mrb[0].mxu0
          %v2023 = vadd.f32 %v1318, %v2022
          %v2024 = vpop.f32.mrb[0].mxu0
          %2025 = vmatprep.mubr.bf16.mxu0 %v1632
          %2026 = vmatmul.mubr.bf16.gmra.mrb[0].mxu0 %v1631
          %v2027 = vpop.f32.mrb[0].mxu0
          %v2028 = vadd.f32 %v1323, %v2027
          %v2029 = vpop.f32.mrb[0].mxu0
          %v2030 = vpop.f32.mrb[0].mxu0
          %v2031 = vadd.f32 %v1326, %v2030
          %v2032 = vpop.f32.mrb[0].mxu0
          %2033 = vmatprep.mubr.bf16.mxu0 %v1634
          %2034 = vmatmul.mubr.bf16.gmra.mrb[0].mxu0 %v1633
          %v2035 = vpop.f32.mrb[0].mxu0
          %v2036 = vadd.f32 %v1331, %v2035
          %v2037 = vpop.f32.mrb[0].mxu0
          %v2038 = vpop.f32.mrb[0].mxu0
          %v2039 = vadd.f32 %v1334, %v2038
          %v2040 = vpop.f32.mrb[0].mxu0
          %2041 = vmatprep.mubr.bf16.mxu0 %v1636
          %2042 = vmatmul.mubr.bf16.gmra.mrb[0].mxu0 %v1635
          %v2043 = vpop.f32.mrb[0].mxu0
          %v2044 = vadd.f32 %v1339, %v2043
          %v2045 = vpop.f32.mrb[0].mxu0
          %v2046 = vpop.f32.mrb[0].mxu0
          %v2047 = vadd.f32 %v1342, %v2046
          %v2048 = vpop.f32.mrb[0].mxu0
          %2049 = vmatprep.mubr.bf16.mxu0 %v1638
          %2050 = vmatmul.mubr.bf16.gmra.mrb[0].mxu0 %v1637
          %v2051 = vpop.f32.mrb[0].mxu0
          %v2052 = vadd.f32 %v1347, %v2051
          %v2053 = vpop.f32.mrb[0].mxu0
          %v2054 = vpop.f32.mrb[0].mxu0
          %v2055 = vadd.f32 %v1350, %v2054
          %v2056 = vpop.f32.mrb[0].mxu0
          %2057 = vmatprep.mubr.bf16.mxu0 %v1640
          %2058 = vmatmul.mubr.bf16.gmra.mrb[0].mxu0 %v1639
          %v2059 = vpop.f32.mrb[0].mxu0
          %v2060 = vadd.f32 %v1355, %v2059
          %v2061 = vpop.f32.mrb[0].mxu0
          %v2062 = vpop.f32.mrb[0].mxu0
          %v2063 = vadd.f32 %v1358, %v2062
          %v2064 = vpop.f32.mrb[0].mxu0
          %2065 = vmatprep.mubr.bf16.mxu0 %v1642
          %2066 = vmatmul.mubr.bf16.gmra.mrb[0].mxu0 %v1641
          %v2067 = vpop.f32.mrb[0].mxu0
          %v2068 = vadd.f32 %v1363, %v2067
          %v2069 = vpop.f32.mrb[0].mxu0
          %v2070 = vpop.f32.mrb[0].mxu0
          %v2071 = vadd.f32 %v1366, %v2070
          %v2072 = vpop.f32.mrb[0].mxu0
          %2073 = vmatprep.mubr.bf16.mxu0 %v1644
          %2074 = vmatmul.mubr.bf16.gmra.mrb[0].mxu0 %v1643
          %v2075 = vpop.f32.mrb[0].mxu0
          %v2076 = vadd.f32 %v1371, %v2075
          %v2077 = vpop.f32.mrb[0].mxu0
          %v2078 = vpop.f32.mrb[0].mxu0
          %v2079 = vadd.f32 %v1374, %v2078
          %v2080 = vpop.f32.mrb[0].mxu0
          %2081 = vmatprep.mubr.bf16.mxu0 %v1646
          %2082 = vmatmul.mubr.bf16.gmra.mrb[0].mxu0 %v1645
          %v2083 = vpop.f32.mrb[0].mxu0
          %v2084 = vadd.f32 %v1379, %v2083
          %v2085 = vpop.f32.mrb[0].mxu0
          %v2086 = vpop.f32.mrb[0].mxu0
          %v2087 = vadd.f32 %v1382, %v2086
          %v2088 = vpop.f32.mrb[0].mxu0
          %2089 = vmatprep.mubr.bf16.mxu0 %v1648
          %2090 = vmatmul.mubr.bf16.gmra.mrb[0].mxu0 %v1647
          %v2091 = vpop.f32.mrb[0].mxu0
          %v2092 = vadd.f32 %v1387, %v2091
          %v2093 = vpop.f32.mrb[0].mxu0
          %v2094 = vpop.f32.mrb[0].mxu0
          %v2095 = vadd.f32 %v1390, %v2094
          %v2096 = vpop.f32.mrb[0].mxu0
          %2097 = vdwg.mxu0
          %v2098 = vld [vmem:[#allocation6] sm:$0xff]
          %v2099 = vld [vmem:[#allocation6 + $0x8] sm:$0xff]
          %v2100 = vld [vmem:[#allocation6 + $0x10] sm:$0xff]
          %v2101 = vld [vmem:[#allocation6 + $0x18] sm:$0xff]
          %v2102 = vld [vmem:[#allocation6 + $0x20] sm:$0xff]
          %v2103 = vld [vmem:[#allocation6 + $0x28] sm:$0xff]
          %v2104 = vld [vmem:[#allocation6 + $0x30] sm:$0xff]
          %v2105 = vld [vmem:[#allocation6 + $0x38] sm:$0xff]
          %v2106 = vld [vmem:[#allocation6 + $0x40] sm:$0xff]
          %v2107 = vld [vmem:[#allocation6 + $0x48] sm:$0xff]
          %v2108 = vld [vmem:[#allocation6 + $0x50] sm:$0xff]
          %v2109 = vld [vmem:[#allocation6 + $0x58] sm:$0xff]
          %v2110 = vld [vmem:[#allocation6 + $0x60] sm:$0xff]
          %v2111 = vld [vmem:[#allocation6 + $0x68] sm:$0xff]
          %v2112 = vld [vmem:[#allocation6 + $0x70] sm:$0xff]
          %v2113 = vld [vmem:[#allocation6 + $0x78] sm:$0xff]
          %v2114 = vld [vmem:[#allocation6 + $0x80] sm:$0xff]
          %v2115 = vld [vmem:[#allocation6 + $0x88] sm:$0xff]
          %v2116 = vld [vmem:[#allocation6 + $0x90] sm:$0xff]
          %v2117 = vld [vmem:[#allocation6 + $0x98] sm:$0xff]
          %v2118 = vld [vmem:[#allocation6 + $0xa0] sm:$0xff]
          %v2119 = vld [vmem:[#allocation6 + $0xa8] sm:$0xff]
          %v2120 = vld [vmem:[#allocation6 + $0xb0] sm:$0xff]
          %v2121 = vld [vmem:[#allocation6 + $0xb8] sm:$0xff]
          %v2122 = vld [vmem:[#allocation6 + $0xc0] sm:$0xff]
          %v2123 = vld [vmem:[#allocation6 + $0xc8] sm:$0xff]
          %v2124 = vld [vmem:[#allocation6 + $0xd0] sm:$0xff]
          %v2125 = vld [vmem:[#allocation6 + $0xd8] sm:$0xff]
          %v2126 = vld [vmem:[#allocation6 + $0xe0] sm:$0xff]
          %v2127 = vld [vmem:[#allocation6 + $0xe8] sm:$0xff]
          %v2128 = vld [vmem:[#allocation6 + $0xf0] sm:$0xff]
          %v2129 = vld [vmem:[#allocation6 + $0xf8] sm:$0xff]
          %v2130 = vld [vmem:[#allocation6 + $0x100] sm:$0xff]
          %v2131 = vld [vmem:[#allocation6 + $0x108] sm:$0xff]
          %v2132 = vld [vmem:[#allocation6 + $0x110] sm:$0xff]
          %v2133 = vld [vmem:[#allocation6 + $0x118] sm:$0xff]
          %v2134 = vld [vmem:[#allocation6 + $0x120] sm:$0xff]
          %v2135 = vld [vmem:[#allocation6 + $0x128] sm:$0xff]
          %v2136 = vld [vmem:[#allocation6 + $0x130] sm:$0xff]
          %v2137 = vld [vmem:[#allocation6 + $0x138] sm:$0xff]
          %v2138 = vld [vmem:[#allocation6 + $0x140] sm:$0xff]
          %v2139 = vld [vmem:[#allocation6 + $0x148] sm:$0xff]
          %v2140 = vld [vmem:[#allocation6 + $0x150] sm:$0xff]
          %v2141 = vld [vmem:[#allocation6 + $0x158] sm:$0xff]
          %v2142 = vld [vmem:[#allocation6 + $0x160] sm:$0xff]
          %v2143 = vld [vmem:[#allocation6 + $0x168] sm:$0xff]
          %v2144 = vld [vmem:[#allocation6 + $0x170] sm:$0xff]
          %v2145 = vld [vmem:[#allocation6 + $0x178] sm:$0xff]
          %v2146 = vld [vmem:[#allocation6 + $0x180] sm:$0xff]
          %v2147 = vld [vmem:[#allocation6 + $0x188] sm:$0xff]
          %v2148 = vld [vmem:[#allocation6 + $0x190] sm:$0xff]
          %v2149 = vld [vmem:[#allocation6 + $0x198] sm:$0xff]
          %v2150 = vld [vmem:[#allocation6 + $0x1a0] sm:$0xff]
          %v2151 = vld [vmem:[#allocation6 + $0x1a8] sm:$0xff]
          %v2152 = vld [vmem:[#allocation6 + $0x1b0] sm:$0xff]
          %v2153 = vld [vmem:[#allocation6 + $0x1b8] sm:$0xff]
          %v2154 = vld [vmem:[#allocation6 + $0x1c0] sm:$0xff]
          %v2155 = vld [vmem:[#allocation6 + $0x1c8] sm:$0xff]
          %v2156 = vld [vmem:[#allocation6 + $0x1d0] sm:$0xff]
          %v2157 = vld [vmem:[#allocation6 + $0x1d8] sm:$0xff]
          %v2158 = vld [vmem:[#allocation6 + $0x1e0] sm:$0xff]
          %v2159 = vld [vmem:[#allocation6 + $0x1e8] sm:$0xff]
          %v2160 = vld [vmem:[#allocation6 + $0x1f0] sm:$0xff]
          %v2161 = vld [vmem:[#allocation6 + $0x1f8] sm:$0xff]
          %v2162 = vld [vmem:[%s5 + $0x100] sm:$0xf]
          %v2163 = vld [vmem:[%s5 + $0x104] sm:$0xf]
          %v2164 = vld [vmem:[%s5 + $0x108] sm:$0xf]
          %v2165 = vld [vmem:[%s5 + $0x10c] sm:$0xf]
          %v2166 = vld [vmem:[%s5 + $0x110] sm:$0xf]
          %v2167 = vld [vmem:[%s5 + $0x114] sm:$0xf]
          %v2168 = vld [vmem:[%s5 + $0x118] sm:$0xf]
          %v2169 = vld [vmem:[%s5 + $0x11c] sm:$0xf]
          %v2170 = vld [vmem:[%s5 + $0x120] sm:$0xf]
          %v2171 = vld [vmem:[%s5 + $0x124] sm:$0xf]
          %v2172 = vld [vmem:[%s5 + $0x128] sm:$0xf]
          %v2173 = vld [vmem:[%s5 + $0x12c] sm:$0xf]
          %v2174 = vld [vmem:[%s5 + $0x130] sm:$0xf]
          %v2175 = vld [vmem:[%s5 + $0x134] sm:$0xf]
          %v2176 = vld [vmem:[%s5 + $0x138] sm:$0xf]
          %v2177 = vld [vmem:[%s5 + $0x13c] sm:$0xf]
          %v2178 = vld [vmem:[%s5 + $0x140] sm:$0xf]
          %v2179 = vld [vmem:[%s5 + $0x144] sm:$0xf]
          %v2180 = vld [vmem:[%s5 + $0x148] sm:$0xf]
          %v2181 = vld [vmem:[%s5 + $0x14c] sm:$0xf]
          %v2182 = vld [vmem:[%s5 + $0x150] sm:$0xf]
          %v2183 = vld [vmem:[%s5 + $0x154] sm:$0xf]
          %v2184 = vld [vmem:[%s5 + $0x158] sm:$0xf]
          %v2185 = vld [vmem:[%s5 + $0x15c] sm:$0xf]
          %v2186 = vld [vmem:[%s5 + $0x160] sm:$0xf]
          %v2187 = vld [vmem:[%s5 + $0x164] sm:$0xf]
          %v2188 = vld [vmem:[%s5 + $0x168] sm:$0xf]
          %v2189 = vld [vmem:[%s5 + $0x16c] sm:$0xf]
          %v2190 = vld [vmem:[%s5 + $0x170] sm:$0xf]
          %v2191 = vld [vmem:[%s5 + $0x174] sm:$0xf]
          %v2192 = vld [vmem:[%s5 + $0x178] sm:$0xf]
          %v2193 = vld [vmem:[%s5 + $0x17c] sm:$0xf]
          %v2258 = vunpack.c.l.b16 %v2098
          %v2259 = vunpack.c.h.b16 %v2098
          %v2260 = vunpack.c.l.b16 %v2099
          %v2261 = vunpack.c.h.b16 %v2099
          %v2262 = vunpack.c.l.b16 %v2100
          %v2263 = vunpack.c.h.b16 %v2100
          %v2264 = vunpack.c.l.b16 %v2101
          %v2265 = vunpack.c.h.b16 %v2101
          %v2266 = vunpack.c.l.b16 %v2102
          %v2267 = vunpack.c.h.b16 %v2102
          %v2268 = vunpack.c.l.b16 %v2103
          %v2269 = vunpack.c.h.b16 %v2103
          %v2270 = vunpack.c.l.b16 %v2104
          %v2271 = vunpack.c.h.b16 %v2104
          %v2272 = vunpack.c.l.b16 %v2105
          %v2273 = vunpack.c.h.b16 %v2105
          %v2274 = vunpack.c.l.b16 %v2106
          %v2275 = vunpack.c.h.b16 %v2106
          %v2276 = vunpack.c.l.b16 %v2107
          %v2277 = vunpack.c.h.b16 %v2107
          %v2278 = vunpack.c.l.b16 %v2108
          %v2279 = vunpack.c.h.b16 %v2108
          %v2280 = vunpack.c.l.b16 %v2109
          %v2281 = vunpack.c.h.b16 %v2109
          %v2282 = vunpack.c.l.b16 %v2110
          %v2283 = vunpack.c.h.b16 %v2110
          %v2284 = vunpack.c.l.b16 %v2111
          %v2285 = vunpack.c.h.b16 %v2111
          %v2286 = vunpack.c.l.b16 %v2112
          %v2287 = vunpack.c.h.b16 %v2112
          %v2288 = vunpack.c.l.b16 %v2113
          %v2289 = vunpack.c.h.b16 %v2113
          %v2290 = vunpack.c.l.b16 %v2114
          %v2291 = vunpack.c.h.b16 %v2114
          %v2292 = vunpack.c.l.b16 %v2115
          %v2293 = vunpack.c.h.b16 %v2115
          %v2294 = vunpack.c.l.b16 %v2116
          %v2295 = vunpack.c.h.b16 %v2116
          %v2296 = vunpack.c.l.b16 %v2117
          %v2297 = vunpack.c.h.b16 %v2117
          %v2298 = vunpack.c.l.b16 %v2118
          %v2299 = vunpack.c.h.b16 %v2118
          %v2300 = vunpack.c.l.b16 %v2119
          %v2301 = vunpack.c.h.b16 %v2119
          %v2302 = vunpack.c.l.b16 %v2120
          %v2303 = vunpack.c.h.b16 %v2120
          %v2304 = vunpack.c.l.b16 %v2121
          %v2305 = vunpack.c.h.b16 %v2121
          %v2306 = vunpack.c.l.b16 %v2122
          %v2307 = vunpack.c.h.b16 %v2122
          %v2308 = vunpack.c.l.b16 %v2123
          %v2309 = vunpack.c.h.b16 %v2123
          %v2310 = vunpack.c.l.b16 %v2124
          %v2311 = vunpack.c.h.b16 %v2124
          %v2312 = vunpack.c.l.b16 %v2125
          %v2313 = vunpack.c.h.b16 %v2125
          %v2314 = vunpack.c.l.b16 %v2126
          %v2315 = vunpack.c.h.b16 %v2126
          %v2316 = vunpack.c.l.b16 %v2127
          %v2317 = vunpack.c.h.b16 %v2127
          %v2318 = vunpack.c.l.b16 %v2128
          %v2319 = vunpack.c.h.b16 %v2128
          %v2320 = vunpack.c.l.b16 %v2129
          %v2321 = vunpack.c.h.b16 %v2129
          %v2322 = vunpack.c.l.b16 %v2130
          %v2323 = vunpack.c.h.b16 %v2130
          %v2324 = vunpack.c.l.b16 %v2131
          %v2325 = vunpack.c.h.b16 %v2131
          %v2326 = vunpack.c.l.b16 %v2132
          %v2327 = vunpack.c.h.b16 %v2132
          %v2328 = vunpack.c.l.b16 %v2133
          %v2329 = vunpack.c.h.b16 %v2133
          %v2330 = vunpack.c.l.b16 %v2134
          %v2331 = vunpack.c.h.b16 %v2134
          %v2332 = vunpack.c.l.b16 %v2135
          %v2333 = vunpack.c.h.b16 %v2135
          %v2334 = vunpack.c.l.b16 %v2136
          %v2335 = vunpack.c.h.b16 %v2136
          %v2336 = vunpack.c.l.b16 %v2137
          %v2337 = vunpack.c.h.b16 %v2137
          %v2338 = vunpack.c.l.b16 %v2138
          %v2339 = vunpack.c.h.b16 %v2138
          %v2340 = vunpack.c.l.b16 %v2139
          %v2341 = vunpack.c.h.b16 %v2139
          %v2342 = vunpack.c.l.b16 %v2140
          %v2343 = vunpack.c.h.b16 %v2140
          %v2344 = vunpack.c.l.b16 %v2141
          %v2345 = vunpack.c.h.b16 %v2141
          %v2346 = vunpack.c.l.b16 %v2142
          %v2347 = vunpack.c.h.b16 %v2142
          %v2348 = vunpack.c.l.b16 %v2143
          %v2349 = vunpack.c.h.b16 %v2143
          %v2350 = vunpack.c.l.b16 %v2144
          %v2351 = vunpack.c.h.b16 %v2144
          %v2352 = vunpack.c.l.b16 %v2145
          %v2353 = vunpack.c.h.b16 %v2145
          %v2354 = vunpack.c.l.b16 %v2146
          %v2355 = vunpack.c.h.b16 %v2146
          %v2356 = vunpack.c.l.b16 %v2147
          %v2357 = vunpack.c.h.b16 %v2147
          %v2358 = vunpack.c.l.b16 %v2148
          %v2359 = vunpack.c.h.b16 %v2148
          %v2360 = vunpack.c.l.b16 %v2149
          %v2361 = vunpack.c.h.b16 %v2149
          %v2362 = vunpack.c.l.b16 %v2150
          %v2363 = vunpack.c.h.b16 %v2150
          %v2364 = vunpack.c.l.b16 %v2151
          %v2365 = vunpack.c.h.b16 %v2151
          %v2366 = vunpack.c.l.b16 %v2152
          %v2367 = vunpack.c.h.b16 %v2152
          %v2368 = vunpack.c.l.b16 %v2153
          %v2369 = vunpack.c.h.b16 %v2153
          %v2370 = vunpack.c.l.b16 %v2154
          %v2371 = vunpack.c.h.b16 %v2154
          %v2372 = vunpack.c.l.b16 %v2155
          %v2373 = vunpack.c.h.b16 %v2155
          %v2374 = vunpack.c.l.b16 %v2156
          %v2375 = vunpack.c.h.b16 %v2156
          %v2376 = vunpack.c.l.b16 %v2157
          %v2377 = vunpack.c.h.b16 %v2157
          %v2378 = vunpack.c.l.b16 %v2158
          %v2379 = vunpack.c.h.b16 %v2158
          %v2380 = vunpack.c.l.b16 %v2159
          %v2381 = vunpack.c.h.b16 %v2159
          %v2382 = vunpack.c.l.b16 %v2160
          %v2383 = vunpack.c.h.b16 %v2160
          %v2384 = vunpack.c.l.b16 %v2161
          %v2385 = vunpack.c.h.b16 %v2161
          %v2386 = vpack.c.b16 %v2260, %v2258
          %v2387 = vpack.c.b16 %v2261, %v2259
          %v2388 = vpack.c.b16 %v2264, %v2262
          %v2389 = vpack.c.b16 %v2265, %v2263
          %v2390 = vpack.c.b16 %v2268, %v2266
          %v2391 = vpack.c.b16 %v2269, %v2267
          %v2392 = vpack.c.b16 %v2272, %v2270
          %v2393 = vpack.c.b16 %v2273, %v2271
          %v2394 = vpack.c.b16 %v2276, %v2274
          %v2395 = vpack.c.b16 %v2277, %v2275
          %v2396 = vpack.c.b16 %v2280, %v2278
          %v2397 = vpack.c.b16 %v2281, %v2279
          %v2398 = vpack.c.b16 %v2284, %v2282
          %v2399 = vpack.c.b16 %v2285, %v2283
          %v2400 = vpack.c.b16 %v2288, %v2286
          %v2401 = vpack.c.b16 %v2289, %v2287
          %v2402 = vpack.c.b16 %v2292, %v2290
          %v2403 = vpack.c.b16 %v2293, %v2291
          %v2404 = vpack.c.b16 %v2296, %v2294
          %v2405 = vpack.c.b16 %v2297, %v2295
          %v2406 = vpack.c.b16 %v2300, %v2298
          %v2407 = vpack.c.b16 %v2301, %v2299
          %v2408 = vpack.c.b16 %v2304, %v2302
          %v2409 = vpack.c.b16 %v2305, %v2303
          %v2410 = vpack.c.b16 %v2308, %v2306
          %v2411 = vpack.c.b16 %v2309, %v2307
          %v2412 = vpack.c.b16 %v2312, %v2310
          %v2413 = vpack.c.b16 %v2313, %v2311
          %v2414 = vpack.c.b16 %v2316, %v2314
          %v2415 = vpack.c.b16 %v2317, %v2315
          %v2416 = vpack.c.b16 %v2320, %v2318
          %v2417 = vpack.c.b16 %v2321, %v2319
          %v2418 = vpack.c.b16 %v2324, %v2322
          %v2419 = vpack.c.b16 %v2325, %v2323
          %v2420 = vpack.c.b16 %v2328, %v2326
          %v2421 = vpack.c.b16 %v2329, %v2327
          %v2422 = vpack.c.b16 %v2332, %v2330
          %v2423 = vpack.c.b16 %v2333, %v2331
          %v2424 = vpack.c.b16 %v2336, %v2334
          %v2425 = vpack.c.b16 %v2337, %v2335
          %v2426 = vpack.c.b16 %v2340, %v2338
          %v2427 = vpack.c.b16 %v2341, %v2339
          %v2428 = vpack.c.b16 %v2344, %v2342
          %v2429 = vpack.c.b16 %v2345, %v2343
          %v2430 = vpack.c.b16 %v2348, %v2346
          %v2431 = vpack.c.b16 %v2349, %v2347
          %v2432 = vpack.c.b16 %v2352, %v2350
          %v2433 = vpack.c.b16 %v2353, %v2351
          %v2434 = vpack.c.b16 %v2356, %v2354
          %v2435 = vpack.c.b16 %v2357, %v2355
          %v2436 = vpack.c.b16 %v2360, %v2358
          %v2437 = vpack.c.b16 %v2361, %v2359
          %v2438 = vpack.c.b16 %v2364, %v2362
          %v2439 = vpack.c.b16 %v2365, %v2363
          %v2440 = vpack.c.b16 %v2368, %v2366
          %v2441 = vpack.c.b16 %v2369, %v2367
          %v2442 = vpack.c.b16 %v2372, %v2370
          %v2443 = vpack.c.b16 %v2373, %v2371
          %v2444 = vpack.c.b16 %v2376, %v2374
          %v2445 = vpack.c.b16 %v2377, %v2375
          %v2446 = vpack.c.b16 %v2380, %v2378
          %v2447 = vpack.c.b16 %v2381, %v2379
          %v2448 = vpack.c.b16 %v2384, %v2382
          %v2449 = vpack.c.b16 %v2385, %v2383
          %v2546 = vunpack.c.l.b16 %v2162
          %v2547 = vunpack.c.l.b16 %v2163
          %v2548 = vunpack.c.l.b16 %v2164
          %v2549 = vunpack.c.l.b16 %v2165
          %v2550 = vunpack.c.l.b16 %v2166
          %v2551 = vunpack.c.l.b16 %v2167
          %v2552 = vunpack.c.l.b16 %v2168
          %v2553 = vunpack.c.l.b16 %v2169
          %v2554 = vunpack.c.l.b16 %v2170
          %v2555 = vunpack.c.l.b16 %v2171
          %v2556 = vunpack.c.l.b16 %v2172
          %v2557 = vunpack.c.l.b16 %v2173
          %v2558 = vunpack.c.l.b16 %v2174
          %v2559 = vunpack.c.l.b16 %v2175
          %v2560 = vunpack.c.l.b16 %v2176
          %v2561 = vunpack.c.l.b16 %v2177
          %v2562 = vunpack.c.l.b16 %v2178
          %v2563 = vunpack.c.l.b16 %v2179
          %v2564 = vunpack.c.l.b16 %v2180
          %v2565 = vunpack.c.l.b16 %v2181
          %v2566 = vunpack.c.l.b16 %v2182
          %v2567 = vunpack.c.l.b16 %v2183
          %v2568 = vunpack.c.l.b16 %v2184
          %v2569 = vunpack.c.l.b16 %v2185
          %v2570 = vunpack.c.l.b16 %v2186
          %v2571 = vunpack.c.l.b16 %v2187
          %v2572 = vunpack.c.l.b16 %v2188
          %v2573 = vunpack.c.l.b16 %v2189
          %v2574 = vunpack.c.l.b16 %v2190
          %v2575 = vunpack.c.l.b16 %v2191
          %v2576 = vunpack.c.l.b16 %v2192
          %v2577 = vunpack.c.l.b16 %v2193
          %v2578 = vpack.c.b16 %v2547, %v2546
          %v2579 = vpack.c.b16 %v2549, %v2548
          %v2580 = vpack.c.b16 %v2551, %v2550
          %v2581 = vpack.c.b16 %v2553, %v2552
          %v2582 = vpack.c.b16 %v2555, %v2554
          %v2583 = vpack.c.b16 %v2557, %v2556
          %v2584 = vpack.c.b16 %v2559, %v2558
          %v2585 = vpack.c.b16 %v2561, %v2560
          %v2586 = vpack.c.b16 %v2563, %v2562
          %v2587 = vpack.c.b16 %v2565, %v2564
          %v2588 = vpack.c.b16 %v2567, %v2566
          %v2589 = vpack.c.b16 %v2569, %v2568
          %v2590 = vpack.c.b16 %v2571, %v2570
          %v2591 = vpack.c.b16 %v2573, %v2572
          %v2592 = vpack.c.b16 %v2575, %v2574
          %v2593 = vpack.c.b16 %v2577, %v2576
          %2610 = vmatprep.subr.bf16.mxu0 0
          %2611 = vmatpush1.bf16.msra.mxu0 %v2578
          %2612 = vmatprep.subr.bf16.mxu0 0
          %2613 = vmatpush1.bf16.msra.mxu0 %v2579
          %2614 = vmatprep.subr.bf16.mxu0 0
          %2615 = vmatpush1.bf16.msra.mxu0 %v2580
          %2616 = vmatprep.subr.bf16.mxu0 0
          %2617 = vmatpush1.bf16.msra.mxu0 %v2581
          %2618 = vmatprep.subr.bf16.mxu0 0
          %2619 = vmatpush1.bf16.msra.mxu0 %v2582
          %2620 = vmatprep.subr.bf16.mxu0 0
          %2621 = vmatpush1.bf16.msra.mxu0 %v2583
          %2622 = vmatprep.subr.bf16.mxu0 0
          %2623 = vmatpush1.bf16.msra.mxu0 %v2584
          %2624 = vmatprep.subr.bf16.mxu0 0
          %2625 = vmatpush1.bf16.msra.mxu0 %v2585
          %2626 = vmatprep.subr.bf16.mxu0 0
          %2627 = vmatpush1.bf16.msra.mxu0 %v2586
          %2628 = vmatprep.subr.bf16.mxu0 0
          %2629 = vmatpush1.bf16.msra.mxu0 %v2587
          %2630 = vmatprep.subr.bf16.mxu0 0
          %2631 = vmatpush1.bf16.msra.mxu0 %v2588
          %2632 = vmatprep.subr.bf16.mxu0 0
          %2633 = vmatpush1.bf16.msra.mxu0 %v2589
          %2634 = vmatprep.subr.bf16.mxu0 0
          %2635 = vmatpush1.bf16.msra.mxu0 %v2590
          %2636 = vmatprep.subr.bf16.mxu0 0
          %2637 = vmatpush1.bf16.msra.mxu0 %v2591
          %2638 = vmatprep.subr.bf16.mxu0 0
          %2639 = vmatpush1.bf16.msra.mxu0 %v2592
          %2640 = vmatprep.subr.bf16.mxu0 0
          %2641 = vmatpush1.bf16.msra.mxu0 %v2593
          %2642 = vmatprep.mubr.bf16.mxu0 %v2387
          %2643 = vmatmul.mubr.bf16.gmra.mrb[0].mxu0 %v2386
          %v2644 = vpop.f32.mrb[0].mxu0
          %v2645 = vadd.f32 0.0, %v2644
          %v2646 = vpop.f32.mrb[0].mxu0
          %v2647 = vpop.f32.mrb[0].mxu0
          %v2648 = vadd.f32 0.0, %v2647
          %v2649 = vpop.f32.mrb[0].mxu0
          %2650 = vmatprep.mubr.bf16.mxu0 %v2389
          %2651 = vmatmul.mubr.bf16.gmra.mrb[0].mxu0 %v2388
          %v2652 = vpop.f32.mrb[0].mxu0
          %v2653 = vadd.f32 0.0, %v2652
          %v2654 = vpop.f32.mrb[0].mxu0
          %v2655 = vpop.f32.mrb[0].mxu0
          %v2656 = vadd.f32 0.0, %v2655
          %v2657 = vpop.f32.mrb[0].mxu0
          %2658 = vmatprep.mubr.bf16.mxu0 %v2391
          %2659 = vmatmul.mubr.bf16.gmra.mrb[0].mxu0 %v2390
          %v2660 = vpop.f32.mrb[0].mxu0
          %v2661 = vadd.f32 0.0, %v2660
          %v2662 = vpop.f32.mrb[0].mxu0
          %v2663 = vpop.f32.mrb[0].mxu0
          %v2664 = vadd.f32 0.0, %v2663
          %v2665 = vpop.f32.mrb[0].mxu0
          %2666 = vmatprep.mubr.bf16.mxu0 %v2393
          %2667 = vmatmul.mubr.bf16.gmra.mrb[0].mxu0 %v2392
          %v2668 = vpop.f32.mrb[0].mxu0
          %v2669 = vadd.f32 0.0, %v2668
          %v2670 = vpop.f32.mrb[0].mxu0
          %v2671 = vpop.f32.mrb[0].mxu0
          %v2672 = vadd.f32 0.0, %v2671
          %v2673 = vpop.f32.mrb[0].mxu0
          %2674 = vmatprep.mubr.bf16.mxu0 %v2395
          %2675 = vmatmul.mubr.bf16.gmra.mrb[0].mxu0 %v2394
          %v2676 = vpop.f32.mrb[0].mxu0
          %v2677 = vadd.f32 0.0, %v2676
          %v2678 = vpop.f32.mrb[0].mxu0
          %v2679 = vpop.f32.mrb[0].mxu0
          %v2680 = vadd.f32 0.0, %v2679
          %v2681 = vpop.f32.mrb[0].mxu0
          %2682 = vmatprep.mubr.bf16.mxu0 %v2397
          %2683 = vmatmul.mubr.bf16.gmra.mrb[0].mxu0 %v2396
          %v2684 = vpop.f32.mrb[0].mxu0
          %v2685 = vadd.f32 0.0, %v2684
          %v2686 = vpop.f32.mrb[0].mxu0
          %v2687 = vpop.f32.mrb[0].mxu0
          %v2688 = vadd.f32 0.0, %v2687
          %v2689 = vpop.f32.mrb[0].mxu0
          %2690 = vmatprep.mubr.bf16.mxu0 %v2399
          %2691 = vmatmul.mubr.bf16.gmra.mrb[0].mxu0 %v2398
          %v2692 = vpop.f32.mrb[0].mxu0
          %v2693 = vadd.f32 0.0, %v2692
          %v2694 = vpop.f32.mrb[0].mxu0
          %v2695 = vpop.f32.mrb[0].mxu0
          %v2696 = vadd.f32 0.0, %v2695
          %v2697 = vpop.f32.mrb[0].mxu0
          %2698 = vmatprep.mubr.bf16.mxu0 %v2401
          %2699 = vmatmul.mubr.bf16.gmra.mrb[0].mxu0 %v2400
          %v2700 = vpop.f32.mrb[0].mxu0
          %v2701 = vadd.f32 0.0, %v2700
          %v2702 = vpop.f32.mrb[0].mxu0
          %v2703 = vpop.f32.mrb[0].mxu0
          %v2704 = vadd.f32 0.0, %v2703
          %v2705 = vpop.f32.mrb[0].mxu0
          %2706 = vmatprep.mubr.bf16.mxu0 %v2403
          %2707 = vmatmul.mubr.bf16.gmra.mrb[0].mxu0 %v2402
          %v2708 = vpop.f32.mrb[0].mxu0
          %v2709 = vadd.f32 0.0, %v2708
          %v2710 = vpop.f32.mrb[0].mxu0
          %v2711 = vpop.f32.mrb[0].mxu0
          %v2712 = vadd.f32 0.0, %v2711
          %v2713 = vpop.f32.mrb[0].mxu0
          %2714 = vmatprep.mubr.bf16.mxu0 %v2405
          %2715 = vmatmul.mubr.bf16.gmra.mrb[0].mxu0 %v2404
          %v2716 = vpop.f32.mrb[0].mxu0
          %v2717 = vadd.f32 0.0, %v2716
          %v2718 = vpop.f32.mrb[0].mxu0
          %v2719 = vpop.f32.mrb[0].mxu0
          %v2720 = vadd.f32 0.0, %v2719
          %v2721 = vpop.f32.mrb[0].mxu0
          %2722 = vmatprep.mubr.bf16.mxu0 %v2407
          %2723 = vmatmul.mubr.bf16.gmra.mrb[0].mxu0 %v2406
          %v2724 = vpop.f32.mrb[0].mxu0
          %v2725 = vadd.f32 0.0, %v2724
          %v2726 = vpop.f32.mrb[0].mxu0
          %v2727 = vpop.f32.mrb[0].mxu0
          %v2728 = vadd.f32 0.0, %v2727
          %v2729 = vpop.f32.mrb[0].mxu0
          %2730 = vmatprep.mubr.bf16.mxu0 %v2409
          %2731 = vmatmul.mubr.bf16.gmra.mrb[0].mxu0 %v2408
          %v2732 = vpop.f32.mrb[0].mxu0
          %v2733 = vadd.f32 0.0, %v2732
          %v2734 = vpop.f32.mrb[0].mxu0
          %v2735 = vpop.f32.mrb[0].mxu0
          %v2736 = vadd.f32 0.0, %v2735
          %v2737 = vpop.f32.mrb[0].mxu0
          %2738 = vmatprep.mubr.bf16.mxu0 %v2411
          %2739 = vmatmul.mubr.bf16.gmra.mrb[0].mxu0 %v2410
          %v2740 = vpop.f32.mrb[0].mxu0
          %v2741 = vadd.f32 0.0, %v2740
          %v2742 = vpop.f32.mrb[0].mxu0
          %v2743 = vpop.f32.mrb[0].mxu0
          %v2744 = vadd.f32 0.0, %v2743
          %v2745 = vpop.f32.mrb[0].mxu0
          %2746 = vmatprep.mubr.bf16.mxu0 %v2413
          %2747 = vmatmul.mubr.bf16.gmra.mrb[0].mxu0 %v2412
          %v2748 = vpop.f32.mrb[0].mxu0
          %v2749 = vadd.f32 0.0, %v2748
          %v2750 = vpop.f32.mrb[0].mxu0
          %v2751 = vpop.f32.mrb[0].mxu0
          %v2752 = vadd.f32 0.0, %v2751
          %v2753 = vpop.f32.mrb[0].mxu0
          %2754 = vmatprep.mubr.bf16.mxu0 %v2415
          %2755 = vmatmul.mubr.bf16.gmra.mrb[0].mxu0 %v2414
          %v2756 = vpop.f32.mrb[0].mxu0
          %v2757 = vadd.f32 0.0, %v2756
          %v2758 = vpop.f32.mrb[0].mxu0
          %v2759 = vpop.f32.mrb[0].mxu0
          %v2760 = vadd.f32 0.0, %v2759
          %v2761 = vpop.f32.mrb[0].mxu0
          %2762 = vmatprep.mubr.bf16.mxu0 %v2417
          %2763 = vmatmul.mubr.bf16.gmra.mrb[0].mxu0 %v2416
          %v2764 = vpop.f32.mrb[0].mxu0
          %v2765 = vadd.f32 0.0, %v2764
          %v2766 = vpop.f32.mrb[0].mxu0
          %v2767 = vpop.f32.mrb[0].mxu0
          %v2768 = vadd.f32 0.0, %v2767
          %v2769 = vpop.f32.mrb[0].mxu0
          %2770 = vmatprep.mubr.bf16.mxu0 %v2419
          %2771 = vmatmul.mubr.bf16.gmra.mrb[0].mxu0 %v2418
          %v2772 = vpop.f32.mrb[0].mxu0
          %v2773 = vadd.f32 0.0, %v2772
          %v2774 = vpop.f32.mrb[0].mxu0
          %v2775 = vpop.f32.mrb[0].mxu0
          %v2776 = vadd.f32 0.0, %v2775
          %v2777 = vpop.f32.mrb[0].mxu0
          %2778 = vmatprep.mubr.bf16.mxu0 %v2421
          %2779 = vmatmul.mubr.bf16.gmra.mrb[0].mxu0 %v2420
          %v2780 = vpop.f32.mrb[0].mxu0
          %v2781 = vadd.f32 0.0, %v2780
          %v2782 = vpop.f32.mrb[0].mxu0
          %v2783 = vpop.f32.mrb[0].mxu0
          %v2784 = vadd.f32 0.0, %v2783
          %v2785 = vpop.f32.mrb[0].mxu0
          %2786 = vmatprep.mubr.bf16.mxu0 %v2423
          %2787 = vmatmul.mubr.bf16.gmra.mrb[0].mxu0 %v2422
          %v2788 = vpop.f32.mrb[0].mxu0
          %v2789 = vadd.f32 0.0, %v2788
          %v2790 = vpop.f32.mrb[0].mxu0
          %v2791 = vpop.f32.mrb[0].mxu0
          %v2792 = vadd.f32 0.0, %v2791
          %v2793 = vpop.f32.mrb[0].mxu0
          %2794 = vmatprep.mubr.bf16.mxu0 %v2425
          %2795 = vmatmul.mubr.bf16.gmra.mrb[0].mxu0 %v2424
          %v2796 = vpop.f32.mrb[0].mxu0
          %v2797 = vadd.f32 0.0, %v2796
          %v2798 = vpop.f32.mrb[0].mxu0
          %v2799 = vpop.f32.mrb[0].mxu0
          %v2800 = vadd.f32 0.0, %v2799
          %v2801 = vpop.f32.mrb[0].mxu0
          %2802 = vmatprep.mubr.bf16.mxu0 %v2427
          %2803 = vmatmul.mubr.bf16.gmra.mrb[0].mxu0 %v2426
          %v2804 = vpop.f32.mrb[0].mxu0
          %v2805 = vadd.f32 0.0, %v2804
          %v2806 = vpop.f32.mrb[0].mxu0
          %v2807 = vpop.f32.mrb[0].mxu0
          %v2808 = vadd.f32 0.0, %v2807
          %v2809 = vpop.f32.mrb[0].mxu0
          %2810 = vmatprep.mubr.bf16.mxu0 %v2429
          %2811 = vmatmul.mubr.bf16.gmra.mrb[0].mxu0 %v2428
          %v2812 = vpop.f32.mrb[0].mxu0
          %v2813 = vadd.f32 0.0, %v2812
          %v2814 = vpop.f32.mrb[0].mxu0
          %v2815 = vpop.f32.mrb[0].mxu0
          %v2816 = vadd.f32 0.0, %v2815
          %v2817 = vpop.f32.mrb[0].mxu0
          %2818 = vmatprep.mubr.bf16.mxu0 %v2431
          %2819 = vmatmul.mubr.bf16.gmra.mrb[0].mxu0 %v2430
          %v2820 = vpop.f32.mrb[0].mxu0
          %v2821 = vadd.f32 0.0, %v2820
          %v2822 = vpop.f32.mrb[0].mxu0
          %v2823 = vpop.f32.mrb[0].mxu0
          %v2824 = vadd.f32 0.0, %v2823
          %v2825 = vpop.f32.mrb[0].mxu0
          %2826 = vmatprep.mubr.bf16.mxu0 %v2433
          %2827 = vmatmul.mubr.bf16.gmra.mrb[0].mxu0 %v2432
          %v2828 = vpop.f32.mrb[0].mxu0
          %v2829 = vadd.f32 0.0, %v2828
          %v2830 = vpop.f32.mrb[0].mxu0
          %v2831 = vpop.f32.mrb[0].mxu0
          %v2832 = vadd.f32 0.0, %v2831
          %v2833 = vpop.f32.mrb[0].mxu0
          %2834 = vmatprep.mubr.bf16.mxu0 %v2435
          %2835 = vmatmul.mubr.bf16.gmra.mrb[0].mxu0 %v2434
          %v2836 = vpop.f32.mrb[0].mxu0
          %v2837 = vadd.f32 0.0, %v2836
          %v2838 = vpop.f32.mrb[0].mxu0
          %v2839 = vpop.f32.mrb[0].mxu0
          %v2840 = vadd.f32 0.0, %v2839
          %v2841 = vpop.f32.mrb[0].mxu0
          %2842 = vmatprep.mubr.bf16.mxu0 %v2437
          %2843 = vmatmul.mubr.bf16.gmra.mrb[0].mxu0 %v2436
          %v2844 = vpop.f32.mrb[0].mxu0
          %v2845 = vadd.f32 0.0, %v2844
          %v2846 = vpop.f32.mrb[0].mxu0
          %v2847 = vpop.f32.mrb[0].mxu0
          %v2848 = vadd.f32 0.0, %v2847
          %v2849 = vpop.f32.mrb[0].mxu0
          %2850 = vmatprep.mubr.bf16.mxu0 %v2439
          %2851 = vmatmul.mubr.bf16.gmra.mrb[0].mxu0 %v2438
          %v2852 = vpop.f32.mrb[0].mxu0
          %v2853 = vadd.f32 0.0, %v2852
          %v2854 = vpop.f32.mrb[0].mxu0
          %v2855 = vpop.f32.mrb[0].mxu0
          %v2856 = vadd.f32 0.0, %v2855
          %v2857 = vpop.f32.mrb[0].mxu0
          %2858 = vmatprep.mubr.bf16.mxu0 %v2441
          %2859 = vmatmul.mubr.bf16.gmra.mrb[0].mxu0 %v2440
          %v2860 = vpop.f32.mrb[0].mxu0
          %v2861 = vadd.f32 0.0, %v2860
          %v2862 = vpop.f32.mrb[0].mxu0
          %v2863 = vpop.f32.mrb[0].mxu0
          %v2864 = vadd.f32 0.0, %v2863
          %v2865 = vpop.f32.mrb[0].mxu0
          %2866 = vmatprep.mubr.bf16.mxu0 %v2443
          %2867 = vmatmul.mubr.bf16.gmra.mrb[0].mxu0 %v2442
          %v2868 = vpop.f32.mrb[0].mxu0
          %v2869 = vadd.f32 0.0, %v2868
          %v2870 = vpop.f32.mrb[0].mxu0
          %v2871 = vpop.f32.mrb[0].mxu0
          %v2872 = vadd.f32 0.0, %v2871
          %v2873 = vpop.f32.mrb[0].mxu0
          %2874 = vmatprep.mubr.bf16.mxu0 %v2445
          %2875 = vmatmul.mubr.bf16.gmra.mrb[0].mxu0 %v2444
          %v2876 = vpop.f32.mrb[0].mxu0
          %v2877 = vadd.f32 0.0, %v2876
          %v2878 = vpop.f32.mrb[0].mxu0
          %v2879 = vpop.f32.mrb[0].mxu0
          %v2880 = vadd.f32 0.0, %v2879
          %v2881 = vpop.f32.mrb[0].mxu0
          %2882 = vmatprep.mubr.bf16.mxu0 %v2447
          %2883 = vmatmul.mubr.bf16.gmra.mrb[0].mxu0 %v2446
          %v2884 = vpop.f32.mrb[0].mxu0
          %v2885 = vadd.f32 0.0, %v2884
          %v2886 = vpop.f32.mrb[0].mxu0
          %v2887 = vpop.f32.mrb[0].mxu0
          %v2888 = vadd.f32 0.0, %v2887
          %v2889 = vpop.f32.mrb[0].mxu0
          %2890 = vmatprep.mubr.bf16.mxu0 %v2449
          %2891 = vmatmul.mubr.bf16.gmra.mrb[0].mxu0 %v2448
          %v2892 = vpop.f32.mrb[0].mxu0
          %v2893 = vadd.f32 0.0, %v2892
          %v2894 = vpop.f32.mrb[0].mxu0
          %v2895 = vpop.f32.mrb[0].mxu0
          %v2896 = vadd.f32 0.0, %v2895
          %v2897 = vpop.f32.mrb[0].mxu0
          %2898 = vdwg.mxu0
          %v2899 = vadd.f32 %v1844, %v2645
          %v2900 = vadd.f32 %v1847, %v2648
          %v2901 = vadd.f32 %v1852, %v2653
          %v2902 = vadd.f32 %v1855, %v2656
          %v2903 = vadd.f32 %v1860, %v2661
          %v2904 = vadd.f32 %v1863, %v2664
          %v2905 = vadd.f32 %v1868, %v2669
          %v2906 = vadd.f32 %v1871, %v2672
          %v2907 = vadd.f32 %v1876, %v2677
          %v2908 = vadd.f32 %v1879, %v2680
          %v2909 = vadd.f32 %v1884, %v2685
          %v2910 = vadd.f32 %v1887, %v2688
          %v2911 = vadd.f32 %v1892, %v2693
          %v2912 = vadd.f32 %v1895, %v2696
          %v2913 = vadd.f32 %v1900, %v2701
          %v2914 = vadd.f32 %v1903, %v2704
          %v2915 = vadd.f32 %v1908, %v2709
          %v2916 = vadd.f32 %v1911, %v2712
          %v2917 = vadd.f32 %v1916, %v2717
          %v2918 = vadd.f32 %v1919, %v2720
          %v2919 = vadd.f32 %v1924, %v2725
          %v2920 = vadd.f32 %v1927, %v2728
          %v2921 = vadd.f32 %v1932, %v2733
          %v2922 = vadd.f32 %v1935, %v2736
          %v2923 = vadd.f32 %v1940, %v2741
          %v2924 = vadd.f32 %v1943, %v2744
          %v2925 = vadd.f32 %v1948, %v2749
          %v2926 = vadd.f32 %v1951, %v2752
          %v2927 = vadd.f32 %v1956, %v2757
          %v2928 = vadd.f32 %v1959, %v2760
          %v2929 = vadd.f32 %v1964, %v2765
          %v2930 = vadd.f32 %v1967, %v2768
          %v2931 = vadd.f32 %v1972, %v2773
          %v2932 = vadd.f32 %v1975, %v2776
          %v2933 = vadd.f32 %v1980, %v2781
          %v2934 = vadd.f32 %v1983, %v2784
          %v2935 = vadd.f32 %v1988, %v2789
          %v2936 = vadd.f32 %v1991, %v2792
          %v2937 = vadd.f32 %v1996, %v2797
          %v2938 = vadd.f32 %v1999, %v2800
          %v2939 = vadd.f32 %v2004, %v2805
          %v2940 = vadd.f32 %v2007, %v2808
          %v2941 = vadd.f32 %v2012, %v2813
          %v2942 = vadd.f32 %v2015, %v2816
          %v2943 = vadd.f32 %v2020, %v2821
          %v2944 = vadd.f32 %v2023, %v2824
          %v2945 = vadd.f32 %v2028, %v2829
          %v2946 = vadd.f32 %v2031, %v2832
          %v2947 = vadd.f32 %v2036, %v2837
          %v2948 = vadd.f32 %v2039, %v2840
          %v2949 = vadd.f32 %v2044, %v2845
          %v2950 = vadd.f32 %v2047, %v2848
          %v2951 = vadd.f32 %v2052, %v2853
          %v2952 = vadd.f32 %v2055, %v2856
          %v2953 = vadd.f32 %v2060, %v2861
          %v2954 = vadd.f32 %v2063, %v2864
          %v2955 = vadd.f32 %v2068, %v2869
          %v2956 = vadd.f32 %v2071, %v2872
          %v2957 = vadd.f32 %v2076, %v2877
          %v2958 = vadd.f32 %v2079, %v2880
          %v2959 = vadd.f32 %v2084, %v2885
          %v2960 = vadd.f32 %v2087, %v2888
          %v2961 = vadd.f32 %v2092, %v2893
          %v2962 = vadd.f32 %v2095, %v2896
          %v2963 = vld [vmem:[#allocation8] sm:$0xff]
          %v2964 = vld [vmem:[#allocation8 + $0x8] sm:$0xff]
          %v2965 = vld [vmem:[#allocation8 + $0x10] sm:$0xff]
          %v2966 = vld [vmem:[#allocation8 + $0x18] sm:$0xff]
          %v2967 = vld [vmem:[#allocation8 + $0x20] sm:$0xff]
          %v2968 = vld [vmem:[#allocation8 + $0x28] sm:$0xff]
          %v2969 = vld [vmem:[#allocation8 + $0x30] sm:$0xff]
          %v2970 = vld [vmem:[#allocation8 + $0x38] sm:$0xff]
          %v2971 = vld [vmem:[#allocation8 + $0x40] sm:$0xff]
          %v2972 = vld [vmem:[#allocation8 + $0x48] sm:$0xff]
          %v2973 = vld [vmem:[#allocation8 + $0x50] sm:$0xff]
          %v2974 = vld [vmem:[#allocation8 + $0x58] sm:$0xff]
          %v2975 = vld [vmem:[#allocation8 + $0x60] sm:$0xff]
          %v2976 = vld [vmem:[#allocation8 + $0x68] sm:$0xff]
          %v2977 = vld [vmem:[#allocation8 + $0x70] sm:$0xff]
          %v2978 = vld [vmem:[#allocation8 + $0x78] sm:$0xff]
          %v2979 = vld [vmem:[#allocation8 + $0x80] sm:$0xff]
          %v2980 = vld [vmem:[#allocation8 + $0x88] sm:$0xff]
          %v2981 = vld [vmem:[#allocation8 + $0x90] sm:$0xff]
          %v2982 = vld [vmem:[#allocation8 + $0x98] sm:$0xff]
          %v2983 = vld [vmem:[#allocation8 + $0xa0] sm:$0xff]
          %v2984 = vld [vmem:[#allocation8 + $0xa8] sm:$0xff]
          %v2985 = vld [vmem:[#allocation8 + $0xb0] sm:$0xff]
          %v2986 = vld [vmem:[#allocation8 + $0xb8] sm:$0xff]
          %v2987 = vld [vmem:[#allocation8 + $0xc0] sm:$0xff]
          %v2988 = vld [vmem:[#allocation8 + $0xc8] sm:$0xff]
          %v2989 = vld [vmem:[#allocation8 + $0xd0] sm:$0xff]
          %v2990 = vld [vmem:[#allocation8 + $0xd8] sm:$0xff]
          %v2991 = vld [vmem:[#allocation8 + $0xe0] sm:$0xff]
          %v2992 = vld [vmem:[#allocation8 + $0xe8] sm:$0xff]
          %v2993 = vld [vmem:[#allocation8 + $0xf0] sm:$0xff]
          %v2994 = vld [vmem:[#allocation8 + $0xf8] sm:$0xff]
          %v2995 = vld [vmem:[#allocation8 + $0x100] sm:$0xff]
          %v2996 = vld [vmem:[#allocation8 + $0x108] sm:$0xff]
          %v2997 = vld [vmem:[#allocation8 + $0x110] sm:$0xff]
          %v2998 = vld [vmem:[#allocation8 + $0x118] sm:$0xff]
          %v2999 = vld [vmem:[#allocation8 + $0x120] sm:$0xff]
          %v3000 = vld [vmem:[#allocation8 + $0x128] sm:$0xff]
          %v3001 = vld [vmem:[#allocation8 + $0x130] sm:$0xff]
          %v3002 = vld [vmem:[#allocation8 + $0x138] sm:$0xff]
          %v3003 = vld [vmem:[#allocation8 + $0x140] sm:$0xff]
          %v3004 = vld [vmem:[#allocation8 + $0x148] sm:$0xff]
          %v3005 = vld [vmem:[#allocation8 + $0x150] sm:$0xff]
          %v3006 = vld [vmem:[#allocation8 + $0x158] sm:$0xff]
          %v3007 = vld [vmem:[#allocation8 + $0x160] sm:$0xff]
          %v3008 = vld [vmem:[#allocation8 + $0x168] sm:$0xff]
          %v3009 = vld [vmem:[#allocation8 + $0x170] sm:$0xff]
          %v3010 = vld [vmem:[#allocation8 + $0x178] sm:$0xff]
          %v3011 = vld [vmem:[#allocation8 + $0x180] sm:$0xff]
          %v3012 = vld [vmem:[#allocation8 + $0x188] sm:$0xff]
          %v3013 = vld [vmem:[#allocation8 + $0x190] sm:$0xff]
          %v3014 = vld [vmem:[#allocation8 + $0x198] sm:$0xff]
          %v3015 = vld [vmem:[#allocation8 + $0x1a0] sm:$0xff]
          %v3016 = vld [vmem:[#allocation8 + $0x1a8] sm:$0xff]
          %v3017 = vld [vmem:[#allocation8 + $0x1b0] sm:$0xff]
          %v3018 = vld [vmem:[#allocation8 + $0x1b8] sm:$0xff]
          %v3019 = vld [vmem:[#allocation8 + $0x1c0] sm:$0xff]
          %v3020 = vld [vmem:[#allocation8 + $0x1c8] sm:$0xff]
          %v3021 = vld [vmem:[#allocation8 + $0x1d0] sm:$0xff]
          %v3022 = vld [vmem:[#allocation8 + $0x1d8] sm:$0xff]
          %v3023 = vld [vmem:[#allocation8 + $0x1e0] sm:$0xff]
          %v3024 = vld [vmem:[#allocation8 + $0x1e8] sm:$0xff]
          %v3025 = vld [vmem:[#allocation8 + $0x1f0] sm:$0xff]
          %v3026 = vld [vmem:[#allocation8 + $0x1f8] sm:$0xff]
          %v3027 = vld [vmem:[%s5 + $0x180] sm:$0xf]
          %v3028 = vld [vmem:[%s5 + $0x184] sm:$0xf]
          %v3029 = vld [vmem:[%s5 + $0x188] sm:$0xf]
          %v3030 = vld [vmem:[%s5 + $0x18c] sm:$0xf]
          %v3031 = vld [vmem:[%s5 + $0x190] sm:$0xf]
          %v3032 = vld [vmem:[%s5 + $0x194] sm:$0xf]
          %v3033 = vld [vmem:[%s5 + $0x198] sm:$0xf]
          %v3034 = vld [vmem:[%s5 + $0x19c] sm:$0xf]
          %v3035 = vld [vmem:[%s5 + $0x1a0] sm:$0xf]
          %v3036 = vld [vmem:[%s5 + $0x1a4] sm:$0xf]
          %v3037 = vld [vmem:[%s5 + $0x1a8] sm:$0xf]
          %v3038 = vld [vmem:[%s5 + $0x1ac] sm:$0xf]
          %v3039 = vld [vmem:[%s5 + $0x1b0] sm:$0xf]
          %v3040 = vld [vmem:[%s5 + $0x1b4] sm:$0xf]
          %v3041 = vld [vmem:[%s5 + $0x1b8] sm:$0xf]
          %v3042 = vld [vmem:[%s5 + $0x1bc] sm:$0xf]
          %v3043 = vld [vmem:[%s5 + $0x1c0] sm:$0xf]
          %v3044 = vld [vmem:[%s5 + $0x1c4] sm:$0xf]
          %v3045 = vld [vmem:[%s5 + $0x1c8] sm:$0xf]
          %v3046 = vld [vmem:[%s5 + $0x1cc] sm:$0xf]
          %v3047 = vld [vmem:[%s5 + $0x1d0] sm:$0xf]
          %v3048 = vld [vmem:[%s5 + $0x1d4] sm:$0xf]
          %v3049 = vld [vmem:[%s5 + $0x1d8] sm:$0xf]
          %v3050 = vld [vmem:[%s5 + $0x1dc] sm:$0xf]
          %v3051 = vld [vmem:[%s5 + $0x1e0] sm:$0xf]
          %v3052 = vld [vmem:[%s5 + $0x1e4] sm:$0xf]
          %v3053 = vld [vmem:[%s5 + $0x1e8] sm:$0xf]
          %v3054 = vld [vmem:[%s5 + $0x1ec] sm:$0xf]
          %v3055 = vld [vmem:[%s5 + $0x1f0] sm:$0xf]
          %v3056 = vld [vmem:[%s5 + $0x1f4] sm:$0xf]
          %v3057 = vld [vmem:[%s5 + $0x1f8] sm:$0xf]
          %v3058 = vld [vmem:[%s5 + $0x1fc] sm:$0xf]
          %v3123 = vunpack.c.l.b16 %v2963
          %v3124 = vunpack.c.h.b16 %v2963
          %v3125 = vunpack.c.l.b16 %v2964
          %v3126 = vunpack.c.h.b16 %v2964
          %v3127 = vunpack.c.l.b16 %v2965
          %v3128 = vunpack.c.h.b16 %v2965
          %v3129 = vunpack.c.l.b16 %v2966
          %v3130 = vunpack.c.h.b16 %v2966
          %v3131 = vunpack.c.l.b16 %v2967
          %v3132 = vunpack.c.h.b16 %v2967
          %v3133 = vunpack.c.l.b16 %v2968
          %v3134 = vunpack.c.h.b16 %v2968
          %v3135 = vunpack.c.l.b16 %v2969
          %v3136 = vunpack.c.h.b16 %v2969
          %v3137 = vunpack.c.l.b16 %v2970
          %v3138 = vunpack.c.h.b16 %v2970
          %v3139 = vunpack.c.l.b16 %v2971
          %v3140 = vunpack.c.h.b16 %v2971
          %v3141 = vunpack.c.l.b16 %v2972
          %v3142 = vunpack.c.h.b16 %v2972
          %v3143 = vunpack.c.l.b16 %v2973
          %v3144 = vunpack.c.h.b16 %v2973
          %v3145 = vunpack.c.l.b16 %v2974
          %v3146 = vunpack.c.h.b16 %v2974
          %v3147 = vunpack.c.l.b16 %v2975
          %v3148 = vunpack.c.h.b16 %v2975
          %v3149 = vunpack.c.l.b16 %v2976
          %v3150 = vunpack.c.h.b16 %v2976
          %v3151 = vunpack.c.l.b16 %v2977
          %v3152 = vunpack.c.h.b16 %v2977
          %v3153 = vunpack.c.l.b16 %v2978
          %v3154 = vunpack.c.h.b16 %v2978
          %v3155 = vunpack.c.l.b16 %v2979
          %v3156 = vunpack.c.h.b16 %v2979
          %v3157 = vunpack.c.l.b16 %v2980
          %v3158 = vunpack.c.h.b16 %v2980
          %v3159 = vunpack.c.l.b16 %v2981
          %v3160 = vunpack.c.h.b16 %v2981
          %v3161 = vunpack.c.l.b16 %v2982
          %v3162 = vunpack.c.h.b16 %v2982
          %v3163 = vunpack.c.l.b16 %v2983
          %v3164 = vunpack.c.h.b16 %v2983
          %v3165 = vunpack.c.l.b16 %v2984
          %v3166 = vunpack.c.h.b16 %v2984
          %v3167 = vunpack.c.l.b16 %v2985
          %v3168 = vunpack.c.h.b16 %v2985
          %v3169 = vunpack.c.l.b16 %v2986
          %v3170 = vunpack.c.h.b16 %v2986
          %v3171 = vunpack.c.l.b16 %v2987
          %v3172 = vunpack.c.h.b16 %v2987
          %v3173 = vunpack.c.l.b16 %v2988
          %v3174 = vunpack.c.h.b16 %v2988
          %v3175 = vunpack.c.l.b16 %v2989
          %v3176 = vunpack.c.h.b16 %v2989
          %v3177 = vunpack.c.l.b16 %v2990
          %v3178 = vunpack.c.h.b16 %v2990
          %v3179 = vunpack.c.l.b16 %v2991
          %v3180 = vunpack.c.h.b16 %v2991
          %v3181 = vunpack.c.l.b16 %v2992
          %v3182 = vunpack.c.h.b16 %v2992
          %v3183 = vunpack.c.l.b16 %v2993
          %v3184 = vunpack.c.h.b16 %v2993
          %v3185 = vunpack.c.l.b16 %v2994
          %v3186 = vunpack.c.h.b16 %v2994
          %v3187 = vunpack.c.l.b16 %v2995
          %v3188 = vunpack.c.h.b16 %v2995
          %v3189 = vunpack.c.l.b16 %v2996
          %v3190 = vunpack.c.h.b16 %v2996
          %v3191 = vunpack.c.l.b16 %v2997
          %v3192 = vunpack.c.h.b16 %v2997
          %v3193 = vunpack.c.l.b16 %v2998
          %v3194 = vunpack.c.h.b16 %v2998
          %v3195 = vunpack.c.l.b16 %v2999
          %v3196 = vunpack.c.h.b16 %v2999
          %v3197 = vunpack.c.l.b16 %v3000
          %v3198 = vunpack.c.h.b16 %v3000
          %v3199 = vunpack.c.l.b16 %v3001
          %v3200 = vunpack.c.h.b16 %v3001
          %v3201 = vunpack.c.l.b16 %v3002
          %v3202 = vunpack.c.h.b16 %v3002
          %v3203 = vunpack.c.l.b16 %v3003
          %v3204 = vunpack.c.h.b16 %v3003
          %v3205 = vunpack.c.l.b16 %v3004
          %v3206 = vunpack.c.h.b16 %v3004
          %v3207 = vunpack.c.l.b16 %v3005
          %v3208 = vunpack.c.h.b16 %v3005
          %v3209 = vunpack.c.l.b16 %v3006
          %v3210 = vunpack.c.h.b16 %v3006
          %v3211 = vunpack.c.l.b16 %v3007
          %v3212 = vunpack.c.h.b16 %v3007
          %v3213 = vunpack.c.l.b16 %v3008
          %v3214 = vunpack.c.h.b16 %v3008
          %v3215 = vunpack.c.l.b16 %v3009
          %v3216 = vunpack.c.h.b16 %v3009
          %v3217 = vunpack.c.l.b16 %v3010
          %v3218 = vunpack.c.h.b16 %v3010
          %v3219 = vunpack.c.l.b16 %v3011
          %v3220 = vunpack.c.h.b16 %v3011
          %v3221 = vunpack.c.l.b16 %v3012
          %v3222 = vunpack.c.h.b16 %v3012
          %v3223 = vunpack.c.l.b16 %v3013
          %v3224 = vunpack.c.h.b16 %v3013
          %v3225 = vunpack.c.l.b16 %v3014
          %v3226 = vunpack.c.h.b16 %v3014
          %v3227 = vunpack.c.l.b16 %v3015
          %v3228 = vunpack.c.h.b16 %v3015
          %v3229 = vunpack.c.l.b16 %v3016
          %v3230 = vunpack.c.h.b16 %v3016
          %v3231 = vunpack.c.l.b16 %v3017
          %v3232 = vunpack.c.h.b16 %v3017
          %v3233 = vunpack.c.l.b16 %v3018
          %v3234 = vunpack.c.h.b16 %v3018
          %v3235 = vunpack.c.l.b16 %v3019
          %v3236 = vunpack.c.h.b16 %v3019
          %v3237 = vunpack.c.l.b16 %v3020
          %v3238 = vunpack.c.h.b16 %v3020
          %v3239 = vunpack.c.l.b16 %v3021
          %v3240 = vunpack.c.h.b16 %v3021
          %v3241 = vunpack.c.l.b16 %v3022
          %v3242 = vunpack.c.h.b16 %v3022
          %v3243 = vunpack.c.l.b16 %v3023
          %v3244 = vunpack.c.h.b16 %v3023
          %v3245 = vunpack.c.l.b16 %v3024
          %v3246 = vunpack.c.h.b16 %v3024
          %v3247 = vunpack.c.l.b16 %v3025
          %v3248 = vunpack.c.h.b16 %v3025
          %v3249 = vunpack.c.l.b16 %v3026
          %v3250 = vunpack.c.h.b16 %v3026
          %v3251 = vpack.c.b16 %v3125, %v3123
          %v3252 = vpack.c.b16 %v3126, %v3124
          %v3253 = vpack.c.b16 %v3129, %v3127
          %v3254 = vpack.c.b16 %v3130, %v3128
          %v3255 = vpack.c.b16 %v3133, %v3131
          %v3256 = vpack.c.b16 %v3134, %v3132
          %v3257 = vpack.c.b16 %v3137, %v3135
          %v3258 = vpack.c.b16 %v3138, %v3136
          %v3259 = vpack.c.b16 %v3141, %v3139
          %v3260 = vpack.c.b16 %v3142, %v3140
          %v3261 = vpack.c.b16 %v3145, %v3143
          %v3262 = vpack.c.b16 %v3146, %v3144
          %v3263 = vpack.c.b16 %v3149, %v3147
          %v3264 = vpack.c.b16 %v3150, %v3148
          %v3265 = vpack.c.b16 %v3153, %v3151
          %v3266 = vpack.c.b16 %v3154, %v3152
          %v3267 = vpack.c.b16 %v3157, %v3155
          %v3268 = vpack.c.b16 %v3158, %v3156
          %v3269 = vpack.c.b16 %v3161, %v3159
          %v3270 = vpack.c.b16 %v3162, %v3160
          %v3271 = vpack.c.b16 %v3165, %v3163
          %v3272 = vpack.c.b16 %v3166, %v3164
          %v3273 = vpack.c.b16 %v3169, %v3167
          %v3274 = vpack.c.b16 %v3170, %v3168
          %v3275 = vpack.c.b16 %v3173, %v3171
          %v3276 = vpack.c.b16 %v3174, %v3172
          %v3277 = vpack.c.b16 %v3177, %v3175
          %v3278 = vpack.c.b16 %v3178, %v3176
          %v3279 = vpack.c.b16 %v3181, %v3179
          %v3280 = vpack.c.b16 %v3182, %v3180
          %v3281 = vpack.c.b16 %v3185, %v3183
          %v3282 = vpack.c.b16 %v3186, %v3184
          %v3283 = vpack.c.b16 %v3189, %v3187
          %v3284 = vpack.c.b16 %v3190, %v3188
          %v3285 = vpack.c.b16 %v3193, %v3191
          %v3286 = vpack.c.b16 %v3194, %v3192
          %v3287 = vpack.c.b16 %v3197, %v3195
          %v3288 = vpack.c.b16 %v3198, %v3196
          %v3289 = vpack.c.b16 %v3201, %v3199
          %v3290 = vpack.c.b16 %v3202, %v3200
          %v3291 = vpack.c.b16 %v3205, %v3203
          %v3292 = vpack.c.b16 %v3206, %v3204
          %v3293 = vpack.c.b16 %v3209, %v3207
          %v3294 = vpack.c.b16 %v3210, %v3208
          %v3295 = vpack.c.b16 %v3213, %v3211
          %v3296 = vpack.c.b16 %v3214, %v3212
          %v3297 = vpack.c.b16 %v3217, %v3215
          %v3298 = vpack.c.b16 %v3218, %v3216
          %v3299 = vpack.c.b16 %v3221, %v3219
          %v3300 = vpack.c.b16 %v3222, %v3220
          %v3301 = vpack.c.b16 %v3225, %v3223
          %v3302 = vpack.c.b16 %v3226, %v3224
          %v3303 = vpack.c.b16 %v3229, %v3227
          %v3304 = vpack.c.b16 %v3230, %v3228
          %v3305 = vpack.c.b16 %v3233, %v3231
          %v3306 = vpack.c.b16 %v3234, %v3232
          %v3307 = vpack.c.b16 %v3237, %v3235
          %v3308 = vpack.c.b16 %v3238, %v3236
          %v3309 = vpack.c.b16 %v3241, %v3239
          %v3310 = vpack.c.b16 %v3242, %v3240
          %v3311 = vpack.c.b16 %v3245, %v3243
          %v3312 = vpack.c.b16 %v3246, %v3244
          %v3313 = vpack.c.b16 %v3249, %v3247
          %v3314 = vpack.c.b16 %v3250, %v3248
          %v3411 = vunpack.c.l.b16 %v3027
          %v3412 = vunpack.c.l.b16 %v3028
          %v3413 = vunpack.c.l.b16 %v3029
          %v3414 = vunpack.c.l.b16 %v3030
          %v3415 = vunpack.c.l.b16 %v3031
          %v3416 = vunpack.c.l.b16 %v3032
          %v3417 = vunpack.c.l.b16 %v3033
          %v3418 = vunpack.c.l.b16 %v3034
          %v3419 = vunpack.c.l.b16 %v3035
          %v3420 = vunpack.c.l.b16 %v3036
          %v3421 = vunpack.c.l.b16 %v3037
          %v3422 = vunpack.c.l.b16 %v3038
          %v3423 = vunpack.c.l.b16 %v3039
          %v3424 = vunpack.c.l.b16 %v3040
          %v3425 = vunpack.c.l.b16 %v3041
          %v3426 = vunpack.c.l.b16 %v3042
          %v3427 = vunpack.c.l.b16 %v3043
          %v3428 = vunpack.c.l.b16 %v3044
          %v3429 = vunpack.c.l.b16 %v3045
          %v3430 = vunpack.c.l.b16 %v3046
          %v3431 = vunpack.c.l.b16 %v3047
          %v3432 = vunpack.c.l.b16 %v3048
          %v3433 = vunpack.c.l.b16 %v3049
          %v3434 = vunpack.c.l.b16 %v3050
          %v3435 = vunpack.c.l.b16 %v3051
          %v3436 = vunpack.c.l.b16 %v3052
          %v3437 = vunpack.c.l.b16 %v3053
          %v3438 = vunpack.c.l.b16 %v3054
          %v3439 = vunpack.c.l.b16 %v3055
          %v3440 = vunpack.c.l.b16 %v3056
          %v3441 = vunpack.c.l.b16 %v3057
          %v3442 = vunpack.c.l.b16 %v3058
          %v3443 = vpack.c.b16 %v3412, %v3411
          %v3444 = vpack.c.b16 %v3414, %v3413
          %v3445 = vpack.c.b16 %v3416, %v3415
          %v3446 = vpack.c.b16 %v3418, %v3417
          %v3447 = vpack.c.b16 %v3420, %v3419
          %v3448 = vpack.c.b16 %v3422, %v3421
          %v3449 = vpack.c.b16 %v3424, %v3423
          %v3450 = vpack.c.b16 %v3426, %v3425
          %v3451 = vpack.c.b16 %v3428, %v3427
          %v3452 = vpack.c.b16 %v3430, %v3429
          %v3453 = vpack.c.b16 %v3432, %v3431
          %v3454 = vpack.c.b16 %v3434, %v3433
          %v3455 = vpack.c.b16 %v3436, %v3435
          %v3456 = vpack.c.b16 %v3438, %v3437
          %v3457 = vpack.c.b16 %v3440, %v3439
          %v3458 = vpack.c.b16 %v3442, %v3441
          %3475 = vmatprep.subr.bf16.mxu0 0
          %3476 = vmatpush1.bf16.msra.mxu0 %v3443
          %3477 = vmatprep.subr.bf16.mxu0 0
          %3478 = vmatpush1.bf16.msra.mxu0 %v3444
          %3479 = vmatprep.subr.bf16.mxu0 0
          %3480 = vmatpush1.bf16.msra.mxu0 %v3445
          %3481 = vmatprep.subr.bf16.mxu0 0
          %3482 = vmatpush1.bf16.msra.mxu0 %v3446
          %3483 = vmatprep.subr.bf16.mxu0 0
          %3484 = vmatpush1.bf16.msra.mxu0 %v3447
          %3485 = vmatprep.subr.bf16.mxu0 0
          %3486 = vmatpush1.bf16.msra.mxu0 %v3448
          %3487 = vmatprep.subr.bf16.mxu0 0
          %3488 = vmatpush1.bf16.msra.mxu0 %v3449
          %3489 = vmatprep.subr.bf16.mxu0 0
          %3490 = vmatpush1.bf16.msra.mxu0 %v3450
          %3491 = vmatprep.subr.bf16.mxu0 0
          %3492 = vmatpush1.bf16.msra.mxu0 %v3451
          %3493 = vmatprep.subr.bf16.mxu0 0
          %3494 = vmatpush1.bf16.msra.mxu0 %v3452
          %3495 = vmatprep.subr.bf16.mxu0 0
          %3496 = vmatpush1.bf16.msra.mxu0 %v3453
          %3497 = vmatprep.subr.bf16.mxu0 0
          %3498 = vmatpush1.bf16.msra.mxu0 %v3454
          %3499 = vmatprep.subr.bf16.mxu0 0
          %3500 = vmatpush1.bf16.msra.mxu0 %v3455
          %3501 = vmatprep.subr.bf16.mxu0 0
          %3502 = vmatpush1.bf16.msra.mxu0 %v3456
          %3503 = vmatprep.subr.bf16.mxu0 0
          %3504 = vmatpush1.bf16.msra.mxu0 %v3457
          %3505 = vmatprep.subr.bf16.mxu0 0
          %3506 = vmatpush1.bf16.msra.mxu0 %v3458
          %3507 = vmatprep.mubr.bf16.mxu0 %v3252
          %3508 = vmatmul.mubr.bf16.gmra.mrb[0].mxu0 %v3251
          %v3509 = vpop.f32.mrb[0].mxu0
          %v3510 = vadd.f32 0.0, %v3509
          %v3511 = vpop.f32.mrb[0].mxu0
          %v3512 = vpop.f32.mrb[0].mxu0
          %v3513 = vadd.f32 0.0, %v3512
          %v3514 = vpop.f32.mrb[0].mxu0
          %3515 = vmatprep.mubr.bf16.mxu0 %v3254
          %3516 = vmatmul.mubr.bf16.gmra.mrb[0].mxu0 %v3253
          %v3517 = vpop.f32.mrb[0].mxu0
          %v3518 = vadd.f32 0.0, %v3517
          %v3519 = vpop.f32.mrb[0].mxu0
          %v3520 = vpop.f32.mrb[0].mxu0
          %v3521 = vadd.f32 0.0, %v3520
          %v3522 = vpop.f32.mrb[0].mxu0
          %3523 = vmatprep.mubr.bf16.mxu0 %v3256
          %3524 = vmatmul.mubr.bf16.gmra.mrb[0].mxu0 %v3255
          %v3525 = vpop.f32.mrb[0].mxu0
          %v3526 = vadd.f32 0.0, %v3525
          %v3527 = vpop.f32.mrb[0].mxu0
          %v3528 = vpop.f32.mrb[0].mxu0
          %v3529 = vadd.f32 0.0, %v3528
          %v3530 = vpop.f32.mrb[0].mxu0
          %3531 = vmatprep.mubr.bf16.mxu0 %v3258
          %3532 = vmatmul.mubr.bf16.gmra.mrb[0].mxu0 %v3257
          %v3533 = vpop.f32.mrb[0].mxu0
          %v3534 = vadd.f32 0.0, %v3533
          %v3535 = vpop.f32.mrb[0].mxu0
          %v3536 = vpop.f32.mrb[0].mxu0
          %v3537 = vadd.f32 0.0, %v3536
          %v3538 = vpop.f32.mrb[0].mxu0
          %3539 = vmatprep.mubr.bf16.mxu0 %v3260
          %3540 = vmatmul.mubr.bf16.gmra.mrb[0].mxu0 %v3259
          %v3541 = vpop.f32.mrb[0].mxu0
          %v3542 = vadd.f32 0.0, %v3541
          %v3543 = vpop.f32.mrb[0].mxu0
          %v3544 = vpop.f32.mrb[0].mxu0
          %v3545 = vadd.f32 0.0, %v3544
          %v3546 = vpop.f32.mrb[0].mxu0
          %3547 = vmatprep.mubr.bf16.mxu0 %v3262
          %3548 = vmatmul.mubr.bf16.gmra.mrb[0].mxu0 %v3261
          %v3549 = vpop.f32.mrb[0].mxu0
          %v3550 = vadd.f32 0.0, %v3549
          %v3551 = vpop.f32.mrb[0].mxu0
          %v3552 = vpop.f32.mrb[0].mxu0
          %v3553 = vadd.f32 0.0, %v3552
          %v3554 = vpop.f32.mrb[0].mxu0
          %3555 = vmatprep.mubr.bf16.mxu0 %v3264
          %3556 = vmatmul.mubr.bf16.gmra.mrb[0].mxu0 %v3263
          %v3557 = vpop.f32.mrb[0].mxu0
          %v3558 = vadd.f32 0.0, %v3557
          %v3559 = vpop.f32.mrb[0].mxu0
          %v3560 = vpop.f32.mrb[0].mxu0
          %v3561 = vadd.f32 0.0, %v3560
          %v3562 = vpop.f32.mrb[0].mxu0
          %3563 = vmatprep.mubr.bf16.mxu0 %v3266
          %3564 = vmatmul.mubr.bf16.gmra.mrb[0].mxu0 %v3265
          %v3565 = vpop.f32.mrb[0].mxu0
          %v3566 = vadd.f32 0.0, %v3565
          %v3567 = vpop.f32.mrb[0].mxu0
          %v3568 = vpop.f32.mrb[0].mxu0
          %v3569 = vadd.f32 0.0, %v3568
          %v3570 = vpop.f32.mrb[0].mxu0
          %3571 = vmatprep.mubr.bf16.mxu0 %v3268
          %3572 = vmatmul.mubr.bf16.gmra.mrb[0].mxu0 %v3267
          %v3573 = vpop.f32.mrb[0].mxu0
          %v3574 = vadd.f32 0.0, %v3573
          %v3575 = vpop.f32.mrb[0].mxu0
          %v3576 = vpop.f32.mrb[0].mxu0
          %v3577 = vadd.f32 0.0, %v3576
          %v3578 = vpop.f32.mrb[0].mxu0
          %3579 = vmatprep.mubr.bf16.mxu0 %v3270
          %3580 = vmatmul.mubr.bf16.gmra.mrb[0].mxu0 %v3269
          %v3581 = vpop.f32.mrb[0].mxu0
          %v3582 = vadd.f32 0.0, %v3581
          %v3583 = vpop.f32.mrb[0].mxu0
          %v3584 = vpop.f32.mrb[0].mxu0
          %v3585 = vadd.f32 0.0, %v3584
          %v3586 = vpop.f32.mrb[0].mxu0
          %3587 = vmatprep.mubr.bf16.mxu0 %v3272
          %3588 = vmatmul.mubr.bf16.gmra.mrb[0].mxu0 %v3271
          %v3589 = vpop.f32.mrb[0].mxu0
          %v3590 = vadd.f32 0.0, %v3589
          %v3591 = vpop.f32.mrb[0].mxu0
          %v3592 = vpop.f32.mrb[0].mxu0
          %v3593 = vadd.f32 0.0, %v3592
          %v3594 = vpop.f32.mrb[0].mxu0
          %3595 = vmatprep.mubr.bf16.mxu0 %v3274
          %3596 = vmatmul.mubr.bf16.gmra.mrb[0].mxu0 %v3273
          %v3597 = vpop.f32.mrb[0].mxu0
          %v3598 = vadd.f32 0.0, %v3597
          %v3599 = vpop.f32.mrb[0].mxu0
          %v3600 = vpop.f32.mrb[0].mxu0
          %v3601 = vadd.f32 0.0, %v3600
          %v3602 = vpop.f32.mrb[0].mxu0
          %3603 = vmatprep.mubr.bf16.mxu0 %v3276
          %3604 = vmatmul.mubr.bf16.gmra.mrb[0].mxu0 %v3275
          %v3605 = vpop.f32.mrb[0].mxu0
          %v3606 = vadd.f32 0.0, %v3605
          %v3607 = vpop.f32.mrb[0].mxu0
          %v3608 = vpop.f32.mrb[0].mxu0
          %v3609 = vadd.f32 0.0, %v3608
          %v3610 = vpop.f32.mrb[0].mxu0
          %3611 = vmatprep.mubr.bf16.mxu0 %v3278
          %3612 = vmatmul.mubr.bf16.gmra.mrb[0].mxu0 %v3277
          %v3613 = vpop.f32.mrb[0].mxu0
          %v3614 = vadd.f32 0.0, %v3613
          %v3615 = vpop.f32.mrb[0].mxu0
          %v3616 = vpop.f32.mrb[0].mxu0
          %v3617 = vadd.f32 0.0, %v3616
          %v3618 = vpop.f32.mrb[0].mxu0
          %3619 = vmatprep.mubr.bf16.mxu0 %v3280
          %3620 = vmatmul.mubr.bf16.gmra.mrb[0].mxu0 %v3279
          %v3621 = vpop.f32.mrb[0].mxu0
          %v3622 = vadd.f32 0.0, %v3621
          %v3623 = vpop.f32.mrb[0].mxu0
          %v3624 = vpop.f32.mrb[0].mxu0
          %v3625 = vadd.f32 0.0, %v3624
          %v3626 = vpop.f32.mrb[0].mxu0
          %3627 = vmatprep.mubr.bf16.mxu0 %v3282
          %3628 = vmatmul.mubr.bf16.gmra.mrb[0].mxu0 %v3281
          %v3629 = vpop.f32.mrb[0].mxu0
          %v3630 = vadd.f32 0.0, %v3629
          %v3631 = vpop.f32.mrb[0].mxu0
          %v3632 = vpop.f32.mrb[0].mxu0
          %v3633 = vadd.f32 0.0, %v3632
          %v3634 = vpop.f32.mrb[0].mxu0
          %3635 = vmatprep.mubr.bf16.mxu0 %v3284
          %3636 = vmatmul.mubr.bf16.gmra.mrb[0].mxu0 %v3283
          %v3637 = vpop.f32.mrb[0].mxu0
          %v3638 = vadd.f32 0.0, %v3637
          %v3639 = vpop.f32.mrb[0].mxu0
          %v3640 = vpop.f32.mrb[0].mxu0
          %v3641 = vadd.f32 0.0, %v3640
          %v3642 = vpop.f32.mrb[0].mxu0
          %3643 = vmatprep.mubr.bf16.mxu0 %v3286
          %3644 = vmatmul.mubr.bf16.gmra.mrb[0].mxu0 %v3285
          %v3645 = vpop.f32.mrb[0].mxu0
          %v3646 = vadd.f32 0.0, %v3645
          %v3647 = vpop.f32.mrb[0].mxu0
          %v3648 = vpop.f32.mrb[0].mxu0
          %v3649 = vadd.f32 0.0, %v3648
          %v3650 = vpop.f32.mrb[0].mxu0
          %3651 = vmatprep.mubr.bf16.mxu0 %v3288
          %3652 = vmatmul.mubr.bf16.gmra.mrb[0].mxu0 %v3287
          %v3653 = vpop.f32.mrb[0].mxu0
          %v3654 = vadd.f32 0.0, %v3653
          %v3655 = vpop.f32.mrb[0].mxu0
          %v3656 = vpop.f32.mrb[0].mxu0
          %v3657 = vadd.f32 0.0, %v3656
          %v3658 = vpop.f32.mrb[0].mxu0
          %3659 = vmatprep.mubr.bf16.mxu0 %v3290
          %3660 = vmatmul.mubr.bf16.gmra.mrb[0].mxu0 %v3289
          %v3661 = vpop.f32.mrb[0].mxu0
          %v3662 = vadd.f32 0.0, %v3661
          %v3663 = vpop.f32.mrb[0].mxu0
          %v3664 = vpop.f32.mrb[0].mxu0
          %v3665 = vadd.f32 0.0, %v3664
          %v3666 = vpop.f32.mrb[0].mxu0
          %3667 = vmatprep.mubr.bf16.mxu0 %v3292
          %3668 = vmatmul.mubr.bf16.gmra.mrb[0].mxu0 %v3291
          %v3669 = vpop.f32.mrb[0].mxu0
          %v3670 = vadd.f32 0.0, %v3669
          %v3671 = vpop.f32.mrb[0].mxu0
          %v3672 = vpop.f32.mrb[0].mxu0
          %v3673 = vadd.f32 0.0, %v3672
          %v3674 = vpop.f32.mrb[0].mxu0
          %3675 = vmatprep.mubr.bf16.mxu0 %v3294
          %3676 = vmatmul.mubr.bf16.gmra.mrb[0].mxu0 %v3293
          %v3677 = vpop.f32.mrb[0].mxu0
          %v3678 = vadd.f32 0.0, %v3677
          %v3679 = vpop.f32.mrb[0].mxu0
          %v3680 = vpop.f32.mrb[0].mxu0
          %v3681 = vadd.f32 0.0, %v3680
          %v3682 = vpop.f32.mrb[0].mxu0
          %3683 = vmatprep.mubr.bf16.mxu0 %v3296
          %3684 = vmatmul.mubr.bf16.gmra.mrb[0].mxu0 %v3295
          %v3685 = vpop.f32.mrb[0].mxu0
          %v3686 = vadd.f32 0.0, %v3685
          %v3687 = vpop.f32.mrb[0].mxu0
          %v3688 = vpop.f32.mrb[0].mxu0
          %v3689 = vadd.f32 0.0, %v3688
          %v3690 = vpop.f32.mrb[0].mxu0
          %3691 = vmatprep.mubr.bf16.mxu0 %v3298
          %3692 = vmatmul.mubr.bf16.gmra.mrb[0].mxu0 %v3297
          %v3693 = vpop.f32.mrb[0].mxu0
          %v3694 = vadd.f32 0.0, %v3693
          %v3695 = vpop.f32.mrb[0].mxu0
          %v3696 = vpop.f32.mrb[0].mxu0
          %v3697 = vadd.f32 0.0, %v3696
          %v3698 = vpop.f32.mrb[0].mxu0
          %3699 = vmatprep.mubr.bf16.mxu0 %v3300
          %3700 = vmatmul.mubr.bf16.gmra.mrb[0].mxu0 %v3299
          %v3701 = vpop.f32.mrb[0].mxu0
          %v3702 = vadd.f32 0.0, %v3701
          %v3703 = vpop.f32.mrb[0].mxu0
          %v3704 = vpop.f32.mrb[0].mxu0
          %v3705 = vadd.f32 0.0, %v3704
          %v3706 = vpop.f32.mrb[0].mxu0
          %3707 = vmatprep.mubr.bf16.mxu0 %v3302
          %3708 = vmatmul.mubr.bf16.gmra.mrb[0].mxu0 %v3301
          %v3709 = vpop.f32.mrb[0].mxu0
          %v3710 = vadd.f32 0.0, %v3709
          %v3711 = vpop.f32.mrb[0].mxu0
          %v3712 = vpop.f32.mrb[0].mxu0
          %v3713 = vadd.f32 0.0, %v3712
          %v3714 = vpop.f32.mrb[0].mxu0
          %3715 = vmatprep.mubr.bf16.mxu0 %v3304
          %3716 = vmatmul.mubr.bf16.gmra.mrb[0].mxu0 %v3303
          %v3717 = vpop.f32.mrb[0].mxu0
          %v3718 = vadd.f32 0.0, %v3717
          %v3719 = vpop.f32.mrb[0].mxu0
          %v3720 = vpop.f32.mrb[0].mxu0
          %v3721 = vadd.f32 0.0, %v3720
          %v3722 = vpop.f32.mrb[0].mxu0
          %3723 = vmatprep.mubr.bf16.mxu0 %v3306
          %3724 = vmatmul.mubr.bf16.gmra.mrb[0].mxu0 %v3305
          %v3725 = vpop.f32.mrb[0].mxu0
          %v3726 = vadd.f32 0.0, %v3725
          %v3727 = vpop.f32.mrb[0].mxu0
          %v3728 = vpop.f32.mrb[0].mxu0
          %v3729 = vadd.f32 0.0, %v3728
          %v3730 = vpop.f32.mrb[0].mxu0
          %3731 = vmatprep.mubr.bf16.mxu0 %v3308
          %3732 = vmatmul.mubr.bf16.gmra.mrb[0].mxu0 %v3307
          %v3733 = vpop.f32.mrb[0].mxu0
          %v3734 = vadd.f32 0.0, %v3733
          %v3735 = vpop.f32.mrb[0].mxu0
          %v3736 = vpop.f32.mrb[0].mxu0
          %v3737 = vadd.f32 0.0, %v3736
          %v3738 = vpop.f32.mrb[0].mxu0
          %3739 = vmatprep.mubr.bf16.mxu0 %v3310
          %3740 = vmatmul.mubr.bf16.gmra.mrb[0].mxu0 %v3309
          %v3741 = vpop.f32.mrb[0].mxu0
          %v3742 = vadd.f32 0.0, %v3741
          %v3743 = vpop.f32.mrb[0].mxu0
          %v3744 = vpop.f32.mrb[0].mxu0
          %v3745 = vadd.f32 0.0, %v3744
          %v3746 = vpop.f32.mrb[0].mxu0
          %3747 = vmatprep.mubr.bf16.mxu0 %v3312
          %3748 = vmatmul.mubr.bf16.gmra.mrb[0].mxu0 %v3311
          %v3749 = vpop.f32.mrb[0].mxu0
          %v3750 = vadd.f32 0.0, %v3749
          %v3751 = vpop.f32.mrb[0].mxu0
          %v3752 = vpop.f32.mrb[0].mxu0
          %v3753 = vadd.f32 0.0, %v3752
          %v3754 = vpop.f32.mrb[0].mxu0
          %3755 = vmatprep.mubr.bf16.mxu0 %v3314
          %3756 = vmatmul.mubr.bf16.gmra.mrb[0].mxu0 %v3313
          %v3757 = vpop.f32.mrb[0].mxu0
          %v3758 = vadd.f32 0.0, %v3757
          %v3759 = vpop.f32.mrb[0].mxu0
          %v3760 = vpop.f32.mrb[0].mxu0
          %v3761 = vadd.f32 0.0, %v3760
          %v3762 = vpop.f32.mrb[0].mxu0
          %3763 = vdwg.mxu0
          %v3764 = vadd.f32 %v2899, %v3510
          %v3765 = vadd.f32 %v2900, %v3513
          %v3766 = vadd.f32 %v2901, %v3518
          %v3767 = vadd.f32 %v2902, %v3521
          %v3768 = vadd.f32 %v2903, %v3526
          %v3769 = vadd.f32 %v2904, %v3529
          %v3770 = vadd.f32 %v2905, %v3534
          %v3771 = vadd.f32 %v2906, %v3537
          %v3772 = vadd.f32 %v2907, %v3542
          %v3773 = vadd.f32 %v2908, %v3545
          %v3774 = vadd.f32 %v2909, %v3550
          %v3775 = vadd.f32 %v2910, %v3553
          %v3776 = vadd.f32 %v2911, %v3558
          %v3777 = vadd.f32 %v2912, %v3561
          %v3778 = vadd.f32 %v2913, %v3566
          %v3779 = vadd.f32 %v2914, %v3569
          %v3780 = vadd.f32 %v2915, %v3574
          %v3781 = vadd.f32 %v2916, %v3577
          %v3782 = vadd.f32 %v2917, %v3582
          %v3783 = vadd.f32 %v2918, %v3585
          %v3784 = vadd.f32 %v2919, %v3590
          %v3785 = vadd.f32 %v2920, %v3593
          %v3786 = vadd.f32 %v2921, %v3598
          %v3787 = vadd.f32 %v2922, %v3601
          %v3788 = vadd.f32 %v2923, %v3606
          %v3789 = vadd.f32 %v2924, %v3609
          %v3790 = vadd.f32 %v2925, %v3614
          %v3791 = vadd.f32 %v2926, %v3617
          %v3792 = vadd.f32 %v2927, %v3622
          %v3793 = vadd.f32 %v2928, %v3625
          %v3794 = vadd.f32 %v2929, %v3630
          %v3795 = vadd.f32 %v2930, %v3633
          %v3796 = vadd.f32 %v2931, %v3638
          %v3797 = vadd.f32 %v2932, %v3641
          %v3798 = vadd.f32 %v2933, %v3646
          %v3799 = vadd.f32 %v2934, %v3649
          %v3800 = vadd.f32 %v2935, %v3654
          %v3801 = vadd.f32 %v2936, %v3657
          %v3802 = vadd.f32 %v2937, %v3662
          %v3803 = vadd.f32 %v2938, %v3665
          %v3804 = vadd.f32 %v2939, %v3670
          %v3805 = vadd.f32 %v2940, %v3673
          %v3806 = vadd.f32 %v2941, %v3678
          %v3807 = vadd.f32 %v2942, %v3681
          %v3808 = vadd.f32 %v2943, %v3686
          %v3809 = vadd.f32 %v2944, %v3689
          %v3810 = vadd.f32 %v2945, %v3694
          %v3811 = vadd.f32 %v2946, %v3697
          %v3812 = vadd.f32 %v2947, %v3702
          %v3813 = vadd.f32 %v2948, %v3705
          %v3814 = vadd.f32 %v2949, %v3710
          %v3815 = vadd.f32 %v2950, %v3713
          %v3816 = vadd.f32 %v2951, %v3718
          %v3817 = vadd.f32 %v2952, %v3721
          %v3818 = vadd.f32 %v2953, %v3726
          %v3819 = vadd.f32 %v2954, %v3729
          %v3820 = vadd.f32 %v2955, %v3734
          %v3821 = vadd.f32 %v2956, %v3737
          %v3822 = vadd.f32 %v2957, %v3742
          %v3823 = vadd.f32 %v2958, %v3745
          %v3824 = vadd.f32 %v2959, %v3750
          %v3825 = vadd.f32 %v2960, %v3753
          %v3826 = vadd.f32 %v2961, %v3758
          %v3827 = vadd.f32 %v2962, %v3761
          %v3828 = vld [vmem:[%s4] sm:$0xff]
          %v3829 = vld [vmem:[%s4 + $0x8] sm:$0xf]
          %v3830 = vld [vmem:[%s4 + $0xc] sm:$0xff]
          %v3831 = vld [vmem:[%s4 + $0x14] sm:$0xf]
          %v3832 = vld [vmem:[%s4 + $0x18] sm:$0xff]
          %v3833 = vld [vmem:[%s4 + $0x20] sm:$0xf]
          %v3834 = vld [vmem:[%s4 + $0x24] sm:$0xff]
          %v3835 = vld [vmem:[%s4 + $0x2c] sm:$0xf]
          %v3836 = vld [vmem:[%s4 + $0x30] sm:$0xff]
          %v3837 = vld [vmem:[%s4 + $0x38] sm:$0xf]
          %v3838 = vld [vmem:[%s4 + $0x3c] sm:$0xff]
          %v3839 = vld [vmem:[%s4 + $0x44] sm:$0xf]
          %v3840 = vld [vmem:[%s4 + $0x48] sm:$0xff]
          %v3841 = vld [vmem:[%s4 + $0x50] sm:$0xf]
          %v3842 = vld [vmem:[%s4 + $0x54] sm:$0xff]
          %v3843 = vld [vmem:[%s4 + $0x5c] sm:$0xf]
          %v3844 = vld [vmem:[%s4 + $0x60] sm:$0xff]
          %v3845 = vld [vmem:[%s4 + $0x68] sm:$0xf]
          %v3846 = vld [vmem:[%s4 + $0x6c] sm:$0xff]
          %v3847 = vld [vmem:[%s4 + $0x74] sm:$0xf]
          %v3848 = vld [vmem:[%s4 + $0x78] sm:$0xff]
          %v3849 = vld [vmem:[%s4 + $0x80] sm:$0xf]
          %v3850 = vld [vmem:[%s4 + $0x84] sm:$0xff]
          %v3851 = vld [vmem:[%s4 + $0x8c] sm:$0xf]
          %v3852 = vld [vmem:[%s4 + $0x90] sm:$0xff]
          %v3853 = vld [vmem:[%s4 + $0x98] sm:$0xf]
          %v3854 = vld [vmem:[%s4 + $0x9c] sm:$0xff]
          %v3855 = vld [vmem:[%s4 + $0xa4] sm:$0xf]
          %v3856 = vld [vmem:[%s4 + $0xa8] sm:$0xff]
          %v3857 = vld [vmem:[%s4 + $0xb0] sm:$0xf]
          %v3858 = vld [vmem:[%s4 + $0xb4] sm:$0xff]
          %v3859 = vld [vmem:[%s4 + $0xbc] sm:$0xf]
          %v3860 = vld [vmem:[%s4 + $0xc0] sm:$0xff]
          %v3861 = vld [vmem:[%s4 + $0xc8] sm:$0xf]
          %v3862 = vld [vmem:[%s4 + $0xcc] sm:$0xff]
          %v3863 = vld [vmem:[%s4 + $0xd4] sm:$0xf]
          %v3864 = vld [vmem:[%s4 + $0xd8] sm:$0xff]
          %v3865 = vld [vmem:[%s4 + $0xe0] sm:$0xf]
          %v3866 = vld [vmem:[%s4 + $0xe4] sm:$0xff]
          %v3867 = vld [vmem:[%s4 + $0xec] sm:$0xf]
          %v3868 = vld [vmem:[%s4 + $0xf0] sm:$0xff]
          %v3869 = vld [vmem:[%s4 + $0xf8] sm:$0xf]
          %v3870 = vld [vmem:[%s4 + $0xfc] sm:$0xff]
          %v3871 = vld [vmem:[%s4 + $0x104] sm:$0xf]
          %v3872 = vld [vmem:[%s4 + $0x108] sm:$0xff]
          %v3873 = vld [vmem:[%s4 + $0x110] sm:$0xf]
          %v3874 = vld [vmem:[%s4 + $0x114] sm:$0xff]
          %v3875 = vld [vmem:[%s4 + $0x11c] sm:$0xf]
          %v3876 = vld [vmem:[%s4 + $0x120] sm:$0xff]
          %v3877 = vld [vmem:[%s4 + $0x128] sm:$0xf]
          %v3878 = vld [vmem:[%s4 + $0x12c] sm:$0xff]
          %v3879 = vld [vmem:[%s4 + $0x134] sm:$0xf]
          %v3880 = vld [vmem:[%s4 + $0x138] sm:$0xff]
          %v3881 = vld [vmem:[%s4 + $0x140] sm:$0xf]
          %v3882 = vld [vmem:[%s4 + $0x144] sm:$0xff]
          %v3883 = vld [vmem:[%s4 + $0x14c] sm:$0xf]
          %v3884 = vld [vmem:[%s4 + $0x150] sm:$0xff]
          %v3885 = vld [vmem:[%s4 + $0x158] sm:$0xf]
          %v3886 = vld [vmem:[%s4 + $0x15c] sm:$0xff]
          %v3887 = vld [vmem:[%s4 + $0x164] sm:$0xf]
          %v3888 = vld [vmem:[%s4 + $0x168] sm:$0xff]
          %v3889 = vld [vmem:[%s4 + $0x170] sm:$0xf]
          %v3890 = vld [vmem:[%s4 + $0x174] sm:$0xff]
          %v3891 = vld [vmem:[%s4 + $0x17c] sm:$0xf]
          %v3892 = vld [vmem:[%s4 + $0x180] sm:$0xff]
          %v3893 = vld [vmem:[%s4 + $0x188] sm:$0xf]
          %v3894 = vld [vmem:[%s4 + $0x18c] sm:$0xff]
          %v3895 = vld [vmem:[%s4 + $0x194] sm:$0xf]
          %v3896 = vld [vmem:[%s4 + $0x198] sm:$0xff]
          %v3897 = vld [vmem:[%s4 + $0x1a0] sm:$0xf]
          %v3898 = vld [vmem:[%s4 + $0x1a4] sm:$0xff]
          %v3899 = vld [vmem:[%s4 + $0x1ac] sm:$0xf]
          %v3900 = vld [vmem:[%s4 + $0x1b0] sm:$0xff]
          %v3901 = vld [vmem:[%s4 + $0x1b8] sm:$0xf]
          %v3902 = vld [vmem:[%s4 + $0x1bc] sm:$0xff]
          %v3903 = vld [vmem:[%s4 + $0x1c4] sm:$0xf]
          %v3904 = vld [vmem:[%s4 + $0x1c8] sm:$0xff]
          %v3905 = vld [vmem:[%s4 + $0x1d0] sm:$0xf]
          %v3906 = vld [vmem:[%s4 + $0x1d4] sm:$0xff]
          %v3907 = vld [vmem:[%s4 + $0x1dc] sm:$0xf]
          %v3908 = vld [vmem:[%s4 + $0x1e0] sm:$0xff]
          %v3909 = vld [vmem:[%s4 + $0x1e8] sm:$0xf]
          %v3910 = vld [vmem:[%s4 + $0x1ec] sm:$0xff]
          %v3911 = vld [vmem:[%s4 + $0x1f4] sm:$0xf]
          %v3912 = vld [vmem:[%s4 + $0x1f8] sm:$0xff]
          %v3913 = vld [vmem:[%s4 + $0x200] sm:$0xf]
          %v3914 = vld [vmem:[%s4 + $0x204] sm:$0xff]
          %v3915 = vld [vmem:[%s4 + $0x20c] sm:$0xf]
          %v3916 = vld [vmem:[%s4 + $0x210] sm:$0xff]
          %v3917 = vld [vmem:[%s4 + $0x218] sm:$0xf]
          %v3918 = vld [vmem:[%s4 + $0x21c] sm:$0xff]
          %v3919 = vld [vmem:[%s4 + $0x224] sm:$0xf]
          %v3920 = vld [vmem:[%s4 + $0x228] sm:$0xff]
          %v3921 = vld [vmem:[%s4 + $0x230] sm:$0xf]
          %v3922 = vld [vmem:[%s4 + $0x234] sm:$0xff]
          %v3923 = vld [vmem:[%s4 + $0x23c] sm:$0xf]
          %v3924 = vld [vmem:[%s4 + $0x240] sm:$0xff]
          %v3925 = vld [vmem:[%s4 + $0x248] sm:$0xf]
          %v3926 = vld [vmem:[%s4 + $0x24c] sm:$0xff]
          %v3927 = vld [vmem:[%s4 + $0x254] sm:$0xf]
          %v3928 = vld [vmem:[%s4 + $0x258] sm:$0xff]
          %v3929 = vld [vmem:[%s4 + $0x260] sm:$0xf]
          %v3930 = vld [vmem:[%s4 + $0x264] sm:$0xff]
          %v3931 = vld [vmem:[%s4 + $0x26c] sm:$0xf]
          %v3932 = vld [vmem:[%s4 + $0x270] sm:$0xff]
          %v3933 = vld [vmem:[%s4 + $0x278] sm:$0xf]
          %v3934 = vld [vmem:[%s4 + $0x27c] sm:$0xff]
          %v3935 = vld [vmem:[%s4 + $0x284] sm:$0xf]
          %v3936 = vld [vmem:[%s4 + $0x288] sm:$0xff]
          %v3937 = vld [vmem:[%s4 + $0x290] sm:$0xf]
          %v3938 = vld [vmem:[%s4 + $0x294] sm:$0xff]
          %v3939 = vld [vmem:[%s4 + $0x29c] sm:$0xf]
          %v3940 = vld [vmem:[%s4 + $0x2a0] sm:$0xff]
          %v3941 = vld [vmem:[%s4 + $0x2a8] sm:$0xf]
          %v3942 = vld [vmem:[%s4 + $0x2ac] sm:$0xff]
          %v3943 = vld [vmem:[%s4 + $0x2b4] sm:$0xf]
          %v3944 = vld [vmem:[%s4 + $0x2b8] sm:$0xff]
          %v3945 = vld [vmem:[%s4 + $0x2c0] sm:$0xf]
          %v3946 = vld [vmem:[%s4 + $0x2c4] sm:$0xff]
          %v3947 = vld [vmem:[%s4 + $0x2cc] sm:$0xf]
          %v3948 = vld [vmem:[%s4 + $0x2d0] sm:$0xff]
          %v3949 = vld [vmem:[%s4 + $0x2d8] sm:$0xf]
          %v3950 = vld [vmem:[%s4 + $0x2dc] sm:$0xff]
          %v3951 = vld [vmem:[%s4 + $0x2e4] sm:$0xf]
          %v3952 = vld [vmem:[%s4 + $0x2e8] sm:$0xff]
          %v3953 = vld [vmem:[%s4 + $0x2f0] sm:$0xf]
          %v3954 = vld [vmem:[%s4 + $0x2f4] sm:$0xff]
          %v3955 = vld [vmem:[%s4 + $0x2fc] sm:$0xf]
          %v3956 = vld [vmem:[%s5 + $0x200] sm:$0xf]
          %v3957 = vld [vmem:[%s5 + $0x204] sm:$0xf]
          %v3958 = vld [vmem:[%s5 + $0x208] sm:$0xf]
          %v3959 = vld [vmem:[%s5 + $0x20c] sm:$0xf]
          %v3960 = vld [vmem:[%s5 + $0x210] sm:$0xf]
          %v3961 = vld [vmem:[%s5 + $0x214] sm:$0xf]
          %v3962 = vld [vmem:[%s5 + $0x218] sm:$0xf]
          %v3963 = vld [vmem:[%s5 + $0x21c] sm:$0xf]
          %v3964 = vld [vmem:[%s5 + $0x220] sm:$0xf]
          %v3965 = vld [vmem:[%s5 + $0x224] sm:$0xf]
          %v3966 = vld [vmem:[%s5 + $0x228] sm:$0xf]
          %v3967 = vld [vmem:[%s5 + $0x22c] sm:$0xf]
          %v3968 = vld [vmem:[%s5 + $0x230] sm:$0xf]
          %v3969 = vld [vmem:[%s5 + $0x234] sm:$0xf]
          %v3970 = vld [vmem:[%s5 + $0x238] sm:$0xf]
          %v3971 = vld [vmem:[%s5 + $0x23c] sm:$0xf]
          %v3972 = vld [vmem:[%s5 + $0x240] sm:$0xf]
          %v3973 = vld [vmem:[%s5 + $0x244] sm:$0xf]
          %v3974 = vld [vmem:[%s5 + $0x248] sm:$0xf]
          %v3975 = vld [vmem:[%s5 + $0x24c] sm:$0xf]
          %v3976 = vld [vmem:[%s5 + $0x250] sm:$0xf]
          %v3977 = vld [vmem:[%s5 + $0x254] sm:$0xf]
          %v3978 = vld [vmem:[%s5 + $0x258] sm:$0xf]
          %v3979 = vld [vmem:[%s5 + $0x25c] sm:$0xf]
          %v3980 = vld [vmem:[%s5 + $0x260] sm:$0xf]
          %v3981 = vld [vmem:[%s5 + $0x264] sm:$0xf]
          %v3982 = vld [vmem:[%s5 + $0x268] sm:$0xf]
          %v3983 = vld [vmem:[%s5 + $0x26c] sm:$0xf]
          %v3984 = vld [vmem:[%s5 + $0x270] sm:$0xf]
          %v3985 = vld [vmem:[%s5 + $0x274] sm:$0xf]
          %v3986 = vld [vmem:[%s5 + $0x278] sm:$0xf]
          %v3987 = vld [vmem:[%s5 + $0x27c] sm:$0xf]
          %v3988 = vld [vmem:[%s5 + $0x280] sm:$0x3]
          %v4117 = vunpack.c.l.b16 %v3828
          %v4118 = vunpack.c.h.b16 %v3828
          %v4119 = vunpack.c.l.b16 %v3829
          %v4120 = vunpack.c.l.b16 %v3830
          %v4121 = vunpack.c.h.b16 %v3830
          %v4122 = vunpack.c.l.b16 %v3831
          %v4123 = vunpack.c.l.b16 %v3832
          %v4124 = vunpack.c.h.b16 %v3832
          %v4125 = vunpack.c.l.b16 %v3833
          %v4126 = vunpack.c.l.b16 %v3834
          %v4127 = vunpack.c.h.b16 %v3834
          %v4128 = vunpack.c.l.b16 %v3835
          %v4129 = vunpack.c.l.b16 %v3836
          %v4130 = vunpack.c.h.b16 %v3836
          %v4131 = vunpack.c.l.b16 %v3837
          %v4132 = vunpack.c.l.b16 %v3838
          %v4133 = vunpack.c.h.b16 %v3838
          %v4134 = vunpack.c.l.b16 %v3839
          %v4135 = vunpack.c.l.b16 %v3840
          %v4136 = vunpack.c.h.b16 %v3840
          %v4137 = vunpack.c.l.b16 %v3841
          %v4138 = vunpack.c.l.b16 %v3842
          %v4139 = vunpack.c.h.b16 %v3842
          %v4140 = vunpack.c.l.b16 %v3843
          %v4141 = vunpack.c.l.b16 %v3844
          %v4142 = vunpack.c.h.b16 %v3844
          %v4143 = vunpack.c.l.b16 %v3845
          %v4144 = vunpack.c.l.b16 %v3846
          %v4145 = vunpack.c.h.b16 %v3846
          %v4146 = vunpack.c.l.b16 %v3847
          %v4147 = vunpack.c.l.b16 %v3848
          %v4148 = vunpack.c.h.b16 %v3848
          %v4149 = vunpack.c.l.b16 %v3849
          %v4150 = vunpack.c.l.b16 %v3850
          %v4151 = vunpack.c.h.b16 %v3850
          %v4152 = vunpack.c.l.b16 %v3851
          %v4153 = vunpack.c.l.b16 %v3852
          %v4154 = vunpack.c.h.b16 %v3852
          %v4155 = vunpack.c.l.b16 %v3853
          %v4156 = vunpack.c.l.b16 %v3854
          %v4157 = vunpack.c.h.b16 %v3854
          %v4158 = vunpack.c.l.b16 %v3855
          %v4159 = vunpack.c.l.b16 %v3856
          %v4160 = vunpack.c.h.b16 %v3856
          %v4161 = vunpack.c.l.b16 %v3857
          %v4162 = vunpack.c.l.b16 %v3858
          %v4163 = vunpack.c.h.b16 %v3858
          %v4164 = vunpack.c.l.b16 %v3859
          %v4165 = vunpack.c.l.b16 %v3860
          %v4166 = vunpack.c.h.b16 %v3860
          %v4167 = vunpack.c.l.b16 %v3861
          %v4168 = vunpack.c.l.b16 %v3862
          %v4169 = vunpack.c.h.b16 %v3862
          %v4170 = vunpack.c.l.b16 %v3863
          %v4171 = vunpack.c.l.b16 %v3864
          %v4172 = vunpack.c.h.b16 %v3864
          %v4173 = vunpack.c.l.b16 %v3865
          %v4174 = vunpack.c.l.b16 %v3866
          %v4175 = vunpack.c.h.b16 %v3866
          %v4176 = vunpack.c.l.b16 %v3867
          %v4177 = vunpack.c.l.b16 %v3868
          %v4178 = vunpack.c.h.b16 %v3868
          %v4179 = vunpack.c.l.b16 %v3869
          %v4180 = vunpack.c.l.b16 %v3870
          %v4181 = vunpack.c.h.b16 %v3870
          %v4182 = vunpack.c.l.b16 %v3871
          %v4183 = vunpack.c.l.b16 %v3872
          %v4184 = vunpack.c.h.b16 %v3872
          %v4185 = vunpack.c.l.b16 %v3873
          %v4186 = vunpack.c.l.b16 %v3874
          %v4187 = vunpack.c.h.b16 %v3874
          %v4188 = vunpack.c.l.b16 %v3875
          %v4189 = vunpack.c.l.b16 %v3876
          %v4190 = vunpack.c.h.b16 %v3876
          %v4191 = vunpack.c.l.b16 %v3877
          %v4192 = vunpack.c.l.b16 %v3878
          %v4193 = vunpack.c.h.b16 %v3878
          %v4194 = vunpack.c.l.b16 %v3879
          %v4195 = vunpack.c.l.b16 %v3880
          %v4196 = vunpack.c.h.b16 %v3880
          %v4197 = vunpack.c.l.b16 %v3881
          %v4198 = vunpack.c.l.b16 %v3882
          %v4199 = vunpack.c.h.b16 %v3882
          %v4200 = vunpack.c.l.b16 %v3883
          %v4201 = vunpack.c.l.b16 %v3884
          %v4202 = vunpack.c.h.b16 %v3884
          %v4203 = vunpack.c.l.b16 %v3885
          %v4204 = vunpack.c.l.b16 %v3886
          %v4205 = vunpack.c.h.b16 %v3886
          %v4206 = vunpack.c.l.b16 %v3887
          %v4207 = vunpack.c.l.b16 %v3888
          %v4208 = vunpack.c.h.b16 %v3888
          %v4209 = vunpack.c.l.b16 %v3889
          %v4210 = vunpack.c.l.b16 %v3890
          %v4211 = vunpack.c.h.b16 %v3890
          %v4212 = vunpack.c.l.b16 %v3891
          %v4213 = vunpack.c.l.b16 %v3892
          %v4214 = vunpack.c.h.b16 %v3892
          %v4215 = vunpack.c.l.b16 %v3893
          %v4216 = vunpack.c.l.b16 %v3894
          %v4217 = vunpack.c.h.b16 %v3894
          %v4218 = vunpack.c.l.b16 %v3895
          %v4219 = vunpack.c.l.b16 %v3896
          %v4220 = vunpack.c.h.b16 %v3896
          %v4221 = vunpack.c.l.b16 %v3897
          %v4222 = vunpack.c.l.b16 %v3898
          %v4223 = vunpack.c.h.b16 %v3898
          %v4224 = vunpack.c.l.b16 %v3899
          %v4225 = vunpack.c.l.b16 %v3900
          %v4226 = vunpack.c.h.b16 %v3900
          %v4227 = vunpack.c.l.b16 %v3901
          %v4228 = vunpack.c.l.b16 %v3902
          %v4229 = vunpack.c.h.b16 %v3902
          %v4230 = vunpack.c.l.b16 %v3903
          %v4231 = vunpack.c.l.b16 %v3904
          %v4232 = vunpack.c.h.b16 %v3904
          %v4233 = vunpack.c.l.b16 %v3905
          %v4234 = vunpack.c.l.b16 %v3906
          %v4235 = vunpack.c.h.b16 %v3906
          %v4236 = vunpack.c.l.b16 %v3907
          %v4237 = vunpack.c.l.b16 %v3908
          %v4238 = vunpack.c.h.b16 %v3908
          %v4239 = vunpack.c.l.b16 %v3909
          %v4240 = vunpack.c.l.b16 %v3910
          %v4241 = vunpack.c.h.b16 %v3910
          %v4242 = vunpack.c.l.b16 %v3911
          %v4243 = vunpack.c.l.b16 %v3912
          %v4244 = vunpack.c.h.b16 %v3912
          %v4245 = vunpack.c.l.b16 %v3913
          %v4246 = vunpack.c.l.b16 %v3914
          %v4247 = vunpack.c.h.b16 %v3914
          %v4248 = vunpack.c.l.b16 %v3915
          %v4249 = vunpack.c.l.b16 %v3916
          %v4250 = vunpack.c.h.b16 %v3916
          %v4251 = vunpack.c.l.b16 %v3917
          %v4252 = vunpack.c.l.b16 %v3918
          %v4253 = vunpack.c.h.b16 %v3918
          %v4254 = vunpack.c.l.b16 %v3919
          %v4255 = vunpack.c.l.b16 %v3920
          %v4256 = vunpack.c.h.b16 %v3920
          %v4257 = vunpack.c.l.b16 %v3921
          %v4258 = vunpack.c.l.b16 %v3922
          %v4259 = vunpack.c.h.b16 %v3922
          %v4260 = vunpack.c.l.b16 %v3923
          %v4261 = vunpack.c.l.b16 %v3924
          %v4262 = vunpack.c.h.b16 %v3924
          %v4263 = vunpack.c.l.b16 %v3925
          %v4264 = vunpack.c.l.b16 %v3926
          %v4265 = vunpack.c.h.b16 %v3926
          %v4266 = vunpack.c.l.b16 %v3927
          %v4267 = vunpack.c.l.b16 %v3928
          %v4268 = vunpack.c.h.b16 %v3928
          %v4269 = vunpack.c.l.b16 %v3929
          %v4270 = vunpack.c.l.b16 %v3930
          %v4271 = vunpack.c.h.b16 %v3930
          %v4272 = vunpack.c.l.b16 %v3931
          %v4273 = vunpack.c.l.b16 %v3932
          %v4274 = vunpack.c.h.b16 %v3932
          %v4275 = vunpack.c.l.b16 %v3933
          %v4276 = vunpack.c.l.b16 %v3934
          %v4277 = vunpack.c.h.b16 %v3934
          %v4278 = vunpack.c.l.b16 %v3935
          %v4279 = vunpack.c.l.b16 %v3936
          %v4280 = vunpack.c.h.b16 %v3936
          %v4281 = vunpack.c.l.b16 %v3937
          %v4282 = vunpack.c.l.b16 %v3938
          %v4283 = vunpack.c.h.b16 %v3938
          %v4284 = vunpack.c.l.b16 %v3939
          %v4285 = vunpack.c.l.b16 %v3940
          %v4286 = vunpack.c.h.b16 %v3940
          %v4287 = vunpack.c.l.b16 %v3941
          %v4288 = vunpack.c.l.b16 %v3942
          %v4289 = vunpack.c.h.b16 %v3942
          %v4290 = vunpack.c.l.b16 %v3943
          %v4291 = vunpack.c.l.b16 %v3944
          %v4292 = vunpack.c.h.b16 %v3944
          %v4293 = vunpack.c.l.b16 %v3945
          %v4294 = vunpack.c.l.b16 %v3946
          %v4295 = vunpack.c.h.b16 %v3946
          %v4296 = vunpack.c.l.b16 %v3947
          %v4297 = vunpack.c.l.b16 %v3948
          %v4298 = vunpack.c.h.b16 %v3948
          %v4299 = vunpack.c.l.b16 %v3949
          %v4300 = vunpack.c.l.b16 %v3950
          %v4301 = vunpack.c.h.b16 %v3950
          %v4302 = vunpack.c.l.b16 %v3951
          %v4303 = vunpack.c.l.b16 %v3952
          %v4304 = vunpack.c.h.b16 %v3952
          %v4305 = vunpack.c.l.b16 %v3953
          %v4306 = vunpack.c.l.b16 %v3954
          %v4307 = vunpack.c.h.b16 %v3954
          %v4308 = vunpack.c.l.b16 %v3955
          %v4309 = vpack.c.b16 %v4120, %v4117
          %v4310 = vpack.c.b16 %v4121, %v4118
          %v4311 = vpack.c.b16 %v4122, %v4119
          %v4312 = vpack.c.b16 %v4126, %v4123
          %v4313 = vpack.c.b16 %v4127, %v4124
          %v4314 = vpack.c.b16 %v4128, %v4125
          %v4315 = vpack.c.b16 %v4132, %v4129
          %v4316 = vpack.c.b16 %v4133, %v4130
          %v4317 = vpack.c.b16 %v4134, %v4131
          %v4318 = vpack.c.b16 %v4138, %v4135
          %v4319 = vpack.c.b16 %v4139, %v4136
          %v4320 = vpack.c.b16 %v4140, %v4137
          %v4321 = vpack.c.b16 %v4144, %v4141
          %v4322 = vpack.c.b16 %v4145, %v4142
          %v4323 = vpack.c.b16 %v4146, %v4143
          %v4324 = vpack.c.b16 %v4150, %v4147
          %v4325 = vpack.c.b16 %v4151, %v4148
          %v4326 = vpack.c.b16 %v4152, %v4149
          %v4327 = vpack.c.b16 %v4156, %v4153
          %v4328 = vpack.c.b16 %v4157, %v4154
          %v4329 = vpack.c.b16 %v4158, %v4155
          %v4330 = vpack.c.b16 %v4162, %v4159
          %v4331 = vpack.c.b16 %v4163, %v4160
          %v4332 = vpack.c.b16 %v4164, %v4161
          %v4333 = vpack.c.b16 %v4168, %v4165
          %v4334 = vpack.c.b16 %v4169, %v4166
          %v4335 = vpack.c.b16 %v4170, %v4167
          %v4336 = vpack.c.b16 %v4174, %v4171
          %v4337 = vpack.c.b16 %v4175, %v4172
          %v4338 = vpack.c.b16 %v4176, %v4173
          %v4339 = vpack.c.b16 %v4180, %v4177
          %v4340 = vpack.c.b16 %v4181, %v4178
          %v4341 = vpack.c.b16 %v4182, %v4179
          %v4342 = vpack.c.b16 %v4186, %v4183
          %v4343 = vpack.c.b16 %v4187, %v4184
          %v4344 = vpack.c.b16 %v4188, %v4185
          %v4345 = vpack.c.b16 %v4192, %v4189
          %v4346 = vpack.c.b16 %v4193, %v4190
          %v4347 = vpack.c.b16 %v4194, %v4191
          %v4348 = vpack.c.b16 %v4198, %v4195
          %v4349 = vpack.c.b16 %v4199, %v4196
          %v4350 = vpack.c.b16 %v4200, %v4197
          %v4351 = vpack.c.b16 %v4204, %v4201
          %v4352 = vpack.c.b16 %v4205, %v4202
          %v4353 = vpack.c.b16 %v4206, %v4203
          %v4354 = vpack.c.b16 %v4210, %v4207
          %v4355 = vpack.c.b16 %v4211, %v4208
          %v4356 = vpack.c.b16 %v4212, %v4209
          %v4357 = vpack.c.b16 %v4216, %v4213
          %v4358 = vpack.c.b16 %v4217, %v4214
          %v4359 = vpack.c.b16 %v4218, %v4215
          %v4360 = vpack.c.b16 %v4222, %v4219
          %v4361 = vpack.c.b16 %v4223, %v4220
          %v4362 = vpack.c.b16 %v4224, %v4221
          %v4363 = vpack.c.b16 %v4228, %v4225
          %v4364 = vpack.c.b16 %v4229, %v4226
          %v4365 = vpack.c.b16 %v4230, %v4227
          %v4366 = vpack.c.b16 %v4234, %v4231
          %v4367 = vpack.c.b16 %v4235, %v4232
          %v4368 = vpack.c.b16 %v4236, %v4233
          %v4369 = vpack.c.b16 %v4240, %v4237
          %v4370 = vpack.c.b16 %v4241, %v4238
          %v4371 = vpack.c.b16 %v4242, %v4239
          %v4372 = vpack.c.b16 %v4246, %v4243
          %v4373 = vpack.c.b16 %v4247, %v4244
          %v4374 = vpack.c.b16 %v4248, %v4245
          %v4375 = vpack.c.b16 %v4252, %v4249
          %v4376 = vpack.c.b16 %v4253, %v4250
          %v4377 = vpack.c.b16 %v4254, %v4251
          %v4378 = vpack.c.b16 %v4258, %v4255
          %v4379 = vpack.c.b16 %v4259, %v4256
          %v4380 = vpack.c.b16 %v4260, %v4257
          %v4381 = vpack.c.b16 %v4264, %v4261
          %v4382 = vpack.c.b16 %v4265, %v4262
          %v4383 = vpack.c.b16 %v4266, %v4263
          %v4384 = vpack.c.b16 %v4270, %v4267
          %v4385 = vpack.c.b16 %v4271, %v4268
          %v4386 = vpack.c.b16 %v4272, %v4269
          %v4387 = vpack.c.b16 %v4276, %v4273
          %v4388 = vpack.c.b16 %v4277, %v4274
          %v4389 = vpack.c.b16 %v4278, %v4275
          %v4390 = vpack.c.b16 %v4282, %v4279
          %v4391 = vpack.c.b16 %v4283, %v4280
          %v4392 = vpack.c.b16 %v4284, %v4281
          %v4393 = vpack.c.b16 %v4288, %v4285
          %v4394 = vpack.c.b16 %v4289, %v4286
          %v4395 = vpack.c.b16 %v4290, %v4287
          %v4396 = vpack.c.b16 %v4294, %v4291
          %v4397 = vpack.c.b16 %v4295, %v4292
          %v4398 = vpack.c.b16 %v4296, %v4293
          %v4399 = vpack.c.b16 %v4300, %v4297
          %v4400 = vpack.c.b16 %v4301, %v4298
          %v4401 = vpack.c.b16 %v4302, %v4299
          %v4402 = vpack.c.b16 %v4306, %v4303
          %v4403 = vpack.c.b16 %v4307, %v4304
          %v4404 = vpack.c.b16 %v4308, %v4305
          %v4502 = vunpack.c.l.b16 %v3956
          %v4503 = vunpack.c.l.b16 %v3957
          %v4504 = vunpack.c.l.b16 %v3958
          %v4505 = vunpack.c.l.b16 %v3959
          %v4506 = vunpack.c.l.b16 %v3960
          %v4507 = vunpack.c.l.b16 %v3961
          %v4508 = vunpack.c.l.b16 %v3962
          %v4509 = vunpack.c.l.b16 %v3963
          %v4510 = vunpack.c.l.b16 %v3964
          %v4511 = vunpack.c.l.b16 %v3965
          %v4512 = vunpack.c.l.b16 %v3966
          %v4513 = vunpack.c.l.b16 %v3967
          %v4514 = vunpack.c.l.b16 %v3968
          %v4515 = vunpack.c.l.b16 %v3969
          %v4516 = vunpack.c.l.b16 %v3970
          %v4517 = vunpack.c.l.b16 %v3971
          %v4518 = vunpack.c.l.b16 %v3972
          %v4519 = vunpack.c.l.b16 %v3973
          %v4520 = vunpack.c.l.b16 %v3974
          %v4521 = vunpack.c.l.b16 %v3975
          %v4522 = vunpack.c.l.b16 %v3976
          %v4523 = vunpack.c.l.b16 %v3977
          %v4524 = vunpack.c.l.b16 %v3978
          %v4525 = vunpack.c.l.b16 %v3979
          %v4526 = vunpack.c.l.b16 %v3980
          %v4527 = vunpack.c.l.b16 %v3981
          %v4528 = vunpack.c.l.b16 %v3982
          %v4529 = vunpack.c.l.b16 %v3983
          %v4530 = vunpack.c.l.b16 %v3984
          %v4531 = vunpack.c.l.b16 %v3985
          %v4532 = vunpack.c.l.b16 %v3986
          %v4533 = vunpack.c.l.b16 %v3987
          %v4534 = vunpack.c.l.b16 %v3988
          %v4535 = vpack.c.b16 %v4503, %v4502
          %v4536 = vpack.c.b16 %v4505, %v4504
          %v4537 = vpack.c.b16 %v4507, %v4506
          %v4538 = vpack.c.b16 %v4509, %v4508
          %v4539 = vpack.c.b16 %v4511, %v4510
          %v4540 = vpack.c.b16 %v4513, %v4512
          %v4541 = vpack.c.b16 %v4515, %v4514
          %v4542 = vpack.c.b16 %v4517, %v4516
          %v4543 = vpack.c.b16 %v4519, %v4518
          %v4544 = vpack.c.b16 %v4521, %v4520
          %v4545 = vpack.c.b16 %v4523, %v4522
          %v4546 = vpack.c.b16 %v4525, %v4524
          %v4547 = vpack.c.b16 %v4527, %v4526
          %v4548 = vpack.c.b16 %v4529, %v4528
          %v4549 = vpack.c.b16 %v4531, %v4530
          %v4550 = vpack.c.b16 %v4533, %v4532
          %v4551 = vpack.c.b16 %v4534, %v4534
          %vm4568 = vcmask 31744
          %v4570 = vsel %vm4568, %v4311, 0
          %v4573 = vsel %vm4568, %v4314, 0
          %v4576 = vsel %vm4568, %v4317, 0
          %v4579 = vsel %vm4568, %v4320, 0
          %v4582 = vsel %vm4568, %v4323, 0
          %v4585 = vsel %vm4568, %v4326, 0
          %v4588 = vsel %vm4568, %v4329, 0
          %v4591 = vsel %vm4568, %v4332, 0
          %v4594 = vsel %vm4568, %v4335, 0
          %v4597 = vsel %vm4568, %v4338, 0
          %v4600 = vsel %vm4568, %v4341, 0
          %v4603 = vsel %vm4568, %v4344, 0
          %v4606 = vsel %vm4568, %v4347, 0
          %v4609 = vsel %vm4568, %v4350, 0
          %v4612 = vsel %vm4568, %v4353, 0
          %v4615 = vsel %vm4568, %v4356, 0
          %v4618 = vsel %vm4568, %v4359, 0
          %v4621 = vsel %vm4568, %v4362, 0
          %v4624 = vsel %vm4568, %v4365, 0
          %v4627 = vsel %vm4568, %v4368, 0
          %v4630 = vsel %vm4568, %v4371, 0
          %v4633 = vsel %vm4568, %v4374, 0
          %v4636 = vsel %vm4568, %v4377, 0
          %v4639 = vsel %vm4568, %v4380, 0
          %v4642 = vsel %vm4568, %v4383, 0
          %v4645 = vsel %vm4568, %v4386, 0
          %v4648 = vsel %vm4568, %v4389, 0
          %v4651 = vsel %vm4568, %v4392, 0
          %v4654 = vsel %vm4568, %v4395, 0
          %v4657 = vsel %vm4568, %v4398, 0
          %v4660 = vsel %vm4568, %v4401, 0
          %v4663 = vsel %vm4568, %v4404, 0
          %vm4665 = vcmask 1041408
          %v4667 = vsel %vm4665, %v4551, 0
          %4669 = vmatprep.subr.bf16.mxu0 0
          %4670 = vmatpush1.bf16.msra.mxu0 %v4535
          %4671 = vmatprep.subr.bf16.mxu0 0
          %4672 = vmatpush1.bf16.msra.mxu0 %v4536
          %4673 = vmatprep.subr.bf16.mxu0 0
          %4674 = vmatpush1.bf16.msra.mxu0 %v4537
          %4675 = vmatprep.subr.bf16.mxu0 0
          %4676 = vmatpush1.bf16.msra.mxu0 %v4538
          %4677 = vmatprep.subr.bf16.mxu0 0
          %4678 = vmatpush1.bf16.msra.mxu0 %v4539
          %4679 = vmatprep.subr.bf16.mxu0 0
          %4680 = vmatpush1.bf16.msra.mxu0 %v4540
          %4681 = vmatprep.subr.bf16.mxu0 0
          %4682 = vmatpush1.bf16.msra.mxu0 %v4541
          %4683 = vmatprep.subr.bf16.mxu0 0
          %4684 = vmatpush1.bf16.msra.mxu0 %v4542
          %4685 = vmatprep.subr.bf16.mxu0 0
          %4686 = vmatpush1.bf16.msra.mxu0 %v4543
          %4687 = vmatprep.subr.bf16.mxu0 0
          %4688 = vmatpush1.bf16.msra.mxu0 %v4544
          %4689 = vmatprep.subr.bf16.mxu0 0
          %4690 = vmatpush1.bf16.msra.mxu0 %v4545
          %4691 = vmatprep.subr.bf16.mxu0 0
          %4692 = vmatpush1.bf16.msra.mxu0 %v4546
          %4693 = vmatprep.subr.bf16.mxu0 0
          %4694 = vmatpush1.bf16.msra.mxu0 %v4547
          %4695 = vmatprep.subr.bf16.mxu0 0
          %4696 = vmatpush1.bf16.msra.mxu0 %v4548
          %4697 = vmatprep.subr.bf16.mxu0 0
          %4698 = vmatpush1.bf16.msra.mxu0 %v4549
          %4699 = vmatprep.subr.bf16.mxu0 0
          %4700 = vmatpush1.bf16.msra.mxu0 %v4550
          %4701 = vmatprep.mubr.bf16.mxu0 %v4310
          %4702 = vmatmul.mubr.bf16.gmra.mrb[0].mxu0 %v4309
          %v4703 = vpop.f32.mrb[0].mxu0
          %v4704 = vadd.f32 0.0, %v4703
          %v4705 = vpop.f32.mrb[0].mxu0
          %v4706 = vpop.f32.mrb[0].mxu0
          %v4707 = vadd.f32 0.0, %v4706
          %v4708 = vpop.f32.mrb[0].mxu0
          %4709 = vmatprep.mubr.bf16.mxu0 %v4313
          %4710 = vmatmul.mubr.bf16.gmra.mrb[0].mxu0 %v4312
          %v4711 = vpop.f32.mrb[0].mxu0
          %v4712 = vadd.f32 0.0, %v4711
          %v4713 = vpop.f32.mrb[0].mxu0
          %v4714 = vpop.f32.mrb[0].mxu0
          %v4715 = vadd.f32 0.0, %v4714
          %v4716 = vpop.f32.mrb[0].mxu0
          %4717 = vmatprep.mubr.bf16.mxu0 %v4316
          %4718 = vmatmul.mubr.bf16.gmra.mrb[0].mxu0 %v4315
          %v4719 = vpop.f32.mrb[0].mxu0
          %v4720 = vadd.f32 0.0, %v4719
          %v4721 = vpop.f32.mrb[0].mxu0
          %v4722 = vpop.f32.mrb[0].mxu0
          %v4723 = vadd.f32 0.0, %v4722
          %v4724 = vpop.f32.mrb[0].mxu0
          %4725 = vmatprep.mubr.bf16.mxu0 %v4319
          %4726 = vmatmul.mubr.bf16.gmra.mrb[0].mxu0 %v4318
          %v4727 = vpop.f32.mrb[0].mxu0
          %v4728 = vadd.f32 0.0, %v4727
          %v4729 = vpop.f32.mrb[0].mxu0
          %v4730 = vpop.f32.mrb[0].mxu0
          %v4731 = vadd.f32 0.0, %v4730
          %v4732 = vpop.f32.mrb[0].mxu0
          %4733 = vmatprep.mubr.bf16.mxu0 %v4322
          %4734 = vmatmul.mubr.bf16.gmra.mrb[0].mxu0 %v4321
          %v4735 = vpop.f32.mrb[0].mxu0
          %v4736 = vadd.f32 0.0, %v4735
          %v4737 = vpop.f32.mrb[0].mxu0
          %v4738 = vpop.f32.mrb[0].mxu0
          %v4739 = vadd.f32 0.0, %v4738
          %v4740 = vpop.f32.mrb[0].mxu0
          %4741 = vmatprep.mubr.bf16.mxu0 %v4325
          %4742 = vmatmul.mubr.bf16.gmra.mrb[0].mxu0 %v4324
          %v4743 = vpop.f32.mrb[0].mxu0
          %v4744 = vadd.f32 0.0, %v4743
          %v4745 = vpop.f32.mrb[0].mxu0
          %v4746 = vpop.f32.mrb[0].mxu0
          %v4747 = vadd.f32 0.0, %v4746
          %v4748 = vpop.f32.mrb[0].mxu0
          %4749 = vmatprep.mubr.bf16.mxu0 %v4328
          %4750 = vmatmul.mubr.bf16.gmra.mrb[0].mxu0 %v4327
          %v4751 = vpop.f32.mrb[0].mxu0
          %v4752 = vadd.f32 0.0, %v4751
          %v4753 = vpop.f32.mrb[0].mxu0
          %v4754 = vpop.f32.mrb[0].mxu0
          %v4755 = vadd.f32 0.0, %v4754
          %v4756 = vpop.f32.mrb[0].mxu0
          %4757 = vmatprep.mubr.bf16.mxu0 %v4331
          %4758 = vmatmul.mubr.bf16.gmra.mrb[0].mxu0 %v4330
          %v4759 = vpop.f32.mrb[0].mxu0
          %v4760 = vadd.f32 0.0, %v4759
          %v4761 = vpop.f32.mrb[0].mxu0
          %v4762 = vpop.f32.mrb[0].mxu0
          %v4763 = vadd.f32 0.0, %v4762
          %v4764 = vpop.f32.mrb[0].mxu0
          %4765 = vmatprep.mubr.bf16.mxu0 %v4334
          %4766 = vmatmul.mubr.bf16.gmra.mrb[0].mxu0 %v4333
          %v4767 = vpop.f32.mrb[0].mxu0
          %v4768 = vadd.f32 0.0, %v4767
          %v4769 = vpop.f32.mrb[0].mxu0
          %v4770 = vpop.f32.mrb[0].mxu0
          %v4771 = vadd.f32 0.0, %v4770
          %v4772 = vpop.f32.mrb[0].mxu0
          %4773 = vmatprep.mubr.bf16.mxu0 %v4337
          %4774 = vmatmul.mubr.bf16.gmra.mrb[0].mxu0 %v4336
          %v4775 = vpop.f32.mrb[0].mxu0
          %v4776 = vadd.f32 0.0, %v4775
          %v4777 = vpop.f32.mrb[0].mxu0
          %v4778 = vpop.f32.mrb[0].mxu0
          %v4779 = vadd.f32 0.0, %v4778
          %v4780 = vpop.f32.mrb[0].mxu0
          %4781 = vmatprep.mubr.bf16.mxu0 %v4340
          %4782 = vmatmul.mubr.bf16.gmra.mrb[0].mxu0 %v4339
          %v4783 = vpop.f32.mrb[0].mxu0
          %v4784 = vadd.f32 0.0, %v4783
          %v4785 = vpop.f32.mrb[0].mxu0
          %v4786 = vpop.f32.mrb[0].mxu0
          %v4787 = vadd.f32 0.0, %v4786
          %v4788 = vpop.f32.mrb[0].mxu0
          %4789 = vmatprep.mubr.bf16.mxu0 %v4343
          %4790 = vmatmul.mubr.bf16.gmra.mrb[0].mxu0 %v4342
          %v4791 = vpop.f32.mrb[0].mxu0
          %v4792 = vadd.f32 0.0, %v4791
          %v4793 = vpop.f32.mrb[0].mxu0
          %v4794 = vpop.f32.mrb[0].mxu0
          %v4795 = vadd.f32 0.0, %v4794
          %v4796 = vpop.f32.mrb[0].mxu0
          %4797 = vmatprep.mubr.bf16.mxu0 %v4346
          %4798 = vmatmul.mubr.bf16.gmra.mrb[0].mxu0 %v4345
          %v4799 = vpop.f32.mrb[0].mxu0
          %v4800 = vadd.f32 0.0, %v4799
          %v4801 = vpop.f32.mrb[0].mxu0
          %v4802 = vpop.f32.mrb[0].mxu0
          %v4803 = vadd.f32 0.0, %v4802
          %v4804 = vpop.f32.mrb[0].mxu0
          %4805 = vmatprep.mubr.bf16.mxu0 %v4349
          %4806 = vmatmul.mubr.bf16.gmra.mrb[0].mxu0 %v4348
          %v4807 = vpop.f32.mrb[0].mxu0
          %v4808 = vadd.f32 0.0, %v4807
          %v4809 = vpop.f32.mrb[0].mxu0
          %v4810 = vpop.f32.mrb[0].mxu0
          %v4811 = vadd.f32 0.0, %v4810
          %v4812 = vpop.f32.mrb[0].mxu0
          %4813 = vmatprep.mubr.bf16.mxu0 %v4352
          %4814 = vmatmul.mubr.bf16.gmra.mrb[0].mxu0 %v4351
          %v4815 = vpop.f32.mrb[0].mxu0
          %v4816 = vadd.f32 0.0, %v4815
          %v4817 = vpop.f32.mrb[0].mxu0
          %v4818 = vpop.f32.mrb[0].mxu0
          %v4819 = vadd.f32 0.0, %v4818
          %v4820 = vpop.f32.mrb[0].mxu0
          %4821 = vmatprep.mubr.bf16.mxu0 %v4355
          %4822 = vmatmul.mubr.bf16.gmra.mrb[0].mxu0 %v4354
          %v4823 = vpop.f32.mrb[0].mxu0
          %v4824 = vadd.f32 0.0, %v4823
          %v4825 = vpop.f32.mrb[0].mxu0
          %v4826 = vpop.f32.mrb[0].mxu0
          %v4827 = vadd.f32 0.0, %v4826
          %v4828 = vpop.f32.mrb[0].mxu0
          %4829 = vmatprep.mubr.bf16.mxu0 %v4358
          %4830 = vmatmul.mubr.bf16.gmra.mrb[0].mxu0 %v4357
          %v4831 = vpop.f32.mrb[0].mxu0
          %v4832 = vadd.f32 0.0, %v4831
          %v4833 = vpop.f32.mrb[0].mxu0
          %v4834 = vpop.f32.mrb[0].mxu0
          %v4835 = vadd.f32 0.0, %v4834
          %v4836 = vpop.f32.mrb[0].mxu0
          %4837 = vmatprep.mubr.bf16.mxu0 %v4361
          %4838 = vmatmul.mubr.bf16.gmra.mrb[0].mxu0 %v4360
          %v4839 = vpop.f32.mrb[0].mxu0
          %v4840 = vadd.f32 0.0, %v4839
          %v4841 = vpop.f32.mrb[0].mxu0
          %v4842 = vpop.f32.mrb[0].mxu0
          %v4843 = vadd.f32 0.0, %v4842
          %v4844 = vpop.f32.mrb[0].mxu0
          %4845 = vmatprep.mubr.bf16.mxu0 %v4364
          %4846 = vmatmul.mubr.bf16.gmra.mrb[0].mxu0 %v4363
          %v4847 = vpop.f32.mrb[0].mxu0
          %v4848 = vadd.f32 0.0, %v4847
          %v4849 = vpop.f32.mrb[0].mxu0
          %v4850 = vpop.f32.mrb[0].mxu0
          %v4851 = vadd.f32 0.0, %v4850
          %v4852 = vpop.f32.mrb[0].mxu0
          %4853 = vmatprep.mubr.bf16.mxu0 %v4367
          %4854 = vmatmul.mubr.bf16.gmra.mrb[0].mxu0 %v4366
          %v4855 = vpop.f32.mrb[0].mxu0
          %v4856 = vadd.f32 0.0, %v4855
          %v4857 = vpop.f32.mrb[0].mxu0
          %v4858 = vpop.f32.mrb[0].mxu0
          %v4859 = vadd.f32 0.0, %v4858
          %v4860 = vpop.f32.mrb[0].mxu0
          %4861 = vmatprep.mubr.bf16.mxu0 %v4370
          %4862 = vmatmul.mubr.bf16.gmra.mrb[0].mxu0 %v4369
          %v4863 = vpop.f32.mrb[0].mxu0
          %v4864 = vadd.f32 0.0, %v4863
          %v4865 = vpop.f32.mrb[0].mxu0
          %v4866 = vpop.f32.mrb[0].mxu0
          %v4867 = vadd.f32 0.0, %v4866
          %v4868 = vpop.f32.mrb[0].mxu0
          %4869 = vmatprep.mubr.bf16.mxu0 %v4373
          %4870 = vmatmul.mubr.bf16.gmra.mrb[0].mxu0 %v4372
          %v4871 = vpop.f32.mrb[0].mxu0
          %v4872 = vadd.f32 0.0, %v4871
          %v4873 = vpop.f32.mrb[0].mxu0
          %v4874 = vpop.f32.mrb[0].mxu0
          %v4875 = vadd.f32 0.0, %v4874
          %v4876 = vpop.f32.mrb[0].mxu0
          %4877 = vmatprep.mubr.bf16.mxu0 %v4376
          %4878 = vmatmul.mubr.bf16.gmra.mrb[0].mxu0 %v4375
          %v4879 = vpop.f32.mrb[0].mxu0
          %v4880 = vadd.f32 0.0, %v4879
          %v4881 = vpop.f32.mrb[0].mxu0
          %v4882 = vpop.f32.mrb[0].mxu0
          %v4883 = vadd.f32 0.0, %v4882
          %v4884 = vpop.f32.mrb[0].mxu0
          %4885 = vmatprep.mubr.bf16.mxu0 %v4379
          %4886 = vmatmul.mubr.bf16.gmra.mrb[0].mxu0 %v4378
          %v4887 = vpop.f32.mrb[0].mxu0
          %v4888 = vadd.f32 0.0, %v4887
          %v4889 = vpop.f32.mrb[0].mxu0
          %v4890 = vpop.f32.mrb[0].mxu0
          %v4891 = vadd.f32 0.0, %v4890
          %v4892 = vpop.f32.mrb[0].mxu0
          %4893 = vmatprep.mubr.bf16.mxu0 %v4382
          %4894 = vmatmul.mubr.bf16.gmra.mrb[0].mxu0 %v4381
          %v4895 = vpop.f32.mrb[0].mxu0
          %v4896 = vadd.f32 0.0, %v4895
          %v4897 = vpop.f32.mrb[0].mxu0
          %v4898 = vpop.f32.mrb[0].mxu0
          %v4899 = vadd.f32 0.0, %v4898
          %v4900 = vpop.f32.mrb[0].mxu0
          %4901 = vmatprep.mubr.bf16.mxu0 %v4385
          %4902 = vmatmul.mubr.bf16.gmra.mrb[0].mxu0 %v4384
          %v4903 = vpop.f32.mrb[0].mxu0
          %v4904 = vadd.f32 0.0, %v4903
          %v4905 = vpop.f32.mrb[0].mxu0
          %v4906 = vpop.f32.mrb[0].mxu0
          %v4907 = vadd.f32 0.0, %v4906
          %v4908 = vpop.f32.mrb[0].mxu0
          %4909 = vmatprep.mubr.bf16.mxu0 %v4388
          %4910 = vmatmul.mubr.bf16.gmra.mrb[0].mxu0 %v4387
          %v4911 = vpop.f32.mrb[0].mxu0
          %v4912 = vadd.f32 0.0, %v4911
          %v4913 = vpop.f32.mrb[0].mxu0
          %v4914 = vpop.f32.mrb[0].mxu0
          %v4915 = vadd.f32 0.0, %v4914
          %v4916 = vpop.f32.mrb[0].mxu0
          %4917 = vmatprep.mubr.bf16.mxu0 %v4391
          %4918 = vmatmul.mubr.bf16.gmra.mrb[0].mxu0 %v4390
          %v4919 = vpop.f32.mrb[0].mxu0
          %v4920 = vadd.f32 0.0, %v4919
          %v4921 = vpop.f32.mrb[0].mxu0
          %v4922 = vpop.f32.mrb[0].mxu0
          %v4923 = vadd.f32 0.0, %v4922
          %v4924 = vpop.f32.mrb[0].mxu0
          %4925 = vmatprep.mubr.bf16.mxu0 %v4394
          %4926 = vmatmul.mubr.bf16.gmra.mrb[0].mxu0 %v4393
          %v4927 = vpop.f32.mrb[0].mxu0
          %v4928 = vadd.f32 0.0, %v4927
          %v4929 = vpop.f32.mrb[0].mxu0
          %v4930 = vpop.f32.mrb[0].mxu0
          %v4931 = vadd.f32 0.0, %v4930
          %v4932 = vpop.f32.mrb[0].mxu0
          %4933 = vmatprep.mubr.bf16.mxu0 %v4397
          %4934 = vmatmul.mubr.bf16.gmra.mrb[0].mxu0 %v4396
          %v4935 = vpop.f32.mrb[0].mxu0
          %v4936 = vadd.f32 0.0, %v4935
          %v4937 = vpop.f32.mrb[0].mxu0
          %v4938 = vpop.f32.mrb[0].mxu0
          %v4939 = vadd.f32 0.0, %v4938
          %v4940 = vpop.f32.mrb[0].mxu0
          %4941 = vmatprep.mubr.bf16.mxu0 %v4400
          %4942 = vmatmul.mubr.bf16.gmra.mrb[0].mxu0 %v4399
          %v4943 = vpop.f32.mrb[0].mxu0
          %v4944 = vadd.f32 0.0, %v4943
          %v4945 = vpop.f32.mrb[0].mxu0
          %v4946 = vpop.f32.mrb[0].mxu0
          %v4947 = vadd.f32 0.0, %v4946
          %v4948 = vpop.f32.mrb[0].mxu0
          %4949 = vmatprep.mubr.bf16.mxu0 %v4403
          %4950 = vmatmul.mubr.bf16.gmra.mrb[0].mxu0 %v4402
          %v4951 = vpop.f32.mrb[0].mxu0
          %v4952 = vadd.f32 0.0, %v4951
          %v4953 = vpop.f32.mrb[0].mxu0
          %v4954 = vpop.f32.mrb[0].mxu0
          %v4955 = vadd.f32 0.0, %v4954
          %v4956 = vpop.f32.mrb[0].mxu0
          %4957 = vdwg.mxu0
          %4958 = vmatprep.subr.bf16.mxu0 0
          %4959 = vmatpush1.bf16.msra.mxu0 %v4667
          %4960 = vmatprep.subr.bf16.mxu0 0
          %4961 = vmatpush1.bf16.msra.mxu0 0
          %4962 = vmatprep.subr.bf16.mxu0 0
          %4963 = vmatpush1.bf16.msra.mxu0 0
          %4964 = vmatprep.subr.bf16.mxu0 0
          %4965 = vmatpush1.bf16.msra.mxu0 0
          %4966 = vmatprep.subr.bf16.mxu0 0
          %4967 = vmatpush1.bf16.msra.mxu0 0
          %4968 = vmatprep.subr.bf16.mxu0 0
          %4969 = vmatpush1.bf16.msra.mxu0 0
          %4970 = vmatprep.subr.bf16.mxu0 0
          %4971 = vmatpush1.bf16.msra.mxu0 0
          %4972 = vmatprep.subr.bf16.mxu0 0
          %4973 = vmatpush1.bf16.msra.mxu0 0
          %4974 = vmatprep.subr.bf16.mxu0 0
          %4975 = vmatpush1.bf16.msra.mxu0 0
          %4976 = vmatprep.subr.bf16.mxu0 0
          %4977 = vmatpush1.bf16.msra.mxu0 0
          %4978 = vmatprep.subr.bf16.mxu0 0
          %4979 = vmatpush1.bf16.msra.mxu0 0
          %4980 = vmatprep.subr.bf16.mxu0 0
          %4981 = vmatpush1.bf16.msra.mxu0 0
          %4982 = vmatprep.subr.bf16.mxu0 0
          %4983 = vmatpush1.bf16.msra.mxu0 0
          %4984 = vmatprep.subr.bf16.mxu0 0
          %4985 = vmatpush1.bf16.msra.mxu0 0
          %4986 = vmatprep.subr.bf16.mxu0 0
          %4987 = vmatpush1.bf16.msra.mxu0 0
          %4988 = vmatprep.subr.bf16.mxu0 0
          %4989 = vmatpush1.bf16.msra.mxu0 0
          %4990 = vmatprep.mubr.bf16.mxu0 0
          %4991 = vmatmul.mubr.bf16.gmra.mrb[0].mxu0 %v4570
          %v4992 = vpop.f32.mrb[0].mxu0
          %v4993 = vadd.f32 %v4704, %v4992
          %v4994 = vpop.f32.mrb[0].mxu0
          %v4995 = vpop.f32.mrb[0].mxu0
          %v4996 = vadd.f32 %v4707, %v4995
          %v4997 = vpop.f32.mrb[0].mxu0
          %4998 = vmatprep.mubr.bf16.mxu0 0
          %4999 = vmatmul.mubr.bf16.gmra.mrb[0].mxu0 %v4573
          %v5000 = vpop.f32.mrb[0].mxu0
          %v5001 = vadd.f32 %v4712, %v5000
          %v5002 = vpop.f32.mrb[0].mxu0
          %v5003 = vpop.f32.mrb[0].mxu0
          %v5004 = vadd.f32 %v4715, %v5003
          %v5005 = vpop.f32.mrb[0].mxu0
          %5006 = vmatprep.mubr.bf16.mxu0 0
          %5007 = vmatmul.mubr.bf16.gmra.mrb[0].mxu0 %v4576
          %v5008 = vpop.f32.mrb[0].mxu0
          %v5009 = vadd.f32 %v4720, %v5008
          %v5010 = vpop.f32.mrb[0].mxu0
          %v5011 = vpop.f32.mrb[0].mxu0
          %v5012 = vadd.f32 %v4723, %v5011
          %v5013 = vpop.f32.mrb[0].mxu0
          %5014 = vmatprep.mubr.bf16.mxu0 0
          %5015 = vmatmul.mubr.bf16.gmra.mrb[0].mxu0 %v4579
          %v5016 = vpop.f32.mrb[0].mxu0
          %v5017 = vadd.f32 %v4728, %v5016
          %v5018 = vpop.f32.mrb[0].mxu0
          %v5019 = vpop.f32.mrb[0].mxu0
          %v5020 = vadd.f32 %v4731, %v5019
          %v5021 = vpop.f32.mrb[0].mxu0
          %5022 = vmatprep.mubr.bf16.mxu0 0
          %5023 = vmatmul.mubr.bf16.gmra.mrb[0].mxu0 %v4582
          %v5024 = vpop.f32.mrb[0].mxu0
          %v5025 = vadd.f32 %v4736, %v5024
          %v5026 = vpop.f32.mrb[0].mxu0
          %v5027 = vpop.f32.mrb[0].mxu0
          %v5028 = vadd.f32 %v4739, %v5027
          %v5029 = vpop.f32.mrb[0].mxu0
          %5030 = vmatprep.mubr.bf16.mxu0 0
          %5031 = vmatmul.mubr.bf16.gmra.mrb[0].mxu0 %v4585
          %v5032 = vpop.f32.mrb[0].mxu0
          %v5033 = vadd.f32 %v4744, %v5032
          %v5034 = vpop.f32.mrb[0].mxu0
          %v5035 = vpop.f32.mrb[0].mxu0
          %v5036 = vadd.f32 %v4747, %v5035
          %v5037 = vpop.f32.mrb[0].mxu0
          %5038 = vmatprep.mubr.bf16.mxu0 0
          %5039 = vmatmul.mubr.bf16.gmra.mrb[0].mxu0 %v4588
          %v5040 = vpop.f32.mrb[0].mxu0
          %v5041 = vadd.f32 %v4752, %v5040
          %v5042 = vpop.f32.mrb[0].mxu0
          %v5043 = vpop.f32.mrb[0].mxu0
          %v5044 = vadd.f32 %v4755, %v5043
          %v5045 = vpop.f32.mrb[0].mxu0
          %5046 = vmatprep.mubr.bf16.mxu0 0
          %5047 = vmatmul.mubr.bf16.gmra.mrb[0].mxu0 %v4591
          %v5048 = vpop.f32.mrb[0].mxu0
          %v5049 = vadd.f32 %v4760, %v5048
          %v5050 = vpop.f32.mrb[0].mxu0
          %v5051 = vpop.f32.mrb[0].mxu0
          %v5052 = vadd.f32 %v4763, %v5051
          %v5053 = vpop.f32.mrb[0].mxu0
          %5054 = vmatprep.mubr.bf16.mxu0 0
          %5055 = vmatmul.mubr.bf16.gmra.mrb[0].mxu0 %v4594
          %v5056 = vpop.f32.mrb[0].mxu0
          %v5057 = vadd.f32 %v4768, %v5056
          %v5058 = vpop.f32.mrb[0].mxu0
          %v5059 = vpop.f32.mrb[0].mxu0
          %v5060 = vadd.f32 %v4771, %v5059
          %v5061 = vpop.f32.mrb[0].mxu0
          %5062 = vmatprep.mubr.bf16.mxu0 0
          %5063 = vmatmul.mubr.bf16.gmra.mrb[0].mxu0 %v4597
          %v5064 = vpop.f32.mrb[0].mxu0
          %v5065 = vadd.f32 %v4776, %v5064
          %v5066 = vpop.f32.mrb[0].mxu0
          %v5067 = vpop.f32.mrb[0].mxu0
          %v5068 = vadd.f32 %v4779, %v5067
          %v5069 = vpop.f32.mrb[0].mxu0
          %5070 = vmatprep.mubr.bf16.mxu0 0
          %5071 = vmatmul.mubr.bf16.gmra.mrb[0].mxu0 %v4600
          %v5072 = vpop.f32.mrb[0].mxu0
          %v5073 = vadd.f32 %v4784, %v5072
          %v5074 = vpop.f32.mrb[0].mxu0
          %v5075 = vpop.f32.mrb[0].mxu0
          %v5076 = vadd.f32 %v4787, %v5075
          %v5077 = vpop.f32.mrb[0].mxu0
          %5078 = vmatprep.mubr.bf16.mxu0 0
          %5079 = vmatmul.mubr.bf16.gmra.mrb[0].mxu0 %v4603
          %v5080 = vpop.f32.mrb[0].mxu0
          %v5081 = vadd.f32 %v4792, %v5080
          %v5082 = vpop.f32.mrb[0].mxu0
          %v5083 = vpop.f32.mrb[0].mxu0
          %v5084 = vadd.f32 %v4795, %v5083
          %v5085 = vpop.f32.mrb[0].mxu0
          %5086 = vmatprep.mubr.bf16.mxu0 0
          %5087 = vmatmul.mubr.bf16.gmra.mrb[0].mxu0 %v4606
          %v5088 = vpop.f32.mrb[0].mxu0
          %v5089 = vadd.f32 %v4800, %v5088
          %v5090 = vpop.f32.mrb[0].mxu0
          %v5091 = vpop.f32.mrb[0].mxu0
          %v5092 = vadd.f32 %v4803, %v5091
          %v5093 = vpop.f32.mrb[0].mxu0
          %5094 = vmatprep.mubr.bf16.mxu0 0
          %5095 = vmatmul.mubr.bf16.gmra.mrb[0].mxu0 %v4609
          %v5096 = vpop.f32.mrb[0].mxu0
          %v5097 = vadd.f32 %v4808, %v5096
          %v5098 = vpop.f32.mrb[0].mxu0
          %v5099 = vpop.f32.mrb[0].mxu0
          %v5100 = vadd.f32 %v4811, %v5099
          %v5101 = vpop.f32.mrb[0].mxu0
          %5102 = vmatprep.mubr.bf16.mxu0 0
          %5103 = vmatmul.mubr.bf16.gmra.mrb[0].mxu0 %v4612
          %v5104 = vpop.f32.mrb[0].mxu0
          %v5105 = vadd.f32 %v4816, %v5104
          %v5106 = vpop.f32.mrb[0].mxu0
          %v5107 = vpop.f32.mrb[0].mxu0
          %v5108 = vadd.f32 %v4819, %v5107
          %v5109 = vpop.f32.mrb[0].mxu0
          %5110 = vmatprep.mubr.bf16.mxu0 0
          %5111 = vmatmul.mubr.bf16.gmra.mrb[0].mxu0 %v4615
          %v5112 = vpop.f32.mrb[0].mxu0
          %v5113 = vadd.f32 %v4824, %v5112
          %v5114 = vpop.f32.mrb[0].mxu0
          %v5115 = vpop.f32.mrb[0].mxu0
          %v5116 = vadd.f32 %v4827, %v5115
          %v5117 = vpop.f32.mrb[0].mxu0
          %5118 = vmatprep.mubr.bf16.mxu0 0
          %5119 = vmatmul.mubr.bf16.gmra.mrb[0].mxu0 %v4618
          %v5120 = vpop.f32.mrb[0].mxu0
          %v5121 = vadd.f32 %v4832, %v5120
          %v5122 = vpop.f32.mrb[0].mxu0
          %v5123 = vpop.f32.mrb[0].mxu0
          %v5124 = vadd.f32 %v4835, %v5123
          %v5125 = vpop.f32.mrb[0].mxu0
          %5126 = vmatprep.mubr.bf16.mxu0 0
          %5127 = vmatmul.mubr.bf16.gmra.mrb[0].mxu0 %v4621
          %v5128 = vpop.f32.mrb[0].mxu0
          %v5129 = vadd.f32 %v4840, %v5128
          %v5130 = vpop.f32.mrb[0].mxu0
          %v5131 = vpop.f32.mrb[0].mxu0
          %v5132 = vadd.f32 %v4843, %v5131
          %v5133 = vpop.f32.mrb[0].mxu0
          %5134 = vmatprep.mubr.bf16.mxu0 0
          %5135 = vmatmul.mubr.bf16.gmra.mrb[0].mxu0 %v4624
          %v5136 = vpop.f32.mrb[0].mxu0
          %v5137 = vadd.f32 %v4848, %v5136
          %v5138 = vpop.f32.mrb[0].mxu0
          %v5139 = vpop.f32.mrb[0].mxu0
          %v5140 = vadd.f32 %v4851, %v5139
          %v5141 = vpop.f32.mrb[0].mxu0
          %5142 = vmatprep.mubr.bf16.mxu0 0
          %5143 = vmatmul.mubr.bf16.gmra.mrb[0].mxu0 %v4627
          %v5144 = vpop.f32.mrb[0].mxu0
          %v5145 = vadd.f32 %v4856, %v5144
          %v5146 = vpop.f32.mrb[0].mxu0
          %v5147 = vpop.f32.mrb[0].mxu0
          %v5148 = vadd.f32 %v4859, %v5147
          %v5149 = vpop.f32.mrb[0].mxu0
          %5150 = vmatprep.mubr.bf16.mxu0 0
          %5151 = vmatmul.mubr.bf16.gmra.mrb[0].mxu0 %v4630
          %v5152 = vpop.f32.mrb[0].mxu0
          %v5153 = vadd.f32 %v4864, %v5152
          %v5154 = vpop.f32.mrb[0].mxu0
          %v5155 = vpop.f32.mrb[0].mxu0
          %v5156 = vadd.f32 %v4867, %v5155
          %v5157 = vpop.f32.mrb[0].mxu0
          %5158 = vmatprep.mubr.bf16.mxu0 0
          %5159 = vmatmul.mubr.bf16.gmra.mrb[0].mxu0 %v4633
          %v5160 = vpop.f32.mrb[0].mxu0
          %v5161 = vadd.f32 %v4872, %v5160
          %v5162 = vpop.f32.mrb[0].mxu0
          %v5163 = vpop.f32.mrb[0].mxu0
          %v5164 = vadd.f32 %v4875, %v5163
          %v5165 = vpop.f32.mrb[0].mxu0
          %5166 = vmatprep.mubr.bf16.mxu0 0
          %5167 = vmatmul.mubr.bf16.gmra.mrb[0].mxu0 %v4636
          %v5168 = vpop.f32.mrb[0].mxu0
          %v5169 = vadd.f32 %v4880, %v5168
          %v5170 = vpop.f32.mrb[0].mxu0
          %v5171 = vpop.f32.mrb[0].mxu0
          %v5172 = vadd.f32 %v4883, %v5171
          %v5173 = vpop.f32.mrb[0].mxu0
          %5174 = vmatprep.mubr.bf16.mxu0 0
          %5175 = vmatmul.mubr.bf16.gmra.mrb[0].mxu0 %v4639
          %v5176 = vpop.f32.mrb[0].mxu0
          %v5177 = vadd.f32 %v4888, %v5176
          %v5178 = vpop.f32.mrb[0].mxu0
          %v5179 = vpop.f32.mrb[0].mxu0
          %v5180 = vadd.f32 %v4891, %v5179
          %v5181 = vpop.f32.mrb[0].mxu0
          %5182 = vmatprep.mubr.bf16.mxu0 0
          %5183 = vmatmul.mubr.bf16.gmra.mrb[0].mxu0 %v4642
          %v5184 = vpop.f32.mrb[0].mxu0
          %v5185 = vadd.f32 %v4896, %v5184
          %v5186 = vpop.f32.mrb[0].mxu0
          %v5187 = vpop.f32.mrb[0].mxu0
          %v5188 = vadd.f32 %v4899, %v5187
          %v5189 = vpop.f32.mrb[0].mxu0
          %5190 = vmatprep.mubr.bf16.mxu0 0
          %5191 = vmatmul.mubr.bf16.gmra.mrb[0].mxu0 %v4645
          %v5192 = vpop.f32.mrb[0].mxu0
          %v5193 = vadd.f32 %v4904, %v5192
          %v5194 = vpop.f32.mrb[0].mxu0
          %v5195 = vpop.f32.mrb[0].mxu0
          %v5196 = vadd.f32 %v4907, %v5195
          %v5197 = vpop.f32.mrb[0].mxu0
          %5198 = vmatprep.mubr.bf16.mxu0 0
          %5199 = vmatmul.mubr.bf16.gmra.mrb[0].mxu0 %v4648
          %v5200 = vpop.f32.mrb[0].mxu0
          %v5201 = vadd.f32 %v4912, %v5200
          %v5202 = vpop.f32.mrb[0].mxu0
          %v5203 = vpop.f32.mrb[0].mxu0
          %v5204 = vadd.f32 %v4915, %v5203
          %v5205 = vpop.f32.mrb[0].mxu0
          %5206 = vmatprep.mubr.bf16.mxu0 0
          %5207 = vmatmul.mubr.bf16.gmra.mrb[0].mxu0 %v4651
          %v5208 = vpop.f32.mrb[0].mxu0
          %v5209 = vadd.f32 %v4920, %v5208
          %v5210 = vpop.f32.mrb[0].mxu0
          %v5211 = vpop.f32.mrb[0].mxu0
          %v5212 = vadd.f32 %v4923, %v5211
          %v5213 = vpop.f32.mrb[0].mxu0
          %5214 = vmatprep.mubr.bf16.mxu0 0
          %5215 = vmatmul.mubr.bf16.gmra.mrb[0].mxu0 %v4654
          %v5216 = vpop.f32.mrb[0].mxu0
          %v5217 = vadd.f32 %v4928, %v5216
          %v5218 = vpop.f32.mrb[0].mxu0
          %v5219 = vpop.f32.mrb[0].mxu0
          %v5220 = vadd.f32 %v4931, %v5219
          %v5221 = vpop.f32.mrb[0].mxu0
          %5222 = vmatprep.mubr.bf16.mxu0 0
          %5223 = vmatmul.mubr.bf16.gmra.mrb[0].mxu0 %v4657
          %v5224 = vpop.f32.mrb[0].mxu0
          %v5225 = vadd.f32 %v4936, %v5224
          %v5226 = vpop.f32.mrb[0].mxu0
          %v5227 = vpop.f32.mrb[0].mxu0
          %v5228 = vadd.f32 %v4939, %v5227
          %v5229 = vpop.f32.mrb[0].mxu0
          %5230 = vmatprep.mubr.bf16.mxu0 0
          %5231 = vmatmul.mubr.bf16.gmra.mrb[0].mxu0 %v4660
          %v5232 = vpop.f32.mrb[0].mxu0
          %v5233 = vadd.f32 %v4944, %v5232
          %v5234 = vpop.f32.mrb[0].mxu0
          %v5235 = vpop.f32.mrb[0].mxu0
          %v5236 = vadd.f32 %v4947, %v5235
          %v5237 = vpop.f32.mrb[0].mxu0
          %5238 = vmatprep.mubr.bf16.mxu0 0
          %5239 = vmatmul.mubr.bf16.gmra.mrb[0].mxu0 %v4663
          %v5240 = vpop.f32.mrb[0].mxu0
          %v5241 = vadd.f32 %v4952, %v5240
          %v5242 = vpop.f32.mrb[0].mxu0
          %v5243 = vpop.f32.mrb[0].mxu0
          %v5244 = vadd.f32 %v4955, %v5243
          %v5245 = vpop.f32.mrb[0].mxu0
          %5246 = vdwg.mxu0
          %v5247 = vadd.f32 %v3764, %v4993
          %v5248 = vadd.f32 %v3765, %v4996
          %v5249 = vadd.f32 %v3766, %v5001
          %v5250 = vadd.f32 %v3767, %v5004
          %v5251 = vadd.f32 %v3768, %v5009
          %v5252 = vadd.f32 %v3769, %v5012
          %v5253 = vadd.f32 %v3770, %v5017
          %v5254 = vadd.f32 %v3771, %v5020
          %v5255 = vadd.f32 %v3772, %v5025
          %v5256 = vadd.f32 %v3773, %v5028
          %v5257 = vadd.f32 %v3774, %v5033
          %v5258 = vadd.f32 %v3775, %v5036
          %v5259 = vadd.f32 %v3776, %v5041
          %v5260 = vadd.f32 %v3777, %v5044
          %v5261 = vadd.f32 %v3778, %v5049
          %v5262 = vadd.f32 %v3779, %v5052
          %v5263 = vadd.f32 %v3780, %v5057
          %v5264 = vadd.f32 %v3781, %v5060
          %v5265 = vadd.f32 %v3782, %v5065
          %v5266 = vadd.f32 %v3783, %v5068
          %v5267 = vadd.f32 %v3784, %v5073
          %v5268 = vadd.f32 %v3785, %v5076
          %v5269 = vadd.f32 %v3786, %v5081
          %v5270 = vadd.f32 %v3787, %v5084
          %v5271 = vadd.f32 %v3788, %v5089
          %v5272 = vadd.f32 %v3789, %v5092
          %v5273 = vadd.f32 %v3790, %v5097
          %v5274 = vadd.f32 %v3791, %v5100
          %v5275 = vadd.f32 %v3792, %v5105
          %v5276 = vadd.f32 %v3793, %v5108
          %v5277 = vadd.f32 %v3794, %v5113
          %v5278 = vadd.f32 %v3795, %v5116
          %v5279 = vadd.f32 %v3796, %v5121
          %v5280 = vadd.f32 %v3797, %v5124
          %v5281 = vadd.f32 %v3798, %v5129
          %v5282 = vadd.f32 %v3799, %v5132
          %v5283 = vadd.f32 %v3800, %v5137
          %v5284 = vadd.f32 %v3801, %v5140
          %v5285 = vadd.f32 %v3802, %v5145
          %v5286 = vadd.f32 %v3803, %v5148
          %v5287 = vadd.f32 %v3804, %v5153
          %v5288 = vadd.f32 %v3805, %v5156
          %v5289 = vadd.f32 %v3806, %v5161
          %v5290 = vadd.f32 %v3807, %v5164
          %v5291 = vadd.f32 %v3808, %v5169
          %v5292 = vadd.f32 %v3809, %v5172
          %v5293 = vadd.f32 %v3810, %v5177
          %v5294 = vadd.f32 %v3811, %v5180
          %v5295 = vadd.f32 %v3812, %v5185
          %v5296 = vadd.f32 %v3813, %v5188
          %v5297 = vadd.f32 %v3814, %v5193
          %v5298 = vadd.f32 %v3815, %v5196
          %v5299 = vadd.f32 %v3816, %v5201
          %v5300 = vadd.f32 %v3817, %v5204
          %v5301 = vadd.f32 %v3818, %v5209
          %v5302 = vadd.f32 %v3819, %v5212
          %v5303 = vadd.f32 %v3820, %v5217
          %v5304 = vadd.f32 %v3821, %v5220
          %v5305 = vadd.f32 %v3822, %v5225
          %v5306 = vadd.f32 %v3823, %v5228
          %v5307 = vadd.f32 %v3824, %v5233
          %v5308 = vadd.f32 %v3825, %v5236
          %v5309 = vadd.f32 %v3826, %v5241
          %v5310 = vadd.f32 %v3827, %v5244
          %v5311 = vlaneseq
          %v5312 = vshrl.u32 %v5311, 7
          %v5313 = vsub.s32 3, %v5312
          %v5314 = vrot.slane %v491, %v5313
          %v5315 = vadd.f32 %v5247, %v5314
          %v5316 = vadd.f32 %v5248, %v5314
          %v5317 = vadd.f32 %v5249, %v5314
          %v5318 = vadd.f32 %v5250, %v5314
          %v5319 = vadd.f32 %v5251, %v5314
          %v5320 = vadd.f32 %v5252, %v5314
          %v5321 = vadd.f32 %v5253, %v5314
          %v5322 = vadd.f32 %v5254, %v5314
          %v5323 = vadd.f32 %v5255, %v5314
          %v5324 = vadd.f32 %v5256, %v5314
          %v5325 = vadd.f32 %v5257, %v5314
          %v5326 = vadd.f32 %v5258, %v5314
          %v5327 = vadd.f32 %v5259, %v5314
          %v5328 = vadd.f32 %v5260, %v5314
          %v5329 = vadd.f32 %v5261, %v5314
          %v5330 = vadd.f32 %v5262, %v5314
          %v5331 = vadd.f32 %v5263, %v5314
          %v5332 = vadd.f32 %v5264, %v5314
          %v5333 = vadd.f32 %v5265, %v5314
          %v5334 = vadd.f32 %v5266, %v5314
          %v5335 = vadd.f32 %v5267, %v5314
          %v5336 = vadd.f32 %v5268, %v5314
          %v5337 = vadd.f32 %v5269, %v5314
          %v5338 = vadd.f32 %v5270, %v5314
          %v5339 = vadd.f32 %v5271, %v5314
          %v5340 = vadd.f32 %v5272, %v5314
          %v5341 = vadd.f32 %v5273, %v5314
          %v5342 = vadd.f32 %v5274, %v5314
          %v5343 = vadd.f32 %v5275, %v5314
          %v5344 = vadd.f32 %v5276, %v5314
          %v5345 = vadd.f32 %v5277, %v5314
          %v5346 = vadd.f32 %v5278, %v5314
          %v5347 = vadd.f32 %v5279, %v5314
          %v5348 = vadd.f32 %v5280, %v5314
          %v5349 = vadd.f32 %v5281, %v5314
          %v5350 = vadd.f32 %v5282, %v5314
          %v5351 = vadd.f32 %v5283, %v5314
          %v5352 = vadd.f32 %v5284, %v5314
          %v5353 = vadd.f32 %v5285, %v5314
          %v5354 = vadd.f32 %v5286, %v5314
          %v5355 = vadd.f32 %v5287, %v5314
          %v5356 = vadd.f32 %v5288, %v5314
          %v5357 = vadd.f32 %v5289, %v5314
          %v5358 = vadd.f32 %v5290, %v5314
          %v5359 = vadd.f32 %v5291, %v5314
          %v5360 = vadd.f32 %v5292, %v5314
          %v5361 = vadd.f32 %v5293, %v5314
          %v5362 = vadd.f32 %v5294, %v5314
          %v5363 = vadd.f32 %v5295, %v5314
          %v5364 = vadd.f32 %v5296, %v5314
          %v5365 = vadd.f32 %v5297, %v5314
          %v5366 = vadd.f32 %v5298, %v5314
          %v5367 = vadd.f32 %v5299, %v5314
          %v5368 = vadd.f32 %v5300, %v5314
          %v5369 = vadd.f32 %v5301, %v5314
          %v5370 = vadd.f32 %v5302, %v5314
          %v5371 = vadd.f32 %v5303, %v5314
          %v5372 = vadd.f32 %v5304, %v5314
          %v5373 = vadd.f32 %v5305, %v5314
          %v5374 = vadd.f32 %v5306, %v5314
          %v5375 = vadd.f32 %v5307, %v5314
          %v5376 = vadd.f32 %v5308, %v5314
          %v5377 = vadd.f32 %v5309, %v5314
          %v5378 = vadd.f32 %v5310, %v5314
          %vm5379 = vcmp.ge.f32.partialorder %v5315, 0.0
          %vm5380 = vcmp.ge.f32.partialorder %v5316, 0.0
          %vm5381 = vcmp.ge.f32.partialorder %v5317, 0.0
          %vm5382 = vcmp.ge.f32.partialorder %v5318, 0.0
          %vm5383 = vcmp.ge.f32.partialorder %v5319, 0.0
          %vm5384 = vcmp.ge.f32.partialorder %v5320, 0.0
          %vm5385 = vcmp.ge.f32.partialorder %v5321, 0.0
          %vm5386 = vcmp.ge.f32.partialorder %v5322, 0.0
          %vm5387 = vcmp.ge.f32.partialorder %v5323, 0.0
          %vm5388 = vcmp.ge.f32.partialorder %v5324, 0.0
          %vm5389 = vcmp.ge.f32.partialorder %v5325, 0.0
          %vm5390 = vcmp.ge.f32.partialorder %v5326, 0.0
          %vm5391 = vcmp.ge.f32.partialorder %v5327, 0.0
          %vm5392 = vcmp.ge.f32.partialorder %v5328, 0.0
          %vm5393 = vcmp.ge.f32.partialorder %v5329, 0.0
          %vm5394 = vcmp.ge.f32.partialorder %v5330, 0.0
          %vm5395 = vcmp.ge.f32.partialorder %v5331, 0.0
          %vm5396 = vcmp.ge.f32.partialorder %v5332, 0.0
          %vm5397 = vcmp.ge.f32.partialorder %v5333, 0.0
          %vm5398 = vcmp.ge.f32.partialorder %v5334, 0.0
          %vm5399 = vcmp.ge.f32.partialorder %v5335, 0.0
          %vm5400 = vcmp.ge.f32.partialorder %v5336, 0.0
          %vm5401 = vcmp.ge.f32.partialorder %v5337, 0.0
          %vm5402 = vcmp.ge.f32.partialorder %v5338, 0.0
          %vm5403 = vcmp.ge.f32.partialorder %v5339, 0.0
          %vm5404 = vcmp.ge.f32.partialorder %v5340, 0.0
          %vm5405 = vcmp.ge.f32.partialorder %v5341, 0.0
          %vm5406 = vcmp.ge.f32.partialorder %v5342, 0.0
          %vm5407 = vcmp.ge.f32.partialorder %v5343, 0.0
          %vm5408 = vcmp.ge.f32.partialorder %v5344, 0.0
          %vm5409 = vcmp.ge.f32.partialorder %v5345, 0.0
          %vm5410 = vcmp.ge.f32.partialorder %v5346, 0.0
          %vm5411 = vcmp.ge.f32.partialorder %v5347, 0.0
          %vm5412 = vcmp.ge.f32.partialorder %v5348, 0.0
          %vm5413 = vcmp.ge.f32.partialorder %v5349, 0.0
          %vm5414 = vcmp.ge.f32.partialorder %v5350, 0.0
          %vm5415 = vcmp.ge.f32.partialorder %v5351, 0.0
          %vm5416 = vcmp.ge.f32.partialorder %v5352, 0.0
          %vm5417 = vcmp.ge.f32.partialorder %v5353, 0.0
          %vm5418 = vcmp.ge.f32.partialorder %v5354, 0.0
          %vm5419 = vcmp.ge.f32.partialorder %v5355, 0.0
          %vm5420 = vcmp.ge.f32.partialorder %v5356, 0.0
          %vm5421 = vcmp.ge.f32.partialorder %v5357, 0.0
          %vm5422 = vcmp.ge.f32.partialorder %v5358, 0.0
          %vm5423 = vcmp.ge.f32.partialorder %v5359, 0.0
          %vm5424 = vcmp.ge.f32.partialorder %v5360, 0.0
          %vm5425 = vcmp.ge.f32.partialorder %v5361, 0.0
          %vm5426 = vcmp.ge.f32.partialorder %v5362, 0.0
          %vm5427 = vcmp.ge.f32.partialorder %v5363, 0.0
          %vm5428 = vcmp.ge.f32.partialorder %v5364, 0.0
          %vm5429 = vcmp.ge.f32.partialorder %v5365, 0.0
          %vm5430 = vcmp.ge.f32.partialorder %v5366, 0.0
          %vm5431 = vcmp.ge.f32.partialorder %v5367, 0.0
          %vm5432 = vcmp.ge.f32.partialorder %v5368, 0.0
          %vm5433 = vcmp.ge.f32.partialorder %v5369, 0.0
          %vm5434 = vcmp.ge.f32.partialorder %v5370, 0.0
          %vm5435 = vcmp.ge.f32.partialorder %v5371, 0.0
          %vm5436 = vcmp.ge.f32.partialorder %v5372, 0.0
          %vm5437 = vcmp.ge.f32.partialorder %v5373, 0.0
          %vm5438 = vcmp.ge.f32.partialorder %v5374, 0.0
          %vm5439 = vcmp.ge.f32.partialorder %v5375, 0.0
          %vm5440 = vcmp.ge.f32.partialorder %v5376, 0.0
          %vm5441 = vcmp.ge.f32.partialorder %v5377, 0.0
          %vm5442 = vcmp.ge.f32.partialorder %v5378, 0.0
          %v5443 = vmul.f32 %v495, %v5315
          %v5444 = vmul.f32 %v495, %v5316
          %v5445 = vmul.f32 %v495, %v5317
          %v5446 = vmul.f32 %v495, %v5318
          %v5447 = vmul.f32 %v495, %v5319
          %v5448 = vmul.f32 %v495, %v5320
          %v5449 = vmul.f32 %v495, %v5321
          %v5450 = vmul.f32 %v495, %v5322
          %v5451 = vmul.f32 %v495, %v5323
          %v5452 = vmul.f32 %v495, %v5324
          %v5453 = vmul.f32 %v495, %v5325
          %v5454 = vmul.f32 %v495, %v5326
          %v5455 = vmul.f32 %v495, %v5327
          %v5456 = vmul.f32 %v495, %v5328
          %v5457 = vmul.f32 %v495, %v5329
          %v5458 = vmul.f32 %v495, %v5330
          %v5459 = vmul.f32 %v495, %v5331
          %v5460 = vmul.f32 %v495, %v5332
          %v5461 = vmul.f32 %v495, %v5333
          %v5462 = vmul.f32 %v495, %v5334
          %v5463 = vmul.f32 %v495, %v5335
          %v5464 = vmul.f32 %v495, %v5336
          %v5465 = vmul.f32 %v495, %v5337
          %v5466 = vmul.f32 %v495, %v5338
          %v5467 = vmul.f32 %v495, %v5339
          %v5468 = vmul.f32 %v495, %v5340
          %v5469 = vmul.f32 %v495, %v5341
          %v5470 = vmul.f32 %v495, %v5342
          %v5471 = vmul.f32 %v495, %v5343
          %v5472 = vmul.f32 %v495, %v5344
          %v5473 = vmul.f32 %v495, %v5345
          %v5474 = vmul.f32 %v495, %v5346
          %v5475 = vmul.f32 %v495, %v5347
          %v5476 = vmul.f32 %v495, %v5348
          %v5477 = vmul.f32 %v495, %v5349
          %v5478 = vmul.f32 %v495, %v5350
          %v5479 = vmul.f32 %v495, %v5351
          %v5480 = vmul.f32 %v495, %v5352
          %v5481 = vmul.f32 %v495, %v5353
          %v5482 = vmul.f32 %v495, %v5354
          %v5483 = vmul.f32 %v495, %v5355
          %v5484 = vmul.f32 %v495, %v5356
          %v5485 = vmul.f32 %v495, %v5357
          %v5486 = vmul.f32 %v495, %v5358
          %v5487 = vmul.f32 %v495, %v5359
          %v5488 = vmul.f32 %v495, %v5360
          %v5489 = vmul.f32 %v495, %v5361
          %v5490 = vmul.f32 %v495, %v5362
          %v5491 = vmul.f32 %v495, %v5363
          %v5492 = vmul.f32 %v495, %v5364
          %v5493 = vmul.f32 %v495, %v5365
          %v5494 = vmul.f32 %v495, %v5366
          %v5495 = vmul.f32 %v495, %v5367
          %v5496 = vmul.f32 %v495, %v5368
          %v5497 = vmul.f32 %v495, %v5369
          %v5498 = vmul.f32 %v495, %v5370
          %v5499 = vmul.f32 %v495, %v5371
          %v5500 = vmul.f32 %v495, %v5372
          %v5501 = vmul.f32 %v495, %v5373
          %v5502 = vmul.f32 %v495, %v5374
          %v5503 = vmul.f32 %v495, %v5375
          %v5504 = vmul.f32 %v495, %v5376
          %v5505 = vmul.f32 %v495, %v5377
          %v5506 = vmul.f32 %v495, %v5378
          %v5507 = vsel %vm5379, %v5315, %v5443
          %v5508 = vsel %vm5380, %v5316, %v5444
          %v5509 = vsel %vm5381, %v5317, %v5445
          %v5510 = vsel %vm5382, %v5318, %v5446
          %v5511 = vsel %vm5383, %v5319, %v5447
          %v5512 = vsel %vm5384, %v5320, %v5448
          %v5513 = vsel %vm5385, %v5321, %v5449
          %v5514 = vsel %vm5386, %v5322, %v5450
          %v5515 = vsel %vm5387, %v5323, %v5451
          %v5516 = vsel %vm5388, %v5324, %v5452
          %v5517 = vsel %vm5389, %v5325, %v5453
          %v5518 = vsel %vm5390, %v5326, %v5454
          %v5519 = vsel %vm5391, %v5327, %v5455
          %v5520 = vsel %vm5392, %v5328, %v5456
          %v5521 = vsel %vm5393, %v5329, %v5457
          %v5522 = vsel %vm5394, %v5330, %v5458
          %v5523 = vsel %vm5395, %v5331, %v5459
          %v5524 = vsel %vm5396, %v5332, %v5460
          %v5525 = vsel %vm5397, %v5333, %v5461
          %v5526 = vsel %vm5398, %v5334, %v5462
          %v5527 = vsel %vm5399, %v5335, %v5463
          %v5528 = vsel %vm5400, %v5336, %v5464
          %v5529 = vsel %vm5401, %v5337, %v5465
          %v5530 = vsel %vm5402, %v5338, %v5466
          %v5531 = vsel %vm5403, %v5339, %v5467
          %v5532 = vsel %vm5404, %v5340, %v5468
          %v5533 = vsel %vm5405, %v5341, %v5469
          %v5534 = vsel %vm5406, %v5342, %v5470
          %v5535 = vsel %vm5407, %v5343, %v5471
          %v5536 = vsel %vm5408, %v5344, %v5472
          %v5537 = vsel %vm5409, %v5345, %v5473
          %v5538 = vsel %vm5410, %v5346, %v5474
          %v5539 = vsel %vm5411, %v5347, %v5475
          %v5540 = vsel %vm5412, %v5348, %v5476
          %v5541 = vsel %vm5413, %v5349, %v5477
          %v5542 = vsel %vm5414, %v5350, %v5478
          %v5543 = vsel %vm5415, %v5351, %v5479
          %v5544 = vsel %vm5416, %v5352, %v5480
          %v5545 = vsel %vm5417, %v5353, %v5481
          %v5546 = vsel %vm5418, %v5354, %v5482
          %v5547 = vsel %vm5419, %v5355, %v5483
          %v5548 = vsel %vm5420, %v5356, %v5484
          %v5549 = vsel %vm5421, %v5357, %v5485
          %v5550 = vsel %vm5422, %v5358, %v5486
          %v5551 = vsel %vm5423, %v5359, %v5487
          %v5552 = vsel %vm5424, %v5360, %v5488
          %v5553 = vsel %vm5425, %v5361, %v5489
          %v5554 = vsel %vm5426, %v5362, %v5490
          %v5555 = vsel %vm5427, %v5363, %v5491
          %v5556 = vsel %vm5428, %v5364, %v5492
          %v5557 = vsel %vm5429, %v5365, %v5493
          %v5558 = vsel %vm5430, %v5366, %v5494
          %v5559 = vsel %vm5431, %v5367, %v5495
          %v5560 = vsel %vm5432, %v5368, %v5496
          %v5561 = vsel %vm5433, %v5369, %v5497
          %v5562 = vsel %vm5434, %v5370, %v5498
          %v5563 = vsel %vm5435, %v5371, %v5499
          %v5564 = vsel %vm5436, %v5372, %v5500
          %v5565 = vsel %vm5437, %v5373, %v5501
          %v5566 = vsel %vm5438, %v5374, %v5502
          %v5567 = vsel %vm5439, %v5375, %v5503
          %v5568 = vsel %vm5440, %v5376, %v5504
          %v5569 = vsel %vm5441, %v5377, %v5505
          %v5570 = vsel %vm5442, %v5378, %v5506
          %v5571 = vadd.f32 %v5507, %v5508
          %v5572 = vadd.f32 %v5571, %v5509
          %v5573 = vadd.f32 %v5572, %v5510
          %v5574 = vadd.f32 %v5573, %v5511
          %v5575 = vadd.f32 %v5574, %v5512
          %v5576 = vadd.f32 %v5575, %v5513
          %v5577 = vadd.f32 %v5576, %v5514
          %v5578 = vadd.f32 %v5577, %v5515
          %v5579 = vadd.f32 %v5578, %v5516
          %v5580 = vadd.f32 %v5579, %v5517
          %v5581 = vadd.f32 %v5580, %v5518
          %v5582 = vadd.f32 %v5581, %v5519
          %v5583 = vadd.f32 %v5582, %v5520
          %v5584 = vadd.f32 %v5583, %v5521
          %v5585 = vadd.f32 %v5584, %v5522
          %v5586 = vadd.f32 %v5585, %v5523
          %v5587 = vadd.f32 %v5586, %v5524
          %v5588 = vadd.f32 %v5587, %v5525
          %v5589 = vadd.f32 %v5588, %v5526
          %v5590 = vadd.f32 %v5589, %v5527
          %v5591 = vadd.f32 %v5590, %v5528
          %v5592 = vadd.f32 %v5591, %v5529
          %v5593 = vadd.f32 %v5592, %v5530
          %v5594 = vadd.f32 %v5593, %v5531
          %v5595 = vadd.f32 %v5594, %v5532
          %v5596 = vadd.f32 %v5595, %v5533
          %v5597 = vadd.f32 %v5596, %v5534
          %v5598 = vadd.f32 %v5597, %v5535
          %v5599 = vadd.f32 %v5598, %v5536
          %v5600 = vadd.f32 %v5599, %v5537
          %v5601 = vadd.f32 %v5600, %v5538
          %v5602 = vadd.f32 %v5601, %v5539
          %v5603 = vadd.f32 %v5602, %v5540
          %v5604 = vadd.f32 %v5603, %v5541
          %v5605 = vadd.f32 %v5604, %v5542
          %v5606 = vadd.f32 %v5605, %v5543
          %v5607 = vadd.f32 %v5606, %v5544
          %v5608 = vadd.f32 %v5607, %v5545
          %v5609 = vadd.f32 %v5608, %v5546
          %v5610 = vadd.f32 %v5609, %v5547
          %v5611 = vadd.f32 %v5610, %v5548
          %v5612 = vadd.f32 %v5611, %v5549
          %v5613 = vadd.f32 %v5612, %v5550
          %v5614 = vadd.f32 %v5613, %v5551
          %v5615 = vadd.f32 %v5614, %v5552
          %v5616 = vadd.f32 %v5615, %v5553
          %v5617 = vadd.f32 %v5616, %v5554
          %v5618 = vadd.f32 %v5617, %v5555
          %v5619 = vadd.f32 %v5618, %v5556
          %v5620 = vadd.f32 %v5619, %v5557
          %v5621 = vadd.f32 %v5620, %v5558
          %v5622 = vadd.f32 %v5621, %v5559
          %v5623 = vadd.f32 %v5622, %v5560
          %v5624 = vadd.f32 %v5623, %v5561
          %v5625 = vadd.f32 %v5624, %v5562
          %v5626 = vadd.f32 %v5625, %v5563
          %v5627 = vadd.f32 %v5626, %v5564
          %v5628 = vadd.f32 %v5627, %v5565
          %v5629 = vadd.f32 %v5628, %v5566
          %v5630 = vadd.f32 %v5629, %v5567
          %v5631 = vadd.f32 %v5630, %v5568
          %v5632 = vadd.f32 %v5631, %v5569
          %v5633 = vadd.f32 %v5632, %v5570
          %v5634 = vrot.slane %v5633, 4
          %v5635 = vadd.f32 %v5633, %v5634
          %v5636 = vrot.slane %v5635, 2
          %v5637 = vadd.f32 %v5635, %v5636
          %v5638 = vrot.slane %v5637, 1
          %v5639 = vadd.f32 %v5637, %v5638
          %v5640 = vrcp.pop 512.0
          %v5641 = vmul.f32 %v5639, %v5640
          %v5642 = vsub.f32 %v5507, %v5641
          %v5643 = vsub.f32 %v5508, %v5641
          %v5644 = vsub.f32 %v5509, %v5641
          %v5645 = vsub.f32 %v5510, %v5641
          %v5646 = vsub.f32 %v5511, %v5641
          %v5647 = vsub.f32 %v5512, %v5641
          %v5648 = vsub.f32 %v5513, %v5641
          %v5649 = vsub.f32 %v5514, %v5641
          %v5650 = vsub.f32 %v5515, %v5641
          %v5651 = vsub.f32 %v5516, %v5641
          %v5652 = vsub.f32 %v5517, %v5641
          %v5653 = vsub.f32 %v5518, %v5641
          %v5654 = vsub.f32 %v5519, %v5641
          %v5655 = vsub.f32 %v5520, %v5641
          %v5656 = vsub.f32 %v5521, %v5641
          %v5657 = vsub.f32 %v5522, %v5641
          %v5658 = vsub.f32 %v5523, %v5641
          %v5659 = vsub.f32 %v5524, %v5641
          %v5660 = vsub.f32 %v5525, %v5641
          %v5661 = vsub.f32 %v5526, %v5641
          %v5662 = vsub.f32 %v5527, %v5641
          %v5663 = vsub.f32 %v5528, %v5641
          %v5664 = vsub.f32 %v5529, %v5641
          %v5665 = vsub.f32 %v5530, %v5641
          %v5666 = vsub.f32 %v5531, %v5641
          %v5667 = vsub.f32 %v5532, %v5641
          %v5668 = vsub.f32 %v5533, %v5641
          %v5669 = vsub.f32 %v5534, %v5641
          %v5670 = vsub.f32 %v5535, %v5641
          %v5671 = vsub.f32 %v5536, %v5641
          %v5672 = vsub.f32 %v5537, %v5641
          %v5673 = vsub.f32 %v5538, %v5641
          %v5674 = vsub.f32 %v5539, %v5641
          %v5675 = vsub.f32 %v5540, %v5641
          %v5676 = vsub.f32 %v5541, %v5641
          %v5677 = vsub.f32 %v5542, %v5641
          %v5678 = vsub.f32 %v5543, %v5641
          %v5679 = vsub.f32 %v5544, %v5641
          %v5680 = vsub.f32 %v5545, %v5641
          %v5681 = vsub.f32 %v5546, %v5641
          %v5682 = vsub.f32 %v5547, %v5641
          %v5683 = vsub.f32 %v5548, %v5641
          %v5684 = vsub.f32 %v5549, %v5641
          %v5685 = vsub.f32 %v5550, %v5641
          %v5686 = vsub.f32 %v5551, %v5641
          %v5687 = vsub.f32 %v5552, %v5641
          %v5688 = vsub.f32 %v5553, %v5641
          %v5689 = vsub.f32 %v5554, %v5641
          %v5690 = vsub.f32 %v5555, %v5641
          %v5691 = vsub.f32 %v5556, %v5641
          %v5692 = vsub.f32 %v5557, %v5641
          %v5693 = vsub.f32 %v5558, %v5641
          %v5694 = vsub.f32 %v5559, %v5641
          %v5695 = vsub.f32 %v5560, %v5641
          %v5696 = vsub.f32 %v5561, %v5641
          %v5697 = vsub.f32 %v5562, %v5641
          %v5698 = vsub.f32 %v5563, %v5641
          %v5699 = vsub.f32 %v5564, %v5641
          %v5700 = vsub.f32 %v5565, %v5641
          %v5701 = vsub.f32 %v5566, %v5641
          %v5702 = vsub.f32 %v5567, %v5641
          %v5703 = vsub.f32 %v5568, %v5641
          %v5704 = vsub.f32 %v5569, %v5641
          %v5705 = vsub.f32 %v5570, %v5641
          %v5706 = vmul.f32 %v5642, %v5642
          %v5707 = vmul.f32 %v5643, %v5643
          %v5708 = vmul.f32 %v5644, %v5644
          %v5709 = vmul.f32 %v5645, %v5645
          %v5710 = vmul.f32 %v5646, %v5646
          %v5711 = vmul.f32 %v5647, %v5647
          %v5712 = vmul.f32 %v5648, %v5648
          %v5713 = vmul.f32 %v5649, %v5649
          %v5714 = vmul.f32 %v5650, %v5650
          %v5715 = vmul.f32 %v5651, %v5651
          %v5716 = vmul.f32 %v5652, %v5652
          %v5717 = vmul.f32 %v5653, %v5653
          %v5718 = vmul.f32 %v5654, %v5654
          %v5719 = vmul.f32 %v5655, %v5655
          %v5720 = vmul.f32 %v5656, %v5656
          %v5721 = vmul.f32 %v5657, %v5657
          %v5722 = vmul.f32 %v5658, %v5658
          %v5723 = vmul.f32 %v5659, %v5659
          %v5724 = vmul.f32 %v5660, %v5660
          %v5725 = vmul.f32 %v5661, %v5661
          %v5726 = vmul.f32 %v5662, %v5662
          %v5727 = vmul.f32 %v5663, %v5663
          %v5728 = vmul.f32 %v5664, %v5664
          %v5729 = vmul.f32 %v5665, %v5665
          %v5730 = vmul.f32 %v5666, %v5666
          %v5731 = vmul.f32 %v5667, %v5667
          %v5732 = vmul.f32 %v5668, %v5668
          %v5733 = vmul.f32 %v5669, %v5669
          %v5734 = vmul.f32 %v5670, %v5670
          %v5735 = vmul.f32 %v5671, %v5671
          %v5736 = vmul.f32 %v5672, %v5672
          %v5737 = vmul.f32 %v5673, %v5673
          %v5738 = vmul.f32 %v5674, %v5674
          %v5739 = vmul.f32 %v5675, %v5675
          %v5740 = vmul.f32 %v5676, %v5676
          %v5741 = vmul.f32 %v5677, %v5677
          %v5742 = vmul.f32 %v5678, %v5678
          %v5743 = vmul.f32 %v5679, %v5679
          %v5744 = vmul.f32 %v5680, %v5680
          %v5745 = vmul.f32 %v5681, %v5681
          %v5746 = vmul.f32 %v5682, %v5682
          %v5747 = vmul.f32 %v5683, %v5683
          %v5748 = vmul.f32 %v5684, %v5684
          %v5749 = vmul.f32 %v5685, %v5685
          %v5750 = vmul.f32 %v5686, %v5686
          %v5751 = vmul.f32 %v5687, %v5687
          %v5752 = vmul.f32 %v5688, %v5688
          %v5753 = vmul.f32 %v5689, %v5689
          %v5754 = vmul.f32 %v5690, %v5690
          %v5755 = vmul.f32 %v5691, %v5691
          %v5756 = vmul.f32 %v5692, %v5692
          %v5757 = vmul.f32 %v5693, %v5693
          %v5758 = vmul.f32 %v5694, %v5694
          %v5759 = vmul.f32 %v5695, %v5695
          %v5760 = vmul.f32 %v5696, %v5696
          %v5761 = vmul.f32 %v5697, %v5697
          %v5762 = vmul.f32 %v5698, %v5698
          %v5763 = vmul.f32 %v5699, %v5699
          %v5764 = vmul.f32 %v5700, %v5700
          %v5765 = vmul.f32 %v5701, %v5701
          %v5766 = vmul.f32 %v5702, %v5702
          %v5767 = vmul.f32 %v5703, %v5703
          %v5768 = vmul.f32 %v5704, %v5704
          %v5769 = vmul.f32 %v5705, %v5705
          %v5770 = vadd.f32 %v5706, %v5707
          %v5771 = vadd.f32 %v5770, %v5708
          %v5772 = vadd.f32 %v5771, %v5709
          %v5773 = vadd.f32 %v5772, %v5710
          %v5774 = vadd.f32 %v5773, %v5711
          %v5775 = vadd.f32 %v5774, %v5712
          %v5776 = vadd.f32 %v5775, %v5713
          %v5777 = vadd.f32 %v5776, %v5714
          %v5778 = vadd.f32 %v5777, %v5715
          %v5779 = vadd.f32 %v5778, %v5716
          %v5780 = vadd.f32 %v5779, %v5717
          %v5781 = vadd.f32 %v5780, %v5718
          %v5782 = vadd.f32 %v5781, %v5719
          %v5783 = vadd.f32 %v5782, %v5720
          %v5784 = vadd.f32 %v5783, %v5721
          %v5785 = vadd.f32 %v5784, %v5722
          %v5786 = vadd.f32 %v5785, %v5723
          %v5787 = vadd.f32 %v5786, %v5724
          %v5788 = vadd.f32 %v5787, %v5725
          %v5789 = vadd.f32 %v5788, %v5726
          %v5790 = vadd.f32 %v5789, %v5727
          %v5791 = vadd.f32 %v5790, %v5728
          %v5792 = vadd.f32 %v5791, %v5729
          %v5793 = vadd.f32 %v5792, %v5730
          %v5794 = vadd.f32 %v5793, %v5731
          %v5795 = vadd.f32 %v5794, %v5732
          %v5796 = vadd.f32 %v5795, %v5733
          %v5797 = vadd.f32 %v5796, %v5734
          %v5798 = vadd.f32 %v5797, %v5735
          %v5799 = vadd.f32 %v5798, %v5736
          %v5800 = vadd.f32 %v5799, %v5737
          %v5801 = vadd.f32 %v5800, %v5738
          %v5802 = vadd.f32 %v5801, %v5739
          %v5803 = vadd.f32 %v5802, %v5740
          %v5804 = vadd.f32 %v5803, %v5741
          %v5805 = vadd.f32 %v5804, %v5742
          %v5806 = vadd.f32 %v5805, %v5743
          %v5807 = vadd.f32 %v5806, %v5744
          %v5808 = vadd.f32 %v5807, %v5745
          %v5809 = vadd.f32 %v5808, %v5746
          %v5810 = vadd.f32 %v5809, %v5747
          %v5811 = vadd.f32 %v5810, %v5748
          %v5812 = vadd.f32 %v5811, %v5749
          %v5813 = vadd.f32 %v5812, %v5750
          %v5814 = vadd.f32 %v5813, %v5751
          %v5815 = vadd.f32 %v5814, %v5752
          %v5816 = vadd.f32 %v5815, %v5753
          %v5817 = vadd.f32 %v5816, %v5754
          %v5818 = vadd.f32 %v5817, %v5755
          %v5819 = vadd.f32 %v5818, %v5756
          %v5820 = vadd.f32 %v5819, %v5757
          %v5821 = vadd.f32 %v5820, %v5758
          %v5822 = vadd.f32 %v5821, %v5759
          %v5823 = vadd.f32 %v5822, %v5760
          %v5824 = vadd.f32 %v5823, %v5761
          %v5825 = vadd.f32 %v5824, %v5762
          %v5826 = vadd.f32 %v5825, %v5763
          %v5827 = vadd.f32 %v5826, %v5764
          %v5828 = vadd.f32 %v5827, %v5765
          %v5829 = vadd.f32 %v5828, %v5766
          %v5830 = vadd.f32 %v5829, %v5767
          %v5831 = vadd.f32 %v5830, %v5768
          %v5832 = vadd.f32 %v5831, %v5769
          %v5833 = vrot.slane %v5832, 4
          %v5834 = vadd.f32 %v5832, %v5833
          %v5835 = vrot.slane %v5834, 2
          %v5836 = vadd.f32 %v5834, %v5835
          %v5837 = vrot.slane %v5836, 1
          %v5838 = vadd.f32 %v5836, %v5837
          %v5839 = vmul.f32 %v5838, %v5640
          %v5840 = vadd.f32 %v5839, 1e-05
          %v5841 = vrsqrt.pop %v5840
          %v5842 = vmul.f32 %v490, %v5841
          %v5843 = vsel %vm494, %v5842, 1.0
          %v5844 = vmul.f32 %v5641, %v5843
          %v5846 = vrot.slane %v5844, 7
          %v5848 = vsub.f32 %v490, %v5846
          %v5849 = vsel %vm494, %v5848, 0.0
          %v5850 = vlaneseq
          %v5851 = vshrl.u32 %v5850, 7
          %v5852 = vsub.s32 3, %v5851
          %v5853 = vrot.slane %v5843, %v5852
          %v5854 = vmul.f32 %v5507, %v5853
          %v5855 = vmul.f32 %v5508, %v5853
          %v5856 = vmul.f32 %v5509, %v5853
          %v5857 = vmul.f32 %v5510, %v5853
          %v5858 = vmul.f32 %v5511, %v5853
          %v5859 = vmul.f32 %v5512, %v5853
          %v5860 = vmul.f32 %v5513, %v5853
          %v5861 = vmul.f32 %v5514, %v5853
          %v5862 = vmul.f32 %v5515, %v5853
          %v5863 = vmul.f32 %v5516, %v5853
          %v5864 = vmul.f32 %v5517, %v5853
          %v5865 = vmul.f32 %v5518, %v5853
          %v5866 = vmul.f32 %v5519, %v5853
          %v5867 = vmul.f32 %v5520, %v5853
          %v5868 = vmul.f32 %v5521, %v5853
          %v5869 = vmul.f32 %v5522, %v5853
          %v5870 = vmul.f32 %v5523, %v5853
          %v5871 = vmul.f32 %v5524, %v5853
          %v5872 = vmul.f32 %v5525, %v5853
          %v5873 = vmul.f32 %v5526, %v5853
          %v5874 = vmul.f32 %v5527, %v5853
          %v5875 = vmul.f32 %v5528, %v5853
          %v5876 = vmul.f32 %v5529, %v5853
          %v5877 = vmul.f32 %v5530, %v5853
          %v5878 = vmul.f32 %v5531, %v5853
          %v5879 = vmul.f32 %v5532, %v5853
          %v5880 = vmul.f32 %v5533, %v5853
          %v5881 = vmul.f32 %v5534, %v5853
          %v5882 = vmul.f32 %v5535, %v5853
          %v5883 = vmul.f32 %v5536, %v5853
          %v5884 = vmul.f32 %v5537, %v5853
          %v5885 = vmul.f32 %v5538, %v5853
          %v5886 = vmul.f32 %v5539, %v5853
          %v5887 = vmul.f32 %v5540, %v5853
          %v5888 = vmul.f32 %v5541, %v5853
          %v5889 = vmul.f32 %v5542, %v5853
          %v5890 = vmul.f32 %v5543, %v5853
          %v5891 = vmul.f32 %v5544, %v5853
          %v5892 = vmul.f32 %v5545, %v5853
          %v5893 = vmul.f32 %v5546, %v5853
          %v5894 = vmul.f32 %v5547, %v5853
          %v5895 = vmul.f32 %v5548, %v5853
          %v5896 = vmul.f32 %v5549, %v5853
          %v5897 = vmul.f32 %v5550, %v5853
          %v5898 = vmul.f32 %v5551, %v5853
          %v5899 = vmul.f32 %v5552, %v5853
          %v5900 = vmul.f32 %v5553, %v5853
          %v5901 = vmul.f32 %v5554, %v5853
          %v5902 = vmul.f32 %v5555, %v5853
          %v5903 = vmul.f32 %v5556, %v5853
          %v5904 = vmul.f32 %v5557, %v5853
          %v5905 = vmul.f32 %v5558, %v5853
          %v5906 = vmul.f32 %v5559, %v5853
          %v5907 = vmul.f32 %v5560, %v5853
          %v5908 = vmul.f32 %v5561, %v5853
          %v5909 = vmul.f32 %v5562, %v5853
          %v5910 = vmul.f32 %v5563, %v5853
          %v5911 = vmul.f32 %v5564, %v5853
          %v5912 = vmul.f32 %v5565, %v5853
          %v5913 = vmul.f32 %v5566, %v5853
          %v5914 = vmul.f32 %v5567, %v5853
          %v5915 = vmul.f32 %v5568, %v5853
          %v5916 = vmul.f32 %v5569, %v5853
          %v5917 = vmul.f32 %v5570, %v5853
          %v5918 = vlaneseq
          %v5919 = vshrl.u32 %v5918, 7
          %v5920 = vsub.s32 4, %v5919
          %v5921 = vrot.slane %v5849, %v5920
          %v5922 = vadd.f32 %v5854, %v5921
          %v5923 = vadd.f32 %v5855, %v5921
          %v5924 = vadd.f32 %v5856, %v5921
          %v5925 = vadd.f32 %v5857, %v5921
          %v5926 = vadd.f32 %v5858, %v5921
          %v5927 = vadd.f32 %v5859, %v5921
          %v5928 = vadd.f32 %v5860, %v5921
          %v5929 = vadd.f32 %v5861, %v5921
          %v5930 = vadd.f32 %v5862, %v5921
          %v5931 = vadd.f32 %v5863, %v5921
          %v5932 = vadd.f32 %v5864, %v5921
          %v5933 = vadd.f32 %v5865, %v5921
          %v5934 = vadd.f32 %v5866, %v5921
          %v5935 = vadd.f32 %v5867, %v5921
          %v5936 = vadd.f32 %v5868, %v5921
          %v5937 = vadd.f32 %v5869, %v5921
          %v5938 = vadd.f32 %v5870, %v5921
          %v5939 = vadd.f32 %v5871, %v5921
          %v5940 = vadd.f32 %v5872, %v5921
          %v5941 = vadd.f32 %v5873, %v5921
          %v5942 = vadd.f32 %v5874, %v5921
          %v5943 = vadd.f32 %v5875, %v5921
          %v5944 = vadd.f32 %v5876, %v5921
          %v5945 = vadd.f32 %v5877, %v5921
          %v5946 = vadd.f32 %v5878, %v5921
          %v5947 = vadd.f32 %v5879, %v5921
          %v5948 = vadd.f32 %v5880, %v5921
          %v5949 = vadd.f32 %v5881, %v5921
          %v5950 = vadd.f32 %v5882, %v5921
          %v5951 = vadd.f32 %v5883, %v5921
          %v5952 = vadd.f32 %v5884, %v5921
          %v5953 = vadd.f32 %v5885, %v5921
          %v5954 = vadd.f32 %v5886, %v5921
          %v5955 = vadd.f32 %v5887, %v5921
          %v5956 = vadd.f32 %v5888, %v5921
          %v5957 = vadd.f32 %v5889, %v5921
          %v5958 = vadd.f32 %v5890, %v5921
          %v5959 = vadd.f32 %v5891, %v5921
          %v5960 = vadd.f32 %v5892, %v5921
          %v5961 = vadd.f32 %v5893, %v5921
          %v5962 = vadd.f32 %v5894, %v5921
          %v5963 = vadd.f32 %v5895, %v5921
          %v5964 = vadd.f32 %v5896, %v5921
          %v5965 = vadd.f32 %v5897, %v5921
          %v5966 = vadd.f32 %v5898, %v5921
          %v5967 = vadd.f32 %v5899, %v5921
          %v5968 = vadd.f32 %v5900, %v5921
          %v5969 = vadd.f32 %v5901, %v5921
          %v5970 = vadd.f32 %v5902, %v5921
          %v5971 = vadd.f32 %v5903, %v5921
          %v5972 = vadd.f32 %v5904, %v5921
          %v5973 = vadd.f32 %v5905, %v5921
          %v5974 = vadd.f32 %v5906, %v5921
          %v5975 = vadd.f32 %v5907, %v5921
          %v5976 = vadd.f32 %v5908, %v5921
          %v5977 = vadd.f32 %v5909, %v5921
          %v5978 = vadd.f32 %v5910, %v5921
          %v5979 = vadd.f32 %v5911, %v5921
          %v5980 = vadd.f32 %v5912, %v5921
          %v5981 = vadd.f32 %v5913, %v5921
          %v5982 = vadd.f32 %v5914, %v5921
          %v5983 = vadd.f32 %v5915, %v5921
          %v5984 = vadd.f32 %v5916, %v5921
          %v5985 = vadd.f32 %v5917, %v5921
          %v5986 = vpack.c.bf16 %v5923, %v5922
          %v5987 = vpack.c.bf16 %v5925, %v5924
          %v5988 = vpack.c.bf16 %v5927, %v5926
          %v5989 = vpack.c.bf16 %v5929, %v5928
          %v5990 = vpack.c.bf16 %v5931, %v5930
          %v5991 = vpack.c.bf16 %v5933, %v5932
          %v5992 = vpack.c.bf16 %v5935, %v5934
          %v5993 = vpack.c.bf16 %v5937, %v5936
          %v5994 = vpack.c.bf16 %v5939, %v5938
          %v5995 = vpack.c.bf16 %v5941, %v5940
          %v5996 = vpack.c.bf16 %v5943, %v5942
          %v5997 = vpack.c.bf16 %v5945, %v5944
          %v5998 = vpack.c.bf16 %v5947, %v5946
          %v5999 = vpack.c.bf16 %v5949, %v5948
          %v6000 = vpack.c.bf16 %v5951, %v5950
          %v6001 = vpack.c.bf16 %v5953, %v5952
          %v6002 = vpack.c.bf16 %v5955, %v5954
          %v6003 = vpack.c.bf16 %v5957, %v5956
          %v6004 = vpack.c.bf16 %v5959, %v5958
          %v6005 = vpack.c.bf16 %v5961, %v5960
          %v6006 = vpack.c.bf16 %v5963, %v5962
          %v6007 = vpack.c.bf16 %v5965, %v5964
          %v6008 = vpack.c.bf16 %v5967, %v5966
          %v6009 = vpack.c.bf16 %v5969, %v5968
          %v6010 = vpack.c.bf16 %v5971, %v5970
          %v6011 = vpack.c.bf16 %v5973, %v5972
          %v6012 = vpack.c.bf16 %v5975, %v5974
          %v6013 = vpack.c.bf16 %v5977, %v5976
          %v6014 = vpack.c.bf16 %v5979, %v5978
          %v6015 = vpack.c.bf16 %v5981, %v5980
          %v6016 = vpack.c.bf16 %v5983, %v5982
          %v6017 = vpack.c.bf16 %v5985, %v5984
          %v6018 = vld [vmem:[%s6] sm:$0xf]
          %v6019 = vld [vmem:[%s6 + $0xc] sm:$0xf]
          %v6020 = vld [vmem:[%s6 + $0x18] sm:$0xf]
          %v6021 = vld [vmem:[%s6 + $0x24] sm:$0xf]
          %v6022 = vld [vmem:[%s6 + $0x30] sm:$0xf]
          %v6023 = vld [vmem:[%s6 + $0x3c] sm:$0xf]
          %v6024 = vld [vmem:[%s6 + $0x48] sm:$0xf]
          %v6025 = vld [vmem:[%s6 + $0x54] sm:$0xf]
          %v6026 = vld [vmem:[%s6 + $0x60] sm:$0xf]
          %v6027 = vld [vmem:[%s6 + $0x6c] sm:$0xf]
          %v6028 = vld [vmem:[%s6 + $0x78] sm:$0xf]
          %v6029 = vld [vmem:[%s6 + $0x84] sm:$0xf]
          %v6030 = vld [vmem:[%s6 + $0x90] sm:$0xf]
          %v6031 = vld [vmem:[%s6 + $0x9c] sm:$0xf]
          %v6032 = vld [vmem:[%s6 + $0xa8] sm:$0xf]
          %v6033 = vld [vmem:[%s6 + $0xb4] sm:$0xf]
          %v6034 = vlaneseq
          %v6035 = vshrl.u32 %v6034, 7
          %v6036 = vsub.s32 0, %v6035
          %v6037 = vrot.slane %v490, %v6036
          %v6054 = vunpack.c.l.b16 %v6018
          %v6055 = vunpack.c.l.b16 %v6019
          %v6056 = vunpack.c.l.b16 %v6020
          %v6057 = vunpack.c.l.b16 %v6021
          %v6058 = vunpack.c.l.b16 %v6022
          %v6059 = vunpack.c.l.b16 %v6023
          %v6060 = vunpack.c.l.b16 %v6024
          %v6061 = vunpack.c.l.b16 %v6025
          %v6062 = vunpack.c.l.b16 %v6026
          %v6063 = vunpack.c.l.b16 %v6027
          %v6064 = vunpack.c.l.b16 %v6028
          %v6065 = vunpack.c.l.b16 %v6029
          %v6066 = vunpack.c.l.b16 %v6030
          %v6067 = vunpack.c.l.b16 %v6031
          %v6068 = vunpack.c.l.b16 %v6032
          %v6069 = vunpack.c.l.b16 %v6033
          %v6070 = vpack.c.b16 %v6055, %v6054
          %v6071 = vpack.c.b16 %v6057, %v6056
          %v6072 = vpack.c.b16 %v6059, %v6058
          %v6073 = vpack.c.b16 %v6061, %v6060
          %v6074 = vpack.c.b16 %v6063, %v6062
          %v6075 = vpack.c.b16 %v6065, %v6064
          %v6076 = vpack.c.b16 %v6067, %v6066
          %v6077 = vpack.c.b16 %v6069, %v6068
          %6086 = vmatprep.subr.bf16.mxu0 0
          %6087 = vmatpush1.bf16.msra.mxu0 %v6070
          %6088 = vmatprep.subr.bf16.mxu0 0
          %6089 = vmatpush1.bf16.msra.mxu0 %v6071
          %6090 = vmatprep.subr.bf16.mxu0 0
          %6091 = vmatpush1.bf16.msra.mxu0 %v6072
          %6092 = vmatprep.subr.bf16.mxu0 0
          %6093 = vmatpush1.bf16.msra.mxu0 %v6073
          %6094 = vmatprep.subr.bf16.mxu0 0
          %6095 = vmatpush1.bf16.msra.mxu0 %v6074
          %6096 = vmatprep.subr.bf16.mxu0 0
          %6097 = vmatpush1.bf16.msra.mxu0 %v6075
          %6098 = vmatprep.subr.bf16.mxu0 0
          %6099 = vmatpush1.bf16.msra.mxu0 %v6076
          %6100 = vmatprep.subr.bf16.mxu0 0
          %6101 = vmatpush1.bf16.msra.mxu0 %v6077
          %6102 = vmatprep.subr.bf16.mxu0 0
          %6103 = vmatpush1.bf16.msra.mxu0 0
          %6104 = vmatprep.subr.bf16.mxu0 0
          %6105 = vmatpush1.bf16.msra.mxu0 0
          %6106 = vmatprep.subr.bf16.mxu0 0
          %6107 = vmatpush1.bf16.msra.mxu0 0
          %6108 = vmatprep.subr.bf16.mxu0 0
          %6109 = vmatpush1.bf16.msra.mxu0 0
          %6110 = vmatprep.subr.bf16.mxu0 0
          %6111 = vmatpush1.bf16.msra.mxu0 0
          %6112 = vmatprep.subr.bf16.mxu0 0
          %6113 = vmatpush1.bf16.msra.mxu0 0
          %6114 = vmatprep.subr.bf16.mxu0 0
          %6115 = vmatpush1.bf16.msra.mxu0 0
          %6116 = vmatprep.subr.bf16.mxu0 0
          %6117 = vmatpush1.bf16.msra.mxu0 0
          %6118 = vmatprep.mubr.bf16.mxu0 0
          %6119 = vmatmul.mubr.bf16.gmra.mrb[0].mxu0 %v5986
          %v6120 = vpop.f32.mrb[0].mxu0
          %v6121 = vadd.f32 %v6037, %v6120
          %v6122 = vpop.f32.mrb[0].mxu0
          %v6123 = vpop.f32.mrb[0].mxu0
          %v6124 = vadd.f32 %v6037, %v6123
          %v6125 = vpop.f32.mrb[0].mxu0
          %6126 = vmatprep.mubr.bf16.mxu0 0
          %6127 = vmatmul.mubr.bf16.gmra.mrb[0].mxu0 %v5987
          %v6128 = vpop.f32.mrb[0].mxu0
          %v6129 = vadd.f32 %v6037, %v6128
          %v6130 = vpop.f32.mrb[0].mxu0
          %v6131 = vpop.f32.mrb[0].mxu0
          %v6132 = vadd.f32 %v6037, %v6131
          %v6133 = vpop.f32.mrb[0].mxu0
          %6134 = vmatprep.mubr.bf16.mxu0 0
          %6135 = vmatmul.mubr.bf16.gmra.mrb[0].mxu0 %v5988
          %v6136 = vpop.f32.mrb[0].mxu0
          %v6137 = vadd.f32 %v6037, %v6136
          %v6138 = vpop.f32.mrb[0].mxu0
          %v6139 = vpop.f32.mrb[0].mxu0
          %v6140 = vadd.f32 %v6037, %v6139
          %v6141 = vpop.f32.mrb[0].mxu0
          %6142 = vmatprep.mubr.bf16.mxu0 0
          %6143 = vmatmul.mubr.bf16.gmra.mrb[0].mxu0 %v5989
          %v6144 = vpop.f32.mrb[0].mxu0
          %v6145 = vadd.f32 %v6037, %v6144
          %v6146 = vpop.f32.mrb[0].mxu0
          %v6147 = vpop.f32.mrb[0].mxu0
          %v6148 = vadd.f32 %v6037, %v6147
          %v6149 = vpop.f32.mrb[0].mxu0
          %6150 = vmatprep.mubr.bf16.mxu0 0
          %6151 = vmatmul.mubr.bf16.gmra.mrb[0].mxu0 %v5990
          %v6152 = vpop.f32.mrb[0].mxu0
          %v6153 = vadd.f32 %v6037, %v6152
          %v6154 = vpop.f32.mrb[0].mxu0
          %v6155 = vpop.f32.mrb[0].mxu0
          %v6156 = vadd.f32 %v6037, %v6155
          %v6157 = vpop.f32.mrb[0].mxu0
          %6158 = vmatprep.mubr.bf16.mxu0 0
          %6159 = vmatmul.mubr.bf16.gmra.mrb[0].mxu0 %v5991
          %v6160 = vpop.f32.mrb[0].mxu0
          %v6161 = vadd.f32 %v6037, %v6160
          %v6162 = vpop.f32.mrb[0].mxu0
          %v6163 = vpop.f32.mrb[0].mxu0
          %v6164 = vadd.f32 %v6037, %v6163
          %v6165 = vpop.f32.mrb[0].mxu0
          %6166 = vmatprep.mubr.bf16.mxu0 0
          %6167 = vmatmul.mubr.bf16.gmra.mrb[0].mxu0 %v5992
          %v6168 = vpop.f32.mrb[0].mxu0
          %v6169 = vadd.f32 %v6037, %v6168
          %v6170 = vpop.f32.mrb[0].mxu0
          %v6171 = vpop.f32.mrb[0].mxu0
          %v6172 = vadd.f32 %v6037, %v6171
          %v6173 = vpop.f32.mrb[0].mxu0
          %6174 = vmatprep.mubr.bf16.mxu0 0
          %6175 = vmatmul.mubr.bf16.gmra.mrb[0].mxu0 %v5993
          %v6176 = vpop.f32.mrb[0].mxu0
          %v6177 = vadd.f32 %v6037, %v6176
          %v6178 = vpop.f32.mrb[0].mxu0
          %v6179 = vpop.f32.mrb[0].mxu0
          %v6180 = vadd.f32 %v6037, %v6179
          %v6181 = vpop.f32.mrb[0].mxu0
          %6182 = vmatprep.mubr.bf16.mxu0 0
          %6183 = vmatmul.mubr.bf16.gmra.mrb[0].mxu0 %v5994
          %v6184 = vpop.f32.mrb[0].mxu0
          %v6185 = vadd.f32 %v6037, %v6184
          %v6186 = vpop.f32.mrb[0].mxu0
          %v6187 = vpop.f32.mrb[0].mxu0
          %v6188 = vadd.f32 %v6037, %v6187
          %v6189 = vpop.f32.mrb[0].mxu0
          %6190 = vmatprep.mubr.bf16.mxu0 0
          %6191 = vmatmul.mubr.bf16.gmra.mrb[0].mxu0 %v5995
          %v6192 = vpop.f32.mrb[0].mxu0
          %v6193 = vadd.f32 %v6037, %v6192
          %v6194 = vpop.f32.mrb[0].mxu0
          %v6195 = vpop.f32.mrb[0].mxu0
          %v6196 = vadd.f32 %v6037, %v6195
          %v6197 = vpop.f32.mrb[0].mxu0
          %6198 = vmatprep.mubr.bf16.mxu0 0
          %6199 = vmatmul.mubr.bf16.gmra.mrb[0].mxu0 %v5996
          %v6200 = vpop.f32.mrb[0].mxu0
          %v6201 = vadd.f32 %v6037, %v6200
          %v6202 = vpop.f32.mrb[0].mxu0
          %v6203 = vpop.f32.mrb[0].mxu0
          %v6204 = vadd.f32 %v6037, %v6203
          %v6205 = vpop.f32.mrb[0].mxu0
          %6206 = vmatprep.mubr.bf16.mxu0 0
          %6207 = vmatmul.mubr.bf16.gmra.mrb[0].mxu0 %v5997
          %v6208 = vpop.f32.mrb[0].mxu0
          %v6209 = vadd.f32 %v6037, %v6208
          %v6210 = vpop.f32.mrb[0].mxu0
          %v6211 = vpop.f32.mrb[0].mxu0
          %v6212 = vadd.f32 %v6037, %v6211
          %v6213 = vpop.f32.mrb[0].mxu0
          %6214 = vmatprep.mubr.bf16.mxu0 0
          %6215 = vmatmul.mubr.bf16.gmra.mrb[0].mxu0 %v5998
          %v6216 = vpop.f32.mrb[0].mxu0
          %v6217 = vadd.f32 %v6037, %v6216
          %v6218 = vpop.f32.mrb[0].mxu0
          %v6219 = vpop.f32.mrb[0].mxu0
          %v6220 = vadd.f32 %v6037, %v6219
          %v6221 = vpop.f32.mrb[0].mxu0
          %6222 = vmatprep.mubr.bf16.mxu0 0
          %6223 = vmatmul.mubr.bf16.gmra.mrb[0].mxu0 %v5999
          %v6224 = vpop.f32.mrb[0].mxu0
          %v6225 = vadd.f32 %v6037, %v6224
          %v6226 = vpop.f32.mrb[0].mxu0
          %v6227 = vpop.f32.mrb[0].mxu0
          %v6228 = vadd.f32 %v6037, %v6227
          %v6229 = vpop.f32.mrb[0].mxu0
          %6230 = vmatprep.mubr.bf16.mxu0 0
          %6231 = vmatmul.mubr.bf16.gmra.mrb[0].mxu0 %v6000
          %v6232 = vpop.f32.mrb[0].mxu0
          %v6233 = vadd.f32 %v6037, %v6232
          %v6234 = vpop.f32.mrb[0].mxu0
          %v6235 = vpop.f32.mrb[0].mxu0
          %v6236 = vadd.f32 %v6037, %v6235
          %v6237 = vpop.f32.mrb[0].mxu0
          %6238 = vmatprep.mubr.bf16.mxu0 0
          %6239 = vmatmul.mubr.bf16.gmra.mrb[0].mxu0 %v6001
          %v6240 = vpop.f32.mrb[0].mxu0
          %v6241 = vadd.f32 %v6037, %v6240
          %v6242 = vpop.f32.mrb[0].mxu0
          %v6243 = vpop.f32.mrb[0].mxu0
          %v6244 = vadd.f32 %v6037, %v6243
          %v6245 = vpop.f32.mrb[0].mxu0
          %6246 = vmatprep.mubr.bf16.mxu0 0
          %6247 = vmatmul.mubr.bf16.gmra.mrb[0].mxu0 %v6002
          %v6248 = vpop.f32.mrb[0].mxu0
          %v6249 = vadd.f32 %v6037, %v6248
          %v6250 = vpop.f32.mrb[0].mxu0
          %v6251 = vpop.f32.mrb[0].mxu0
          %v6252 = vadd.f32 %v6037, %v6251
          %v6253 = vpop.f32.mrb[0].mxu0
          %6254 = vmatprep.mubr.bf16.mxu0 0
          %6255 = vmatmul.mubr.bf16.gmra.mrb[0].mxu0 %v6003
          %v6256 = vpop.f32.mrb[0].mxu0
          %v6257 = vadd.f32 %v6037, %v6256
          %v6258 = vpop.f32.mrb[0].mxu0
          %v6259 = vpop.f32.mrb[0].mxu0
          %v6260 = vadd.f32 %v6037, %v6259
          %v6261 = vpop.f32.mrb[0].mxu0
          %6262 = vmatprep.mubr.bf16.mxu0 0
          %6263 = vmatmul.mubr.bf16.gmra.mrb[0].mxu0 %v6004
          %v6264 = vpop.f32.mrb[0].mxu0
          %v6265 = vadd.f32 %v6037, %v6264
          %v6266 = vpop.f32.mrb[0].mxu0
          %v6267 = vpop.f32.mrb[0].mxu0
          %v6268 = vadd.f32 %v6037, %v6267
          %v6269 = vpop.f32.mrb[0].mxu0
          %6270 = vmatprep.mubr.bf16.mxu0 0
          %6271 = vmatmul.mubr.bf16.gmra.mrb[0].mxu0 %v6005
          %v6272 = vpop.f32.mrb[0].mxu0
          %v6273 = vadd.f32 %v6037, %v6272
          %v6274 = vpop.f32.mrb[0].mxu0
          %v6275 = vpop.f32.mrb[0].mxu0
          %v6276 = vadd.f32 %v6037, %v6275
          %v6277 = vpop.f32.mrb[0].mxu0
          %6278 = vmatprep.mubr.bf16.mxu0 0
          %6279 = vmatmul.mubr.bf16.gmra.mrb[0].mxu0 %v6006
          %v6280 = vpop.f32.mrb[0].mxu0
          %v6281 = vadd.f32 %v6037, %v6280
          %v6282 = vpop.f32.mrb[0].mxu0
          %v6283 = vpop.f32.mrb[0].mxu0
          %v6284 = vadd.f32 %v6037, %v6283
          %v6285 = vpop.f32.mrb[0].mxu0
          %6286 = vmatprep.mubr.bf16.mxu0 0
          %6287 = vmatmul.mubr.bf16.gmra.mrb[0].mxu0 %v6007
          %v6288 = vpop.f32.mrb[0].mxu0
          %v6289 = vadd.f32 %v6037, %v6288
          %v6290 = vpop.f32.mrb[0].mxu0
          %v6291 = vpop.f32.mrb[0].mxu0
          %v6292 = vadd.f32 %v6037, %v6291
          %v6293 = vpop.f32.mrb[0].mxu0
          %6294 = vmatprep.mubr.bf16.mxu0 0
          %6295 = vmatmul.mubr.bf16.gmra.mrb[0].mxu0 %v6008
          %v6296 = vpop.f32.mrb[0].mxu0
          %v6297 = vadd.f32 %v6037, %v6296
          %v6298 = vpop.f32.mrb[0].mxu0
          %v6299 = vpop.f32.mrb[0].mxu0
          %v6300 = vadd.f32 %v6037, %v6299
          %v6301 = vpop.f32.mrb[0].mxu0
          %6302 = vmatprep.mubr.bf16.mxu0 0
          %6303 = vmatmul.mubr.bf16.gmra.mrb[0].mxu0 %v6009
          %v6304 = vpop.f32.mrb[0].mxu0
          %v6305 = vadd.f32 %v6037, %v6304
          %v6306 = vpop.f32.mrb[0].mxu0
          %v6307 = vpop.f32.mrb[0].mxu0
          %v6308 = vadd.f32 %v6037, %v6307
          %v6309 = vpop.f32.mrb[0].mxu0
          %6310 = vmatprep.mubr.bf16.mxu0 0
          %6311 = vmatmul.mubr.bf16.gmra.mrb[0].mxu0 %v6010
          %v6312 = vpop.f32.mrb[0].mxu0
          %v6313 = vadd.f32 %v6037, %v6312
          %v6314 = vpop.f32.mrb[0].mxu0
          %v6315 = vpop.f32.mrb[0].mxu0
          %v6316 = vadd.f32 %v6037, %v6315
          %v6317 = vpop.f32.mrb[0].mxu0
          %6318 = vmatprep.mubr.bf16.mxu0 0
          %6319 = vmatmul.mubr.bf16.gmra.mrb[0].mxu0 %v6011
          %v6320 = vpop.f32.mrb[0].mxu0
          %v6321 = vadd.f32 %v6037, %v6320
          %v6322 = vpop.f32.mrb[0].mxu0
          %v6323 = vpop.f32.mrb[0].mxu0
          %v6324 = vadd.f32 %v6037, %v6323
          %v6325 = vpop.f32.mrb[0].mxu0
          %6326 = vmatprep.mubr.bf16.mxu0 0
          %6327 = vmatmul.mubr.bf16.gmra.mrb[0].mxu0 %v6012
          %v6328 = vpop.f32.mrb[0].mxu0
          %v6329 = vadd.f32 %v6037, %v6328
          %v6330 = vpop.f32.mrb[0].mxu0
          %v6331 = vpop.f32.mrb[0].mxu0
          %v6332 = vadd.f32 %v6037, %v6331
          %v6333 = vpop.f32.mrb[0].mxu0
          %6334 = vmatprep.mubr.bf16.mxu0 0
          %6335 = vmatmul.mubr.bf16.gmra.mrb[0].mxu0 %v6013
          %v6336 = vpop.f32.mrb[0].mxu0
          %v6337 = vadd.f32 %v6037, %v6336
          %v6338 = vpop.f32.mrb[0].mxu0
          %v6339 = vpop.f32.mrb[0].mxu0
          %v6340 = vadd.f32 %v6037, %v6339
          %v6341 = vpop.f32.mrb[0].mxu0
          %6342 = vmatprep.mubr.bf16.mxu0 0
          %6343 = vmatmul.mubr.bf16.gmra.mrb[0].mxu0 %v6014
          %v6344 = vpop.f32.mrb[0].mxu0
          %v6345 = vadd.f32 %v6037, %v6344
          %v6346 = vpop.f32.mrb[0].mxu0
          %v6347 = vpop.f32.mrb[0].mxu0
          %v6348 = vadd.f32 %v6037, %v6347
          %v6349 = vpop.f32.mrb[0].mxu0
          %6350 = vmatprep.mubr.bf16.mxu0 0
          %6351 = vmatmul.mubr.bf16.gmra.mrb[0].mxu0 %v6015
          %v6352 = vpop.f32.mrb[0].mxu0
          %v6353 = vadd.f32 %v6037, %v6352
          %v6354 = vpop.f32.mrb[0].mxu0
          %v6355 = vpop.f32.mrb[0].mxu0
          %v6356 = vadd.f32 %v6037, %v6355
          %v6357 = vpop.f32.mrb[0].mxu0
          %6358 = vmatprep.mubr.bf16.mxu0 0
          %6359 = vmatmul.mubr.bf16.gmra.mrb[0].mxu0 %v6016
          %v6360 = vpop.f32.mrb[0].mxu0
          %v6361 = vadd.f32 %v6037, %v6360
          %v6362 = vpop.f32.mrb[0].mxu0
          %v6363 = vpop.f32.mrb[0].mxu0
          %v6364 = vadd.f32 %v6037, %v6363
          %v6365 = vpop.f32.mrb[0].mxu0
          %6366 = vmatprep.mubr.bf16.mxu0 0
          %6367 = vmatmul.mubr.bf16.gmra.mrb[0].mxu0 %v6017
          %v6368 = vpop.f32.mrb[0].mxu0
          %v6369 = vadd.f32 %v6037, %v6368
          %v6370 = vpop.f32.mrb[0].mxu0
          %v6371 = vpop.f32.mrb[0].mxu0
          %v6372 = vadd.f32 %v6037, %v6371
          %v6373 = vpop.f32.mrb[0].mxu0
          %6374 = vdwg.mxu0
          %vm6375 = vcmp.ge.f32.partialorder %v6121, 0.0
          %vm6376 = vcmp.ge.f32.partialorder %v6124, 0.0
          %vm6377 = vcmp.ge.f32.partialorder %v6129, 0.0
          %vm6378 = vcmp.ge.f32.partialorder %v6132, 0.0
          %vm6379 = vcmp.ge.f32.partialorder %v6137, 0.0
          %vm6380 = vcmp.ge.f32.partialorder %v6140, 0.0
          %vm6381 = vcmp.ge.f32.partialorder %v6145, 0.0
          %vm6382 = vcmp.ge.f32.partialorder %v6148, 0.0
          %vm6383 = vcmp.ge.f32.partialorder %v6153, 0.0
          %vm6384 = vcmp.ge.f32.partialorder %v6156, 0.0
          %vm6385 = vcmp.ge.f32.partialorder %v6161, 0.0
          %vm6386 = vcmp.ge.f32.partialorder %v6164, 0.0
          %vm6387 = vcmp.ge.f32.partialorder %v6169, 0.0
          %vm6388 = vcmp.ge.f32.partialorder %v6172, 0.0
          %vm6389 = vcmp.ge.f32.partialorder %v6177, 0.0
          %vm6390 = vcmp.ge.f32.partialorder %v6180, 0.0
          %vm6391 = vcmp.ge.f32.partialorder %v6185, 0.0
          %vm6392 = vcmp.ge.f32.partialorder %v6188, 0.0
          %vm6393 = vcmp.ge.f32.partialorder %v6193, 0.0
          %vm6394 = vcmp.ge.f32.partialorder %v6196, 0.0
          %vm6395 = vcmp.ge.f32.partialorder %v6201, 0.0
          %vm6396 = vcmp.ge.f32.partialorder %v6204, 0.0
          %vm6397 = vcmp.ge.f32.partialorder %v6209, 0.0
          %vm6398 = vcmp.ge.f32.partialorder %v6212, 0.0
          %vm6399 = vcmp.ge.f32.partialorder %v6217, 0.0
          %vm6400 = vcmp.ge.f32.partialorder %v6220, 0.0
          %vm6401 = vcmp.ge.f32.partialorder %v6225, 0.0
          %vm6402 = vcmp.ge.f32.partialorder %v6228, 0.0
          %vm6403 = vcmp.ge.f32.partialorder %v6233, 0.0
          %vm6404 = vcmp.ge.f32.partialorder %v6236, 0.0
          %vm6405 = vcmp.ge.f32.partialorder %v6241, 0.0
          %vm6406 = vcmp.ge.f32.partialorder %v6244, 0.0
          %vm6407 = vcmp.ge.f32.partialorder %v6249, 0.0
          %vm6408 = vcmp.ge.f32.partialorder %v6252, 0.0
          %vm6409 = vcmp.ge.f32.partialorder %v6257, 0.0
          %vm6410 = vcmp.ge.f32.partialorder %v6260, 0.0
          %vm6411 = vcmp.ge.f32.partialorder %v6265, 0.0
          %vm6412 = vcmp.ge.f32.partialorder %v6268, 0.0
          %vm6413 = vcmp.ge.f32.partialorder %v6273, 0.0
          %vm6414 = vcmp.ge.f32.partialorder %v6276, 0.0
          %vm6415 = vcmp.ge.f32.partialorder %v6281, 0.0
          %vm6416 = vcmp.ge.f32.partialorder %v6284, 0.0
          %vm6417 = vcmp.ge.f32.partialorder %v6289, 0.0
          %vm6418 = vcmp.ge.f32.partialorder %v6292, 0.0
          %vm6419 = vcmp.ge.f32.partialorder %v6297, 0.0
          %vm6420 = vcmp.ge.f32.partialorder %v6300, 0.0
          %vm6421 = vcmp.ge.f32.partialorder %v6305, 0.0
          %vm6422 = vcmp.ge.f32.partialorder %v6308, 0.0
          %vm6423 = vcmp.ge.f32.partialorder %v6313, 0.0
          %vm6424 = vcmp.ge.f32.partialorder %v6316, 0.0
          %vm6425 = vcmp.ge.f32.partialorder %v6321, 0.0
          %vm6426 = vcmp.ge.f32.partialorder %v6324, 0.0
          %vm6427 = vcmp.ge.f32.partialorder %v6329, 0.0
          %vm6428 = vcmp.ge.f32.partialorder %v6332, 0.0
          %vm6429 = vcmp.ge.f32.partialorder %v6337, 0.0
          %vm6430 = vcmp.ge.f32.partialorder %v6340, 0.0
          %vm6431 = vcmp.ge.f32.partialorder %v6345, 0.0
          %vm6432 = vcmp.ge.f32.partialorder %v6348, 0.0
          %vm6433 = vcmp.ge.f32.partialorder %v6353, 0.0
          %vm6434 = vcmp.ge.f32.partialorder %v6356, 0.0
          %vm6435 = vcmp.ge.f32.partialorder %v6361, 0.0
          %vm6436 = vcmp.ge.f32.partialorder %v6364, 0.0
          %vm6437 = vcmp.ge.f32.partialorder %v6369, 0.0
          %vm6438 = vcmp.ge.f32.partialorder %v6372, 0.0
          %v6439 = vmul.f32 %v495, %v6121
          %v6440 = vmul.f32 %v495, %v6124
          %v6441 = vmul.f32 %v495, %v6129
          %v6442 = vmul.f32 %v495, %v6132
          %v6443 = vmul.f32 %v495, %v6137
          %v6444 = vmul.f32 %v495, %v6140
          %v6445 = vmul.f32 %v495, %v6145
          %v6446 = vmul.f32 %v495, %v6148
          %v6447 = vmul.f32 %v495, %v6153
          %v6448 = vmul.f32 %v495, %v6156
          %v6449 = vmul.f32 %v495, %v6161
          %v6450 = vmul.f32 %v495, %v6164
          %v6451 = vmul.f32 %v495, %v6169
          %v6452 = vmul.f32 %v495, %v6172
          %v6453 = vmul.f32 %v495, %v6177
          %v6454 = vmul.f32 %v495, %v6180
          %v6455 = vmul.f32 %v495, %v6185
          %v6456 = vmul.f32 %v495, %v6188
          %v6457 = vmul.f32 %v495, %v6193
          %v6458 = vmul.f32 %v495, %v6196
          %v6459 = vmul.f32 %v495, %v6201
          %v6460 = vmul.f32 %v495, %v6204
          %v6461 = vmul.f32 %v495, %v6209
          %v6462 = vmul.f32 %v495, %v6212
          %v6463 = vmul.f32 %v495, %v6217
          %v6464 = vmul.f32 %v495, %v6220
          %v6465 = vmul.f32 %v495, %v6225
          %v6466 = vmul.f32 %v495, %v6228
          %v6467 = vmul.f32 %v495, %v6233
          %v6468 = vmul.f32 %v495, %v6236
          %v6469 = vmul.f32 %v495, %v6241
          %v6470 = vmul.f32 %v495, %v6244
          %v6471 = vmul.f32 %v495, %v6249
          %v6472 = vmul.f32 %v495, %v6252
          %v6473 = vmul.f32 %v495, %v6257
          %v6474 = vmul.f32 %v495, %v6260
          %v6475 = vmul.f32 %v495, %v6265
          %v6476 = vmul.f32 %v495, %v6268
          %v6477 = vmul.f32 %v495, %v6273
          %v6478 = vmul.f32 %v495, %v6276
          %v6479 = vmul.f32 %v495, %v6281
          %v6480 = vmul.f32 %v495, %v6284
          %v6481 = vmul.f32 %v495, %v6289
          %v6482 = vmul.f32 %v495, %v6292
          %v6483 = vmul.f32 %v495, %v6297
          %v6484 = vmul.f32 %v495, %v6300
          %v6485 = vmul.f32 %v495, %v6305
          %v6486 = vmul.f32 %v495, %v6308
          %v6487 = vmul.f32 %v495, %v6313
          %v6488 = vmul.f32 %v495, %v6316
          %v6489 = vmul.f32 %v495, %v6321
          %v6490 = vmul.f32 %v495, %v6324
          %v6491 = vmul.f32 %v495, %v6329
          %v6492 = vmul.f32 %v495, %v6332
          %v6493 = vmul.f32 %v495, %v6337
          %v6494 = vmul.f32 %v495, %v6340
          %v6495 = vmul.f32 %v495, %v6345
          %v6496 = vmul.f32 %v495, %v6348
          %v6497 = vmul.f32 %v495, %v6353
          %v6498 = vmul.f32 %v495, %v6356
          %v6499 = vmul.f32 %v495, %v6361
          %v6500 = vmul.f32 %v495, %v6364
          %v6501 = vmul.f32 %v495, %v6369
          %v6502 = vmul.f32 %v495, %v6372
          %v6503 = vsel %vm6375, %v6121, %v6439
          %v6504 = vsel %vm6376, %v6124, %v6440
          %v6505 = vsel %vm6377, %v6129, %v6441
          %v6506 = vsel %vm6378, %v6132, %v6442
          %v6507 = vsel %vm6379, %v6137, %v6443
          %v6508 = vsel %vm6380, %v6140, %v6444
          %v6509 = vsel %vm6381, %v6145, %v6445
          %v6510 = vsel %vm6382, %v6148, %v6446
          %v6511 = vsel %vm6383, %v6153, %v6447
          %v6512 = vsel %vm6384, %v6156, %v6448
          %v6513 = vsel %vm6385, %v6161, %v6449
          %v6514 = vsel %vm6386, %v6164, %v6450
          %v6515 = vsel %vm6387, %v6169, %v6451
          %v6516 = vsel %vm6388, %v6172, %v6452
          %v6517 = vsel %vm6389, %v6177, %v6453
          %v6518 = vsel %vm6390, %v6180, %v6454
          %v6519 = vsel %vm6391, %v6185, %v6455
          %v6520 = vsel %vm6392, %v6188, %v6456
          %v6521 = vsel %vm6393, %v6193, %v6457
          %v6522 = vsel %vm6394, %v6196, %v6458
          %v6523 = vsel %vm6395, %v6201, %v6459
          %v6524 = vsel %vm6396, %v6204, %v6460
          %v6525 = vsel %vm6397, %v6209, %v6461
          %v6526 = vsel %vm6398, %v6212, %v6462
          %v6527 = vsel %vm6399, %v6217, %v6463
          %v6528 = vsel %vm6400, %v6220, %v6464
          %v6529 = vsel %vm6401, %v6225, %v6465
          %v6530 = vsel %vm6402, %v6228, %v6466
          %v6531 = vsel %vm6403, %v6233, %v6467
          %v6532 = vsel %vm6404, %v6236, %v6468
          %v6533 = vsel %vm6405, %v6241, %v6469
          %v6534 = vsel %vm6406, %v6244, %v6470
          %v6535 = vsel %vm6407, %v6249, %v6471
          %v6536 = vsel %vm6408, %v6252, %v6472
          %v6537 = vsel %vm6409, %v6257, %v6473
          %v6538 = vsel %vm6410, %v6260, %v6474
          %v6539 = vsel %vm6411, %v6265, %v6475
          %v6540 = vsel %vm6412, %v6268, %v6476
          %v6541 = vsel %vm6413, %v6273, %v6477
          %v6542 = vsel %vm6414, %v6276, %v6478
          %v6543 = vsel %vm6415, %v6281, %v6479
          %v6544 = vsel %vm6416, %v6284, %v6480
          %v6545 = vsel %vm6417, %v6289, %v6481
          %v6546 = vsel %vm6418, %v6292, %v6482
          %v6547 = vsel %vm6419, %v6297, %v6483
          %v6548 = vsel %vm6420, %v6300, %v6484
          %v6549 = vsel %vm6421, %v6305, %v6485
          %v6550 = vsel %vm6422, %v6308, %v6486
          %v6551 = vsel %vm6423, %v6313, %v6487
          %v6552 = vsel %vm6424, %v6316, %v6488
          %v6553 = vsel %vm6425, %v6321, %v6489
          %v6554 = vsel %vm6426, %v6324, %v6490
          %v6555 = vsel %vm6427, %v6329, %v6491
          %v6556 = vsel %vm6428, %v6332, %v6492
          %v6557 = vsel %vm6429, %v6337, %v6493
          %v6558 = vsel %vm6430, %v6340, %v6494
          %v6559 = vsel %vm6431, %v6345, %v6495
          %v6560 = vsel %vm6432, %v6348, %v6496
          %v6561 = vsel %vm6433, %v6353, %v6497
          %v6562 = vsel %vm6434, %v6356, %v6498
          %v6563 = vsel %vm6435, %v6361, %v6499
          %v6564 = vsel %vm6436, %v6364, %v6500
          %v6565 = vsel %vm6437, %v6369, %v6501
          %v6566 = vsel %vm6438, %v6372, %v6502
          %v6567 = vadd.f32 %v6503, %v6504
          %v6568 = vadd.f32 %v6567, %v6505
          %v6569 = vadd.f32 %v6568, %v6506
          %v6570 = vadd.f32 %v6569, %v6507
          %v6571 = vadd.f32 %v6570, %v6508
          %v6572 = vadd.f32 %v6571, %v6509
          %v6573 = vadd.f32 %v6572, %v6510
          %v6574 = vadd.f32 %v6573, %v6511
          %v6575 = vadd.f32 %v6574, %v6512
          %v6576 = vadd.f32 %v6575, %v6513
          %v6577 = vadd.f32 %v6576, %v6514
          %v6578 = vadd.f32 %v6577, %v6515
          %v6579 = vadd.f32 %v6578, %v6516
          %v6580 = vadd.f32 %v6579, %v6517
          %v6581 = vadd.f32 %v6580, %v6518
          %v6582 = vadd.f32 %v6581, %v6519
          %v6583 = vadd.f32 %v6582, %v6520
          %v6584 = vadd.f32 %v6583, %v6521
          %v6585 = vadd.f32 %v6584, %v6522
          %v6586 = vadd.f32 %v6585, %v6523
          %v6587 = vadd.f32 %v6586, %v6524
          %v6588 = vadd.f32 %v6587, %v6525
          %v6589 = vadd.f32 %v6588, %v6526
          %v6590 = vadd.f32 %v6589, %v6527
          %v6591 = vadd.f32 %v6590, %v6528
          %v6592 = vadd.f32 %v6591, %v6529
          %v6593 = vadd.f32 %v6592, %v6530
          %v6594 = vadd.f32 %v6593, %v6531
          %v6595 = vadd.f32 %v6594, %v6532
          %v6596 = vadd.f32 %v6595, %v6533
          %v6597 = vadd.f32 %v6596, %v6534
          %v6598 = vadd.f32 %v6597, %v6535
          %v6599 = vadd.f32 %v6598, %v6536
          %v6600 = vadd.f32 %v6599, %v6537
          %v6601 = vadd.f32 %v6600, %v6538
          %v6602 = vadd.f32 %v6601, %v6539
          %v6603 = vadd.f32 %v6602, %v6540
          %v6604 = vadd.f32 %v6603, %v6541
          %v6605 = vadd.f32 %v6604, %v6542
          %v6606 = vadd.f32 %v6605, %v6543
          %v6607 = vadd.f32 %v6606, %v6544
          %v6608 = vadd.f32 %v6607, %v6545
          %v6609 = vadd.f32 %v6608, %v6546
          %v6610 = vadd.f32 %v6609, %v6547
          %v6611 = vadd.f32 %v6610, %v6548
          %v6612 = vadd.f32 %v6611, %v6549
          %v6613 = vadd.f32 %v6612, %v6550
          %v6614 = vadd.f32 %v6613, %v6551
          %v6615 = vadd.f32 %v6614, %v6552
          %v6616 = vadd.f32 %v6615, %v6553
          %v6617 = vadd.f32 %v6616, %v6554
          %v6618 = vadd.f32 %v6617, %v6555
          %v6619 = vadd.f32 %v6618, %v6556
          %v6620 = vadd.f32 %v6619, %v6557
          %v6621 = vadd.f32 %v6620, %v6558
          %v6622 = vadd.f32 %v6621, %v6559
          %v6623 = vadd.f32 %v6622, %v6560
          %v6624 = vadd.f32 %v6623, %v6561
          %v6625 = vadd.f32 %v6624, %v6562
          %v6626 = vadd.f32 %v6625, %v6563
          %v6627 = vadd.f32 %v6626, %v6564
          %v6628 = vadd.f32 %v6627, %v6565
          %v6629 = vadd.f32 %v6628, %v6566
          %v6630 = vrot.slane %v6629, 4
          %v6631 = vadd.f32 %v6629, %v6630
          %v6632 = vrot.slane %v6631, 2
          %v6633 = vadd.f32 %v6631, %v6632
          %v6634 = vrot.slane %v6633, 1
          %v6635 = vadd.f32 %v6633, %v6634
          %v6636 = vmul.f32 %v6635, %v5640
          %v6637 = vsub.f32 %v6503, %v6636
          %v6638 = vsub.f32 %v6504, %v6636
          %v6639 = vsub.f32 %v6505, %v6636
          %v6640 = vsub.f32 %v6506, %v6636
          %v6641 = vsub.f32 %v6507, %v6636
          %v6642 = vsub.f32 %v6508, %v6636
          %v6643 = vsub.f32 %v6509, %v6636
          %v6644 = vsub.f32 %v6510, %v6636
          %v6645 = vsub.f32 %v6511, %v6636
          %v6646 = vsub.f32 %v6512, %v6636
          %v6647 = vsub.f32 %v6513, %v6636
          %v6648 = vsub.f32 %v6514, %v6636
          %v6649 = vsub.f32 %v6515, %v6636
          %v6650 = vsub.f32 %v6516, %v6636
          %v6651 = vsub.f32 %v6517, %v6636
          %v6652 = vsub.f32 %v6518, %v6636
          %v6653 = vsub.f32 %v6519, %v6636
          %v6654 = vsub.f32 %v6520, %v6636
          %v6655 = vsub.f32 %v6521, %v6636
          %v6656 = vsub.f32 %v6522, %v6636
          %v6657 = vsub.f32 %v6523, %v6636
          %v6658 = vsub.f32 %v6524, %v6636
          %v6659 = vsub.f32 %v6525, %v6636
          %v6660 = vsub.f32 %v6526, %v6636
          %v6661 = vsub.f32 %v6527, %v6636
          %v6662 = vsub.f32 %v6528, %v6636
          %v6663 = vsub.f32 %v6529, %v6636
          %v6664 = vsub.f32 %v6530, %v6636
          %v6665 = vsub.f32 %v6531, %v6636
          %v6666 = vsub.f32 %v6532, %v6636
          %v6667 = vsub.f32 %v6533, %v6636
          %v6668 = vsub.f32 %v6534, %v6636
          %v6669 = vsub.f32 %v6535, %v6636
          %v6670 = vsub.f32 %v6536, %v6636
          %v6671 = vsub.f32 %v6537, %v6636
          %v6672 = vsub.f32 %v6538, %v6636
          %v6673 = vsub.f32 %v6539, %v6636
          %v6674 = vsub.f32 %v6540, %v6636
          %v6675 = vsub.f32 %v6541, %v6636
          %v6676 = vsub.f32 %v6542, %v6636
          %v6677 = vsub.f32 %v6543, %v6636
          %v6678 = vsub.f32 %v6544, %v6636
          %v6679 = vsub.f32 %v6545, %v6636
          %v6680 = vsub.f32 %v6546, %v6636
          %v6681 = vsub.f32 %v6547, %v6636
          %v6682 = vsub.f32 %v6548, %v6636
          %v6683 = vsub.f32 %v6549, %v6636
          %v6684 = vsub.f32 %v6550, %v6636
          %v6685 = vsub.f32 %v6551, %v6636
          %v6686 = vsub.f32 %v6552, %v6636
          %v6687 = vsub.f32 %v6553, %v6636
          %v6688 = vsub.f32 %v6554, %v6636
          %v6689 = vsub.f32 %v6555, %v6636
          %v6690 = vsub.f32 %v6556, %v6636
          %v6691 = vsub.f32 %v6557, %v6636
          %v6692 = vsub.f32 %v6558, %v6636
          %v6693 = vsub.f32 %v6559, %v6636
          %v6694 = vsub.f32 %v6560, %v6636
          %v6695 = vsub.f32 %v6561, %v6636
          %v6696 = vsub.f32 %v6562, %v6636
          %v6697 = vsub.f32 %v6563, %v6636
          %v6698 = vsub.f32 %v6564, %v6636
          %v6699 = vsub.f32 %v6565, %v6636
          %v6700 = vsub.f32 %v6566, %v6636
          %v6701 = vmul.f32 %v6637, %v6637
          %v6702 = vmul.f32 %v6638, %v6638
          %v6703 = vmul.f32 %v6639, %v6639
          %v6704 = vmul.f32 %v6640, %v6640
          %v6705 = vmul.f32 %v6641, %v6641
          %v6706 = vmul.f32 %v6642, %v6642
          %v6707 = vmul.f32 %v6643, %v6643
          %v6708 = vmul.f32 %v6644, %v6644
          %v6709 = vmul.f32 %v6645, %v6645
          %v6710 = vmul.f32 %v6646, %v6646
          %v6711 = vmul.f32 %v6647, %v6647
          %v6712 = vmul.f32 %v6648, %v6648
          %v6713 = vmul.f32 %v6649, %v6649
          %v6714 = vmul.f32 %v6650, %v6650
          %v6715 = vmul.f32 %v6651, %v6651
          %v6716 = vmul.f32 %v6652, %v6652
          %v6717 = vmul.f32 %v6653, %v6653
          %v6718 = vmul.f32 %v6654, %v6654
          %v6719 = vmul.f32 %v6655, %v6655
          %v6720 = vmul.f32 %v6656, %v6656
          %v6721 = vmul.f32 %v6657, %v6657
          %v6722 = vmul.f32 %v6658, %v6658
          %v6723 = vmul.f32 %v6659, %v6659
          %v6724 = vmul.f32 %v6660, %v6660
          %v6725 = vmul.f32 %v6661, %v6661
          %v6726 = vmul.f32 %v6662, %v6662
          %v6727 = vmul.f32 %v6663, %v6663
          %v6728 = vmul.f32 %v6664, %v6664
          %v6729 = vmul.f32 %v6665, %v6665
          %v6730 = vmul.f32 %v6666, %v6666
          %v6731 = vmul.f32 %v6667, %v6667
          %v6732 = vmul.f32 %v6668, %v6668
          %v6733 = vmul.f32 %v6669, %v6669
          %v6734 = vmul.f32 %v6670, %v6670
          %v6735 = vmul.f32 %v6671, %v6671
          %v6736 = vmul.f32 %v6672, %v6672
          %v6737 = vmul.f32 %v6673, %v6673
          %v6738 = vmul.f32 %v6674, %v6674
          %v6739 = vmul.f32 %v6675, %v6675
          %v6740 = vmul.f32 %v6676, %v6676
          %v6741 = vmul.f32 %v6677, %v6677
          %v6742 = vmul.f32 %v6678, %v6678
          %v6743 = vmul.f32 %v6679, %v6679
          %v6744 = vmul.f32 %v6680, %v6680
          %v6745 = vmul.f32 %v6681, %v6681
          %v6746 = vmul.f32 %v6682, %v6682
          %v6747 = vmul.f32 %v6683, %v6683
          %v6748 = vmul.f32 %v6684, %v6684
          %v6749 = vmul.f32 %v6685, %v6685
          %v6750 = vmul.f32 %v6686, %v6686
          %v6751 = vmul.f32 %v6687, %v6687
          %v6752 = vmul.f32 %v6688, %v6688
          %v6753 = vmul.f32 %v6689, %v6689
          %v6754 = vmul.f32 %v6690, %v6690
          %v6755 = vmul.f32 %v6691, %v6691
          %v6756 = vmul.f32 %v6692, %v6692
          %v6757 = vmul.f32 %v6693, %v6693
          %v6758 = vmul.f32 %v6694, %v6694
          %v6759 = vmul.f32 %v6695, %v6695
          %v6760 = vmul.f32 %v6696, %v6696
          %v6761 = vmul.f32 %v6697, %v6697
          %v6762 = vmul.f32 %v6698, %v6698
          %v6763 = vmul.f32 %v6699, %v6699
          %v6764 = vmul.f32 %v6700, %v6700
          %v6765 = vadd.f32 %v6701, %v6702
          %v6766 = vadd.f32 %v6765, %v6703
          %v6767 = vadd.f32 %v6766, %v6704
          %v6768 = vadd.f32 %v6767, %v6705
          %v6769 = vadd.f32 %v6768, %v6706
          %v6770 = vadd.f32 %v6769, %v6707
          %v6771 = vadd.f32 %v6770, %v6708
          %v6772 = vadd.f32 %v6771, %v6709
          %v6773 = vadd.f32 %v6772, %v6710
          %v6774 = vadd.f32 %v6773, %v6711
          %v6775 = vadd.f32 %v6774, %v6712
          %v6776 = vadd.f32 %v6775, %v6713
          %v6777 = vadd.f32 %v6776, %v6714
          %v6778 = vadd.f32 %v6777, %v6715
          %v6779 = vadd.f32 %v6778, %v6716
          %v6780 = vadd.f32 %v6779, %v6717
          %v6781 = vadd.f32 %v6780, %v6718
          %v6782 = vadd.f32 %v6781, %v6719
          %v6783 = vadd.f32 %v6782, %v6720
          %v6784 = vadd.f32 %v6783, %v6721
          %v6785 = vadd.f32 %v6784, %v6722
          %v6786 = vadd.f32 %v6785, %v6723
          %v6787 = vadd.f32 %v6786, %v6724
          %v6788 = vadd.f32 %v6787, %v6725
          %v6789 = vadd.f32 %v6788, %v6726
          %v6790 = vadd.f32 %v6789, %v6727
          %v6791 = vadd.f32 %v6790, %v6728
          %v6792 = vadd.f32 %v6791, %v6729
          %v6793 = vadd.f32 %v6792, %v6730
          %v6794 = vadd.f32 %v6793, %v6731
          %v6795 = vadd.f32 %v6794, %v6732
          %v6796 = vadd.f32 %v6795, %v6733
          %v6797 = vadd.f32 %v6796, %v6734
          %v6798 = vadd.f32 %v6797, %v6735
          %v6799 = vadd.f32 %v6798, %v6736
          %v6800 = vadd.f32 %v6799, %v6737
          %v6801 = vadd.f32 %v6800, %v6738
          %v6802 = vadd.f32 %v6801, %v6739
          %v6803 = vadd.f32 %v6802, %v6740
          %v6804 = vadd.f32 %v6803, %v6741
          %v6805 = vadd.f32 %v6804, %v6742
          %v6806 = vadd.f32 %v6805, %v6743
          %v6807 = vadd.f32 %v6806, %v6744
          %v6808 = vadd.f32 %v6807, %v6745
          %v6809 = vadd.f32 %v6808, %v6746
          %v6810 = vadd.f32 %v6809, %v6747
          %v6811 = vadd.f32 %v6810, %v6748
          %v6812 = vadd.f32 %v6811, %v6749
          %v6813 = vadd.f32 %v6812, %v6750
          %v6814 = vadd.f32 %v6813, %v6751
          %v6815 = vadd.f32 %v6814, %v6752
          %v6816 = vadd.f32 %v6815, %v6753
          %v6817 = vadd.f32 %v6816, %v6754
          %v6818 = vadd.f32 %v6817, %v6755
          %v6819 = vadd.f32 %v6818, %v6756
          %v6820 = vadd.f32 %v6819, %v6757
          %v6821 = vadd.f32 %v6820, %v6758
          %v6822 = vadd.f32 %v6821, %v6759
          %v6823 = vadd.f32 %v6822, %v6760
          %v6824 = vadd.f32 %v6823, %v6761
          %v6825 = vadd.f32 %v6824, %v6762
          %v6826 = vadd.f32 %v6825, %v6763
          %v6827 = vadd.f32 %v6826, %v6764
          %v6828 = vrot.slane %v6827, 4
          %v6829 = vadd.f32 %v6827, %v6828
          %v6830 = vrot.slane %v6829, 2
          %v6831 = vadd.f32 %v6829, %v6830
          %v6832 = vrot.slane %v6831, 1
          %v6833 = vadd.f32 %v6831, %v6832
          %v6834 = vmul.f32 %v6833, %v5640
          %v6835 = vadd.f32 %v6834, 1e-05
          %v6836 = vrsqrt.pop %v6835
          %v6837 = vmul.f32 %v490, %v6836
          %v6838 = vsel %vm494, %v6837, 1.0
          %v6839 = vmul.f32 %v6636, %v6838
          %v6841 = vrot.slane %v6839, 7
          %v6843 = vsub.f32 %v490, %v6841
          %v6844 = vsel %vm494, %v6843, 0.0
          %v6845 = vlaneseq
          %v6846 = vshrl.u32 %v6845, 7
          %v6847 = vsub.s32 5, %v6846
          %v6848 = vrot.slane %v6838, %v6847
          %v6849 = vmul.f32 %v6503, %v6848
          %v6850 = vmul.f32 %v6504, %v6848
          %v6851 = vmul.f32 %v6505, %v6848
          %v6852 = vmul.f32 %v6506, %v6848
          %v6853 = vmul.f32 %v6507, %v6848
          %v6854 = vmul.f32 %v6508, %v6848
          %v6855 = vmul.f32 %v6509, %v6848
          %v6856 = vmul.f32 %v6510, %v6848
          %v6857 = vmul.f32 %v6511, %v6848
          %v6858 = vmul.f32 %v6512, %v6848
          %v6859 = vmul.f32 %v6513, %v6848
          %v6860 = vmul.f32 %v6514, %v6848
          %v6861 = vmul.f32 %v6515, %v6848
          %v6862 = vmul.f32 %v6516, %v6848
          %v6863 = vmul.f32 %v6517, %v6848
          %v6864 = vmul.f32 %v6518, %v6848
          %v6865 = vmul.f32 %v6519, %v6848
          %v6866 = vmul.f32 %v6520, %v6848
          %v6867 = vmul.f32 %v6521, %v6848
          %v6868 = vmul.f32 %v6522, %v6848
          %v6869 = vmul.f32 %v6523, %v6848
          %v6870 = vmul.f32 %v6524, %v6848
          %v6871 = vmul.f32 %v6525, %v6848
          %v6872 = vmul.f32 %v6526, %v6848
          %v6873 = vmul.f32 %v6527, %v6848
          %v6874 = vmul.f32 %v6528, %v6848
          %v6875 = vmul.f32 %v6529, %v6848
          %v6876 = vmul.f32 %v6530, %v6848
          %v6877 = vmul.f32 %v6531, %v6848
          %v6878 = vmul.f32 %v6532, %v6848
          %v6879 = vmul.f32 %v6533, %v6848
          %v6880 = vmul.f32 %v6534, %v6848
          %v6881 = vmul.f32 %v6535, %v6848
          %v6882 = vmul.f32 %v6536, %v6848
          %v6883 = vmul.f32 %v6537, %v6848
          %v6884 = vmul.f32 %v6538, %v6848
          %v6885 = vmul.f32 %v6539, %v6848
          %v6886 = vmul.f32 %v6540, %v6848
          %v6887 = vmul.f32 %v6541, %v6848
          %v6888 = vmul.f32 %v6542, %v6848
          %v6889 = vmul.f32 %v6543, %v6848
          %v6890 = vmul.f32 %v6544, %v6848
          %v6891 = vmul.f32 %v6545, %v6848
          %v6892 = vmul.f32 %v6546, %v6848
          %v6893 = vmul.f32 %v6547, %v6848
          %v6894 = vmul.f32 %v6548, %v6848
          %v6895 = vmul.f32 %v6549, %v6848
          %v6896 = vmul.f32 %v6550, %v6848
          %v6897 = vmul.f32 %v6551, %v6848
          %v6898 = vmul.f32 %v6552, %v6848
          %v6899 = vmul.f32 %v6553, %v6848
          %v6900 = vmul.f32 %v6554, %v6848
          %v6901 = vmul.f32 %v6555, %v6848
          %v6902 = vmul.f32 %v6556, %v6848
          %v6903 = vmul.f32 %v6557, %v6848
          %v6904 = vmul.f32 %v6558, %v6848
          %v6905 = vmul.f32 %v6559, %v6848
          %v6906 = vmul.f32 %v6560, %v6848
          %v6907 = vmul.f32 %v6561, %v6848
          %v6908 = vmul.f32 %v6562, %v6848
          %v6909 = vmul.f32 %v6563, %v6848
          %v6910 = vmul.f32 %v6564, %v6848
          %v6911 = vmul.f32 %v6565, %v6848
          %v6912 = vmul.f32 %v6566, %v6848
          %v6913 = vlaneseq
          %v6914 = vshrl.u32 %v6913, 7
          %v6915 = vsub.s32 6, %v6914
          %v6916 = vrot.slane %v6844, %v6915
          %v6917 = vadd.f32 %v6849, %v6916
          %v6918 = vadd.f32 %v6850, %v6916
          %v6919 = vadd.f32 %v6851, %v6916
          %v6920 = vadd.f32 %v6852, %v6916
          %v6921 = vadd.f32 %v6853, %v6916
          %v6922 = vadd.f32 %v6854, %v6916
          %v6923 = vadd.f32 %v6855, %v6916
          %v6924 = vadd.f32 %v6856, %v6916
          %v6925 = vadd.f32 %v6857, %v6916
          %v6926 = vadd.f32 %v6858, %v6916
          %v6927 = vadd.f32 %v6859, %v6916
          %v6928 = vadd.f32 %v6860, %v6916
          %v6929 = vadd.f32 %v6861, %v6916
          %v6930 = vadd.f32 %v6862, %v6916
          %v6931 = vadd.f32 %v6863, %v6916
          %v6932 = vadd.f32 %v6864, %v6916
          %v6933 = vadd.f32 %v6865, %v6916
          %v6934 = vadd.f32 %v6866, %v6916
          %v6935 = vadd.f32 %v6867, %v6916
          %v6936 = vadd.f32 %v6868, %v6916
          %v6937 = vadd.f32 %v6869, %v6916
          %v6938 = vadd.f32 %v6870, %v6916
          %v6939 = vadd.f32 %v6871, %v6916
          %v6940 = vadd.f32 %v6872, %v6916
          %v6941 = vadd.f32 %v6873, %v6916
          %v6942 = vadd.f32 %v6874, %v6916
          %v6943 = vadd.f32 %v6875, %v6916
          %v6944 = vadd.f32 %v6876, %v6916
          %v6945 = vadd.f32 %v6877, %v6916
          %v6946 = vadd.f32 %v6878, %v6916
          %v6947 = vadd.f32 %v6879, %v6916
          %v6948 = vadd.f32 %v6880, %v6916
          %v6949 = vadd.f32 %v6881, %v6916
          %v6950 = vadd.f32 %v6882, %v6916
          %v6951 = vadd.f32 %v6883, %v6916
          %v6952 = vadd.f32 %v6884, %v6916
          %v6953 = vadd.f32 %v6885, %v6916
          %v6954 = vadd.f32 %v6886, %v6916
          %v6955 = vadd.f32 %v6887, %v6916
          %v6956 = vadd.f32 %v6888, %v6916
          %v6957 = vadd.f32 %v6889, %v6916
          %v6958 = vadd.f32 %v6890, %v6916
          %v6959 = vadd.f32 %v6891, %v6916
          %v6960 = vadd.f32 %v6892, %v6916
          %v6961 = vadd.f32 %v6893, %v6916
          %v6962 = vadd.f32 %v6894, %v6916
          %v6963 = vadd.f32 %v6895, %v6916
          %v6964 = vadd.f32 %v6896, %v6916
          %v6965 = vadd.f32 %v6897, %v6916
          %v6966 = vadd.f32 %v6898, %v6916
          %v6967 = vadd.f32 %v6899, %v6916
          %v6968 = vadd.f32 %v6900, %v6916
          %v6969 = vadd.f32 %v6901, %v6916
          %v6970 = vadd.f32 %v6902, %v6916
          %v6971 = vadd.f32 %v6903, %v6916
          %v6972 = vadd.f32 %v6904, %v6916
          %v6973 = vadd.f32 %v6905, %v6916
          %v6974 = vadd.f32 %v6906, %v6916
          %v6975 = vadd.f32 %v6907, %v6916
          %v6976 = vadd.f32 %v6908, %v6916
          %v6977 = vadd.f32 %v6909, %v6916
          %v6978 = vadd.f32 %v6910, %v6916
          %v6979 = vadd.f32 %v6911, %v6916
          %v6980 = vadd.f32 %v6912, %v6916
          %v6981 = vpack.c.bf16 %v6918, %v6917
          %v6982 = vpack.c.bf16 %v6920, %v6919
          %v6983 = vpack.c.bf16 %v6922, %v6921
          %v6984 = vpack.c.bf16 %v6924, %v6923
          %v6985 = vpack.c.bf16 %v6926, %v6925
          %v6986 = vpack.c.bf16 %v6928, %v6927
          %v6987 = vpack.c.bf16 %v6930, %v6929
          %v6988 = vpack.c.bf16 %v6932, %v6931
          %v6989 = vpack.c.bf16 %v6934, %v6933
          %v6990 = vpack.c.bf16 %v6936, %v6935
          %v6991 = vpack.c.bf16 %v6938, %v6937
          %v6992 = vpack.c.bf16 %v6940, %v6939
          %v6993 = vpack.c.bf16 %v6942, %v6941
          %v6994 = vpack.c.bf16 %v6944, %v6943
          %v6995 = vpack.c.bf16 %v6946, %v6945
          %v6996 = vpack.c.bf16 %v6948, %v6947
          %v6997 = vpack.c.bf16 %v6950, %v6949
          %v6998 = vpack.c.bf16 %v6952, %v6951
          %v6999 = vpack.c.bf16 %v6954, %v6953
          %v7000 = vpack.c.bf16 %v6956, %v6955
          %v7001 = vpack.c.bf16 %v6958, %v6957
          %v7002 = vpack.c.bf16 %v6960, %v6959
          %v7003 = vpack.c.bf16 %v6962, %v6961
          %v7004 = vpack.c.bf16 %v6964, %v6963
          %v7005 = vpack.c.bf16 %v6966, %v6965
          %v7006 = vpack.c.bf16 %v6968, %v6967
          %v7007 = vpack.c.bf16 %v6970, %v6969
          %v7008 = vpack.c.bf16 %v6972, %v6971
          %v7009 = vpack.c.bf16 %v6974, %v6973
          %v7010 = vpack.c.bf16 %v6976, %v6975
          %v7011 = vpack.c.bf16 %v6978, %v6977
          %v7012 = vpack.c.bf16 %v6980, %v6979
          %v7013 = vld [vmem:[%s6 + $0x4] sm:$0xf]
          %v7014 = vld [vmem:[%s6 + $0x10] sm:$0xf]
          %v7015 = vld [vmem:[%s6 + $0x1c] sm:$0xf]
          %v7016 = vld [vmem:[%s6 + $0x28] sm:$0xf]
          %v7017 = vld [vmem:[%s6 + $0x34] sm:$0xf]
          %v7018 = vld [vmem:[%s6 + $0x40] sm:$0xf]
          %v7019 = vld [vmem:[%s6 + $0x4c] sm:$0xf]
          %v7020 = vld [vmem:[%s6 + $0x58] sm:$0xf]
          %v7021 = vld [vmem:[%s6 + $0x64] sm:$0xf]
          %v7022 = vld [vmem:[%s6 + $0x70] sm:$0xf]
          %v7023 = vld [vmem:[%s6 + $0x7c] sm:$0xf]
          %v7024 = vld [vmem:[%s6 + $0x88] sm:$0xf]
          %v7025 = vld [vmem:[%s6 + $0x94] sm:$0xf]
          %v7026 = vld [vmem:[%s6 + $0xa0] sm:$0xf]
          %v7027 = vld [vmem:[%s6 + $0xac] sm:$0xf]
          %v7028 = vld [vmem:[%s6 + $0xb8] sm:$0xf]
          %v7029 = vlaneseq
          %v7030 = vshrl.u32 %v7029, 7
          %v7031 = vsub.s32 1, %v7030
          %v7032 = vrot.slane %v490, %v7031
          %v7049 = vunpack.c.l.b16 %v7013
          %v7050 = vunpack.c.l.b16 %v7014
          %v7051 = vunpack.c.l.b16 %v7015
          %v7052 = vunpack.c.l.b16 %v7016
          %v7053 = vunpack.c.l.b16 %v7017
          %v7054 = vunpack.c.l.b16 %v7018
          %v7055 = vunpack.c.l.b16 %v7019
          %v7056 = vunpack.c.l.b16 %v7020
          %v7057 = vunpack.c.l.b16 %v7021
          %v7058 = vunpack.c.l.b16 %v7022
          %v7059 = vunpack.c.l.b16 %v7023
          %v7060 = vunpack.c.l.b16 %v7024
          %v7061 = vunpack.c.l.b16 %v7025
          %v7062 = vunpack.c.l.b16 %v7026
          %v7063 = vunpack.c.l.b16 %v7027
          %v7064 = vunpack.c.l.b16 %v7028
          %v7065 = vpack.c.b16 %v7050, %v7049
          %v7066 = vpack.c.b16 %v7052, %v7051
          %v7067 = vpack.c.b16 %v7054, %v7053
          %v7068 = vpack.c.b16 %v7056, %v7055
          %v7069 = vpack.c.b16 %v7058, %v7057
          %v7070 = vpack.c.b16 %v7060, %v7059
          %v7071 = vpack.c.b16 %v7062, %v7061
          %v7072 = vpack.c.b16 %v7064, %v7063
          %7081 = vmatprep.subr.bf16.mxu0 0
          %7082 = vmatpush1.bf16.msra.mxu0 %v7065
          %7083 = vmatprep.subr.bf16.mxu0 0
          %7084 = vmatpush1.bf16.msra.mxu0 %v7066
          %7085 = vmatprep.subr.bf16.mxu0 0
          %7086 = vmatpush1.bf16.msra.mxu0 %v7067
          %7087 = vmatprep.subr.bf16.mxu0 0
          %7088 = vmatpush1.bf16.msra.mxu0 %v7068
          %7089 = vmatprep.subr.bf16.mxu0 0
          %7090 = vmatpush1.bf16.msra.mxu0 %v7069
          %7091 = vmatprep.subr.bf16.mxu0 0
          %7092 = vmatpush1.bf16.msra.mxu0 %v7070
          %7093 = vmatprep.subr.bf16.mxu0 0
          %7094 = vmatpush1.bf16.msra.mxu0 %v7071
          %7095 = vmatprep.subr.bf16.mxu0 0
          %7096 = vmatpush1.bf16.msra.mxu0 %v7072
          %7097 = vmatprep.subr.bf16.mxu0 0
          %7098 = vmatpush1.bf16.msra.mxu0 0
          %7099 = vmatprep.subr.bf16.mxu0 0
          %7100 = vmatpush1.bf16.msra.mxu0 0
          %7101 = vmatprep.subr.bf16.mxu0 0
          %7102 = vmatpush1.bf16.msra.mxu0 0
          %7103 = vmatprep.subr.bf16.mxu0 0
          %7104 = vmatpush1.bf16.msra.mxu0 0
          %7105 = vmatprep.subr.bf16.mxu0 0
          %7106 = vmatpush1.bf16.msra.mxu0 0
          %7107 = vmatprep.subr.bf16.mxu0 0
          %7108 = vmatpush1.bf16.msra.mxu0 0
          %7109 = vmatprep.subr.bf16.mxu0 0
          %7110 = vmatpush1.bf16.msra.mxu0 0
          %7111 = vmatprep.subr.bf16.mxu0 0
          %7112 = vmatpush1.bf16.msra.mxu0 0
          %7113 = vmatprep.mubr.bf16.mxu0 0
          %7114 = vmatmul.mubr.bf16.gmra.mrb[0].mxu0 %v6981
          %v7115 = vpop.f32.mrb[0].mxu0
          %v7116 = vadd.f32 %v7032, %v7115
          %v7117 = vpop.f32.mrb[0].mxu0
          %v7118 = vpop.f32.mrb[0].mxu0
          %v7119 = vadd.f32 %v7032, %v7118
          %v7120 = vpop.f32.mrb[0].mxu0
          %7121 = vmatprep.mubr.bf16.mxu0 0
          %7122 = vmatmul.mubr.bf16.gmra.mrb[0].mxu0 %v6982
          %v7123 = vpop.f32.mrb[0].mxu0
          %v7124 = vadd.f32 %v7032, %v7123
          %v7125 = vpop.f32.mrb[0].mxu0
          %v7126 = vpop.f32.mrb[0].mxu0
          %v7127 = vadd.f32 %v7032, %v7126
          %v7128 = vpop.f32.mrb[0].mxu0
          %7129 = vmatprep.mubr.bf16.mxu0 0
          %7130 = vmatmul.mubr.bf16.gmra.mrb[0].mxu0 %v6983
          %v7131 = vpop.f32.mrb[0].mxu0
          %v7132 = vadd.f32 %v7032, %v7131
          %v7133 = vpop.f32.mrb[0].mxu0
          %v7134 = vpop.f32.mrb[0].mxu0
          %v7135 = vadd.f32 %v7032, %v7134
          %v7136 = vpop.f32.mrb[0].mxu0
          %7137 = vmatprep.mubr.bf16.mxu0 0
          %7138 = vmatmul.mubr.bf16.gmra.mrb[0].mxu0 %v6984
          %v7139 = vpop.f32.mrb[0].mxu0
          %v7140 = vadd.f32 %v7032, %v7139
          %v7141 = vpop.f32.mrb[0].mxu0
          %v7142 = vpop.f32.mrb[0].mxu0
          %v7143 = vadd.f32 %v7032, %v7142
          %v7144 = vpop.f32.mrb[0].mxu0
          %7145 = vmatprep.mubr.bf16.mxu0 0
          %7146 = vmatmul.mubr.bf16.gmra.mrb[0].mxu0 %v6985
          %v7147 = vpop.f32.mrb[0].mxu0
          %v7148 = vadd.f32 %v7032, %v7147
          %v7149 = vpop.f32.mrb[0].mxu0
          %v7150 = vpop.f32.mrb[0].mxu0
          %v7151 = vadd.f32 %v7032, %v7150
          %v7152 = vpop.f32.mrb[0].mxu0
          %7153 = vmatprep.mubr.bf16.mxu0 0
          %7154 = vmatmul.mubr.bf16.gmra.mrb[0].mxu0 %v6986
          %v7155 = vpop.f32.mrb[0].mxu0
          %v7156 = vadd.f32 %v7032, %v7155
          %v7157 = vpop.f32.mrb[0].mxu0
          %v7158 = vpop.f32.mrb[0].mxu0
          %v7159 = vadd.f32 %v7032, %v7158
          %v7160 = vpop.f32.mrb[0].mxu0
          %7161 = vmatprep.mubr.bf16.mxu0 0
          %7162 = vmatmul.mubr.bf16.gmra.mrb[0].mxu0 %v6987
          %v7163 = vpop.f32.mrb[0].mxu0
          %v7164 = vadd.f32 %v7032, %v7163
          %v7165 = vpop.f32.mrb[0].mxu0
          %v7166 = vpop.f32.mrb[0].mxu0
          %v7167 = vadd.f32 %v7032, %v7166
          %v7168 = vpop.f32.mrb[0].mxu0
          %7169 = vmatprep.mubr.bf16.mxu0 0
          %7170 = vmatmul.mubr.bf16.gmra.mrb[0].mxu0 %v6988
          %v7171 = vpop.f32.mrb[0].mxu0
          %v7172 = vadd.f32 %v7032, %v7171
          %v7173 = vpop.f32.mrb[0].mxu0
          %v7174 = vpop.f32.mrb[0].mxu0
          %v7175 = vadd.f32 %v7032, %v7174
          %v7176 = vpop.f32.mrb[0].mxu0
          %7177 = vmatprep.mubr.bf16.mxu0 0
          %7178 = vmatmul.mubr.bf16.gmra.mrb[0].mxu0 %v6989
          %v7179 = vpop.f32.mrb[0].mxu0
          %v7180 = vadd.f32 %v7032, %v7179
          %v7181 = vpop.f32.mrb[0].mxu0
          %v7182 = vpop.f32.mrb[0].mxu0
          %v7183 = vadd.f32 %v7032, %v7182
          %v7184 = vpop.f32.mrb[0].mxu0
          %7185 = vmatprep.mubr.bf16.mxu0 0
          %7186 = vmatmul.mubr.bf16.gmra.mrb[0].mxu0 %v6990
          %v7187 = vpop.f32.mrb[0].mxu0
          %v7188 = vadd.f32 %v7032, %v7187
          %v7189 = vpop.f32.mrb[0].mxu0
          %v7190 = vpop.f32.mrb[0].mxu0
          %v7191 = vadd.f32 %v7032, %v7190
          %v7192 = vpop.f32.mrb[0].mxu0
          %7193 = vmatprep.mubr.bf16.mxu0 0
          %7194 = vmatmul.mubr.bf16.gmra.mrb[0].mxu0 %v6991
          %v7195 = vpop.f32.mrb[0].mxu0
          %v7196 = vadd.f32 %v7032, %v7195
          %v7197 = vpop.f32.mrb[0].mxu0
          %v7198 = vpop.f32.mrb[0].mxu0
          %v7199 = vadd.f32 %v7032, %v7198
          %v7200 = vpop.f32.mrb[0].mxu0
          %7201 = vmatprep.mubr.bf16.mxu0 0
          %7202 = vmatmul.mubr.bf16.gmra.mrb[0].mxu0 %v6992
          %v7203 = vpop.f32.mrb[0].mxu0
          %v7204 = vadd.f32 %v7032, %v7203
          %v7205 = vpop.f32.mrb[0].mxu0
          %v7206 = vpop.f32.mrb[0].mxu0
          %v7207 = vadd.f32 %v7032, %v7206
          %v7208 = vpop.f32.mrb[0].mxu0
          %7209 = vmatprep.mubr.bf16.mxu0 0
          %7210 = vmatmul.mubr.bf16.gmra.mrb[0].mxu0 %v6993
          %v7211 = vpop.f32.mrb[0].mxu0
          %v7212 = vadd.f32 %v7032, %v7211
          %v7213 = vpop.f32.mrb[0].mxu0
          %v7214 = vpop.f32.mrb[0].mxu0
          %v7215 = vadd.f32 %v7032, %v7214
          %v7216 = vpop.f32.mrb[0].mxu0
          %7217 = vmatprep.mubr.bf16.mxu0 0
          %7218 = vmatmul.mubr.bf16.gmra.mrb[0].mxu0 %v6994
          %v7219 = vpop.f32.mrb[0].mxu0
          %v7220 = vadd.f32 %v7032, %v7219
          %v7221 = vpop.f32.mrb[0].mxu0
          %v7222 = vpop.f32.mrb[0].mxu0
          %v7223 = vadd.f32 %v7032, %v7222
          %v7224 = vpop.f32.mrb[0].mxu0
          %7225 = vmatprep.mubr.bf16.mxu0 0
          %7226 = vmatmul.mubr.bf16.gmra.mrb[0].mxu0 %v6995
          %v7227 = vpop.f32.mrb[0].mxu0
          %v7228 = vadd.f32 %v7032, %v7227
          %v7229 = vpop.f32.mrb[0].mxu0
          %v7230 = vpop.f32.mrb[0].mxu0
          %v7231 = vadd.f32 %v7032, %v7230
          %v7232 = vpop.f32.mrb[0].mxu0
          %7233 = vmatprep.mubr.bf16.mxu0 0
          %7234 = vmatmul.mubr.bf16.gmra.mrb[0].mxu0 %v6996
          %v7235 = vpop.f32.mrb[0].mxu0
          %v7236 = vadd.f32 %v7032, %v7235
          %v7237 = vpop.f32.mrb[0].mxu0
          %v7238 = vpop.f32.mrb[0].mxu0
          %v7239 = vadd.f32 %v7032, %v7238
          %v7240 = vpop.f32.mrb[0].mxu0
          %7241 = vmatprep.mubr.bf16.mxu0 0
          %7242 = vmatmul.mubr.bf16.gmra.mrb[0].mxu0 %v6997
          %v7243 = vpop.f32.mrb[0].mxu0
          %v7244 = vadd.f32 %v7032, %v7243
          %v7245 = vpop.f32.mrb[0].mxu0
          %v7246 = vpop.f32.mrb[0].mxu0
          %v7247 = vadd.f32 %v7032, %v7246
          %v7248 = vpop.f32.mrb[0].mxu0
          %7249 = vmatprep.mubr.bf16.mxu0 0
          %7250 = vmatmul.mubr.bf16.gmra.mrb[0].mxu0 %v6998
          %v7251 = vpop.f32.mrb[0].mxu0
          %v7252 = vadd.f32 %v7032, %v7251
          %v7253 = vpop.f32.mrb[0].mxu0
          %v7254 = vpop.f32.mrb[0].mxu0
          %v7255 = vadd.f32 %v7032, %v7254
          %v7256 = vpop.f32.mrb[0].mxu0
          %7257 = vmatprep.mubr.bf16.mxu0 0
          %7258 = vmatmul.mubr.bf16.gmra.mrb[0].mxu0 %v6999
          %v7259 = vpop.f32.mrb[0].mxu0
          %v7260 = vadd.f32 %v7032, %v7259
          %v7261 = vpop.f32.mrb[0].mxu0
          %v7262 = vpop.f32.mrb[0].mxu0
          %v7263 = vadd.f32 %v7032, %v7262
          %v7264 = vpop.f32.mrb[0].mxu0
          %7265 = vmatprep.mubr.bf16.mxu0 0
          %7266 = vmatmul.mubr.bf16.gmra.mrb[0].mxu0 %v7000
          %v7267 = vpop.f32.mrb[0].mxu0
          %v7268 = vadd.f32 %v7032, %v7267
          %v7269 = vpop.f32.mrb[0].mxu0
          %v7270 = vpop.f32.mrb[0].mxu0
          %v7271 = vadd.f32 %v7032, %v7270
          %v7272 = vpop.f32.mrb[0].mxu0
          %7273 = vmatprep.mubr.bf16.mxu0 0
          %7274 = vmatmul.mubr.bf16.gmra.mrb[0].mxu0 %v7001
          %v7275 = vpop.f32.mrb[0].mxu0
          %v7276 = vadd.f32 %v7032, %v7275
          %v7277 = vpop.f32.mrb[0].mxu0
          %v7278 = vpop.f32.mrb[0].mxu0
          %v7279 = vadd.f32 %v7032, %v7278
          %v7280 = vpop.f32.mrb[0].mxu0
          %7281 = vmatprep.mubr.bf16.mxu0 0
          %7282 = vmatmul.mubr.bf16.gmra.mrb[0].mxu0 %v7002
          %v7283 = vpop.f32.mrb[0].mxu0
          %v7284 = vadd.f32 %v7032, %v7283
          %v7285 = vpop.f32.mrb[0].mxu0
          %v7286 = vpop.f32.mrb[0].mxu0
          %v7287 = vadd.f32 %v7032, %v7286
          %v7288 = vpop.f32.mrb[0].mxu0
          %7289 = vmatprep.mubr.bf16.mxu0 0
          %7290 = vmatmul.mubr.bf16.gmra.mrb[0].mxu0 %v7003
          %v7291 = vpop.f32.mrb[0].mxu0
          %v7292 = vadd.f32 %v7032, %v7291
          %v7293 = vpop.f32.mrb[0].mxu0
          %v7294 = vpop.f32.mrb[0].mxu0
          %v7295 = vadd.f32 %v7032, %v7294
          %v7296 = vpop.f32.mrb[0].mxu0
          %7297 = vmatprep.mubr.bf16.mxu0 0
          %7298 = vmatmul.mubr.bf16.gmra.mrb[0].mxu0 %v7004
          %v7299 = vpop.f32.mrb[0].mxu0
          %v7300 = vadd.f32 %v7032, %v7299
          %v7301 = vpop.f32.mrb[0].mxu0
          %v7302 = vpop.f32.mrb[0].mxu0
          %v7303 = vadd.f32 %v7032, %v7302
          %v7304 = vpop.f32.mrb[0].mxu0
          %7305 = vmatprep.mubr.bf16.mxu0 0
          %7306 = vmatmul.mubr.bf16.gmra.mrb[0].mxu0 %v7005
          %v7307 = vpop.f32.mrb[0].mxu0
          %v7308 = vadd.f32 %v7032, %v7307
          %v7309 = vpop.f32.mrb[0].mxu0
          %v7310 = vpop.f32.mrb[0].mxu0
          %v7311 = vadd.f32 %v7032, %v7310
          %v7312 = vpop.f32.mrb[0].mxu0
          %7313 = vmatprep.mubr.bf16.mxu0 0
          %7314 = vmatmul.mubr.bf16.gmra.mrb[0].mxu0 %v7006
          %v7315 = vpop.f32.mrb[0].mxu0
          %v7316 = vadd.f32 %v7032, %v7315
          %v7317 = vpop.f32.mrb[0].mxu0
          %v7318 = vpop.f32.mrb[0].mxu0
          %v7319 = vadd.f32 %v7032, %v7318
          %v7320 = vpop.f32.mrb[0].mxu0
          %7321 = vmatprep.mubr.bf16.mxu0 0
          %7322 = vmatmul.mubr.bf16.gmra.mrb[0].mxu0 %v7007
          %v7323 = vpop.f32.mrb[0].mxu0
          %v7324 = vadd.f32 %v7032, %v7323
          %v7325 = vpop.f32.mrb[0].mxu0
          %v7326 = vpop.f32.mrb[0].mxu0
          %v7327 = vadd.f32 %v7032, %v7326
          %v7328 = vpop.f32.mrb[0].mxu0
          %7329 = vmatprep.mubr.bf16.mxu0 0
          %7330 = vmatmul.mubr.bf16.gmra.mrb[0].mxu0 %v7008
          %v7331 = vpop.f32.mrb[0].mxu0
          %v7332 = vadd.f32 %v7032, %v7331
          %v7333 = vpop.f32.mrb[0].mxu0
          %v7334 = vpop.f32.mrb[0].mxu0
          %v7335 = vadd.f32 %v7032, %v7334
          %v7336 = vpop.f32.mrb[0].mxu0
          %7337 = vmatprep.mubr.bf16.mxu0 0
          %7338 = vmatmul.mubr.bf16.gmra.mrb[0].mxu0 %v7009
          %v7339 = vpop.f32.mrb[0].mxu0
          %v7340 = vadd.f32 %v7032, %v7339
          %v7341 = vpop.f32.mrb[0].mxu0
          %v7342 = vpop.f32.mrb[0].mxu0
          %v7343 = vadd.f32 %v7032, %v7342
          %v7344 = vpop.f32.mrb[0].mxu0
          %7345 = vmatprep.mubr.bf16.mxu0 0
          %7346 = vmatmul.mubr.bf16.gmra.mrb[0].mxu0 %v7010
          %v7347 = vpop.f32.mrb[0].mxu0
          %v7348 = vadd.f32 %v7032, %v7347
          %v7349 = vpop.f32.mrb[0].mxu0
          %v7350 = vpop.f32.mrb[0].mxu0
          %v7351 = vadd.f32 %v7032, %v7350
          %v7352 = vpop.f32.mrb[0].mxu0
          %7353 = vmatprep.mubr.bf16.mxu0 0
          %7354 = vmatmul.mubr.bf16.gmra.mrb[0].mxu0 %v7011
          %v7355 = vpop.f32.mrb[0].mxu0
          %v7356 = vadd.f32 %v7032, %v7355
          %v7357 = vpop.f32.mrb[0].mxu0
          %v7358 = vpop.f32.mrb[0].mxu0
          %v7359 = vadd.f32 %v7032, %v7358
          %v7360 = vpop.f32.mrb[0].mxu0
          %7361 = vmatprep.mubr.bf16.mxu0 0
          %7362 = vmatmul.mubr.bf16.gmra.mrb[0].mxu0 %v7012
          %v7363 = vpop.f32.mrb[0].mxu0
          %v7364 = vadd.f32 %v7032, %v7363
          %v7365 = vpop.f32.mrb[0].mxu0
          %v7366 = vpop.f32.mrb[0].mxu0
          %v7367 = vadd.f32 %v7032, %v7366
          %v7368 = vpop.f32.mrb[0].mxu0
          %7369 = vdwg.mxu0
          %vm7370 = vcmp.ge.f32.partialorder %v7116, 0.0
          %vm7371 = vcmp.ge.f32.partialorder %v7119, 0.0
          %vm7372 = vcmp.ge.f32.partialorder %v7124, 0.0
          %vm7373 = vcmp.ge.f32.partialorder %v7127, 0.0
          %vm7374 = vcmp.ge.f32.partialorder %v7132, 0.0
          %vm7375 = vcmp.ge.f32.partialorder %v7135, 0.0
          %vm7376 = vcmp.ge.f32.partialorder %v7140, 0.0
          %vm7377 = vcmp.ge.f32.partialorder %v7143, 0.0
          %vm7378 = vcmp.ge.f32.partialorder %v7148, 0.0
          %vm7379 = vcmp.ge.f32.partialorder %v7151, 0.0
          %vm7380 = vcmp.ge.f32.partialorder %v7156, 0.0
          %vm7381 = vcmp.ge.f32.partialorder %v7159, 0.0
          %vm7382 = vcmp.ge.f32.partialorder %v7164, 0.0
          %vm7383 = vcmp.ge.f32.partialorder %v7167, 0.0
          %vm7384 = vcmp.ge.f32.partialorder %v7172, 0.0
          %vm7385 = vcmp.ge.f32.partialorder %v7175, 0.0
          %vm7386 = vcmp.ge.f32.partialorder %v7180, 0.0
          %vm7387 = vcmp.ge.f32.partialorder %v7183, 0.0
          %vm7388 = vcmp.ge.f32.partialorder %v7188, 0.0
          %vm7389 = vcmp.ge.f32.partialorder %v7191, 0.0
          %vm7390 = vcmp.ge.f32.partialorder %v7196, 0.0
          %vm7391 = vcmp.ge.f32.partialorder %v7199, 0.0
          %vm7392 = vcmp.ge.f32.partialorder %v7204, 0.0
          %vm7393 = vcmp.ge.f32.partialorder %v7207, 0.0
          %vm7394 = vcmp.ge.f32.partialorder %v7212, 0.0
          %vm7395 = vcmp.ge.f32.partialorder %v7215, 0.0
          %vm7396 = vcmp.ge.f32.partialorder %v7220, 0.0
          %vm7397 = vcmp.ge.f32.partialorder %v7223, 0.0
          %vm7398 = vcmp.ge.f32.partialorder %v7228, 0.0
          %vm7399 = vcmp.ge.f32.partialorder %v7231, 0.0
          %vm7400 = vcmp.ge.f32.partialorder %v7236, 0.0
          %vm7401 = vcmp.ge.f32.partialorder %v7239, 0.0
          %vm7402 = vcmp.ge.f32.partialorder %v7244, 0.0
          %vm7403 = vcmp.ge.f32.partialorder %v7247, 0.0
          %vm7404 = vcmp.ge.f32.partialorder %v7252, 0.0
          %vm7405 = vcmp.ge.f32.partialorder %v7255, 0.0
          %vm7406 = vcmp.ge.f32.partialorder %v7260, 0.0
          %vm7407 = vcmp.ge.f32.partialorder %v7263, 0.0
          %vm7408 = vcmp.ge.f32.partialorder %v7268, 0.0
          %vm7409 = vcmp.ge.f32.partialorder %v7271, 0.0
          %vm7410 = vcmp.ge.f32.partialorder %v7276, 0.0
          %vm7411 = vcmp.ge.f32.partialorder %v7279, 0.0
          %vm7412 = vcmp.ge.f32.partialorder %v7284, 0.0
          %vm7413 = vcmp.ge.f32.partialorder %v7287, 0.0
          %vm7414 = vcmp.ge.f32.partialorder %v7292, 0.0
          %vm7415 = vcmp.ge.f32.partialorder %v7295, 0.0
          %vm7416 = vcmp.ge.f32.partialorder %v7300, 0.0
          %vm7417 = vcmp.ge.f32.partialorder %v7303, 0.0
          %vm7418 = vcmp.ge.f32.partialorder %v7308, 0.0
          %vm7419 = vcmp.ge.f32.partialorder %v7311, 0.0
          %vm7420 = vcmp.ge.f32.partialorder %v7316, 0.0
          %vm7421 = vcmp.ge.f32.partialorder %v7319, 0.0
          %vm7422 = vcmp.ge.f32.partialorder %v7324, 0.0
          %vm7423 = vcmp.ge.f32.partialorder %v7327, 0.0
          %vm7424 = vcmp.ge.f32.partialorder %v7332, 0.0
          %vm7425 = vcmp.ge.f32.partialorder %v7335, 0.0
          %vm7426 = vcmp.ge.f32.partialorder %v7340, 0.0
          %vm7427 = vcmp.ge.f32.partialorder %v7343, 0.0
          %vm7428 = vcmp.ge.f32.partialorder %v7348, 0.0
          %vm7429 = vcmp.ge.f32.partialorder %v7351, 0.0
          %vm7430 = vcmp.ge.f32.partialorder %v7356, 0.0
          %vm7431 = vcmp.ge.f32.partialorder %v7359, 0.0
          %vm7432 = vcmp.ge.f32.partialorder %v7364, 0.0
          %vm7433 = vcmp.ge.f32.partialorder %v7367, 0.0
          %v7434 = vmul.f32 %v495, %v7116
          %v7435 = vmul.f32 %v495, %v7119
          %v7436 = vmul.f32 %v495, %v7124
          %v7437 = vmul.f32 %v495, %v7127
          %v7438 = vmul.f32 %v495, %v7132
          %v7439 = vmul.f32 %v495, %v7135
          %v7440 = vmul.f32 %v495, %v7140
          %v7441 = vmul.f32 %v495, %v7143
          %v7442 = vmul.f32 %v495, %v7148
          %v7443 = vmul.f32 %v495, %v7151
          %v7444 = vmul.f32 %v495, %v7156
          %v7445 = vmul.f32 %v495, %v7159
          %v7446 = vmul.f32 %v495, %v7164
          %v7447 = vmul.f32 %v495, %v7167
          %v7448 = vmul.f32 %v495, %v7172
          %v7449 = vmul.f32 %v495, %v7175
          %v7450 = vmul.f32 %v495, %v7180
          %v7451 = vmul.f32 %v495, %v7183
          %v7452 = vmul.f32 %v495, %v7188
          %v7453 = vmul.f32 %v495, %v7191
          %v7454 = vmul.f32 %v495, %v7196
          %v7455 = vmul.f32 %v495, %v7199
          %v7456 = vmul.f32 %v495, %v7204
          %v7457 = vmul.f32 %v495, %v7207
          %v7458 = vmul.f32 %v495, %v7212
          %v7459 = vmul.f32 %v495, %v7215
          %v7460 = vmul.f32 %v495, %v7220
          %v7461 = vmul.f32 %v495, %v7223
          %v7462 = vmul.f32 %v495, %v7228
          %v7463 = vmul.f32 %v495, %v7231
          %v7464 = vmul.f32 %v495, %v7236
          %v7465 = vmul.f32 %v495, %v7239
          %v7466 = vmul.f32 %v495, %v7244
          %v7467 = vmul.f32 %v495, %v7247
          %v7468 = vmul.f32 %v495, %v7252
          %v7469 = vmul.f32 %v495, %v7255
          %v7470 = vmul.f32 %v495, %v7260
          %v7471 = vmul.f32 %v495, %v7263
          %v7472 = vmul.f32 %v495, %v7268
          %v7473 = vmul.f32 %v495, %v7271
          %v7474 = vmul.f32 %v495, %v7276
          %v7475 = vmul.f32 %v495, %v7279
          %v7476 = vmul.f32 %v495, %v7284
          %v7477 = vmul.f32 %v495, %v7287
          %v7478 = vmul.f32 %v495, %v7292
          %v7479 = vmul.f32 %v495, %v7295
          %v7480 = vmul.f32 %v495, %v7300
          %v7481 = vmul.f32 %v495, %v7303
          %v7482 = vmul.f32 %v495, %v7308
          %v7483 = vmul.f32 %v495, %v7311
          %v7484 = vmul.f32 %v495, %v7316
          %v7485 = vmul.f32 %v495, %v7319
          %v7486 = vmul.f32 %v495, %v7324
          %v7487 = vmul.f32 %v495, %v7327
          %v7488 = vmul.f32 %v495, %v7332
          %v7489 = vmul.f32 %v495, %v7335
          %v7490 = vmul.f32 %v495, %v7340
          %v7491 = vmul.f32 %v495, %v7343
          %v7492 = vmul.f32 %v495, %v7348
          %v7493 = vmul.f32 %v495, %v7351
          %v7494 = vmul.f32 %v495, %v7356
          %v7495 = vmul.f32 %v495, %v7359
          %v7496 = vmul.f32 %v495, %v7364
          %v7497 = vmul.f32 %v495, %v7367
          %v7498 = vsel %vm7370, %v7116, %v7434
          %v7499 = vsel %vm7371, %v7119, %v7435
          %v7500 = vsel %vm7372, %v7124, %v7436
          %v7501 = vsel %vm7373, %v7127, %v7437
          %v7502 = vsel %vm7374, %v7132, %v7438
          %v7503 = vsel %vm7375, %v7135, %v7439
          %v7504 = vsel %vm7376, %v7140, %v7440
          %v7505 = vsel %vm7377, %v7143, %v7441
          %v7506 = vsel %vm7378, %v7148, %v7442
          %v7507 = vsel %vm7379, %v7151, %v7443
          %v7508 = vsel %vm7380, %v7156, %v7444
          %v7509 = vsel %vm7381, %v7159, %v7445
          %v7510 = vsel %vm7382, %v7164, %v7446
          %v7511 = vsel %vm7383, %v7167, %v7447
          %v7512 = vsel %vm7384, %v7172, %v7448
          %v7513 = vsel %vm7385, %v7175, %v7449
          %v7514 = vsel %vm7386, %v7180, %v7450
          %v7515 = vsel %vm7387, %v7183, %v7451
          %v7516 = vsel %vm7388, %v7188, %v7452
          %v7517 = vsel %vm7389, %v7191, %v7453
          %v7518 = vsel %vm7390, %v7196, %v7454
          %v7519 = vsel %vm7391, %v7199, %v7455
          %v7520 = vsel %vm7392, %v7204, %v7456
          %v7521 = vsel %vm7393, %v7207, %v7457
          %v7522 = vsel %vm7394, %v7212, %v7458
          %v7523 = vsel %vm7395, %v7215, %v7459
          %v7524 = vsel %vm7396, %v7220, %v7460
          %v7525 = vsel %vm7397, %v7223, %v7461
          %v7526 = vsel %vm7398, %v7228, %v7462
          %v7527 = vsel %vm7399, %v7231, %v7463
          %v7528 = vsel %vm7400, %v7236, %v7464
          %v7529 = vsel %vm7401, %v7239, %v7465
          %v7530 = vsel %vm7402, %v7244, %v7466
          %v7531 = vsel %vm7403, %v7247, %v7467
          %v7532 = vsel %vm7404, %v7252, %v7468
          %v7533 = vsel %vm7405, %v7255, %v7469
          %v7534 = vsel %vm7406, %v7260, %v7470
          %v7535 = vsel %vm7407, %v7263, %v7471
          %v7536 = vsel %vm7408, %v7268, %v7472
          %v7537 = vsel %vm7409, %v7271, %v7473
          %v7538 = vsel %vm7410, %v7276, %v7474
          %v7539 = vsel %vm7411, %v7279, %v7475
          %v7540 = vsel %vm7412, %v7284, %v7476
          %v7541 = vsel %vm7413, %v7287, %v7477
          %v7542 = vsel %vm7414, %v7292, %v7478
          %v7543 = vsel %vm7415, %v7295, %v7479
          %v7544 = vsel %vm7416, %v7300, %v7480
          %v7545 = vsel %vm7417, %v7303, %v7481
          %v7546 = vsel %vm7418, %v7308, %v7482
          %v7547 = vsel %vm7419, %v7311, %v7483
          %v7548 = vsel %vm7420, %v7316, %v7484
          %v7549 = vsel %vm7421, %v7319, %v7485
          %v7550 = vsel %vm7422, %v7324, %v7486
          %v7551 = vsel %vm7423, %v7327, %v7487
          %v7552 = vsel %vm7424, %v7332, %v7488
          %v7553 = vsel %vm7425, %v7335, %v7489
          %v7554 = vsel %vm7426, %v7340, %v7490
          %v7555 = vsel %vm7427, %v7343, %v7491
          %v7556 = vsel %vm7428, %v7348, %v7492
          %v7557 = vsel %vm7429, %v7351, %v7493
          %v7558 = vsel %vm7430, %v7356, %v7494
          %v7559 = vsel %vm7431, %v7359, %v7495
          %v7560 = vsel %vm7432, %v7364, %v7496
          %v7561 = vsel %vm7433, %v7367, %v7497
          %v7562 = vadd.f32 %v7498, %v7499
          %v7563 = vadd.f32 %v7562, %v7500
          %v7564 = vadd.f32 %v7563, %v7501
          %v7565 = vadd.f32 %v7564, %v7502
          %v7566 = vadd.f32 %v7565, %v7503
          %v7567 = vadd.f32 %v7566, %v7504
          %v7568 = vadd.f32 %v7567, %v7505
          %v7569 = vadd.f32 %v7568, %v7506
          %v7570 = vadd.f32 %v7569, %v7507
          %v7571 = vadd.f32 %v7570, %v7508
          %v7572 = vadd.f32 %v7571, %v7509
          %v7573 = vadd.f32 %v7572, %v7510
          %v7574 = vadd.f32 %v7573, %v7511
          %v7575 = vadd.f32 %v7574, %v7512
          %v7576 = vadd.f32 %v7575, %v7513
          %v7577 = vadd.f32 %v7576, %v7514
          %v7578 = vadd.f32 %v7577, %v7515
          %v7579 = vadd.f32 %v7578, %v7516
          %v7580 = vadd.f32 %v7579, %v7517
          %v7581 = vadd.f32 %v7580, %v7518
          %v7582 = vadd.f32 %v7581, %v7519
          %v7583 = vadd.f32 %v7582, %v7520
          %v7584 = vadd.f32 %v7583, %v7521
          %v7585 = vadd.f32 %v7584, %v7522
          %v7586 = vadd.f32 %v7585, %v7523
          %v7587 = vadd.f32 %v7586, %v7524
          %v7588 = vadd.f32 %v7587, %v7525
          %v7589 = vadd.f32 %v7588, %v7526
          %v7590 = vadd.f32 %v7589, %v7527
          %v7591 = vadd.f32 %v7590, %v7528
          %v7592 = vadd.f32 %v7591, %v7529
          %v7593 = vadd.f32 %v7592, %v7530
          %v7594 = vadd.f32 %v7593, %v7531
          %v7595 = vadd.f32 %v7594, %v7532
          %v7596 = vadd.f32 %v7595, %v7533
          %v7597 = vadd.f32 %v7596, %v7534
          %v7598 = vadd.f32 %v7597, %v7535
          %v7599 = vadd.f32 %v7598, %v7536
          %v7600 = vadd.f32 %v7599, %v7537
          %v7601 = vadd.f32 %v7600, %v7538
          %v7602 = vadd.f32 %v7601, %v7539
          %v7603 = vadd.f32 %v7602, %v7540
          %v7604 = vadd.f32 %v7603, %v7541
          %v7605 = vadd.f32 %v7604, %v7542
          %v7606 = vadd.f32 %v7605, %v7543
          %v7607 = vadd.f32 %v7606, %v7544
          %v7608 = vadd.f32 %v7607, %v7545
          %v7609 = vadd.f32 %v7608, %v7546
          %v7610 = vadd.f32 %v7609, %v7547
          %v7611 = vadd.f32 %v7610, %v7548
          %v7612 = vadd.f32 %v7611, %v7549
          %v7613 = vadd.f32 %v7612, %v7550
          %v7614 = vadd.f32 %v7613, %v7551
          %v7615 = vadd.f32 %v7614, %v7552
          %v7616 = vadd.f32 %v7615, %v7553
          %v7617 = vadd.f32 %v7616, %v7554
          %v7618 = vadd.f32 %v7617, %v7555
          %v7619 = vadd.f32 %v7618, %v7556
          %v7620 = vadd.f32 %v7619, %v7557
          %v7621 = vadd.f32 %v7620, %v7558
          %v7622 = vadd.f32 %v7621, %v7559
          %v7623 = vadd.f32 %v7622, %v7560
          %v7624 = vadd.f32 %v7623, %v7561
          %v7625 = vrot.slane %v7624, 4
          %v7626 = vadd.f32 %v7624, %v7625
          %v7627 = vrot.slane %v7626, 2
          %v7628 = vadd.f32 %v7626, %v7627
          %v7629 = vrot.slane %v7628, 1
          %v7630 = vadd.f32 %v7628, %v7629
          %v7631 = vmul.f32 %v7630, %v5640
          %v7632 = vsub.f32 %v7498, %v7631
          %v7633 = vsub.f32 %v7499, %v7631
          %v7634 = vsub.f32 %v7500, %v7631
          %v7635 = vsub.f32 %v7501, %v7631
          %v7636 = vsub.f32 %v7502, %v7631
          %v7637 = vsub.f32 %v7503, %v7631
          %v7638 = vsub.f32 %v7504, %v7631
          %v7639 = vsub.f32 %v7505, %v7631
          %v7640 = vsub.f32 %v7506, %v7631
          %v7641 = vsub.f32 %v7507, %v7631
          %v7642 = vsub.f32 %v7508, %v7631
          %v7643 = vsub.f32 %v7509, %v7631
          %v7644 = vsub.f32 %v7510, %v7631
          %v7645 = vsub.f32 %v7511, %v7631
          %v7646 = vsub.f32 %v7512, %v7631
          %v7647 = vsub.f32 %v7513, %v7631
          %v7648 = vsub.f32 %v7514, %v7631
          %v7649 = vsub.f32 %v7515, %v7631
          %v7650 = vsub.f32 %v7516, %v7631
          %v7651 = vsub.f32 %v7517, %v7631
          %v7652 = vsub.f32 %v7518, %v7631
          %v7653 = vsub.f32 %v7519, %v7631
          %v7654 = vsub.f32 %v7520, %v7631
          %v7655 = vsub.f32 %v7521, %v7631
          %v7656 = vsub.f32 %v7522, %v7631
          %v7657 = vsub.f32 %v7523, %v7631
          %v7658 = vsub.f32 %v7524, %v7631
          %v7659 = vsub.f32 %v7525, %v7631
          %v7660 = vsub.f32 %v7526, %v7631
          %v7661 = vsub.f32 %v7527, %v7631
          %v7662 = vsub.f32 %v7528, %v7631
          %v7663 = vsub.f32 %v7529, %v7631
          %v7664 = vsub.f32 %v7530, %v7631
          %v7665 = vsub.f32 %v7531, %v7631
          %v7666 = vsub.f32 %v7532, %v7631
          %v7667 = vsub.f32 %v7533, %v7631
          %v7668 = vsub.f32 %v7534, %v7631
          %v7669 = vsub.f32 %v7535, %v7631
          %v7670 = vsub.f32 %v7536, %v7631
          %v7671 = vsub.f32 %v7537, %v7631
          %v7672 = vsub.f32 %v7538, %v7631
          %v7673 = vsub.f32 %v7539, %v7631
          %v7674 = vsub.f32 %v7540, %v7631
          %v7675 = vsub.f32 %v7541, %v7631
          %v7676 = vsub.f32 %v7542, %v7631
          %v7677 = vsub.f32 %v7543, %v7631
          %v7678 = vsub.f32 %v7544, %v7631
          %v7679 = vsub.f32 %v7545, %v7631
          %v7680 = vsub.f32 %v7546, %v7631
          %v7681 = vsub.f32 %v7547, %v7631
          %v7682 = vsub.f32 %v7548, %v7631
          %v7683 = vsub.f32 %v7549, %v7631
          %v7684 = vsub.f32 %v7550, %v7631
          %v7685 = vsub.f32 %v7551, %v7631
          %v7686 = vsub.f32 %v7552, %v7631
          %v7687 = vsub.f32 %v7553, %v7631
          %v7688 = vsub.f32 %v7554, %v7631
          %v7689 = vsub.f32 %v7555, %v7631
          %v7690 = vsub.f32 %v7556, %v7631
          %v7691 = vsub.f32 %v7557, %v7631
          %v7692 = vsub.f32 %v7558, %v7631
          %v7693 = vsub.f32 %v7559, %v7631
          %v7694 = vsub.f32 %v7560, %v7631
          %v7695 = vsub.f32 %v7561, %v7631
          %v7696 = vmul.f32 %v7632, %v7632
          %v7697 = vmul.f32 %v7633, %v7633
          %v7698 = vmul.f32 %v7634, %v7634
          %v7699 = vmul.f32 %v7635, %v7635
          %v7700 = vmul.f32 %v7636, %v7636
          %v7701 = vmul.f32 %v7637, %v7637
          %v7702 = vmul.f32 %v7638, %v7638
          %v7703 = vmul.f32 %v7639, %v7639
          %v7704 = vmul.f32 %v7640, %v7640
          %v7705 = vmul.f32 %v7641, %v7641
          %v7706 = vmul.f32 %v7642, %v7642
          %v7707 = vmul.f32 %v7643, %v7643
          %v7708 = vmul.f32 %v7644, %v7644
          %v7709 = vmul.f32 %v7645, %v7645
          %v7710 = vmul.f32 %v7646, %v7646
          %v7711 = vmul.f32 %v7647, %v7647
          %v7712 = vmul.f32 %v7648, %v7648
          %v7713 = vmul.f32 %v7649, %v7649
          %v7714 = vmul.f32 %v7650, %v7650
          %v7715 = vmul.f32 %v7651, %v7651
          %v7716 = vmul.f32 %v7652, %v7652
          %v7717 = vmul.f32 %v7653, %v7653
          %v7718 = vmul.f32 %v7654, %v7654
          %v7719 = vmul.f32 %v7655, %v7655
          %v7720 = vmul.f32 %v7656, %v7656
          %v7721 = vmul.f32 %v7657, %v7657
          %v7722 = vmul.f32 %v7658, %v7658
          %v7723 = vmul.f32 %v7659, %v7659
          %v7724 = vmul.f32 %v7660, %v7660
          %v7725 = vmul.f32 %v7661, %v7661
          %v7726 = vmul.f32 %v7662, %v7662
          %v7727 = vmul.f32 %v7663, %v7663
          %v7728 = vmul.f32 %v7664, %v7664
          %v7729 = vmul.f32 %v7665, %v7665
          %v7730 = vmul.f32 %v7666, %v7666
          %v7731 = vmul.f32 %v7667, %v7667
          %v7732 = vmul.f32 %v7668, %v7668
          %v7733 = vmul.f32 %v7669, %v7669
          %v7734 = vmul.f32 %v7670, %v7670
          %v7735 = vmul.f32 %v7671, %v7671
          %v7736 = vmul.f32 %v7672, %v7672
          %v7737 = vmul.f32 %v7673, %v7673
          %v7738 = vmul.f32 %v7674, %v7674
          %v7739 = vmul.f32 %v7675, %v7675
          %v7740 = vmul.f32 %v7676, %v7676
          %v7741 = vmul.f32 %v7677, %v7677
          %v7742 = vmul.f32 %v7678, %v7678
          %v7743 = vmul.f32 %v7679, %v7679
          %v7744 = vmul.f32 %v7680, %v7680
          %v7745 = vmul.f32 %v7681, %v7681
          %v7746 = vmul.f32 %v7682, %v7682
          %v7747 = vmul.f32 %v7683, %v7683
          %v7748 = vmul.f32 %v7684, %v7684
          %v7749 = vmul.f32 %v7685, %v7685
          %v7750 = vmul.f32 %v7686, %v7686
          %v7751 = vmul.f32 %v7687, %v7687
          %v7752 = vmul.f32 %v7688, %v7688
          %v7753 = vmul.f32 %v7689, %v7689
          %v7754 = vmul.f32 %v7690, %v7690
          %v7755 = vmul.f32 %v7691, %v7691
          %v7756 = vmul.f32 %v7692, %v7692
          %v7757 = vmul.f32 %v7693, %v7693
          %v7758 = vmul.f32 %v7694, %v7694
          %v7759 = vmul.f32 %v7695, %v7695
          %v7760 = vadd.f32 %v7696, %v7697
          %v7761 = vadd.f32 %v7760, %v7698
          %v7762 = vadd.f32 %v7761, %v7699
          %v7763 = vadd.f32 %v7762, %v7700
          %v7764 = vadd.f32 %v7763, %v7701
          %v7765 = vadd.f32 %v7764, %v7702
          %v7766 = vadd.f32 %v7765, %v7703
          %v7767 = vadd.f32 %v7766, %v7704
          %v7768 = vadd.f32 %v7767, %v7705
          %v7769 = vadd.f32 %v7768, %v7706
          %v7770 = vadd.f32 %v7769, %v7707
          %v7771 = vadd.f32 %v7770, %v7708
          %v7772 = vadd.f32 %v7771, %v7709
          %v7773 = vadd.f32 %v7772, %v7710
          %v7774 = vadd.f32 %v7773, %v7711
          %v7775 = vadd.f32 %v7774, %v7712
          %v7776 = vadd.f32 %v7775, %v7713
          %v7777 = vadd.f32 %v7776, %v7714
          %v7778 = vadd.f32 %v7777, %v7715
          %v7779 = vadd.f32 %v7778, %v7716
          %v7780 = vadd.f32 %v7779, %v7717
          %v7781 = vadd.f32 %v7780, %v7718
          %v7782 = vadd.f32 %v7781, %v7719
          %v7783 = vadd.f32 %v7782, %v7720
          %v7784 = vadd.f32 %v7783, %v7721
          %v7785 = vadd.f32 %v7784, %v7722
          %v7786 = vadd.f32 %v7785, %v7723
          %v7787 = vadd.f32 %v7786, %v7724
          %v7788 = vadd.f32 %v7787, %v7725
          %v7789 = vadd.f32 %v7788, %v7726
          %v7790 = vadd.f32 %v7789, %v7727
          %v7791 = vadd.f32 %v7790, %v7728
          %v7792 = vadd.f32 %v7791, %v7729
          %v7793 = vadd.f32 %v7792, %v7730
          %v7794 = vadd.f32 %v7793, %v7731
          %v7795 = vadd.f32 %v7794, %v7732
          %v7796 = vadd.f32 %v7795, %v7733
          %v7797 = vadd.f32 %v7796, %v7734
          %v7798 = vadd.f32 %v7797, %v7735
          %v7799 = vadd.f32 %v7798, %v7736
          %v7800 = vadd.f32 %v7799, %v7737
          %v7801 = vadd.f32 %v7800, %v7738
          %v7802 = vadd.f32 %v7801, %v7739
          %v7803 = vadd.f32 %v7802, %v7740
          %v7804 = vadd.f32 %v7803, %v7741
          %v7805 = vadd.f32 %v7804, %v7742
          %v7806 = vadd.f32 %v7805, %v7743
          %v7807 = vadd.f32 %v7806, %v7744
          %v7808 = vadd.f32 %v7807, %v7745
          %v7809 = vadd.f32 %v7808, %v7746
          %v7810 = vadd.f32 %v7809, %v7747
          %v7811 = vadd.f32 %v7810, %v7748
          %v7812 = vadd.f32 %v7811, %v7749
          %v7813 = vadd.f32 %v7812, %v7750
          %v7814 = vadd.f32 %v7813, %v7751
          %v7815 = vadd.f32 %v7814, %v7752
          %v7816 = vadd.f32 %v7815, %v7753
          %v7817 = vadd.f32 %v7816, %v7754
          %v7818 = vadd.f32 %v7817, %v7755
          %v7819 = vadd.f32 %v7818, %v7756
          %v7820 = vadd.f32 %v7819, %v7757
          %v7821 = vadd.f32 %v7820, %v7758
          %v7822 = vadd.f32 %v7821, %v7759
          %v7823 = vrot.slane %v7822, 4
          %v7824 = vadd.f32 %v7822, %v7823
          %v7825 = vrot.slane %v7824, 2
          %v7826 = vadd.f32 %v7824, %v7825
          %v7827 = vrot.slane %v7826, 1
          %v7828 = vadd.f32 %v7826, %v7827
          %v7829 = vmul.f32 %v7828, %v5640
          %v7830 = vadd.f32 %v7829, 1e-05
          %v7831 = vrsqrt.pop %v7830
          %v7832 = vmul.f32 %v490, %v7831
          %v7833 = vsel %vm494, %v7832, 1.0
          %v7834 = vmul.f32 %v7631, %v7833
          %v7836 = vrot.slane %v7834, 7
          %v7838 = vsub.f32 %v491, %v7836
          %v7839 = vsel %vm494, %v7838, 0.0
          %v7840 = vlaneseq
          %v7841 = vshrl.u32 %v7840, 7
          %v7842 = vsub.s32 7, %v7841
          %v7843 = vrot.slane %v7833, %v7842
          %v7844 = vmul.f32 %v7498, %v7843
          %v7845 = vmul.f32 %v7499, %v7843
          %v7846 = vmul.f32 %v7500, %v7843
          %v7847 = vmul.f32 %v7501, %v7843
          %v7848 = vmul.f32 %v7502, %v7843
          %v7849 = vmul.f32 %v7503, %v7843
          %v7850 = vmul.f32 %v7504, %v7843
          %v7851 = vmul.f32 %v7505, %v7843
          %v7852 = vmul.f32 %v7506, %v7843
          %v7853 = vmul.f32 %v7507, %v7843
          %v7854 = vmul.f32 %v7508, %v7843
          %v7855 = vmul.f32 %v7509, %v7843
          %v7856 = vmul.f32 %v7510, %v7843
          %v7857 = vmul.f32 %v7511, %v7843
          %v7858 = vmul.f32 %v7512, %v7843
          %v7859 = vmul.f32 %v7513, %v7843
          %v7860 = vmul.f32 %v7514, %v7843
          %v7861 = vmul.f32 %v7515, %v7843
          %v7862 = vmul.f32 %v7516, %v7843
          %v7863 = vmul.f32 %v7517, %v7843
          %v7864 = vmul.f32 %v7518, %v7843
          %v7865 = vmul.f32 %v7519, %v7843
          %v7866 = vmul.f32 %v7520, %v7843
          %v7867 = vmul.f32 %v7521, %v7843
          %v7868 = vmul.f32 %v7522, %v7843
          %v7869 = vmul.f32 %v7523, %v7843
          %v7870 = vmul.f32 %v7524, %v7843
          %v7871 = vmul.f32 %v7525, %v7843
          %v7872 = vmul.f32 %v7526, %v7843
          %v7873 = vmul.f32 %v7527, %v7843
          %v7874 = vmul.f32 %v7528, %v7843
          %v7875 = vmul.f32 %v7529, %v7843
          %v7876 = vmul.f32 %v7530, %v7843
          %v7877 = vmul.f32 %v7531, %v7843
          %v7878 = vmul.f32 %v7532, %v7843
          %v7879 = vmul.f32 %v7533, %v7843
          %v7880 = vmul.f32 %v7534, %v7843
          %v7881 = vmul.f32 %v7535, %v7843
          %v7882 = vmul.f32 %v7536, %v7843
          %v7883 = vmul.f32 %v7537, %v7843
          %v7884 = vmul.f32 %v7538, %v7843
          %v7885 = vmul.f32 %v7539, %v7843
          %v7886 = vmul.f32 %v7540, %v7843
          %v7887 = vmul.f32 %v7541, %v7843
          %v7888 = vmul.f32 %v7542, %v7843
          %v7889 = vmul.f32 %v7543, %v7843
          %v7890 = vmul.f32 %v7544, %v7843
          %v7891 = vmul.f32 %v7545, %v7843
          %v7892 = vmul.f32 %v7546, %v7843
          %v7893 = vmul.f32 %v7547, %v7843
          %v7894 = vmul.f32 %v7548, %v7843
          %v7895 = vmul.f32 %v7549, %v7843
          %v7896 = vmul.f32 %v7550, %v7843
          %v7897 = vmul.f32 %v7551, %v7843
          %v7898 = vmul.f32 %v7552, %v7843
          %v7899 = vmul.f32 %v7553, %v7843
          %v7900 = vmul.f32 %v7554, %v7843
          %v7901 = vmul.f32 %v7555, %v7843
          %v7902 = vmul.f32 %v7556, %v7843
          %v7903 = vmul.f32 %v7557, %v7843
          %v7904 = vmul.f32 %v7558, %v7843
          %v7905 = vmul.f32 %v7559, %v7843
          %v7906 = vmul.f32 %v7560, %v7843
          %v7907 = vmul.f32 %v7561, %v7843
          %v7908 = vlaneseq
          %v7909 = vshrl.u32 %v7908, 7
          %v7910 = vsub.s32 0, %v7909
          %v7911 = vrot.slane %v7839, %v7910
          %v7912 = vadd.f32 %v7844, %v7911
          %v7913 = vadd.f32 %v7845, %v7911
          %v7914 = vadd.f32 %v7846, %v7911
          %v7915 = vadd.f32 %v7847, %v7911
          %v7916 = vadd.f32 %v7848, %v7911
          %v7917 = vadd.f32 %v7849, %v7911
          %v7918 = vadd.f32 %v7850, %v7911
          %v7919 = vadd.f32 %v7851, %v7911
          %v7920 = vadd.f32 %v7852, %v7911
          %v7921 = vadd.f32 %v7853, %v7911
          %v7922 = vadd.f32 %v7854, %v7911
          %v7923 = vadd.f32 %v7855, %v7911
          %v7924 = vadd.f32 %v7856, %v7911
          %v7925 = vadd.f32 %v7857, %v7911
          %v7926 = vadd.f32 %v7858, %v7911
          %v7927 = vadd.f32 %v7859, %v7911
          %v7928 = vadd.f32 %v7860, %v7911
          %v7929 = vadd.f32 %v7861, %v7911
          %v7930 = vadd.f32 %v7862, %v7911
          %v7931 = vadd.f32 %v7863, %v7911
          %v7932 = vadd.f32 %v7864, %v7911
          %v7933 = vadd.f32 %v7865, %v7911
          %v7934 = vadd.f32 %v7866, %v7911
          %v7935 = vadd.f32 %v7867, %v7911
          %v7936 = vadd.f32 %v7868, %v7911
          %v7937 = vadd.f32 %v7869, %v7911
          %v7938 = vadd.f32 %v7870, %v7911
          %v7939 = vadd.f32 %v7871, %v7911
          %v7940 = vadd.f32 %v7872, %v7911
          %v7941 = vadd.f32 %v7873, %v7911
          %v7942 = vadd.f32 %v7874, %v7911
          %v7943 = vadd.f32 %v7875, %v7911
          %v7944 = vadd.f32 %v7876, %v7911
          %v7945 = vadd.f32 %v7877, %v7911
          %v7946 = vadd.f32 %v7878, %v7911
          %v7947 = vadd.f32 %v7879, %v7911
          %v7948 = vadd.f32 %v7880, %v7911
          %v7949 = vadd.f32 %v7881, %v7911
          %v7950 = vadd.f32 %v7882, %v7911
          %v7951 = vadd.f32 %v7883, %v7911
          %v7952 = vadd.f32 %v7884, %v7911
          %v7953 = vadd.f32 %v7885, %v7911
          %v7954 = vadd.f32 %v7886, %v7911
          %v7955 = vadd.f32 %v7887, %v7911
          %v7956 = vadd.f32 %v7888, %v7911
          %v7957 = vadd.f32 %v7889, %v7911
          %v7958 = vadd.f32 %v7890, %v7911
          %v7959 = vadd.f32 %v7891, %v7911
          %v7960 = vadd.f32 %v7892, %v7911
          %v7961 = vadd.f32 %v7893, %v7911
          %v7962 = vadd.f32 %v7894, %v7911
          %v7963 = vadd.f32 %v7895, %v7911
          %v7964 = vadd.f32 %v7896, %v7911
          %v7965 = vadd.f32 %v7897, %v7911
          %v7966 = vadd.f32 %v7898, %v7911
          %v7967 = vadd.f32 %v7899, %v7911
          %v7968 = vadd.f32 %v7900, %v7911
          %v7969 = vadd.f32 %v7901, %v7911
          %v7970 = vadd.f32 %v7902, %v7911
          %v7971 = vadd.f32 %v7903, %v7911
          %v7972 = vadd.f32 %v7904, %v7911
          %v7973 = vadd.f32 %v7905, %v7911
          %v7974 = vadd.f32 %v7906, %v7911
          %v7975 = vadd.f32 %v7907, %v7911
          %v7976 = vpack.c.bf16 %v7913, %v7912
          %v7977 = vpack.c.bf16 %v7915, %v7914
          %v7978 = vpack.c.bf16 %v7917, %v7916
          %v7979 = vpack.c.bf16 %v7919, %v7918
          %v7980 = vpack.c.bf16 %v7921, %v7920
          %v7981 = vpack.c.bf16 %v7923, %v7922
          %v7982 = vpack.c.bf16 %v7925, %v7924
          %v7983 = vpack.c.bf16 %v7927, %v7926
          %v7984 = vpack.c.bf16 %v7929, %v7928
          %v7985 = vpack.c.bf16 %v7931, %v7930
          %v7986 = vpack.c.bf16 %v7933, %v7932
          %v7987 = vpack.c.bf16 %v7935, %v7934
          %v7988 = vpack.c.bf16 %v7937, %v7936
          %v7989 = vpack.c.bf16 %v7939, %v7938
          %v7990 = vpack.c.bf16 %v7941, %v7940
          %v7991 = vpack.c.bf16 %v7943, %v7942
          %v7992 = vpack.c.bf16 %v7945, %v7944
          %v7993 = vpack.c.bf16 %v7947, %v7946
          %v7994 = vpack.c.bf16 %v7949, %v7948
          %v7995 = vpack.c.bf16 %v7951, %v7950
          %v7996 = vpack.c.bf16 %v7953, %v7952
          %v7997 = vpack.c.bf16 %v7955, %v7954
          %v7998 = vpack.c.bf16 %v7957, %v7956
          %v7999 = vpack.c.bf16 %v7959, %v7958
          %v8000 = vpack.c.bf16 %v7961, %v7960
          %v8001 = vpack.c.bf16 %v7963, %v7962
          %v8002 = vpack.c.bf16 %v7965, %v7964
          %v8003 = vpack.c.bf16 %v7967, %v7966
          %v8004 = vpack.c.bf16 %v7969, %v7968
          %v8005 = vpack.c.bf16 %v7971, %v7970
          %v8006 = vpack.c.bf16 %v7973, %v7972
          %v8007 = vpack.c.bf16 %v7975, %v7974
          %v8008 = vld [vmem:[%s6 + $0x8] sm:$0xf]
          %v8009 = vld [vmem:[%s6 + $0x14] sm:$0xf]
          %v8010 = vld [vmem:[%s6 + $0x20] sm:$0xf]
          %v8011 = vld [vmem:[%s6 + $0x2c] sm:$0xf]
          %v8012 = vld [vmem:[%s6 + $0x38] sm:$0xf]
          %v8013 = vld [vmem:[%s6 + $0x44] sm:$0xf]
          %v8014 = vld [vmem:[%s6 + $0x50] sm:$0xf]
          %v8015 = vld [vmem:[%s6 + $0x5c] sm:$0xf]
          %v8016 = vld [vmem:[%s6 + $0x68] sm:$0xf]
          %v8017 = vld [vmem:[%s6 + $0x74] sm:$0xf]
          %v8018 = vld [vmem:[%s6 + $0x80] sm:$0xf]
          %v8019 = vld [vmem:[%s6 + $0x8c] sm:$0xf]
          %v8020 = vld [vmem:[%s6 + $0x98] sm:$0xf]
          %v8021 = vld [vmem:[%s6 + $0xa4] sm:$0xf]
          %v8022 = vld [vmem:[%s6 + $0xb0] sm:$0xf]
          %v8023 = vld [vmem:[%s6 + $0xbc] sm:$0xf]
          %v8024 = vlaneseq
          %v8025 = vshrl.u32 %v8024, 7
          %v8026 = vsub.s32 2, %v8025
          %v8027 = vrot.slane %v490, %v8026
          %v8044 = vunpack.c.l.b16 %v8008
          %v8045 = vunpack.c.l.b16 %v8009
          %v8046 = vunpack.c.l.b16 %v8010
          %v8047 = vunpack.c.l.b16 %v8011
          %v8048 = vunpack.c.l.b16 %v8012
          %v8049 = vunpack.c.l.b16 %v8013
          %v8050 = vunpack.c.l.b16 %v8014
          %v8051 = vunpack.c.l.b16 %v8015
          %v8052 = vunpack.c.l.b16 %v8016
          %v8053 = vunpack.c.l.b16 %v8017
          %v8054 = vunpack.c.l.b16 %v8018
          %v8055 = vunpack.c.l.b16 %v8019
          %v8056 = vunpack.c.l.b16 %v8020
          %v8057 = vunpack.c.l.b16 %v8021
          %v8058 = vunpack.c.l.b16 %v8022
          %v8059 = vunpack.c.l.b16 %v8023
          %v8060 = vpack.c.b16 %v8045, %v8044
          %v8061 = vpack.c.b16 %v8047, %v8046
          %v8062 = vpack.c.b16 %v8049, %v8048
          %v8063 = vpack.c.b16 %v8051, %v8050
          %v8064 = vpack.c.b16 %v8053, %v8052
          %v8065 = vpack.c.b16 %v8055, %v8054
          %v8066 = vpack.c.b16 %v8057, %v8056
          %v8067 = vpack.c.b16 %v8059, %v8058
          %8076 = vmatprep.subr.bf16.mxu0 0
          %8077 = vmatpush1.bf16.msra.mxu0 %v8060
          %8078 = vmatprep.subr.bf16.mxu0 0
          %8079 = vmatpush1.bf16.msra.mxu0 %v8061
          %8080 = vmatprep.subr.bf16.mxu0 0
          %8081 = vmatpush1.bf16.msra.mxu0 %v8062
          %8082 = vmatprep.subr.bf16.mxu0 0
          %8083 = vmatpush1.bf16.msra.mxu0 %v8063
          %8084 = vmatprep.subr.bf16.mxu0 0
          %8085 = vmatpush1.bf16.msra.mxu0 %v8064
          %8086 = vmatprep.subr.bf16.mxu0 0
          %8087 = vmatpush1.bf16.msra.mxu0 %v8065
          %8088 = vmatprep.subr.bf16.mxu0 0
          %8089 = vmatpush1.bf16.msra.mxu0 %v8066
          %8090 = vmatprep.subr.bf16.mxu0 0
          %8091 = vmatpush1.bf16.msra.mxu0 %v8067
          %8092 = vmatprep.subr.bf16.mxu0 0
          %8093 = vmatpush1.bf16.msra.mxu0 0
          %8094 = vmatprep.subr.bf16.mxu0 0
          %8095 = vmatpush1.bf16.msra.mxu0 0
          %8096 = vmatprep.subr.bf16.mxu0 0
          %8097 = vmatpush1.bf16.msra.mxu0 0
          %8098 = vmatprep.subr.bf16.mxu0 0
          %8099 = vmatpush1.bf16.msra.mxu0 0
          %8100 = vmatprep.subr.bf16.mxu0 0
          %8101 = vmatpush1.bf16.msra.mxu0 0
          %8102 = vmatprep.subr.bf16.mxu0 0
          %8103 = vmatpush1.bf16.msra.mxu0 0
          %8104 = vmatprep.subr.bf16.mxu0 0
          %8105 = vmatpush1.bf16.msra.mxu0 0
          %8106 = vmatprep.subr.bf16.mxu0 0
          %8107 = vmatpush1.bf16.msra.mxu0 0
          %8108 = vmatprep.mubr.bf16.mxu0 0
          %8109 = vmatmul.mubr.bf16.gmra.mrb[0].mxu0 %v7976
          %v8110 = vpop.f32.mrb[0].mxu0
          %v8111 = vadd.f32 %v8027, %v8110
          %v8112 = vpop.f32.mrb[0].mxu0
          %v8113 = vpop.f32.mrb[0].mxu0
          %v8114 = vadd.f32 %v8027, %v8113
          %v8115 = vpop.f32.mrb[0].mxu0
          %8116 = vmatprep.mubr.bf16.mxu0 0
          %8117 = vmatmul.mubr.bf16.gmra.mrb[0].mxu0 %v7977
          %v8118 = vpop.f32.mrb[0].mxu0
          %v8119 = vadd.f32 %v8027, %v8118
          %v8120 = vpop.f32.mrb[0].mxu0
          %v8121 = vpop.f32.mrb[0].mxu0
          %v8122 = vadd.f32 %v8027, %v8121
          %v8123 = vpop.f32.mrb[0].mxu0
          %8124 = vmatprep.mubr.bf16.mxu0 0
          %8125 = vmatmul.mubr.bf16.gmra.mrb[0].mxu0 %v7978
          %v8126 = vpop.f32.mrb[0].mxu0
          %v8127 = vadd.f32 %v8027, %v8126
          %v8128 = vpop.f32.mrb[0].mxu0
          %v8129 = vpop.f32.mrb[0].mxu0
          %v8130 = vadd.f32 %v8027, %v8129
          %v8131 = vpop.f32.mrb[0].mxu0
          %8132 = vmatprep.mubr.bf16.mxu0 0
          %8133 = vmatmul.mubr.bf16.gmra.mrb[0].mxu0 %v7979
          %v8134 = vpop.f32.mrb[0].mxu0
          %v8135 = vadd.f32 %v8027, %v8134
          %v8136 = vpop.f32.mrb[0].mxu0
          %v8137 = vpop.f32.mrb[0].mxu0
          %v8138 = vadd.f32 %v8027, %v8137
          %v8139 = vpop.f32.mrb[0].mxu0
          %8140 = vmatprep.mubr.bf16.mxu0 0
          %8141 = vmatmul.mubr.bf16.gmra.mrb[0].mxu0 %v7980
          %v8142 = vpop.f32.mrb[0].mxu0
          %v8143 = vadd.f32 %v8027, %v8142
          %v8144 = vpop.f32.mrb[0].mxu0
          %v8145 = vpop.f32.mrb[0].mxu0
          %v8146 = vadd.f32 %v8027, %v8145
          %v8147 = vpop.f32.mrb[0].mxu0
          %8148 = vmatprep.mubr.bf16.mxu0 0
          %8149 = vmatmul.mubr.bf16.gmra.mrb[0].mxu0 %v7981
          %v8150 = vpop.f32.mrb[0].mxu0
          %v8151 = vadd.f32 %v8027, %v8150
          %v8152 = vpop.f32.mrb[0].mxu0
          %v8153 = vpop.f32.mrb[0].mxu0
          %v8154 = vadd.f32 %v8027, %v8153
          %v8155 = vpop.f32.mrb[0].mxu0
          %8156 = vmatprep.mubr.bf16.mxu0 0
          %8157 = vmatmul.mubr.bf16.gmra.mrb[0].mxu0 %v7982
          %v8158 = vpop.f32.mrb[0].mxu0
          %v8159 = vadd.f32 %v8027, %v8158
          %v8160 = vpop.f32.mrb[0].mxu0
          %v8161 = vpop.f32.mrb[0].mxu0
          %v8162 = vadd.f32 %v8027, %v8161
          %v8163 = vpop.f32.mrb[0].mxu0
          %8164 = vmatprep.mubr.bf16.mxu0 0
          %8165 = vmatmul.mubr.bf16.gmra.mrb[0].mxu0 %v7983
          %v8166 = vpop.f32.mrb[0].mxu0
          %v8167 = vadd.f32 %v8027, %v8166
          %v8168 = vpop.f32.mrb[0].mxu0
          %v8169 = vpop.f32.mrb[0].mxu0
          %v8170 = vadd.f32 %v8027, %v8169
          %v8171 = vpop.f32.mrb[0].mxu0
          %8172 = vmatprep.mubr.bf16.mxu0 0
          %8173 = vmatmul.mubr.bf16.gmra.mrb[0].mxu0 %v7984
          %v8174 = vpop.f32.mrb[0].mxu0
          %v8175 = vadd.f32 %v8027, %v8174
          %v8176 = vpop.f32.mrb[0].mxu0
          %v8177 = vpop.f32.mrb[0].mxu0
          %v8178 = vadd.f32 %v8027, %v8177
          %v8179 = vpop.f32.mrb[0].mxu0
          %8180 = vmatprep.mubr.bf16.mxu0 0
          %8181 = vmatmul.mubr.bf16.gmra.mrb[0].mxu0 %v7985
          %v8182 = vpop.f32.mrb[0].mxu0
          %v8183 = vadd.f32 %v8027, %v8182
          %v8184 = vpop.f32.mrb[0].mxu0
          %v8185 = vpop.f32.mrb[0].mxu0
          %v8186 = vadd.f32 %v8027, %v8185
          %v8187 = vpop.f32.mrb[0].mxu0
          %8188 = vmatprep.mubr.bf16.mxu0 0
          %8189 = vmatmul.mubr.bf16.gmra.mrb[0].mxu0 %v7986
          %v8190 = vpop.f32.mrb[0].mxu0
          %v8191 = vadd.f32 %v8027, %v8190
          %v8192 = vpop.f32.mrb[0].mxu0
          %v8193 = vpop.f32.mrb[0].mxu0
          %v8194 = vadd.f32 %v8027, %v8193
          %v8195 = vpop.f32.mrb[0].mxu0
          %8196 = vmatprep.mubr.bf16.mxu0 0
          %8197 = vmatmul.mubr.bf16.gmra.mrb[0].mxu0 %v7987
          %v8198 = vpop.f32.mrb[0].mxu0
          %v8199 = vadd.f32 %v8027, %v8198
          %v8200 = vpop.f32.mrb[0].mxu0
          %v8201 = vpop.f32.mrb[0].mxu0
          %v8202 = vadd.f32 %v8027, %v8201
          %v8203 = vpop.f32.mrb[0].mxu0
          %8204 = vmatprep.mubr.bf16.mxu0 0
          %8205 = vmatmul.mubr.bf16.gmra.mrb[0].mxu0 %v7988
          %v8206 = vpop.f32.mrb[0].mxu0
          %v8207 = vadd.f32 %v8027, %v8206
          %v8208 = vpop.f32.mrb[0].mxu0
          %v8209 = vpop.f32.mrb[0].mxu0
          %v8210 = vadd.f32 %v8027, %v8209
          %v8211 = vpop.f32.mrb[0].mxu0
          %8212 = vmatprep.mubr.bf16.mxu0 0
          %8213 = vmatmul.mubr.bf16.gmra.mrb[0].mxu0 %v7989
          %v8214 = vpop.f32.mrb[0].mxu0
          %v8215 = vadd.f32 %v8027, %v8214
          %v8216 = vpop.f32.mrb[0].mxu0
          %v8217 = vpop.f32.mrb[0].mxu0
          %v8218 = vadd.f32 %v8027, %v8217
          %v8219 = vpop.f32.mrb[0].mxu0
          %8220 = vmatprep.mubr.bf16.mxu0 0
          %8221 = vmatmul.mubr.bf16.gmra.mrb[0].mxu0 %v7990
          %v8222 = vpop.f32.mrb[0].mxu0
          %v8223 = vadd.f32 %v8027, %v8222
          %v8224 = vpop.f32.mrb[0].mxu0
          %v8225 = vpop.f32.mrb[0].mxu0
          %v8226 = vadd.f32 %v8027, %v8225
          %v8227 = vpop.f32.mrb[0].mxu0
          %8228 = vmatprep.mubr.bf16.mxu0 0
          %8229 = vmatmul.mubr.bf16.gmra.mrb[0].mxu0 %v7991
          %v8230 = vpop.f32.mrb[0].mxu0
          %v8231 = vadd.f32 %v8027, %v8230
          %v8232 = vpop.f32.mrb[0].mxu0
          %v8233 = vpop.f32.mrb[0].mxu0
          %v8234 = vadd.f32 %v8027, %v8233
          %v8235 = vpop.f32.mrb[0].mxu0
          %8236 = vmatprep.mubr.bf16.mxu0 0
          %8237 = vmatmul.mubr.bf16.gmra.mrb[0].mxu0 %v7992
          %v8238 = vpop.f32.mrb[0].mxu0
          %v8239 = vadd.f32 %v8027, %v8238
          %v8240 = vpop.f32.mrb[0].mxu0
          %v8241 = vpop.f32.mrb[0].mxu0
          %v8242 = vadd.f32 %v8027, %v8241
          %v8243 = vpop.f32.mrb[0].mxu0
          %8244 = vmatprep.mubr.bf16.mxu0 0
          %8245 = vmatmul.mubr.bf16.gmra.mrb[0].mxu0 %v7993
          %v8246 = vpop.f32.mrb[0].mxu0
          %v8247 = vadd.f32 %v8027, %v8246
          %v8248 = vpop.f32.mrb[0].mxu0
          %v8249 = vpop.f32.mrb[0].mxu0
          %v8250 = vadd.f32 %v8027, %v8249
          %v8251 = vpop.f32.mrb[0].mxu0
          %8252 = vmatprep.mubr.bf16.mxu0 0
          %8253 = vmatmul.mubr.bf16.gmra.mrb[0].mxu0 %v7994
          %v8254 = vpop.f32.mrb[0].mxu0
          %v8255 = vadd.f32 %v8027, %v8254
          %v8256 = vpop.f32.mrb[0].mxu0
          %v8257 = vpop.f32.mrb[0].mxu0
          %v8258 = vadd.f32 %v8027, %v8257
          %v8259 = vpop.f32.mrb[0].mxu0
          %8260 = vmatprep.mubr.bf16.mxu0 0
          %8261 = vmatmul.mubr.bf16.gmra.mrb[0].mxu0 %v7995
          %v8262 = vpop.f32.mrb[0].mxu0
          %v8263 = vadd.f32 %v8027, %v8262
          %v8264 = vpop.f32.mrb[0].mxu0
          %v8265 = vpop.f32.mrb[0].mxu0
          %v8266 = vadd.f32 %v8027, %v8265
          %v8267 = vpop.f32.mrb[0].mxu0
          %8268 = vmatprep.mubr.bf16.mxu0 0
          %8269 = vmatmul.mubr.bf16.gmra.mrb[0].mxu0 %v7996
          %v8270 = vpop.f32.mrb[0].mxu0
          %v8271 = vadd.f32 %v8027, %v8270
          %v8272 = vpop.f32.mrb[0].mxu0
          %v8273 = vpop.f32.mrb[0].mxu0
          %v8274 = vadd.f32 %v8027, %v8273
          %v8275 = vpop.f32.mrb[0].mxu0
          %8276 = vmatprep.mubr.bf16.mxu0 0
          %8277 = vmatmul.mubr.bf16.gmra.mrb[0].mxu0 %v7997
          %v8278 = vpop.f32.mrb[0].mxu0
          %v8279 = vadd.f32 %v8027, %v8278
          %v8280 = vpop.f32.mrb[0].mxu0
          %v8281 = vpop.f32.mrb[0].mxu0
          %v8282 = vadd.f32 %v8027, %v8281
          %v8283 = vpop.f32.mrb[0].mxu0
          %8284 = vmatprep.mubr.bf16.mxu0 0
          %8285 = vmatmul.mubr.bf16.gmra.mrb[0].mxu0 %v7998
          %v8286 = vpop.f32.mrb[0].mxu0
          %v8287 = vadd.f32 %v8027, %v8286
          %v8288 = vpop.f32.mrb[0].mxu0
          %v8289 = vpop.f32.mrb[0].mxu0
          %v8290 = vadd.f32 %v8027, %v8289
          %v8291 = vpop.f32.mrb[0].mxu0
          %8292 = vmatprep.mubr.bf16.mxu0 0
          %8293 = vmatmul.mubr.bf16.gmra.mrb[0].mxu0 %v7999
          %v8294 = vpop.f32.mrb[0].mxu0
          %v8295 = vadd.f32 %v8027, %v8294
          %v8296 = vpop.f32.mrb[0].mxu0
          %v8297 = vpop.f32.mrb[0].mxu0
          %v8298 = vadd.f32 %v8027, %v8297
          %v8299 = vpop.f32.mrb[0].mxu0
          %8300 = vmatprep.mubr.bf16.mxu0 0
          %8301 = vmatmul.mubr.bf16.gmra.mrb[0].mxu0 %v8000
          %v8302 = vpop.f32.mrb[0].mxu0
          %v8303 = vadd.f32 %v8027, %v8302
          %v8304 = vpop.f32.mrb[0].mxu0
          %v8305 = vpop.f32.mrb[0].mxu0
          %v8306 = vadd.f32 %v8027, %v8305
          %v8307 = vpop.f32.mrb[0].mxu0
          %8308 = vmatprep.mubr.bf16.mxu0 0
          %8309 = vmatmul.mubr.bf16.gmra.mrb[0].mxu0 %v8001
          %v8310 = vpop.f32.mrb[0].mxu0
          %v8311 = vadd.f32 %v8027, %v8310
          %v8312 = vpop.f32.mrb[0].mxu0
          %v8313 = vpop.f32.mrb[0].mxu0
          %v8314 = vadd.f32 %v8027, %v8313
          %v8315 = vpop.f32.mrb[0].mxu0
          %8316 = vmatprep.mubr.bf16.mxu0 0
          %8317 = vmatmul.mubr.bf16.gmra.mrb[0].mxu0 %v8002
          %v8318 = vpop.f32.mrb[0].mxu0
          %v8319 = vadd.f32 %v8027, %v8318
          %v8320 = vpop.f32.mrb[0].mxu0
          %v8321 = vpop.f32.mrb[0].mxu0
          %v8322 = vadd.f32 %v8027, %v8321
          %v8323 = vpop.f32.mrb[0].mxu0
          %8324 = vmatprep.mubr.bf16.mxu0 0
          %8325 = vmatmul.mubr.bf16.gmra.mrb[0].mxu0 %v8003
          %v8326 = vpop.f32.mrb[0].mxu0
          %v8327 = vadd.f32 %v8027, %v8326
          %v8328 = vpop.f32.mrb[0].mxu0
          %v8329 = vpop.f32.mrb[0].mxu0
          %v8330 = vadd.f32 %v8027, %v8329
          %v8331 = vpop.f32.mrb[0].mxu0
          %8332 = vmatprep.mubr.bf16.mxu0 0
          %8333 = vmatmul.mubr.bf16.gmra.mrb[0].mxu0 %v8004
          %v8334 = vpop.f32.mrb[0].mxu0
          %v8335 = vadd.f32 %v8027, %v8334
          %v8336 = vpop.f32.mrb[0].mxu0
          %v8337 = vpop.f32.mrb[0].mxu0
          %v8338 = vadd.f32 %v8027, %v8337
          %v8339 = vpop.f32.mrb[0].mxu0
          %8340 = vmatprep.mubr.bf16.mxu0 0
          %8341 = vmatmul.mubr.bf16.gmra.mrb[0].mxu0 %v8005
          %v8342 = vpop.f32.mrb[0].mxu0
          %v8343 = vadd.f32 %v8027, %v8342
          %v8344 = vpop.f32.mrb[0].mxu0
          %v8345 = vpop.f32.mrb[0].mxu0
          %v8346 = vadd.f32 %v8027, %v8345
          %v8347 = vpop.f32.mrb[0].mxu0
          %8348 = vmatprep.mubr.bf16.mxu0 0
          %8349 = vmatmul.mubr.bf16.gmra.mrb[0].mxu0 %v8006
          %v8350 = vpop.f32.mrb[0].mxu0
          %v8351 = vadd.f32 %v8027, %v8350
          %v8352 = vpop.f32.mrb[0].mxu0
          %v8353 = vpop.f32.mrb[0].mxu0
          %v8354 = vadd.f32 %v8027, %v8353
          %v8355 = vpop.f32.mrb[0].mxu0
          %8356 = vmatprep.mubr.bf16.mxu0 0
          %8357 = vmatmul.mubr.bf16.gmra.mrb[0].mxu0 %v8007
          %v8358 = vpop.f32.mrb[0].mxu0
          %v8359 = vadd.f32 %v8027, %v8358
          %v8360 = vpop.f32.mrb[0].mxu0
          %v8361 = vpop.f32.mrb[0].mxu0
          %v8362 = vadd.f32 %v8027, %v8361
          %v8363 = vpop.f32.mrb[0].mxu0
          %8364 = vdwg.mxu0
          %8429 = vrot.lane.b32.xlu0 %v5922, 64
          %v8430 = vpop.permute.xlu0 %8429
          %8431 = vrot.lane.b32.xlu0 %v5923, 64
          %v8432 = vpop.permute.xlu0 %8431
          %8433 = vrot.lane.b32.xlu0 %v5924, 64
          %v8434 = vpop.permute.xlu0 %8433
          %8435 = vrot.lane.b32.xlu0 %v5925, 64
          %v8436 = vpop.permute.xlu0 %8435
          %8437 = vrot.lane.b32.xlu0 %v5926, 64
          %v8438 = vpop.permute.xlu0 %8437
          %8439 = vrot.lane.b32.xlu0 %v5927, 64
          %v8440 = vpop.permute.xlu0 %8439
          %8441 = vrot.lane.b32.xlu0 %v5928, 64
          %v8442 = vpop.permute.xlu0 %8441
          %8443 = vrot.lane.b32.xlu0 %v5929, 64
          %v8444 = vpop.permute.xlu0 %8443
          %8445 = vrot.lane.b32.xlu0 %v5930, 64
          %v8446 = vpop.permute.xlu0 %8445
          %8447 = vrot.lane.b32.xlu0 %v5931, 64
          %v8448 = vpop.permute.xlu0 %8447
          %8449 = vrot.lane.b32.xlu0 %v5932, 64
          %v8450 = vpop.permute.xlu0 %8449
          %8451 = vrot.lane.b32.xlu0 %v5933, 64
          %v8452 = vpop.permute.xlu0 %8451
          %8453 = vrot.lane.b32.xlu0 %v5934, 64
          %v8454 = vpop.permute.xlu0 %8453
          %8455 = vrot.lane.b32.xlu0 %v5935, 64
          %v8456 = vpop.permute.xlu0 %8455
          %8457 = vrot.lane.b32.xlu0 %v5936, 64
          %v8458 = vpop.permute.xlu0 %8457
          %8459 = vrot.lane.b32.xlu0 %v5937, 64
          %v8460 = vpop.permute.xlu0 %8459
          %8461 = vrot.lane.b32.xlu0 %v5938, 64
          %v8462 = vpop.permute.xlu0 %8461
          %8463 = vrot.lane.b32.xlu0 %v5939, 64
          %v8464 = vpop.permute.xlu0 %8463
          %8465 = vrot.lane.b32.xlu0 %v5940, 64
          %v8466 = vpop.permute.xlu0 %8465
          %8467 = vrot.lane.b32.xlu0 %v5941, 64
          %v8468 = vpop.permute.xlu0 %8467
          %8469 = vrot.lane.b32.xlu0 %v5942, 64
          %v8470 = vpop.permute.xlu0 %8469
          %8471 = vrot.lane.b32.xlu0 %v5943, 64
          %v8472 = vpop.permute.xlu0 %8471
          %8473 = vrot.lane.b32.xlu0 %v5944, 64
          %v8474 = vpop.permute.xlu0 %8473
          %8475 = vrot.lane.b32.xlu0 %v5945, 64
          %v8476 = vpop.permute.xlu0 %8475
          %8477 = vrot.lane.b32.xlu0 %v5946, 64
          %v8478 = vpop.permute.xlu0 %8477
          %8479 = vrot.lane.b32.xlu0 %v5947, 64
          %v8480 = vpop.permute.xlu0 %8479
          %8481 = vrot.lane.b32.xlu0 %v5948, 64
          %v8482 = vpop.permute.xlu0 %8481
          %8483 = vrot.lane.b32.xlu0 %v5949, 64
          %v8484 = vpop.permute.xlu0 %8483
          %8485 = vrot.lane.b32.xlu0 %v5950, 64
          %v8486 = vpop.permute.xlu0 %8485
          %8487 = vrot.lane.b32.xlu0 %v5951, 64
          %v8488 = vpop.permute.xlu0 %8487
          %8489 = vrot.lane.b32.xlu0 %v5952, 64
          %v8490 = vpop.permute.xlu0 %8489
          %8491 = vrot.lane.b32.xlu0 %v5953, 64
          %v8492 = vpop.permute.xlu0 %8491
          %8493 = vrot.lane.b32.xlu0 %v5954, 64
          %v8494 = vpop.permute.xlu0 %8493
          %8495 = vrot.lane.b32.xlu0 %v5955, 64
          %v8496 = vpop.permute.xlu0 %8495
          %8497 = vrot.lane.b32.xlu0 %v5956, 64
          %v8498 = vpop.permute.xlu0 %8497
          %8499 = vrot.lane.b32.xlu0 %v5957, 64
          %v8500 = vpop.permute.xlu0 %8499
          %8501 = vrot.lane.b32.xlu0 %v5958, 64
          %v8502 = vpop.permute.xlu0 %8501
          %8503 = vrot.lane.b32.xlu0 %v5959, 64
          %v8504 = vpop.permute.xlu0 %8503
          %8505 = vrot.lane.b32.xlu0 %v5960, 64
          %v8506 = vpop.permute.xlu0 %8505
          %8507 = vrot.lane.b32.xlu0 %v5961, 64
          %v8508 = vpop.permute.xlu0 %8507
          %8509 = vrot.lane.b32.xlu0 %v5962, 64
          %v8510 = vpop.permute.xlu0 %8509
          %8511 = vrot.lane.b32.xlu0 %v5963, 64
          %v8512 = vpop.permute.xlu0 %8511
          %8513 = vrot.lane.b32.xlu0 %v5964, 64
          %v8514 = vpop.permute.xlu0 %8513
          %8515 = vrot.lane.b32.xlu0 %v5965, 64
          %v8516 = vpop.permute.xlu0 %8515
          %8517 = vrot.lane.b32.xlu0 %v5966, 64
          %v8518 = vpop.permute.xlu0 %8517
          %8519 = vrot.lane.b32.xlu0 %v5967, 64
          %v8520 = vpop.permute.xlu0 %8519
          %8521 = vrot.lane.b32.xlu0 %v5968, 64
          %v8522 = vpop.permute.xlu0 %8521
          %8523 = vrot.lane.b32.xlu0 %v5969, 64
          %v8524 = vpop.permute.xlu0 %8523
          %8525 = vrot.lane.b32.xlu0 %v5970, 64
          %v8526 = vpop.permute.xlu0 %8525
          %8527 = vrot.lane.b32.xlu0 %v5971, 64
          %v8528 = vpop.permute.xlu0 %8527
          %8529 = vrot.lane.b32.xlu0 %v5972, 64
          %v8530 = vpop.permute.xlu0 %8529
          %8531 = vrot.lane.b32.xlu0 %v5973, 64
          %v8532 = vpop.permute.xlu0 %8531
          %8533 = vrot.lane.b32.xlu0 %v5974, 64
          %v8534 = vpop.permute.xlu0 %8533
          %8535 = vrot.lane.b32.xlu0 %v5975, 64
          %v8536 = vpop.permute.xlu0 %8535
          %8537 = vrot.lane.b32.xlu0 %v5976, 64
          %v8538 = vpop.permute.xlu0 %8537
          %8539 = vrot.lane.b32.xlu0 %v5977, 64
          %v8540 = vpop.permute.xlu0 %8539
          %8541 = vrot.lane.b32.xlu0 %v5978, 64
          %v8542 = vpop.permute.xlu0 %8541
          %8543 = vrot.lane.b32.xlu0 %v5979, 64
          %v8544 = vpop.permute.xlu0 %8543
          %8545 = vrot.lane.b32.xlu0 %v5980, 64
          %v8546 = vpop.permute.xlu0 %8545
          %8547 = vrot.lane.b32.xlu0 %v5981, 64
          %v8548 = vpop.permute.xlu0 %8547
          %8549 = vrot.lane.b32.xlu0 %v5982, 64
          %v8550 = vpop.permute.xlu0 %8549
          %8551 = vrot.lane.b32.xlu0 %v5983, 64
          %v8552 = vpop.permute.xlu0 %8551
          %8553 = vrot.lane.b32.xlu0 %v5984, 64
          %v8554 = vpop.permute.xlu0 %8553
          %8555 = vrot.lane.b32.xlu0 %v5985, 64
          %v8556 = vpop.permute.xlu0 %8555
          %v8621 = vadd.f32 %v8111, %v8430
          %v8622 = vadd.f32 %v8114, %v8432
          %v8623 = vadd.f32 %v8119, %v8434
          %v8624 = vadd.f32 %v8122, %v8436
          %v8625 = vadd.f32 %v8127, %v8438
          %v8626 = vadd.f32 %v8130, %v8440
          %v8627 = vadd.f32 %v8135, %v8442
          %v8628 = vadd.f32 %v8138, %v8444
          %v8629 = vadd.f32 %v8143, %v8446
          %v8630 = vadd.f32 %v8146, %v8448
          %v8631 = vadd.f32 %v8151, %v8450
          %v8632 = vadd.f32 %v8154, %v8452
          %v8633 = vadd.f32 %v8159, %v8454
          %v8634 = vadd.f32 %v8162, %v8456
          %v8635 = vadd.f32 %v8167, %v8458
          %v8636 = vadd.f32 %v8170, %v8460
          %v8637 = vadd.f32 %v8175, %v8462
          %v8638 = vadd.f32 %v8178, %v8464
          %v8639 = vadd.f32 %v8183, %v8466
          %v8640 = vadd.f32 %v8186, %v8468
          %v8641 = vadd.f32 %v8191, %v8470
          %v8642 = vadd.f32 %v8194, %v8472
          %v8643 = vadd.f32 %v8199, %v8474
          %v8644 = vadd.f32 %v8202, %v8476
          %v8645 = vadd.f32 %v8207, %v8478
          %v8646 = vadd.f32 %v8210, %v8480
          %v8647 = vadd.f32 %v8215, %v8482
          %v8648 = vadd.f32 %v8218, %v8484
          %v8649 = vadd.f32 %v8223, %v8486
          %v8650 = vadd.f32 %v8226, %v8488
          %v8651 = vadd.f32 %v8231, %v8490
          %v8652 = vadd.f32 %v8234, %v8492
          %v8653 = vadd.f32 %v8239, %v8494
          %v8654 = vadd.f32 %v8242, %v8496
          %v8655 = vadd.f32 %v8247, %v8498
          %v8656 = vadd.f32 %v8250, %v8500
          %v8657 = vadd.f32 %v8255, %v8502
          %v8658 = vadd.f32 %v8258, %v8504
          %v8659 = vadd.f32 %v8263, %v8506
          %v8660 = vadd.f32 %v8266, %v8508
          %v8661 = vadd.f32 %v8271, %v8510
          %v8662 = vadd.f32 %v8274, %v8512
          %v8663 = vadd.f32 %v8279, %v8514
          %v8664 = vadd.f32 %v8282, %v8516
          %v8665 = vadd.f32 %v8287, %v8518
          %v8666 = vadd.f32 %v8290, %v8520
          %v8667 = vadd.f32 %v8295, %v8522
          %v8668 = vadd.f32 %v8298, %v8524
          %v8669 = vadd.f32 %v8303, %v8526
          %v8670 = vadd.f32 %v8306, %v8528
          %v8671 = vadd.f32 %v8311, %v8530
          %v8672 = vadd.f32 %v8314, %v8532
          %v8673 = vadd.f32 %v8319, %v8534
          %v8674 = vadd.f32 %v8322, %v8536
          %v8675 = vadd.f32 %v8327, %v8538
          %v8676 = vadd.f32 %v8330, %v8540
          %v8677 = vadd.f32 %v8335, %v8542
          %v8678 = vadd.f32 %v8338, %v8544
          %v8679 = vadd.f32 %v8343, %v8546
          %v8680 = vadd.f32 %v8346, %v8548
          %v8681 = vadd.f32 %v8351, %v8550
          %v8682 = vadd.f32 %v8354, %v8552
          %v8683 = vadd.f32 %v8359, %v8554
          %v8684 = vadd.f32 %v8362, %v8556
          %vm8685 = vcmp.ge.f32.partialorder %v8621, 0.0
          %vm8686 = vcmp.ge.f32.partialorder %v8622, 0.0
          %vm8687 = vcmp.ge.f32.partialorder %v8623, 0.0
          %vm8688 = vcmp.ge.f32.partialorder %v8624, 0.0
          %vm8689 = vcmp.ge.f32.partialorder %v8625, 0.0
          %vm8690 = vcmp.ge.f32.partialorder %v8626, 0.0
          %vm8691 = vcmp.ge.f32.partialorder %v8627, 0.0
          %vm8692 = vcmp.ge.f32.partialorder %v8628, 0.0
          %vm8693 = vcmp.ge.f32.partialorder %v8629, 0.0
          %vm8694 = vcmp.ge.f32.partialorder %v8630, 0.0
          %vm8695 = vcmp.ge.f32.partialorder %v8631, 0.0
          %vm8696 = vcmp.ge.f32.partialorder %v8632, 0.0
          %vm8697 = vcmp.ge.f32.partialorder %v8633, 0.0
          %vm8698 = vcmp.ge.f32.partialorder %v8634, 0.0
          %vm8699 = vcmp.ge.f32.partialorder %v8635, 0.0
          %vm8700 = vcmp.ge.f32.partialorder %v8636, 0.0
          %vm8701 = vcmp.ge.f32.partialorder %v8637, 0.0
          %vm8702 = vcmp.ge.f32.partialorder %v8638, 0.0
          %vm8703 = vcmp.ge.f32.partialorder %v8639, 0.0
          %vm8704 = vcmp.ge.f32.partialorder %v8640, 0.0
          %vm8705 = vcmp.ge.f32.partialorder %v8641, 0.0
          %vm8706 = vcmp.ge.f32.partialorder %v8642, 0.0
          %vm8707 = vcmp.ge.f32.partialorder %v8643, 0.0
          %vm8708 = vcmp.ge.f32.partialorder %v8644, 0.0
          %vm8709 = vcmp.ge.f32.partialorder %v8645, 0.0
          %vm8710 = vcmp.ge.f32.partialorder %v8646, 0.0
          %vm8711 = vcmp.ge.f32.partialorder %v8647, 0.0
          %vm8712 = vcmp.ge.f32.partialorder %v8648, 0.0
          %vm8713 = vcmp.ge.f32.partialorder %v8649, 0.0
          %vm8714 = vcmp.ge.f32.partialorder %v8650, 0.0
          %vm8715 = vcmp.ge.f32.partialorder %v8651, 0.0
          %vm8716 = vcmp.ge.f32.partialorder %v8652, 0.0
          %vm8717 = vcmp.ge.f32.partialorder %v8653, 0.0
          %vm8718 = vcmp.ge.f32.partialorder %v8654, 0.0
          %vm8719 = vcmp.ge.f32.partialorder %v8655, 0.0
          %vm8720 = vcmp.ge.f32.partialorder %v8656, 0.0
          %vm8721 = vcmp.ge.f32.partialorder %v8657, 0.0
          %vm8722 = vcmp.ge.f32.partialorder %v8658, 0.0
          %vm8723 = vcmp.ge.f32.partialorder %v8659, 0.0
          %vm8724 = vcmp.ge.f32.partialorder %v8660, 0.0
          %vm8725 = vcmp.ge.f32.partialorder %v8661, 0.0
          %vm8726 = vcmp.ge.f32.partialorder %v8662, 0.0
          %vm8727 = vcmp.ge.f32.partialorder %v8663, 0.0
          %vm8728 = vcmp.ge.f32.partialorder %v8664, 0.0
          %vm8729 = vcmp.ge.f32.partialorder %v8665, 0.0
          %vm8730 = vcmp.ge.f32.partialorder %v8666, 0.0
          %vm8731 = vcmp.ge.f32.partialorder %v8667, 0.0
          %vm8732 = vcmp.ge.f32.partialorder %v8668, 0.0
          %vm8733 = vcmp.ge.f32.partialorder %v8669, 0.0
          %vm8734 = vcmp.ge.f32.partialorder %v8670, 0.0
          %vm8735 = vcmp.ge.f32.partialorder %v8671, 0.0
          %vm8736 = vcmp.ge.f32.partialorder %v8672, 0.0
          %vm8737 = vcmp.ge.f32.partialorder %v8673, 0.0
          %vm8738 = vcmp.ge.f32.partialorder %v8674, 0.0
          %vm8739 = vcmp.ge.f32.partialorder %v8675, 0.0
          %vm8740 = vcmp.ge.f32.partialorder %v8676, 0.0
          %vm8741 = vcmp.ge.f32.partialorder %v8677, 0.0
          %vm8742 = vcmp.ge.f32.partialorder %v8678, 0.0
          %vm8743 = vcmp.ge.f32.partialorder %v8679, 0.0
          %vm8744 = vcmp.ge.f32.partialorder %v8680, 0.0
          %vm8745 = vcmp.ge.f32.partialorder %v8681, 0.0
          %vm8746 = vcmp.ge.f32.partialorder %v8682, 0.0
          %vm8747 = vcmp.ge.f32.partialorder %v8683, 0.0
          %vm8748 = vcmp.ge.f32.partialorder %v8684, 0.0
          %v8749 = vmul.f32 %v8621, 0.01
          %v8750 = vmul.f32 %v8622, 0.01
          %v8751 = vmul.f32 %v8623, 0.01
          %v8752 = vmul.f32 %v8624, 0.01
          %v8753 = vmul.f32 %v8625, 0.01
          %v8754 = vmul.f32 %v8626, 0.01
          %v8755 = vmul.f32 %v8627, 0.01
          %v8756 = vmul.f32 %v8628, 0.01
          %v8757 = vmul.f32 %v8629, 0.01
          %v8758 = vmul.f32 %v8630, 0.01
          %v8759 = vmul.f32 %v8631, 0.01
          %v8760 = vmul.f32 %v8632, 0.01
          %v8761 = vmul.f32 %v8633, 0.01
          %v8762 = vmul.f32 %v8634, 0.01
          %v8763 = vmul.f32 %v8635, 0.01
          %v8764 = vmul.f32 %v8636, 0.01
          %v8765 = vmul.f32 %v8637, 0.01
          %v8766 = vmul.f32 %v8638, 0.01
          %v8767 = vmul.f32 %v8639, 0.01
          %v8768 = vmul.f32 %v8640, 0.01
          %v8769 = vmul.f32 %v8641, 0.01
          %v8770 = vmul.f32 %v8642, 0.01
          %v8771 = vmul.f32 %v8643, 0.01
          %v8772 = vmul.f32 %v8644, 0.01
          %v8773 = vmul.f32 %v8645, 0.01
          %v8774 = vmul.f32 %v8646, 0.01
          %v8775 = vmul.f32 %v8647, 0.01
          %v8776 = vmul.f32 %v8648, 0.01
          %v8777 = vmul.f32 %v8649, 0.01
          %v8778 = vmul.f32 %v8650, 0.01
          %v8779 = vmul.f32 %v8651, 0.01
          %v8780 = vmul.f32 %v8652, 0.01
          %v8781 = vmul.f32 %v8653, 0.01
          %v8782 = vmul.f32 %v8654, 0.01
          %v8783 = vmul.f32 %v8655, 0.01
          %v8784 = vmul.f32 %v8656, 0.01
          %v8785 = vmul.f32 %v8657, 0.01
          %v8786 = vmul.f32 %v8658, 0.01
          %v8787 = vmul.f32 %v8659, 0.01
          %v8788 = vmul.f32 %v8660, 0.01
          %v8789 = vmul.f32 %v8661, 0.01
          %v8790 = vmul.f32 %v8662, 0.01
          %v8791 = vmul.f32 %v8663, 0.01
          %v8792 = vmul.f32 %v8664, 0.01
          %v8793 = vmul.f32 %v8665, 0.01
          %v8794 = vmul.f32 %v8666, 0.01
          %v8795 = vmul.f32 %v8667, 0.01
          %v8796 = vmul.f32 %v8668, 0.01
          %v8797 = vmul.f32 %v8669, 0.01
          %v8798 = vmul.f32 %v8670, 0.01
          %v8799 = vmul.f32 %v8671, 0.01
          %v8800 = vmul.f32 %v8672, 0.01
          %v8801 = vmul.f32 %v8673, 0.01
          %v8802 = vmul.f32 %v8674, 0.01
          %v8803 = vmul.f32 %v8675, 0.01
          %v8804 = vmul.f32 %v8676, 0.01
          %v8805 = vmul.f32 %v8677, 0.01
          %v8806 = vmul.f32 %v8678, 0.01
          %v8807 = vmul.f32 %v8679, 0.01
          %v8808 = vmul.f32 %v8680, 0.01
          %v8809 = vmul.f32 %v8681, 0.01
          %v8810 = vmul.f32 %v8682, 0.01
          %v8811 = vmul.f32 %v8683, 0.01
          %v8812 = vmul.f32 %v8684, 0.01
          %v8813 = vsel %vm8685, %v8621, %v8749
          %v8814 = vsel %vm8686, %v8622, %v8750
          %v8815 = vsel %vm8687, %v8623, %v8751
          %v8816 = vsel %vm8688, %v8624, %v8752
          %v8817 = vsel %vm8689, %v8625, %v8753
          %v8818 = vsel %vm8690, %v8626, %v8754
          %v8819 = vsel %vm8691, %v8627, %v8755
          %v8820 = vsel %vm8692, %v8628, %v8756
          %v8821 = vsel %vm8693, %v8629, %v8757
          %v8822 = vsel %vm8694, %v8630, %v8758
          %v8823 = vsel %vm8695, %v8631, %v8759
          %v8824 = vsel %vm8696, %v8632, %v8760
          %v8825 = vsel %vm8697, %v8633, %v8761
          %v8826 = vsel %vm8698, %v8634, %v8762
          %v8827 = vsel %vm8699, %v8635, %v8763
          %v8828 = vsel %vm8700, %v8636, %v8764
          %v8829 = vsel %vm8701, %v8637, %v8765
          %v8830 = vsel %vm8702, %v8638, %v8766
          %v8831 = vsel %vm8703, %v8639, %v8767
          %v8832 = vsel %vm8704, %v8640, %v8768
          %v8833 = vsel %vm8705, %v8641, %v8769
          %v8834 = vsel %vm8706, %v8642, %v8770
          %v8835 = vsel %vm8707, %v8643, %v8771
          %v8836 = vsel %vm8708, %v8644, %v8772
          %v8837 = vsel %vm8709, %v8645, %v8773
          %v8838 = vsel %vm8710, %v8646, %v8774
          %v8839 = vsel %vm8711, %v8647, %v8775
          %v8840 = vsel %vm8712, %v8648, %v8776
          %v8841 = vsel %vm8713, %v8649, %v8777
          %v8842 = vsel %vm8714, %v8650, %v8778
          %v8843 = vsel %vm8715, %v8651, %v8779
          %v8844 = vsel %vm8716, %v8652, %v8780
          %v8845 = vsel %vm8717, %v8653, %v8781
          %v8846 = vsel %vm8718, %v8654, %v8782
          %v8847 = vsel %vm8719, %v8655, %v8783
          %v8848 = vsel %vm8720, %v8656, %v8784
          %v8849 = vsel %vm8721, %v8657, %v8785
          %v8850 = vsel %vm8722, %v8658, %v8786
          %v8851 = vsel %vm8723, %v8659, %v8787
          %v8852 = vsel %vm8724, %v8660, %v8788
          %v8853 = vsel %vm8725, %v8661, %v8789
          %v8854 = vsel %vm8726, %v8662, %v8790
          %v8855 = vsel %vm8727, %v8663, %v8791
          %v8856 = vsel %vm8728, %v8664, %v8792
          %v8857 = vsel %vm8729, %v8665, %v8793
          %v8858 = vsel %vm8730, %v8666, %v8794
          %v8859 = vsel %vm8731, %v8667, %v8795
          %v8860 = vsel %vm8732, %v8668, %v8796
          %v8861 = vsel %vm8733, %v8669, %v8797
          %v8862 = vsel %vm8734, %v8670, %v8798
          %v8863 = vsel %vm8735, %v8671, %v8799
          %v8864 = vsel %vm8736, %v8672, %v8800
          %v8865 = vsel %vm8737, %v8673, %v8801
          %v8866 = vsel %vm8738, %v8674, %v8802
          %v8867 = vsel %vm8739, %v8675, %v8803
          %v8868 = vsel %vm8740, %v8676, %v8804
          %v8869 = vsel %vm8741, %v8677, %v8805
          %v8870 = vsel %vm8742, %v8678, %v8806
          %v8871 = vsel %vm8743, %v8679, %v8807
          %v8872 = vsel %vm8744, %v8680, %v8808
          %v8873 = vsel %vm8745, %v8681, %v8809
          %v8874 = vsel %vm8746, %v8682, %v8810
          %v8875 = vsel %vm8747, %v8683, %v8811
          %v8876 = vsel %vm8748, %v8684, %v8812
          %vm8877 = vcmask 523264
          %v8878 = vsel %vm8877, %v8813, 0.0
          %v8879 = vsel %vm8877, %v8814, 0.0
          %v8880 = vadd.f32 %v8878, %v8879
          %v8881 = vsel %vm8877, %v8815, 0.0
          %v8882 = vadd.f32 %v8880, %v8881
          %v8883 = vsel %vm8877, %v8816, 0.0
          %v8884 = vadd.f32 %v8882, %v8883
          %v8885 = vsel %vm8877, %v8817, 0.0
          %v8886 = vadd.f32 %v8884, %v8885
          %v8887 = vsel %vm8877, %v8818, 0.0
          %v8888 = vadd.f32 %v8886, %v8887
          %v8889 = vsel %vm8877, %v8819, 0.0
          %v8890 = vadd.f32 %v8888, %v8889
          %v8891 = vsel %vm8877, %v8820, 0.0
          %v8892 = vadd.f32 %v8890, %v8891
          %v8893 = vsel %vm8877, %v8821, 0.0
          %v8894 = vadd.f32 %v8892, %v8893
          %v8895 = vsel %vm8877, %v8822, 0.0
          %v8896 = vadd.f32 %v8894, %v8895
          %v8897 = vsel %vm8877, %v8823, 0.0
          %v8898 = vadd.f32 %v8896, %v8897
          %v8899 = vsel %vm8877, %v8824, 0.0
          %v8900 = vadd.f32 %v8898, %v8899
          %v8901 = vsel %vm8877, %v8825, 0.0
          %v8902 = vadd.f32 %v8900, %v8901
          %v8903 = vsel %vm8877, %v8826, 0.0
          %v8904 = vadd.f32 %v8902, %v8903
          %v8905 = vsel %vm8877, %v8827, 0.0
          %v8906 = vadd.f32 %v8904, %v8905
          %v8907 = vsel %vm8877, %v8828, 0.0
          %v8908 = vadd.f32 %v8906, %v8907
          %v8909 = vsel %vm8877, %v8829, 0.0
          %v8910 = vadd.f32 %v8908, %v8909
          %v8911 = vsel %vm8877, %v8830, 0.0
          %v8912 = vadd.f32 %v8910, %v8911
          %v8913 = vsel %vm8877, %v8831, 0.0
          %v8914 = vadd.f32 %v8912, %v8913
          %v8915 = vsel %vm8877, %v8832, 0.0
          %v8916 = vadd.f32 %v8914, %v8915
          %v8917 = vsel %vm8877, %v8833, 0.0
          %v8918 = vadd.f32 %v8916, %v8917
          %v8919 = vsel %vm8877, %v8834, 0.0
          %v8920 = vadd.f32 %v8918, %v8919
          %v8921 = vsel %vm8877, %v8835, 0.0
          %v8922 = vadd.f32 %v8920, %v8921
          %v8923 = vsel %vm8877, %v8836, 0.0
          %v8924 = vadd.f32 %v8922, %v8923
          %v8925 = vsel %vm8877, %v8837, 0.0
          %v8926 = vadd.f32 %v8924, %v8925
          %v8927 = vsel %vm8877, %v8838, 0.0
          %v8928 = vadd.f32 %v8926, %v8927
          %v8929 = vsel %vm8877, %v8839, 0.0
          %v8930 = vadd.f32 %v8928, %v8929
          %v8931 = vsel %vm8877, %v8840, 0.0
          %v8932 = vadd.f32 %v8930, %v8931
          %v8933 = vsel %vm8877, %v8841, 0.0
          %v8934 = vadd.f32 %v8932, %v8933
          %v8935 = vsel %vm8877, %v8842, 0.0
          %v8936 = vadd.f32 %v8934, %v8935
          %v8937 = vsel %vm8877, %v8843, 0.0
          %v8938 = vadd.f32 %v8936, %v8937
          %v8939 = vsel %vm8877, %v8844, 0.0
          %v8940 = vadd.f32 %v8938, %v8939
          %v8941 = vsel %vm8877, %v8845, 0.0
          %v8942 = vadd.f32 %v8940, %v8941
          %v8943 = vsel %vm8877, %v8846, 0.0
          %v8944 = vadd.f32 %v8942, %v8943
          %v8945 = vsel %vm8877, %v8847, 0.0
          %v8946 = vadd.f32 %v8944, %v8945
          %v8947 = vsel %vm8877, %v8848, 0.0
          %v8948 = vadd.f32 %v8946, %v8947
          %v8949 = vsel %vm8877, %v8849, 0.0
          %v8950 = vadd.f32 %v8948, %v8949
          %v8951 = vsel %vm8877, %v8850, 0.0
          %v8952 = vadd.f32 %v8950, %v8951
          %v8953 = vsel %vm8877, %v8851, 0.0
          %v8954 = vadd.f32 %v8952, %v8953
          %v8955 = vsel %vm8877, %v8852, 0.0
          %v8956 = vadd.f32 %v8954, %v8955
          %v8957 = vsel %vm8877, %v8853, 0.0
          %v8958 = vadd.f32 %v8956, %v8957
          %v8959 = vsel %vm8877, %v8854, 0.0
          %v8960 = vadd.f32 %v8958, %v8959
          %v8961 = vsel %vm8877, %v8855, 0.0
          %v8962 = vadd.f32 %v8960, %v8961
          %v8963 = vsel %vm8877, %v8856, 0.0
          %v8964 = vadd.f32 %v8962, %v8963
          %v8965 = vsel %vm8877, %v8857, 0.0
          %v8966 = vadd.f32 %v8964, %v8965
          %v8967 = vsel %vm8877, %v8858, 0.0
          %v8968 = vadd.f32 %v8966, %v8967
          %v8969 = vsel %vm8877, %v8859, 0.0
          %v8970 = vadd.f32 %v8968, %v8969
          %v8971 = vsel %vm8877, %v8860, 0.0
          %v8972 = vadd.f32 %v8970, %v8971
          %v8973 = vsel %vm8877, %v8861, 0.0
          %v8974 = vadd.f32 %v8972, %v8973
          %v8975 = vsel %vm8877, %v8862, 0.0
          %v8976 = vadd.f32 %v8974, %v8975
          %v8977 = vsel %vm8877, %v8863, 0.0
          %v8978 = vadd.f32 %v8976, %v8977
          %v8979 = vsel %vm8877, %v8864, 0.0
          %v8980 = vadd.f32 %v8978, %v8979
          %v8981 = vsel %vm8877, %v8865, 0.0
          %v8982 = vadd.f32 %v8980, %v8981
          %v8983 = vsel %vm8877, %v8866, 0.0
          %v8984 = vadd.f32 %v8982, %v8983
          %v8985 = vsel %vm8877, %v8867, 0.0
          %v8986 = vadd.f32 %v8984, %v8985
          %v8987 = vsel %vm8877, %v8868, 0.0
          %v8988 = vadd.f32 %v8986, %v8987
          %v8989 = vsel %vm8877, %v8869, 0.0
          %v8990 = vadd.f32 %v8988, %v8989
          %v8991 = vsel %vm8877, %v8870, 0.0
          %v8992 = vadd.f32 %v8990, %v8991
          %v8993 = vsel %vm8877, %v8871, 0.0
          %v8994 = vadd.f32 %v8992, %v8993
          %v8995 = vsel %vm8877, %v8872, 0.0
          %v8996 = vadd.f32 %v8994, %v8995
          %v8997 = vsel %vm8877, %v8873, 0.0
          %v8998 = vadd.f32 %v8996, %v8997
          %v8999 = vsel %vm8877, %v8874, 0.0
          %v9000 = vadd.f32 %v8998, %v8999
          %v9001 = vsel %vm8877, %v8875, 0.0
          %v9002 = vadd.f32 %v9000, %v9001
          %v9003 = vsel %vm8877, %v8876, 0.0
          %v9004 = vadd.f32 %v9002, %v9003
          %v9005 = vrot.slane %v9004, 4
          %v9006 = vadd.f32 %v9004, %v9005
          %v9007 = vrot.slane %v9006, 2
          %v9008 = vadd.f32 %v9006, %v9007
          %v9009 = vrot.slane %v9008, 1
          %v9010 = vadd.f32 %v9008, %v9009
          %v9011 = vmul.f32 %v9010, %v5640
          %v9012 = vsub.f32 %v8813, %v9011
          %v9013 = vsub.f32 %v8814, %v9011
          %v9014 = vsub.f32 %v8815, %v9011
          %v9015 = vsub.f32 %v8816, %v9011
          %v9016 = vsub.f32 %v8817, %v9011
          %v9017 = vsub.f32 %v8818, %v9011
          %v9018 = vsub.f32 %v8819, %v9011
          %v9019 = vsub.f32 %v8820, %v9011
          %v9020 = vsub.f32 %v8821, %v9011
          %v9021 = vsub.f32 %v8822, %v9011
          %v9022 = vsub.f32 %v8823, %v9011
          %v9023 = vsub.f32 %v8824, %v9011
          %v9024 = vsub.f32 %v8825, %v9011
          %v9025 = vsub.f32 %v8826, %v9011
          %v9026 = vsub.f32 %v8827, %v9011
          %v9027 = vsub.f32 %v8828, %v9011
          %v9028 = vsub.f32 %v8829, %v9011
          %v9029 = vsub.f32 %v8830, %v9011
          %v9030 = vsub.f32 %v8831, %v9011
          %v9031 = vsub.f32 %v8832, %v9011
          %v9032 = vsub.f32 %v8833, %v9011
          %v9033 = vsub.f32 %v8834, %v9011
          %v9034 = vsub.f32 %v8835, %v9011
          %v9035 = vsub.f32 %v8836, %v9011
          %v9036 = vsub.f32 %v8837, %v9011
          %v9037 = vsub.f32 %v8838, %v9011
          %v9038 = vsub.f32 %v8839, %v9011
          %v9039 = vsub.f32 %v8840, %v9011
          %v9040 = vsub.f32 %v8841, %v9011
          %v9041 = vsub.f32 %v8842, %v9011
          %v9042 = vsub.f32 %v8843, %v9011
          %v9043 = vsub.f32 %v8844, %v9011
          %v9044 = vsub.f32 %v8845, %v9011
          %v9045 = vsub.f32 %v8846, %v9011
          %v9046 = vsub.f32 %v8847, %v9011
          %v9047 = vsub.f32 %v8848, %v9011
          %v9048 = vsub.f32 %v8849, %v9011
          %v9049 = vsub.f32 %v8850, %v9011
          %v9050 = vsub.f32 %v8851, %v9011
          %v9051 = vsub.f32 %v8852, %v9011
          %v9052 = vsub.f32 %v8853, %v9011
          %v9053 = vsub.f32 %v8854, %v9011
          %v9054 = vsub.f32 %v8855, %v9011
          %v9055 = vsub.f32 %v8856, %v9011
          %v9056 = vsub.f32 %v8857, %v9011
          %v9057 = vsub.f32 %v8858, %v9011
          %v9058 = vsub.f32 %v8859, %v9011
          %v9059 = vsub.f32 %v8860, %v9011
          %v9060 = vsub.f32 %v8861, %v9011
          %v9061 = vsub.f32 %v8862, %v9011
          %v9062 = vsub.f32 %v8863, %v9011
          %v9063 = vsub.f32 %v8864, %v9011
          %v9064 = vsub.f32 %v8865, %v9011
          %v9065 = vsub.f32 %v8866, %v9011
          %v9066 = vsub.f32 %v8867, %v9011
          %v9067 = vsub.f32 %v8868, %v9011
          %v9068 = vsub.f32 %v8869, %v9011
          %v9069 = vsub.f32 %v8870, %v9011
          %v9070 = vsub.f32 %v8871, %v9011
          %v9071 = vsub.f32 %v8872, %v9011
          %v9072 = vsub.f32 %v8873, %v9011
          %v9073 = vsub.f32 %v8874, %v9011
          %v9074 = vsub.f32 %v8875, %v9011
          %v9075 = vsub.f32 %v8876, %v9011
          %v9076 = vmul.f32 %v9012, %v9012
          %v9077 = vmul.f32 %v9013, %v9013
          %v9078 = vmul.f32 %v9014, %v9014
          %v9079 = vmul.f32 %v9015, %v9015
          %v9080 = vmul.f32 %v9016, %v9016
          %v9081 = vmul.f32 %v9017, %v9017
          %v9082 = vmul.f32 %v9018, %v9018
          %v9083 = vmul.f32 %v9019, %v9019
          %v9084 = vmul.f32 %v9020, %v9020
          %v9085 = vmul.f32 %v9021, %v9021
          %v9086 = vmul.f32 %v9022, %v9022
          %v9087 = vmul.f32 %v9023, %v9023
          %v9088 = vmul.f32 %v9024, %v9024
          %v9089 = vmul.f32 %v9025, %v9025
          %v9090 = vmul.f32 %v9026, %v9026
          %v9091 = vmul.f32 %v9027, %v9027
          %v9092 = vmul.f32 %v9028, %v9028
          %v9093 = vmul.f32 %v9029, %v9029
          %v9094 = vmul.f32 %v9030, %v9030
          %v9095 = vmul.f32 %v9031, %v9031
          %v9096 = vmul.f32 %v9032, %v9032
          %v9097 = vmul.f32 %v9033, %v9033
          %v9098 = vmul.f32 %v9034, %v9034
          %v9099 = vmul.f32 %v9035, %v9035
          %v9100 = vmul.f32 %v9036, %v9036
          %v9101 = vmul.f32 %v9037, %v9037
          %v9102 = vmul.f32 %v9038, %v9038
          %v9103 = vmul.f32 %v9039, %v9039
          %v9104 = vmul.f32 %v9040, %v9040
          %v9105 = vmul.f32 %v9041, %v9041
          %v9106 = vmul.f32 %v9042, %v9042
          %v9107 = vmul.f32 %v9043, %v9043
          %v9108 = vmul.f32 %v9044, %v9044
          %v9109 = vmul.f32 %v9045, %v9045
          %v9110 = vmul.f32 %v9046, %v9046
          %v9111 = vmul.f32 %v9047, %v9047
          %v9112 = vmul.f32 %v9048, %v9048
          %v9113 = vmul.f32 %v9049, %v9049
          %v9114 = vmul.f32 %v9050, %v9050
          %v9115 = vmul.f32 %v9051, %v9051
          %v9116 = vmul.f32 %v9052, %v9052
          %v9117 = vmul.f32 %v9053, %v9053
          %v9118 = vmul.f32 %v9054, %v9054
          %v9119 = vmul.f32 %v9055, %v9055
          %v9120 = vmul.f32 %v9056, %v9056
          %v9121 = vmul.f32 %v9057, %v9057
          %v9122 = vmul.f32 %v9058, %v9058
          %v9123 = vmul.f32 %v9059, %v9059
          %v9124 = vmul.f32 %v9060, %v9060
          %v9125 = vmul.f32 %v9061, %v9061
          %v9126 = vmul.f32 %v9062, %v9062
          %v9127 = vmul.f32 %v9063, %v9063
          %v9128 = vmul.f32 %v9064, %v9064
          %v9129 = vmul.f32 %v9065, %v9065
          %v9130 = vmul.f32 %v9066, %v9066
          %v9131 = vmul.f32 %v9067, %v9067
          %v9132 = vmul.f32 %v9068, %v9068
          %v9133 = vmul.f32 %v9069, %v9069
          %v9134 = vmul.f32 %v9070, %v9070
          %v9135 = vmul.f32 %v9071, %v9071
          %v9136 = vmul.f32 %v9072, %v9072
          %v9137 = vmul.f32 %v9073, %v9073
          %v9138 = vmul.f32 %v9074, %v9074
          %v9139 = vmul.f32 %v9075, %v9075
          %v9140 = vsel %vm8877, %v9076, 0.0
          %v9141 = vsel %vm8877, %v9077, 0.0
          %v9142 = vadd.f32 %v9140, %v9141
          %v9143 = vsel %vm8877, %v9078, 0.0
          %v9144 = vadd.f32 %v9142, %v9143
          %v9145 = vsel %vm8877, %v9079, 0.0
          %v9146 = vadd.f32 %v9144, %v9145
          %v9147 = vsel %vm8877, %v9080, 0.0
          %v9148 = vadd.f32 %v9146, %v9147
          %v9149 = vsel %vm8877, %v9081, 0.0
          %v9150 = vadd.f32 %v9148, %v9149
          %v9151 = vsel %vm8877, %v9082, 0.0
          %v9152 = vadd.f32 %v9150, %v9151
          %v9153 = vsel %vm8877, %v9083, 0.0
          %v9154 = vadd.f32 %v9152, %v9153
          %v9155 = vsel %vm8877, %v9084, 0.0
          %v9156 = vadd.f32 %v9154, %v9155
          %v9157 = vsel %vm8877, %v9085, 0.0
          %v9158 = vadd.f32 %v9156, %v9157
          %v9159 = vsel %vm8877, %v9086, 0.0
          %v9160 = vadd.f32 %v9158, %v9159
          %v9161 = vsel %vm8877, %v9087, 0.0
          %v9162 = vadd.f32 %v9160, %v9161
          %v9163 = vsel %vm8877, %v9088, 0.0
          %v9164 = vadd.f32 %v9162, %v9163
          %v9165 = vsel %vm8877, %v9089, 0.0
          %v9166 = vadd.f32 %v9164, %v9165
          %v9167 = vsel %vm8877, %v9090, 0.0
          %v9168 = vadd.f32 %v9166, %v9167
          %v9169 = vsel %vm8877, %v9091, 0.0
          %v9170 = vadd.f32 %v9168, %v9169
          %v9171 = vsel %vm8877, %v9092, 0.0
          %v9172 = vadd.f32 %v9170, %v9171
          %v9173 = vsel %vm8877, %v9093, 0.0
          %v9174 = vadd.f32 %v9172, %v9173
          %v9175 = vsel %vm8877, %v9094, 0.0
          %v9176 = vadd.f32 %v9174, %v9175
          %v9177 = vsel %vm8877, %v9095, 0.0
          %v9178 = vadd.f32 %v9176, %v9177
          %v9179 = vsel %vm8877, %v9096, 0.0
          %v9180 = vadd.f32 %v9178, %v9179
          %v9181 = vsel %vm8877, %v9097, 0.0
          %v9182 = vadd.f32 %v9180, %v9181
          %v9183 = vsel %vm8877, %v9098, 0.0
          %v9184 = vadd.f32 %v9182, %v9183
          %v9185 = vsel %vm8877, %v9099, 0.0
          %v9186 = vadd.f32 %v9184, %v9185
          %v9187 = vsel %vm8877, %v9100, 0.0
          %v9188 = vadd.f32 %v9186, %v9187
          %v9189 = vsel %vm8877, %v9101, 0.0
          %v9190 = vadd.f32 %v9188, %v9189
          %v9191 = vsel %vm8877, %v9102, 0.0
          %v9192 = vadd.f32 %v9190, %v9191
          %v9193 = vsel %vm8877, %v9103, 0.0
          %v9194 = vadd.f32 %v9192, %v9193
          %v9195 = vsel %vm8877, %v9104, 0.0
          %v9196 = vadd.f32 %v9194, %v9195
          %v9197 = vsel %vm8877, %v9105, 0.0
          %v9198 = vadd.f32 %v9196, %v9197
          %v9199 = vsel %vm8877, %v9106, 0.0
          %v9200 = vadd.f32 %v9198, %v9199
          %v9201 = vsel %vm8877, %v9107, 0.0
          %v9202 = vadd.f32 %v9200, %v9201
          %v9203 = vsel %vm8877, %v9108, 0.0
          %v9204 = vadd.f32 %v9202, %v9203
          %v9205 = vsel %vm8877, %v9109, 0.0
          %v9206 = vadd.f32 %v9204, %v9205
          %v9207 = vsel %vm8877, %v9110, 0.0
          %v9208 = vadd.f32 %v9206, %v9207
          %v9209 = vsel %vm8877, %v9111, 0.0
          %v9210 = vadd.f32 %v9208, %v9209
          %v9211 = vsel %vm8877, %v9112, 0.0
          %v9212 = vadd.f32 %v9210, %v9211
          %v9213 = vsel %vm8877, %v9113, 0.0
          %v9214 = vadd.f32 %v9212, %v9213
          %v9215 = vsel %vm8877, %v9114, 0.0
          %v9216 = vadd.f32 %v9214, %v9215
          %v9217 = vsel %vm8877, %v9115, 0.0
          %v9218 = vadd.f32 %v9216, %v9217
          %v9219 = vsel %vm8877, %v9116, 0.0
          %v9220 = vadd.f32 %v9218, %v9219
          %v9221 = vsel %vm8877, %v9117, 0.0
          %v9222 = vadd.f32 %v9220, %v9221
          %v9223 = vsel %vm8877, %v9118, 0.0
          %v9224 = vadd.f32 %v9222, %v9223
          %v9225 = vsel %vm8877, %v9119, 0.0
          %v9226 = vadd.f32 %v9224, %v9225
          %v9227 = vsel %vm8877, %v9120, 0.0
          %v9228 = vadd.f32 %v9226, %v9227
          %v9229 = vsel %vm8877, %v9121, 0.0
          %v9230 = vadd.f32 %v9228, %v9229
          %v9231 = vsel %vm8877, %v9122, 0.0
          %v9232 = vadd.f32 %v9230, %v9231
          %v9233 = vsel %vm8877, %v9123, 0.0
          %v9234 = vadd.f32 %v9232, %v9233
          %v9235 = vsel %vm8877, %v9124, 0.0
          %v9236 = vadd.f32 %v9234, %v9235
          %v9237 = vsel %vm8877, %v9125, 0.0
          %v9238 = vadd.f32 %v9236, %v9237
          %v9239 = vsel %vm8877, %v9126, 0.0
          %v9240 = vadd.f32 %v9238, %v9239
          %v9241 = vsel %vm8877, %v9127, 0.0
          %v9242 = vadd.f32 %v9240, %v9241
          %v9243 = vsel %vm8877, %v9128, 0.0
          %v9244 = vadd.f32 %v9242, %v9243
          %v9245 = vsel %vm8877, %v9129, 0.0
          %v9246 = vadd.f32 %v9244, %v9245
          %v9247 = vsel %vm8877, %v9130, 0.0
          %v9248 = vadd.f32 %v9246, %v9247
          %v9249 = vsel %vm8877, %v9131, 0.0
          %v9250 = vadd.f32 %v9248, %v9249
          %v9251 = vsel %vm8877, %v9132, 0.0
          %v9252 = vadd.f32 %v9250, %v9251
          %v9253 = vsel %vm8877, %v9133, 0.0
          %v9254 = vadd.f32 %v9252, %v9253
          %v9255 = vsel %vm8877, %v9134, 0.0
          %v9256 = vadd.f32 %v9254, %v9255
          %v9257 = vsel %vm8877, %v9135, 0.0
          %v9258 = vadd.f32 %v9256, %v9257
          %v9259 = vsel %vm8877, %v9136, 0.0
          %v9260 = vadd.f32 %v9258, %v9259
          %v9261 = vsel %vm8877, %v9137, 0.0
          %v9262 = vadd.f32 %v9260, %v9261
          %v9263 = vsel %vm8877, %v9138, 0.0
          %v9264 = vadd.f32 %v9262, %v9263
          %v9265 = vsel %vm8877, %v9139, 0.0
          %v9266 = vadd.f32 %v9264, %v9265
          %v9267 = vrot.slane %v9266, 4
          %v9268 = vadd.f32 %v9266, %v9267
          %v9269 = vrot.slane %v9268, 2
          %v9270 = vadd.f32 %v9268, %v9269
          %v9271 = vrot.slane %v9270, 1
          %v9272 = vadd.f32 %v9270, %v9271
          %v9273 = vmul.f32 %v9272, %v5640
          %v9274 = vadd.f32 %v9273, 1e-05
          %v9275 = vrsqrt.pop %v9274
          %v9276 = vmul.f32 %v491, %v9275
          %v9277 = vlaneseq
          %v9278 = vshrl.u32 %v9277, 7
          %v9279 = vsub.s32 1, %v9278
          %v9280 = vrot.slane %v9276, %v9279
          %v9281 = vmul.f32 %v8813, %v9280
          %v9282 = vmul.f32 %v8814, %v9280
          %v9283 = vmul.f32 %v8815, %v9280
          %v9284 = vmul.f32 %v8816, %v9280
          %v9285 = vmul.f32 %v8817, %v9280
          %v9286 = vmul.f32 %v8818, %v9280
          %v9287 = vmul.f32 %v8819, %v9280
          %v9288 = vmul.f32 %v8820, %v9280
          %v9289 = vmul.f32 %v8821, %v9280
          %v9290 = vmul.f32 %v8822, %v9280
          %v9291 = vmul.f32 %v8823, %v9280
          %v9292 = vmul.f32 %v8824, %v9280
          %v9293 = vmul.f32 %v8825, %v9280
          %v9294 = vmul.f32 %v8826, %v9280
          %v9295 = vmul.f32 %v8827, %v9280
          %v9296 = vmul.f32 %v8828, %v9280
          %v9297 = vmul.f32 %v8829, %v9280
          %v9298 = vmul.f32 %v8830, %v9280
          %v9299 = vmul.f32 %v8831, %v9280
          %v9300 = vmul.f32 %v8832, %v9280
          %v9301 = vmul.f32 %v8833, %v9280
          %v9302 = vmul.f32 %v8834, %v9280
          %v9303 = vmul.f32 %v8835, %v9280
          %v9304 = vmul.f32 %v8836, %v9280
          %v9305 = vmul.f32 %v8837, %v9280
          %v9306 = vmul.f32 %v8838, %v9280
          %v9307 = vmul.f32 %v8839, %v9280
          %v9308 = vmul.f32 %v8840, %v9280
          %v9309 = vmul.f32 %v8841, %v9280
          %v9310 = vmul.f32 %v8842, %v9280
          %v9311 = vmul.f32 %v8843, %v9280
          %v9312 = vmul.f32 %v8844, %v9280
          %v9313 = vmul.f32 %v8845, %v9280
          %v9314 = vmul.f32 %v8846, %v9280
          %v9315 = vmul.f32 %v8847, %v9280
          %v9316 = vmul.f32 %v8848, %v9280
          %v9317 = vmul.f32 %v8849, %v9280
          %v9318 = vmul.f32 %v8850, %v9280
          %v9319 = vmul.f32 %v8851, %v9280
          %v9320 = vmul.f32 %v8852, %v9280
          %v9321 = vmul.f32 %v8853, %v9280
          %v9322 = vmul.f32 %v8854, %v9280
          %v9323 = vmul.f32 %v8855, %v9280
          %v9324 = vmul.f32 %v8856, %v9280
          %v9325 = vmul.f32 %v8857, %v9280
          %v9326 = vmul.f32 %v8858, %v9280
          %v9327 = vmul.f32 %v8859, %v9280
          %v9328 = vmul.f32 %v8860, %v9280
          %v9329 = vmul.f32 %v8861, %v9280
          %v9330 = vmul.f32 %v8862, %v9280
          %v9331 = vmul.f32 %v8863, %v9280
          %v9332 = vmul.f32 %v8864, %v9280
          %v9333 = vmul.f32 %v8865, %v9280
          %v9334 = vmul.f32 %v8866, %v9280
          %v9335 = vmul.f32 %v8867, %v9280
          %v9336 = vmul.f32 %v8868, %v9280
          %v9337 = vmul.f32 %v8869, %v9280
          %v9338 = vmul.f32 %v8870, %v9280
          %v9339 = vmul.f32 %v8871, %v9280
          %v9340 = vmul.f32 %v8872, %v9280
          %v9341 = vmul.f32 %v8873, %v9280
          %v9342 = vmul.f32 %v8874, %v9280
          %v9343 = vmul.f32 %v8875, %v9280
          %v9344 = vmul.f32 %v8876, %v9280
          %v9345 = vmul.f32 %v9011, %v9276
          %v9347 = vrot.slane %v9345, 7
          %v9349 = vsub.f32 %v491, %v9347
          %v9350 = vlaneseq
          %v9351 = vshrl.u32 %v9350, 7
          %v9352 = vsub.s32 2, %v9351
          %v9353 = vrot.slane %v9349, %v9352
          %v9354 = vadd.f32 %v9281, %v9353
          %v9355 = vadd.f32 %v9282, %v9353
          %v9356 = vadd.f32 %v9283, %v9353
          %v9357 = vadd.f32 %v9284, %v9353
          %v9358 = vadd.f32 %v9285, %v9353
          %v9359 = vadd.f32 %v9286, %v9353
          %v9360 = vadd.f32 %v9287, %v9353
          %v9361 = vadd.f32 %v9288, %v9353
          %v9362 = vadd.f32 %v9289, %v9353
          %v9363 = vadd.f32 %v9290, %v9353
          %v9364 = vadd.f32 %v9291, %v9353
          %v9365 = vadd.f32 %v9292, %v9353
          %v9366 = vadd.f32 %v9293, %v9353
          %v9367 = vadd.f32 %v9294, %v9353
          %v9368 = vadd.f32 %v9295, %v9353
          %v9369 = vadd.f32 %v9296, %v9353
          %v9370 = vadd.f32 %v9297, %v9353
          %v9371 = vadd.f32 %v9298, %v9353
          %v9372 = vadd.f32 %v9299, %v9353
          %v9373 = vadd.f32 %v9300, %v9353
          %v9374 = vadd.f32 %v9301, %v9353
          %v9375 = vadd.f32 %v9302, %v9353
          %v9376 = vadd.f32 %v9303, %v9353
          %v9377 = vadd.f32 %v9304, %v9353
          %v9378 = vadd.f32 %v9305, %v9353
          %v9379 = vadd.f32 %v9306, %v9353
          %v9380 = vadd.f32 %v9307, %v9353
          %v9381 = vadd.f32 %v9308, %v9353
          %v9382 = vadd.f32 %v9309, %v9353
          %v9383 = vadd.f32 %v9310, %v9353
          %v9384 = vadd.f32 %v9311, %v9353
          %v9385 = vadd.f32 %v9312, %v9353
          %v9386 = vadd.f32 %v9313, %v9353
          %v9387 = vadd.f32 %v9314, %v9353
          %v9388 = vadd.f32 %v9315, %v9353
          %v9389 = vadd.f32 %v9316, %v9353
          %v9390 = vadd.f32 %v9317, %v9353
          %v9391 = vadd.f32 %v9318, %v9353
          %v9392 = vadd.f32 %v9319, %v9353
          %v9393 = vadd.f32 %v9320, %v9353
          %v9394 = vadd.f32 %v9321, %v9353
          %v9395 = vadd.f32 %v9322, %v9353
          %v9396 = vadd.f32 %v9323, %v9353
          %v9397 = vadd.f32 %v9324, %v9353
          %v9398 = vadd.f32 %v9325, %v9353
          %v9399 = vadd.f32 %v9326, %v9353
          %v9400 = vadd.f32 %v9327, %v9353
          %v9401 = vadd.f32 %v9328, %v9353
          %v9402 = vadd.f32 %v9329, %v9353
          %v9403 = vadd.f32 %v9330, %v9353
          %v9404 = vadd.f32 %v9331, %v9353
          %v9405 = vadd.f32 %v9332, %v9353
          %v9406 = vadd.f32 %v9333, %v9353
          %v9407 = vadd.f32 %v9334, %v9353
          %v9408 = vadd.f32 %v9335, %v9353
          %v9409 = vadd.f32 %v9336, %v9353
          %v9410 = vadd.f32 %v9337, %v9353
          %v9411 = vadd.f32 %v9338, %v9353
          %v9412 = vadd.f32 %v9339, %v9353
          %v9413 = vadd.f32 %v9340, %v9353
          %v9414 = vadd.f32 %v9341, %v9353
          %v9415 = vadd.f32 %v9342, %v9353
          %v9416 = vadd.f32 %v9343, %v9353
          %v9417 = vadd.f32 %v9344, %v9353
          %v9418 = vpack.c.bf16 %v9355, %v9354
          %v9419 = vpack.c.bf16 %v9357, %v9356
          %v9420 = vpack.c.bf16 %v9359, %v9358
          %v9421 = vpack.c.bf16 %v9361, %v9360
          %v9422 = vpack.c.bf16 %v9363, %v9362
          %v9423 = vpack.c.bf16 %v9365, %v9364
          %v9424 = vpack.c.bf16 %v9367, %v9366
          %v9425 = vpack.c.bf16 %v9369, %v9368
          %v9426 = vpack.c.bf16 %v9371, %v9370
          %v9427 = vpack.c.bf16 %v9373, %v9372
          %v9428 = vpack.c.bf16 %v9375, %v9374
          %v9429 = vpack.c.bf16 %v9377, %v9376
          %v9430 = vpack.c.bf16 %v9379, %v9378
          %v9431 = vpack.c.bf16 %v9381, %v9380
          %v9432 = vpack.c.bf16 %v9383, %v9382
          %v9433 = vpack.c.bf16 %v9385, %v9384
          %v9434 = vpack.c.bf16 %v9387, %v9386
          %v9435 = vpack.c.bf16 %v9389, %v9388
          %v9436 = vpack.c.bf16 %v9391, %v9390
          %v9437 = vpack.c.bf16 %v9393, %v9392
          %v9438 = vpack.c.bf16 %v9395, %v9394
          %v9439 = vpack.c.bf16 %v9397, %v9396
          %v9440 = vpack.c.bf16 %v9399, %v9398
          %v9441 = vpack.c.bf16 %v9401, %v9400
          %v9442 = vpack.c.bf16 %v9403, %v9402
          %v9443 = vpack.c.bf16 %v9405, %v9404
          %v9444 = vpack.c.bf16 %v9407, %v9406
          %v9445 = vpack.c.bf16 %v9409, %v9408
          %v9446 = vpack.c.bf16 %v9411, %v9410
          %v9447 = vpack.c.bf16 %v9413, %v9412
          %v9448 = vpack.c.bf16 %v9415, %v9414
          %v9449 = vpack.c.bf16 %v9417, %v9416
          %9450 = vst.msk [vmem:[#allocation2] sm:$0xff] %vm8877, %v9418
          %9451 = vst.msk [vmem:[#allocation2 + $0x8] sm:$0xff] %vm8877, %v9419
          %9452 = vst.msk [vmem:[#allocation2 + $0x10] sm:$0xff] %vm8877, %v9420
          %9453 = vst.msk [vmem:[#allocation2 + $0x18] sm:$0xff] %vm8877, %v9421
          %9454 = vst.msk [vmem:[#allocation2 + $0x20] sm:$0xff] %vm8877, %v9422
          %9455 = vst.msk [vmem:[#allocation2 + $0x28] sm:$0xff] %vm8877, %v9423
          %9456 = vst.msk [vmem:[#allocation2 + $0x30] sm:$0xff] %vm8877, %v9424
          %9457 = vst.msk [vmem:[#allocation2 + $0x38] sm:$0xff] %vm8877, %v9425
          %9458 = vst.msk [vmem:[#allocation2 + $0x40] sm:$0xff] %vm8877, %v9426
          %9459 = vst.msk [vmem:[#allocation2 + $0x48] sm:$0xff] %vm8877, %v9427
          %9460 = vst.msk [vmem:[#allocation2 + $0x50] sm:$0xff] %vm8877, %v9428
          %9461 = vst.msk [vmem:[#allocation2 + $0x58] sm:$0xff] %vm8877, %v9429
          %9462 = vst.msk [vmem:[#allocation2 + $0x60] sm:$0xff] %vm8877, %v9430
          %9463 = vst.msk [vmem:[#allocation2 + $0x68] sm:$0xff] %vm8877, %v9431
          %9464 = vst.msk [vmem:[#allocation2 + $0x70] sm:$0xff] %vm8877, %v9432
          %9465 = vst.msk [vmem:[#allocation2 + $0x78] sm:$0xff] %vm8877, %v9433
          %9466 = vst.msk [vmem:[#allocation2 + $0x80] sm:$0xff] %vm8877, %v9434
          %9467 = vst.msk [vmem:[#allocation2 + $0x88] sm:$0xff] %vm8877, %v9435
          %9468 = vst.msk [vmem:[#allocation2 + $0x90] sm:$0xff] %vm8877, %v9436
          %9469 = vst.msk [vmem:[#allocation2 + $0x98] sm:$0xff] %vm8877, %v9437
          %9470 = vst.msk [vmem:[#allocation2 + $0xa0] sm:$0xff] %vm8877, %v9438
          %9471 = vst.msk [vmem:[#allocation2 + $0xa8] sm:$0xff] %vm8877, %v9439
          %9472 = vst.msk [vmem:[#allocation2 + $0xb0] sm:$0xff] %vm8877, %v9440
          %9473 = vst.msk [vmem:[#allocation2 + $0xb8] sm:$0xff] %vm8877, %v9441
          %9474 = vst.msk [vmem:[#allocation2 + $0xc0] sm:$0xff] %vm8877, %v9442
          %9475 = vst.msk [vmem:[#allocation2 + $0xc8] sm:$0xff] %vm8877, %v9443
          %9476 = vst.msk [vmem:[#allocation2 + $0xd0] sm:$0xff] %vm8877, %v9444
          %9477 = vst.msk [vmem:[#allocation2 + $0xd8] sm:$0xff] %vm8877, %v9445
          %9478 = vst.msk [vmem:[#allocation2 + $0xe0] sm:$0xff] %vm8877, %v9446
          %9479 = vst.msk [vmem:[#allocation2 + $0xe8] sm:$0xff] %vm8877, %v9447
          %9480 = vst.msk [vmem:[#allocation2 + $0xf0] sm:$0xff] %vm8877, %v9448
          %9481 = vst.msk [vmem:[#allocation2 + $0xf8] sm:$0xff] %vm8877, %v9449
        $region117: #{tpu_custom_call.1} parent=96 // pred_fallthru
          _
        %v9482 = vld [vmem:[#allocation2] sm:$0xff]
        %v9483 = vld [vmem:[#allocation2 + $0x8] sm:$0xff]
        %v9484 = vld [vmem:[#allocation2 + $0x10] sm:$0xff]
        %v9485 = vld [vmem:[#allocation2 + $0x18] sm:$0xff]
        %v9486 = vld [vmem:[#allocation2 + $0x20] sm:$0xff]
        %v9487 = vld [vmem:[#allocation2 + $0x28] sm:$0xff]
        %v9488 = vld [vmem:[#allocation2 + $0x30] sm:$0xff]
        %v9489 = vld [vmem:[#allocation2 + $0x38] sm:$0xff]
        %v9490 = vld [vmem:[#allocation2 + $0x40] sm:$0xff]
        %v9491 = vld [vmem:[#allocation2 + $0x48] sm:$0xff]
        %v9492 = vld [vmem:[#allocation2 + $0x50] sm:$0xff]
        %v9493 = vld [vmem:[#allocation2 + $0x58] sm:$0xff]
        %v9494 = vld [vmem:[#allocation2 + $0x60] sm:$0xff]
        %v9495 = vld [vmem:[#allocation2 + $0x68] sm:$0xff]
        %v9496 = vld [vmem:[#allocation2 + $0x70] sm:$0xff]
        %v9497 = vld [vmem:[#allocation2 + $0x78] sm:$0xff]
        %v9498 = vld [vmem:[#allocation2 + $0x80] sm:$0xff]
        %v9499 = vld [vmem:[#allocation2 + $0x88] sm:$0xff]
        %v9500 = vld [vmem:[#allocation2 + $0x90] sm:$0xff]
        %v9501 = vld [vmem:[#allocation2 + $0x98] sm:$0xff]
        %v9502 = vld [vmem:[#allocation2 + $0xa0] sm:$0xff]
        %v9503 = vld [vmem:[#allocation2 + $0xa8] sm:$0xff]
        %v9504 = vld [vmem:[#allocation2 + $0xb0] sm:$0xff]
        %v9505 = vld [vmem:[#allocation2 + $0xb8] sm:$0xff]
        %v9506 = vld [vmem:[#allocation2 + $0xc0] sm:$0xff]
        %v9507 = vld [vmem:[#allocation2 + $0xc8] sm:$0xff]
        %v9508 = vld [vmem:[#allocation2 + $0xd0] sm:$0xff]
        %v9509 = vld [vmem:[#allocation2 + $0xd8] sm:$0xff]
        %v9510 = vld [vmem:[#allocation2 + $0xe0] sm:$0xff]
        %v9511 = vld [vmem:[#allocation2 + $0xe8] sm:$0xff]
        %v9512 = vld [vmem:[#allocation2 + $0xf0] sm:$0xff]
        %v9513 = vld [vmem:[#allocation2 + $0xf8] sm:$0xff]
        %v9514 = vld [vmem:[%s444] sm:$0xf]
        %v9515 = vld [vmem:[%s444 + $0x4] sm:$0xf]
        %v9516 = vld [vmem:[%s444 + $0x8] sm:$0xf]
        %v9517 = vld [vmem:[%s444 + $0xc] sm:$0xf]
        %v9518 = vld [vmem:[%s444 + $0x10] sm:$0xf]
        %v9519 = vld [vmem:[%s444 + $0x14] sm:$0xf]
        %v9520 = vld [vmem:[%s444 + $0x18] sm:$0xf]
        %v9521 = vld [vmem:[%s444 + $0x1c] sm:$0xf]
        %v9522 = vld [vmem:[%s484] sm:$0x1]
        %v9524 = vlaneseq
        %v9525 = vshrl.u32 %v9524, 7
        %v9526 = vsub.s32 0, %v9525
        %v9527 = vrot.slane %v9522, %v9526
        %v9537 = vunpack.c.l.b16 %v9514
        %v9538 = vunpack.c.l.b16 %v9515
        %v9539 = vunpack.c.l.b16 %v9516
        %v9540 = vunpack.c.l.b16 %v9517
        %v9541 = vunpack.c.l.b16 %v9518
        %v9542 = vunpack.c.l.b16 %v9519
        %v9543 = vunpack.c.l.b16 %v9520
        %v9544 = vunpack.c.l.b16 %v9521
        %v9545 = vpack.c.b16 %v9538, %v9537
        %v9546 = vpack.c.b16 %v9540, %v9539
        %v9547 = vpack.c.b16 %v9542, %v9541
        %v9548 = vpack.c.b16 %v9544, %v9543
        %vm9553 = vcmask 523264
        %v9555 = vsel %vm9553, %v9482, 0
        %v9558 = vsel %vm9553, %v9483, 0
        %v9561 = vsel %vm9553, %v9484, 0
        %v9564 = vsel %vm9553, %v9485, 0
        %v9567 = vsel %vm9553, %v9486, 0
        %v9570 = vsel %vm9553, %v9487, 0
        %v9573 = vsel %vm9553, %v9488, 0
        %v9576 = vsel %vm9553, %v9489, 0
        %v9579 = vsel %vm9553, %v9490, 0
        %v9582 = vsel %vm9553, %v9491, 0
        %v9585 = vsel %vm9553, %v9492, 0
        %v9588 = vsel %vm9553, %v9493, 0
        %v9591 = vsel %vm9553, %v9494, 0
        %v9594 = vsel %vm9553, %v9495, 0
        %v9597 = vsel %vm9553, %v9496, 0
        %v9600 = vsel %vm9553, %v9497, 0
        %v9603 = vsel %vm9553, %v9498, 0
        %v9606 = vsel %vm9553, %v9499, 0
        %v9609 = vsel %vm9553, %v9500, 0
        %v9612 = vsel %vm9553, %v9501, 0
        %v9615 = vsel %vm9553, %v9502, 0
        %v9618 = vsel %vm9553, %v9503, 0
        %v9621 = vsel %vm9553, %v9504, 0
        %v9624 = vsel %vm9553, %v9505, 0
        %v9627 = vsel %vm9553, %v9506, 0
        %v9630 = vsel %vm9553, %v9507, 0
        %v9633 = vsel %vm9553, %v9508, 0
        %v9636 = vsel %vm9553, %v9509, 0
        %v9639 = vsel %vm9553, %v9510, 0
        %v9642 = vsel %vm9553, %v9511, 0
        %v9645 = vsel %vm9553, %v9512, 0
        %v9648 = vsel %vm9553, %v9513, 0
        %9650 = vmatprep.subr.bf16.mxu0 0
        %9651 = vmatpush1.bf16.msra.mxu0 %v9545
        %9652 = vmatprep.subr.bf16.mxu0 0
        %9653 = vmatpush1.bf16.msra.mxu0 %v9546
        %9654 = vmatprep.subr.bf16.mxu0 0
        %9655 = vmatpush1.bf16.msra.mxu0 %v9547
        %9656 = vmatprep.subr.bf16.mxu0 0
        %9657 = vmatpush1.bf16.msra.mxu0 %v9548
        %9658 = vmatprep.subr.bf16.mxu0 0
        %9659 = vmatpush1.bf16.msra.mxu0 0
        %9660 = vmatprep.subr.bf16.mxu0 0
        %9661 = vmatpush1.bf16.msra.mxu0 0
        %9662 = vmatprep.subr.bf16.mxu0 0
        %9663 = vmatpush1.bf16.msra.mxu0 0
        %9664 = vmatprep.subr.bf16.mxu0 0
        %9665 = vmatpush1.bf16.msra.mxu0 0
        %9666 = vmatprep.subr.bf16.mxu0 0
        %9667 = vmatpush1.bf16.msra.mxu0 0
        %9668 = vmatprep.subr.bf16.mxu0 0
        %9669 = vmatpush1.bf16.msra.mxu0 0
        %9670 = vmatprep.subr.bf16.mxu0 0
        %9671 = vmatpush1.bf16.msra.mxu0 0
        %9672 = vmatprep.subr.bf16.mxu0 0
        %9673 = vmatpush1.bf16.msra.mxu0 0
        %9674 = vmatprep.subr.bf16.mxu0 0
        %9675 = vmatpush1.bf16.msra.mxu0 0
        %9676 = vmatprep.subr.bf16.mxu0 0
        %9677 = vmatpush1.bf16.msra.mxu0 0
        %9678 = vmatprep.subr.bf16.mxu0 0
        %9679 = vmatpush1.bf16.msra.mxu0 0
        %9680 = vmatprep.subr.bf16.mxu0 0
        %9681 = vmatpush1.bf16.msra.mxu0 0
        %9682 = vmatprep.mubr.bf16.mxu0 0
        %9683 = vmatmul.mubr.bf16.gmra.mrb[0].mxu0 %v9555
        %v9684 = vpop.f32.mrb[0].mxu0
        %v9685 = vadd.f32 %v9527, %v9684
        %v9686 = vpop.f32.mrb[0].mxu0
        %v9687 = vpop.f32.mrb[0].mxu0
        %v9688 = vadd.f32 %v9527, %v9687
        %v9689 = vpop.f32.mrb[0].mxu0
        %9690 = vmatprep.mubr.bf16.mxu0 0
        %9691 = vmatmul.mubr.bf16.gmra.mrb[0].mxu0 %v9558
        %v9692 = vpop.f32.mrb[0].mxu0
        %v9693 = vadd.f32 %v9527, %v9692
        %v9694 = vpop.f32.mrb[0].mxu0
        %v9695 = vpop.f32.mrb[0].mxu0
        %v9696 = vadd.f32 %v9527, %v9695
        %v9697 = vpop.f32.mrb[0].mxu0
        %9698 = vmatprep.mubr.bf16.mxu0 0
        %9699 = vmatmul.mubr.bf16.gmra.mrb[0].mxu0 %v9561
        %v9700 = vpop.f32.mrb[0].mxu0
        %v9701 = vadd.f32 %v9527, %v9700
        %v9702 = vpop.f32.mrb[0].mxu0
        %v9703 = vpop.f32.mrb[0].mxu0
        %v9704 = vadd.f32 %v9527, %v9703
        %v9705 = vpop.f32.mrb[0].mxu0
        %9706 = vmatprep.mubr.bf16.mxu0 0
        %9707 = vmatmul.mubr.bf16.gmra.mrb[0].mxu0 %v9564
        %v9708 = vpop.f32.mrb[0].mxu0
        %v9709 = vadd.f32 %v9527, %v9708
        %v9710 = vpop.f32.mrb[0].mxu0
        %v9711 = vpop.f32.mrb[0].mxu0
        %v9712 = vadd.f32 %v9527, %v9711
        %v9713 = vpop.f32.mrb[0].mxu0
        %9714 = vmatprep.mubr.bf16.mxu0 0
        %9715 = vmatmul.mubr.bf16.gmra.mrb[0].mxu0 %v9567
        %v9716 = vpop.f32.mrb[0].mxu0
        %v9717 = vadd.f32 %v9527, %v9716
        %v9718 = vpop.f32.mrb[0].mxu0
        %v9719 = vpop.f32.mrb[0].mxu0
        %v9720 = vadd.f32 %v9527, %v9719
        %v9721 = vpop.f32.mrb[0].mxu0
        %9722 = vmatprep.mubr.bf16.mxu0 0
        %9723 = vmatmul.mubr.bf16.gmra.mrb[0].mxu0 %v9570
        %v9724 = vpop.f32.mrb[0].mxu0
        %v9725 = vadd.f32 %v9527, %v9724
        %v9726 = vpop.f32.mrb[0].mxu0
        %v9727 = vpop.f32.mrb[0].mxu0
        %v9728 = vadd.f32 %v9527, %v9727
        %v9729 = vpop.f32.mrb[0].mxu0
        %9730 = vmatprep.mubr.bf16.mxu0 0
        %9731 = vmatmul.mubr.bf16.gmra.mrb[0].mxu0 %v9573
        %v9732 = vpop.f32.mrb[0].mxu0
        %v9733 = vadd.f32 %v9527, %v9732
        %v9734 = vpop.f32.mrb[0].mxu0
        %v9735 = vpop.f32.mrb[0].mxu0
        %v9736 = vadd.f32 %v9527, %v9735
        %v9737 = vpop.f32.mrb[0].mxu0
        %9738 = vmatprep.mubr.bf16.mxu0 0
        %9739 = vmatmul.mubr.bf16.gmra.mrb[0].mxu0 %v9576
        %v9740 = vpop.f32.mrb[0].mxu0
        %v9741 = vadd.f32 %v9527, %v9740
        %v9742 = vpop.f32.mrb[0].mxu0
        %v9743 = vpop.f32.mrb[0].mxu0
        %v9744 = vadd.f32 %v9527, %v9743
        %v9745 = vpop.f32.mrb[0].mxu0
        %9746 = vmatprep.mubr.bf16.mxu0 0
        %9747 = vmatmul.mubr.bf16.gmra.mrb[0].mxu0 %v9579
        %v9748 = vpop.f32.mrb[0].mxu0
        %v9749 = vadd.f32 %v9527, %v9748
        %v9750 = vpop.f32.mrb[0].mxu0
        %v9751 = vpop.f32.mrb[0].mxu0
        %v9752 = vadd.f32 %v9527, %v9751
        %v9753 = vpop.f32.mrb[0].mxu0
        %9754 = vmatprep.mubr.bf16.mxu0 0
        %9755 = vmatmul.mubr.bf16.gmra.mrb[0].mxu0 %v9582
        %v9756 = vpop.f32.mrb[0].mxu0
        %v9757 = vadd.f32 %v9527, %v9756
        %v9758 = vpop.f32.mrb[0].mxu0
        %v9759 = vpop.f32.mrb[0].mxu0
        %v9760 = vadd.f32 %v9527, %v9759
        %v9761 = vpop.f32.mrb[0].mxu0
        %9762 = vmatprep.mubr.bf16.mxu0 0
        %9763 = vmatmul.mubr.bf16.gmra.mrb[0].mxu0 %v9585
        %v9764 = vpop.f32.mrb[0].mxu0
        %v9765 = vadd.f32 %v9527, %v9764
        %v9766 = vpop.f32.mrb[0].mxu0
        %v9767 = vpop.f32.mrb[0].mxu0
        %v9768 = vadd.f32 %v9527, %v9767
        %v9769 = vpop.f32.mrb[0].mxu0
        %9770 = vmatprep.mubr.bf16.mxu0 0
        %9771 = vmatmul.mubr.bf16.gmra.mrb[0].mxu0 %v9588
        %v9772 = vpop.f32.mrb[0].mxu0
        %v9773 = vadd.f32 %v9527, %v9772
        %v9774 = vpop.f32.mrb[0].mxu0
        %v9775 = vpop.f32.mrb[0].mxu0
        %v9776 = vadd.f32 %v9527, %v9775
        %v9777 = vpop.f32.mrb[0].mxu0
        %9778 = vmatprep.mubr.bf16.mxu0 0
        %9779 = vmatmul.mubr.bf16.gmra.mrb[0].mxu0 %v9591
        %v9780 = vpop.f32.mrb[0].mxu0
        %v9781 = vadd.f32 %v9527, %v9780
        %v9782 = vpop.f32.mrb[0].mxu0
        %v9783 = vpop.f32.mrb[0].mxu0
        %v9784 = vadd.f32 %v9527, %v9783
        %v9785 = vpop.f32.mrb[0].mxu0
        %9786 = vmatprep.mubr.bf16.mxu0 0
        %9787 = vmatmul.mubr.bf16.gmra.mrb[0].mxu0 %v9594
        %v9788 = vpop.f32.mrb[0].mxu0
        %v9789 = vadd.f32 %v9527, %v9788
        %v9790 = vpop.f32.mrb[0].mxu0
        %v9791 = vpop.f32.mrb[0].mxu0
        %v9792 = vadd.f32 %v9527, %v9791
        %v9793 = vpop.f32.mrb[0].mxu0
        %9794 = vmatprep.mubr.bf16.mxu0 0
        %9795 = vmatmul.mubr.bf16.gmra.mrb[0].mxu0 %v9597
        %v9796 = vpop.f32.mrb[0].mxu0
        %v9797 = vadd.f32 %v9527, %v9796
        %v9798 = vpop.f32.mrb[0].mxu0
        %v9799 = vpop.f32.mrb[0].mxu0
        %v9800 = vadd.f32 %v9527, %v9799
        %v9801 = vpop.f32.mrb[0].mxu0
        %9802 = vmatprep.mubr.bf16.mxu0 0
        %9803 = vmatmul.mubr.bf16.gmra.mrb[0].mxu0 %v9600
        %v9804 = vpop.f32.mrb[0].mxu0
        %v9805 = vadd.f32 %v9527, %v9804
        %v9806 = vpop.f32.mrb[0].mxu0
        %v9807 = vpop.f32.mrb[0].mxu0
        %v9808 = vadd.f32 %v9527, %v9807
        %v9809 = vpop.f32.mrb[0].mxu0
        %9810 = vmatprep.mubr.bf16.mxu0 0
        %9811 = vmatmul.mubr.bf16.gmra.mrb[0].mxu0 %v9603
        %v9812 = vpop.f32.mrb[0].mxu0
        %v9813 = vadd.f32 %v9527, %v9812
        %v9814 = vpop.f32.mrb[0].mxu0
        %v9815 = vpop.f32.mrb[0].mxu0
        %v9816 = vadd.f32 %v9527, %v9815
        %v9817 = vpop.f32.mrb[0].mxu0
        %9818 = vmatprep.mubr.bf16.mxu0 0
        %9819 = vmatmul.mubr.bf16.gmra.mrb[0].mxu0 %v9606
        %v9820 = vpop.f32.mrb[0].mxu0
        %v9821 = vadd.f32 %v9527, %v9820
        %v9822 = vpop.f32.mrb[0].mxu0
        %v9823 = vpop.f32.mrb[0].mxu0
        %v9824 = vadd.f32 %v9527, %v9823
        %v9825 = vpop.f32.mrb[0].mxu0
        %9826 = vmatprep.mubr.bf16.mxu0 0
        %9827 = vmatmul.mubr.bf16.gmra.mrb[0].mxu0 %v9609
        %v9828 = vpop.f32.mrb[0].mxu0
        %v9829 = vadd.f32 %v9527, %v9828
        %v9830 = vpop.f32.mrb[0].mxu0
        %v9831 = vpop.f32.mrb[0].mxu0
        %v9832 = vadd.f32 %v9527, %v9831
        %v9833 = vpop.f32.mrb[0].mxu0
        %9834 = vmatprep.mubr.bf16.mxu0 0
        %9835 = vmatmul.mubr.bf16.gmra.mrb[0].mxu0 %v9612
        %v9836 = vpop.f32.mrb[0].mxu0
        %v9837 = vadd.f32 %v9527, %v9836
        %v9838 = vpop.f32.mrb[0].mxu0
        %v9839 = vpop.f32.mrb[0].mxu0
        %v9840 = vadd.f32 %v9527, %v9839
        %v9841 = vpop.f32.mrb[0].mxu0
        %9842 = vmatprep.mubr.bf16.mxu0 0
        %9843 = vmatmul.mubr.bf16.gmra.mrb[0].mxu0 %v9615
        %v9844 = vpop.f32.mrb[0].mxu0
        %v9845 = vadd.f32 %v9527, %v9844
        %v9846 = vpop.f32.mrb[0].mxu0
        %v9847 = vpop.f32.mrb[0].mxu0
        %v9848 = vadd.f32 %v9527, %v9847
        %v9849 = vpop.f32.mrb[0].mxu0
        %9850 = vmatprep.mubr.bf16.mxu0 0
        %9851 = vmatmul.mubr.bf16.gmra.mrb[0].mxu0 %v9618
        %v9852 = vpop.f32.mrb[0].mxu0
        %v9853 = vadd.f32 %v9527, %v9852
        %v9854 = vpop.f32.mrb[0].mxu0
        %v9855 = vpop.f32.mrb[0].mxu0
        %v9856 = vadd.f32 %v9527, %v9855
        %v9857 = vpop.f32.mrb[0].mxu0
        %9858 = vmatprep.mubr.bf16.mxu0 0
        %9859 = vmatmul.mubr.bf16.gmra.mrb[0].mxu0 %v9621
        %v9860 = vpop.f32.mrb[0].mxu0
        %v9861 = vadd.f32 %v9527, %v9860
        %v9862 = vpop.f32.mrb[0].mxu0
        %v9863 = vpop.f32.mrb[0].mxu0
        %v9864 = vadd.f32 %v9527, %v9863
        %v9865 = vpop.f32.mrb[0].mxu0
        %9866 = vmatprep.mubr.bf16.mxu0 0
        %9867 = vmatmul.mubr.bf16.gmra.mrb[0].mxu0 %v9624
        %v9868 = vpop.f32.mrb[0].mxu0
        %v9869 = vadd.f32 %v9527, %v9868
        %v9870 = vpop.f32.mrb[0].mxu0
        %v9871 = vpop.f32.mrb[0].mxu0
        %v9872 = vadd.f32 %v9527, %v9871
        %v9873 = vpop.f32.mrb[0].mxu0
        %9874 = vmatprep.mubr.bf16.mxu0 0
        %9875 = vmatmul.mubr.bf16.gmra.mrb[0].mxu0 %v9627
        %v9876 = vpop.f32.mrb[0].mxu0
        %v9877 = vadd.f32 %v9527, %v9876
        %v9878 = vpop.f32.mrb[0].mxu0
        %v9879 = vpop.f32.mrb[0].mxu0
        %v9880 = vadd.f32 %v9527, %v9879
        %v9881 = vpop.f32.mrb[0].mxu0
        %9882 = vmatprep.mubr.bf16.mxu0 0
        %9883 = vmatmul.mubr.bf16.gmra.mrb[0].mxu0 %v9630
        %v9884 = vpop.f32.mrb[0].mxu0
        %v9885 = vadd.f32 %v9527, %v9884
        %v9886 = vpop.f32.mrb[0].mxu0
        %v9887 = vpop.f32.mrb[0].mxu0
        %v9888 = vadd.f32 %v9527, %v9887
        %v9889 = vpop.f32.mrb[0].mxu0
        %9890 = vmatprep.mubr.bf16.mxu0 0
        %9891 = vmatmul.mubr.bf16.gmra.mrb[0].mxu0 %v9633
        %v9892 = vpop.f32.mrb[0].mxu0
        %v9893 = vadd.f32 %v9527, %v9892
        %v9894 = vpop.f32.mrb[0].mxu0
        %v9895 = vpop.f32.mrb[0].mxu0
        %v9896 = vadd.f32 %v9527, %v9895
        %v9897 = vpop.f32.mrb[0].mxu0
        %9898 = vmatprep.mubr.bf16.mxu0 0
        %9899 = vmatmul.mubr.bf16.gmra.mrb[0].mxu0 %v9636
        %v9900 = vpop.f32.mrb[0].mxu0
        %v9901 = vadd.f32 %v9527, %v9900
        %v9902 = vpop.f32.mrb[0].mxu0
        %v9903 = vpop.f32.mrb[0].mxu0
        %v9904 = vadd.f32 %v9527, %v9903
        %v9905 = vpop.f32.mrb[0].mxu0
        %9906 = vmatprep.mubr.bf16.mxu0 0
        %9907 = vmatmul.mubr.bf16.gmra.mrb[0].mxu0 %v9639
        %v9908 = vpop.f32.mrb[0].mxu0
        %v9909 = vadd.f32 %v9527, %v9908
        %v9910 = vpop.f32.mrb[0].mxu0
        %v9911 = vpop.f32.mrb[0].mxu0
        %v9912 = vadd.f32 %v9527, %v9911
        %v9913 = vpop.f32.mrb[0].mxu0
        %9914 = vmatprep.mubr.bf16.mxu0 0
        %9915 = vmatmul.mubr.bf16.gmra.mrb[0].mxu0 %v9642
        %v9916 = vpop.f32.mrb[0].mxu0
        %v9917 = vadd.f32 %v9527, %v9916
        %v9918 = vpop.f32.mrb[0].mxu0
        %v9919 = vpop.f32.mrb[0].mxu0
        %v9920 = vadd.f32 %v9527, %v9919
        %v9921 = vpop.f32.mrb[0].mxu0
        %9922 = vmatprep.mubr.bf16.mxu0 0
        %9923 = vmatmul.mubr.bf16.gmra.mrb[0].mxu0 %v9645
        %v9924 = vpop.f32.mrb[0].mxu0
        %v9925 = vadd.f32 %v9527, %v9924
        %v9926 = vpop.f32.mrb[0].mxu0
        %v9927 = vpop.f32.mrb[0].mxu0
        %v9928 = vadd.f32 %v9527, %v9927
        %v9929 = vpop.f32.mrb[0].mxu0
        %9930 = vmatprep.mubr.bf16.mxu0 0
        %9931 = vmatmul.mubr.bf16.gmra.mrb[0].mxu0 %v9648
        %v9932 = vpop.f32.mrb[0].mxu0
        %v9933 = vadd.f32 %v9527, %v9932
        %v9934 = vpop.f32.mrb[0].mxu0
        %v9935 = vpop.f32.mrb[0].mxu0
        %v9936 = vadd.f32 %v9527, %v9935
        %v9937 = vpop.f32.mrb[0].mxu0
        %9938 = vdwg.mxu0
        %9939 = vmax.xlane.f32.xlu0 %v9685
        %v9940 = vpop.xlane.xlu0 %9939
        %9941 = vmax.xlane.f32.xlu0 %v9688
        %v9942 = vpop.xlane.xlu0 %9941
        %9943 = vmax.xlane.f32.xlu0 %v9693
        %v9944 = vpop.xlane.xlu0 %9943
        %9945 = vmax.xlane.f32.xlu0 %v9696
        %v9946 = vpop.xlane.xlu0 %9945
        %9947 = vmax.xlane.f32.xlu0 %v9701
        %v9948 = vpop.xlane.xlu0 %9947
        %9949 = vmax.xlane.f32.xlu0 %v9704
        %v9950 = vpop.xlane.xlu0 %9949
        %9951 = vmax.xlane.f32.xlu0 %v9709
        %v9952 = vpop.xlane.xlu0 %9951
        %9953 = vmax.xlane.f32.xlu0 %v9712
        %v9954 = vpop.xlane.xlu0 %9953
        %9955 = vmax.xlane.f32.xlu0 %v9717
        %v9956 = vpop.xlane.xlu0 %9955
        %9957 = vmax.xlane.f32.xlu0 %v9720
        %v9958 = vpop.xlane.xlu0 %9957
        %9959 = vmax.xlane.f32.xlu0 %v9725
        %v9960 = vpop.xlane.xlu0 %9959
        %9961 = vmax.xlane.f32.xlu0 %v9728
        %v9962 = vpop.xlane.xlu0 %9961
        %9963 = vmax.xlane.f32.xlu0 %v9733
        %v9964 = vpop.xlane.xlu0 %9963
        %9965 = vmax.xlane.f32.xlu0 %v9736
        %v9966 = vpop.xlane.xlu0 %9965
        %9967 = vmax.xlane.f32.xlu0 %v9741
        %v9968 = vpop.xlane.xlu0 %9967
        %9969 = vmax.xlane.f32.xlu0 %v9744
        %v9970 = vpop.xlane.xlu0 %9969
        %9971 = vmax.xlane.f32.xlu0 %v9749
        %v9972 = vpop.xlane.xlu0 %9971
        %9973 = vmax.xlane.f32.xlu0 %v9752
        %v9974 = vpop.xlane.xlu0 %9973
        %9975 = vmax.xlane.f32.xlu0 %v9757
        %v9976 = vpop.xlane.xlu0 %9975
        %9977 = vmax.xlane.f32.xlu0 %v9760
        %v9978 = vpop.xlane.xlu0 %9977
        %9979 = vmax.xlane.f32.xlu0 %v9765
        %v9980 = vpop.xlane.xlu0 %9979
        %9981 = vmax.xlane.f32.xlu0 %v9768
        %v9982 = vpop.xlane.xlu0 %9981
        %9983 = vmax.xlane.f32.xlu0 %v9773
        %v9984 = vpop.xlane.xlu0 %9983
        %9985 = vmax.xlane.f32.xlu0 %v9776
        %v9986 = vpop.xlane.xlu0 %9985
        %9987 = vmax.xlane.f32.xlu0 %v9781
        %v9988 = vpop.xlane.xlu0 %9987
        %9989 = vmax.xlane.f32.xlu0 %v9784
        %v9990 = vpop.xlane.xlu0 %9989
        %9991 = vmax.xlane.f32.xlu0 %v9789
        %v9992 = vpop.xlane.xlu0 %9991
        %9993 = vmax.xlane.f32.xlu0 %v9792
        %v9994 = vpop.xlane.xlu0 %9993
        %9995 = vmax.xlane.f32.xlu0 %v9797
        %v9996 = vpop.xlane.xlu0 %9995
        %9997 = vmax.xlane.f32.xlu0 %v9800
        %v9998 = vpop.xlane.xlu0 %9997
        %9999 = vmax.xlane.f32.xlu0 %v9805
        %v10000 = vpop.xlane.xlu0 %9999
        %10001 = vmax.xlane.f32.xlu0 %v9808
        %v10002 = vpop.xlane.xlu0 %10001
        %10003 = vmax.xlane.f32.xlu0 %v9813
        %v10004 = vpop.xlane.xlu0 %10003
        %10005 = vmax.xlane.f32.xlu0 %v9816
        %v10006 = vpop.xlane.xlu0 %10005
        %10007 = vmax.xlane.f32.xlu0 %v9821
        %v10008 = vpop.xlane.xlu0 %10007
        %10009 = vmax.xlane.f32.xlu0 %v9824
        %v10010 = vpop.xlane.xlu0 %10009
        %10011 = vmax.xlane.f32.xlu0 %v9829
        %v10012 = vpop.xlane.xlu0 %10011
        %10013 = vmax.xlane.f32.xlu0 %v9832
        %v10014 = vpop.xlane.xlu0 %10013
        %10015 = vmax.xlane.f32.xlu0 %v9837
        %v10016 = vpop.xlane.xlu0 %10015
        %10017 = vmax.xlane.f32.xlu0 %v9840
        %v10018 = vpop.xlane.xlu0 %10017
        %10019 = vmax.xlane.f32.xlu0 %v9845
        %v10020 = vpop.xlane.xlu0 %10019
        %10021 = vmax.xlane.f32.xlu0 %v9848
        %v10022 = vpop.xlane.xlu0 %10021
        %10023 = vmax.xlane.f32.xlu0 %v9853
        %v10024 = vpop.xlane.xlu0 %10023
        %10025 = vmax.xlane.f32.xlu0 %v9856
        %v10026 = vpop.xlane.xlu0 %10025
        %10027 = vmax.xlane.f32.xlu0 %v9861
        %v10028 = vpop.xlane.xlu0 %10027
        %10029 = vmax.xlane.f32.xlu0 %v9864
        %v10030 = vpop.xlane.xlu0 %10029
        %10031 = vmax.xlane.f32.xlu0 %v9869
        %v10032 = vpop.xlane.xlu0 %10031
        %10033 = vmax.xlane.f32.xlu0 %v9872
        %v10034 = vpop.xlane.xlu0 %10033
        %10035 = vmax.xlane.f32.xlu0 %v9877
        %v10036 = vpop.xlane.xlu0 %10035
        %10037 = vmax.xlane.f32.xlu0 %v9880
        %v10038 = vpop.xlane.xlu0 %10037
        %10039 = vmax.xlane.f32.xlu0 %v9885
        %v10040 = vpop.xlane.xlu0 %10039
        %10041 = vmax.xlane.f32.xlu0 %v9888
        %v10042 = vpop.xlane.xlu0 %10041
        %10043 = vmax.xlane.f32.xlu0 %v9893
        %v10044 = vpop.xlane.xlu0 %10043
        %10045 = vmax.xlane.f32.xlu0 %v9896
        %v10046 = vpop.xlane.xlu0 %10045
        %10047 = vmax.xlane.f32.xlu0 %v9901
        %v10048 = vpop.xlane.xlu0 %10047
        %10049 = vmax.xlane.f32.xlu0 %v9904
        %v10050 = vpop.xlane.xlu0 %10049
        %10051 = vmax.xlane.f32.xlu0 %v9909
        %v10052 = vpop.xlane.xlu0 %10051
        %10053 = vmax.xlane.f32.xlu0 %v9912
        %v10054 = vpop.xlane.xlu0 %10053
        %10055 = vmax.xlane.f32.xlu0 %v9917
        %v10056 = vpop.xlane.xlu0 %10055
        %10057 = vmax.xlane.f32.xlu0 %v9920
        %v10058 = vpop.xlane.xlu0 %10057
        %10059 = vmax.xlane.f32.xlu0 %v9925
        %v10060 = vpop.xlane.xlu0 %10059
        %10061 = vmax.xlane.f32.xlu0 %v9928
        %v10062 = vpop.xlane.xlu0 %10061
        %10063 = vmax.xlane.f32.xlu0 %v9933
        %v10064 = vpop.xlane.xlu0 %10063
        %10065 = vmax.xlane.f32.xlu0 %v9936
        %v10066 = vpop.xlane.xlu0 %10065
        %v10067 = vsub.f32 %v9685, %v9940
        %v10068 = vsub.f32 %v9688, %v9942
        %v10069 = vsub.f32 %v9693, %v9944
        %v10070 = vsub.f32 %v9696, %v9946
        %v10071 = vsub.f32 %v9701, %v9948
        %v10072 = vsub.f32 %v9704, %v9950
        %v10073 = vsub.f32 %v9709, %v9952
        %v10074 = vsub.f32 %v9712, %v9954
        %v10075 = vsub.f32 %v9717, %v9956
        %v10076 = vsub.f32 %v9720, %v9958
        %v10077 = vsub.f32 %v9725, %v9960
        %v10078 = vsub.f32 %v9728, %v9962
        %v10079 = vsub.f32 %v9733, %v9964
        %v10080 = vsub.f32 %v9736, %v9966
        %v10081 = vsub.f32 %v9741, %v9968
        %v10082 = vsub.f32 %v9744, %v9970
        %v10083 = vsub.f32 %v9749, %v9972
        %v10084 = vsub.f32 %v9752, %v9974
        %v10085 = vsub.f32 %v9757, %v9976
        %v10086 = vsub.f32 %v9760, %v9978
        %v10087 = vsub.f32 %v9765, %v9980
        %v10088 = vsub.f32 %v9768, %v9982
        %v10089 = vsub.f32 %v9773, %v9984
        %v10090 = vsub.f32 %v9776, %v9986
        %v10091 = vsub.f32 %v9781, %v9988
        %v10092 = vsub.f32 %v9784, %v9990
        %v10093 = vsub.f32 %v9789, %v9992
        %v10094 = vsub.f32 %v9792, %v9994
        %v10095 = vsub.f32 %v9797, %v9996
        %v10096 = vsub.f32 %v9800, %v9998
        %v10097 = vsub.f32 %v9805, %v10000
        %v10098 = vsub.f32 %v9808, %v10002
        %v10099 = vsub.f32 %v9813, %v10004
        %v10100 = vsub.f32 %v9816, %v10006
        %v10101 = vsub.f32 %v9821, %v10008
        %v10102 = vsub.f32 %v9824, %v10010
        %v10103 = vsub.f32 %v9829, %v10012
        %v10104 = vsub.f32 %v9832, %v10014
        %v10105 = vsub.f32 %v9837, %v10016
        %v10106 = vsub.f32 %v9840, %v10018
        %v10107 = vsub.f32 %v9845, %v10020
        %v10108 = vsub.f32 %v9848, %v10022
        %v10109 = vsub.f32 %v9853, %v10024
        %v10110 = vsub.f32 %v9856, %v10026
        %v10111 = vsub.f32 %v9861, %v10028
        %v10112 = vsub.f32 %v9864, %v10030
        %v10113 = vsub.f32 %v9869, %v10032
        %v10114 = vsub.f32 %v9872, %v10034
        %v10115 = vsub.f32 %v9877, %v10036
        %v10116 = vsub.f32 %v9880, %v10038
        %v10117 = vsub.f32 %v9885, %v10040
        %v10118 = vsub.f32 %v9888, %v10042
        %v10119 = vsub.f32 %v9893, %v10044
        %v10120 = vsub.f32 %v9896, %v10046
        %v10121 = vsub.f32 %v9901, %v10048
        %v10122 = vsub.f32 %v9904, %v10050
        %v10123 = vsub.f32 %v9909, %v10052
        %v10124 = vsub.f32 %v9912, %v10054
        %v10125 = vsub.f32 %v9917, %v10056
        %v10126 = vsub.f32 %v9920, %v10058
        %v10127 = vsub.f32 %v9925, %v10060
        %v10128 = vsub.f32 %v9928, %v10062
        %v10129 = vsub.f32 %v9933, %v10064
        %v10130 = vsub.f32 %v9936, %v10066
        %v10131 = vmul.f32 %v10067, 1.442695
        %v10132 = vpow.pop %v10131
        %v10133 = vmul.f32 %v10068, 1.442695
        %v10134 = vpow.pop %v10133
        %v10135 = vmul.f32 %v10069, 1.442695
        %v10136 = vpow.pop %v10135
        %v10137 = vmul.f32 %v10070, 1.442695
        %v10138 = vpow.pop %v10137
        %v10139 = vmul.f32 %v10071, 1.442695
        %v10140 = vpow.pop %v10139
        %v10141 = vmul.f32 %v10072, 1.442695
        %v10142 = vpow.pop %v10141
        %v10143 = vmul.f32 %v10073, 1.442695
        %v10144 = vpow.pop %v10143
        %v10145 = vmul.f32 %v10074, 1.442695
        %v10146 = vpow.pop %v10145
        %v10147 = vmul.f32 %v10075, 1.442695
        %v10148 = vpow.pop %v10147
        %v10149 = vmul.f32 %v10076, 1.442695
        %v10150 = vpow.pop %v10149
        %v10151 = vmul.f32 %v10077, 1.442695
        %v10152 = vpow.pop %v10151
        %v10153 = vmul.f32 %v10078, 1.442695
        %v10154 = vpow.pop %v10153
        %v10155 = vmul.f32 %v10079, 1.442695
        %v10156 = vpow.pop %v10155
        %v10157 = vmul.f32 %v10080, 1.442695
        %v10158 = vpow.pop %v10157
        %v10159 = vmul.f32 %v10081, 1.442695
        %v10160 = vpow.pop %v10159
        %v10161 = vmul.f32 %v10082, 1.442695
        %v10162 = vpow.pop %v10161
        %v10163 = vmul.f32 %v10083, 1.442695
        %v10164 = vpow.pop %v10163
        %v10165 = vmul.f32 %v10084, 1.442695
        %v10166 = vpow.pop %v10165
        %v10167 = vmul.f32 %v10085, 1.442695
        %v10168 = vpow.pop %v10167
        %v10169 = vmul.f32 %v10086, 1.442695
        %v10170 = vpow.pop %v10169
        %v10171 = vmul.f32 %v10087, 1.442695
        %v10172 = vpow.pop %v10171
        %v10173 = vmul.f32 %v10088, 1.442695
        %v10174 = vpow.pop %v10173
        %v10175 = vmul.f32 %v10089, 1.442695
        %v10176 = vpow.pop %v10175
        %v10177 = vmul.f32 %v10090, 1.442695
        %v10178 = vpow.pop %v10177
        %v10179 = vmul.f32 %v10091, 1.442695
        %v10180 = vpow.pop %v10179
        %v10181 = vmul.f32 %v10092, 1.442695
        %v10182 = vpow.pop %v10181
        %v10183 = vmul.f32 %v10093, 1.442695
        %v10184 = vpow.pop %v10183
        %v10185 = vmul.f32 %v10094, 1.442695
        %v10186 = vpow.pop %v10185
        %v10187 = vmul.f32 %v10095, 1.442695
        %v10188 = vpow.pop %v10187
        %v10189 = vmul.f32 %v10096, 1.442695
        %v10190 = vpow.pop %v10189
        %v10191 = vmul.f32 %v10097, 1.442695
        %v10192 = vpow.pop %v10191
        %v10193 = vmul.f32 %v10098, 1.442695
        %v10194 = vpow.pop %v10193
        %v10195 = vmul.f32 %v10099, 1.442695
        %v10196 = vpow.pop %v10195
        %v10197 = vmul.f32 %v10100, 1.442695
        %v10198 = vpow.pop %v10197
        %v10199 = vmul.f32 %v10101, 1.442695
        %v10200 = vpow.pop %v10199
        %v10201 = vmul.f32 %v10102, 1.442695
        %v10202 = vpow.pop %v10201
        %v10203 = vmul.f32 %v10103, 1.442695
        %v10204 = vpow.pop %v10203
        %v10205 = vmul.f32 %v10104, 1.442695
        %v10206 = vpow.pop %v10205
        %v10207 = vmul.f32 %v10105, 1.442695
        %v10208 = vpow.pop %v10207
        %v10209 = vmul.f32 %v10106, 1.442695
        %v10210 = vpow.pop %v10209
        %v10211 = vmul.f32 %v10107, 1.442695
        %v10212 = vpow.pop %v10211
        %v10213 = vmul.f32 %v10108, 1.442695
        %v10214 = vpow.pop %v10213
        %v10215 = vmul.f32 %v10109, 1.442695
        %v10216 = vpow.pop %v10215
        %v10217 = vmul.f32 %v10110, 1.442695
        %v10218 = vpow.pop %v10217
        %v10219 = vmul.f32 %v10111, 1.442695
        %v10220 = vpow.pop %v10219
        %v10221 = vmul.f32 %v10112, 1.442695
        %v10222 = vpow.pop %v10221
        %v10223 = vmul.f32 %v10113, 1.442695
        %v10224 = vpow.pop %v10223
        %v10225 = vmul.f32 %v10114, 1.442695
        %v10226 = vpow.pop %v10225
        %v10227 = vmul.f32 %v10115, 1.442695
        %v10228 = vpow.pop %v10227
        %v10229 = vmul.f32 %v10116, 1.442695
        %v10230 = vpow.pop %v10229
        %v10231 = vmul.f32 %v10117, 1.442695
        %v10232 = vpow.pop %v10231
        %v10233 = vmul.f32 %v10118, 1.442695
        %v10234 = vpow.pop %v10233
        %v10235 = vmul.f32 %v10119, 1.442695
        %v10236 = vpow.pop %v10235
        %v10237 = vmul.f32 %v10120, 1.442695
        %v10238 = vpow.pop %v10237
        %v10239 = vmul.f32 %v10121, 1.442695
        %v10240 = vpow.pop %v10239
        %v10241 = vmul.f32 %v10122, 1.442695
        %v10242 = vpow.pop %v10241
        %v10243 = vmul.f32 %v10123, 1.442695
        %v10244 = vpow.pop %v10243
        %v10245 = vmul.f32 %v10124, 1.442695
        %v10246 = vpow.pop %v10245
        %v10247 = vmul.f32 %v10125, 1.442695
        %v10248 = vpow.pop %v10247
        %v10249 = vmul.f32 %v10126, 1.442695
        %v10250 = vpow.pop %v10249
        %v10251 = vmul.f32 %v10127, 1.442695
        %v10252 = vpow.pop %v10251
        %v10253 = vmul.f32 %v10128, 1.442695
        %v10254 = vpow.pop %v10253
        %v10255 = vmul.f32 %v10129, 1.442695
        %v10256 = vpow.pop %v10255
        %v10257 = vmul.f32 %v10130, 1.442695
        %v10258 = vpow.pop %v10257
        %10259 = vadd.xlane.f32.xlu0 %v10132
        %v10260 = vpop.xlane.xlu0 %10259
        %10261 = vadd.xlane.f32.xlu0 %v10134
        %v10262 = vpop.xlane.xlu0 %10261
        %10263 = vadd.xlane.f32.xlu0 %v10136
        %v10264 = vpop.xlane.xlu0 %10263
        %10265 = vadd.xlane.f32.xlu0 %v10138
        %v10266 = vpop.xlane.xlu0 %10265
        %10267 = vadd.xlane.f32.xlu0 %v10140
        %v10268 = vpop.xlane.xlu0 %10267
        %10269 = vadd.xlane.f32.xlu0 %v10142
        %v10270 = vpop.xlane.xlu0 %10269
        %10271 = vadd.xlane.f32.xlu0 %v10144
        %v10272 = vpop.xlane.xlu0 %10271
        %10273 = vadd.xlane.f32.xlu0 %v10146
        %v10274 = vpop.xlane.xlu0 %10273
        %10275 = vadd.xlane.f32.xlu0 %v10148
        %v10276 = vpop.xlane.xlu0 %10275
        %10277 = vadd.xlane.f32.xlu0 %v10150
        %v10278 = vpop.xlane.xlu0 %10277
        %10279 = vadd.xlane.f32.xlu0 %v10152
        %v10280 = vpop.xlane.xlu0 %10279
        %10281 = vadd.xlane.f32.xlu0 %v10154
        %v10282 = vpop.xlane.xlu0 %10281
        %10283 = vadd.xlane.f32.xlu0 %v10156
        %v10284 = vpop.xlane.xlu0 %10283
        %10285 = vadd.xlane.f32.xlu0 %v10158
        %v10286 = vpop.xlane.xlu0 %10285
        %10287 = vadd.xlane.f32.xlu0 %v10160
        %v10288 = vpop.xlane.xlu0 %10287
        %10289 = vadd.xlane.f32.xlu0 %v10162
        %v10290 = vpop.xlane.xlu0 %10289
        %10291 = vadd.xlane.f32.xlu0 %v10164
        %v10292 = vpop.xlane.xlu0 %10291
        %10293 = vadd.xlane.f32.xlu0 %v10166
        %v10294 = vpop.xlane.xlu0 %10293
        %10295 = vadd.xlane.f32.xlu0 %v10168
        %v10296 = vpop.xlane.xlu0 %10295
        %10297 = vadd.xlane.f32.xlu0 %v10170
        %v10298 = vpop.xlane.xlu0 %10297
        %10299 = vadd.xlane.f32.xlu0 %v10172
        %v10300 = vpop.xlane.xlu0 %10299
        %10301 = vadd.xlane.f32.xlu0 %v10174
        %v10302 = vpop.xlane.xlu0 %10301
        %10303 = vadd.xlane.f32.xlu0 %v10176
        %v10304 = vpop.xlane.xlu0 %10303
        %10305 = vadd.xlane.f32.xlu0 %v10178
        %v10306 = vpop.xlane.xlu0 %10305
        %10307 = vadd.xlane.f32.xlu0 %v10180
        %v10308 = vpop.xlane.xlu0 %10307
        %10309 = vadd.xlane.f32.xlu0 %v10182
        %v10310 = vpop.xlane.xlu0 %10309
        %10311 = vadd.xlane.f32.xlu0 %v10184
        %v10312 = vpop.xlane.xlu0 %10311
        %10313 = vadd.xlane.f32.xlu0 %v10186
        %v10314 = vpop.xlane.xlu0 %10313
        %10315 = vadd.xlane.f32.xlu0 %v10188
        %v10316 = vpop.xlane.xlu0 %10315
        %10317 = vadd.xlane.f32.xlu0 %v10190
        %v10318 = vpop.xlane.xlu0 %10317
        %10319 = vadd.xlane.f32.xlu0 %v10192
        %v10320 = vpop.xlane.xlu0 %10319
        %10321 = vadd.xlane.f32.xlu0 %v10194
        %v10322 = vpop.xlane.xlu0 %10321
        %10323 = vadd.xlane.f32.xlu0 %v10196
        %v10324 = vpop.xlane.xlu0 %10323
        %10325 = vadd.xlane.f32.xlu0 %v10198
        %v10326 = vpop.xlane.xlu0 %10325
        %10327 = vadd.xlane.f32.xlu0 %v10200
        %v10328 = vpop.xlane.xlu0 %10327
        %10329 = vadd.xlane.f32.xlu0 %v10202
        %v10330 = vpop.xlane.xlu0 %10329
        %10331 = vadd.xlane.f32.xlu0 %v10204
        %v10332 = vpop.xlane.xlu0 %10331
        %10333 = vadd.xlane.f32.xlu0 %v10206
        %v10334 = vpop.xlane.xlu0 %10333
        %10335 = vadd.xlane.f32.xlu0 %v10208
        %v10336 = vpop.xlane.xlu0 %10335
        %10337 = vadd.xlane.f32.xlu0 %v10210
        %v10338 = vpop.xlane.xlu0 %10337
        %10339 = vadd.xlane.f32.xlu0 %v10212
        %v10340 = vpop.xlane.xlu0 %10339
        %10341 = vadd.xlane.f32.xlu0 %v10214
        %v10342 = vpop.xlane.xlu0 %10341
        %10343 = vadd.xlane.f32.xlu0 %v10216
        %v10344 = vpop.xlane.xlu0 %10343
        %10345 = vadd.xlane.f32.xlu0 %v10218
        %v10346 = vpop.xlane.xlu0 %10345
        %10347 = vadd.xlane.f32.xlu0 %v10220
        %v10348 = vpop.xlane.xlu0 %10347
        %10349 = vadd.xlane.f32.xlu0 %v10222
        %v10350 = vpop.xlane.xlu0 %10349
        %10351 = vadd.xlane.f32.xlu0 %v10224
        %v10352 = vpop.xlane.xlu0 %10351
        %10353 = vadd.xlane.f32.xlu0 %v10226
        %v10354 = vpop.xlane.xlu0 %10353
        %10355 = vadd.xlane.f32.xlu0 %v10228
        %v10356 = vpop.xlane.xlu0 %10355
        %10357 = vadd.xlane.f32.xlu0 %v10230
        %v10358 = vpop.xlane.xlu0 %10357
        %10359 = vadd.xlane.f32.xlu0 %v10232
        %v10360 = vpop.xlane.xlu0 %10359
        %10361 = vadd.xlane.f32.xlu0 %v10234
        %v10362 = vpop.xlane.xlu0 %10361
        %10363 = vadd.xlane.f32.xlu0 %v10236
        %v10364 = vpop.xlane.xlu0 %10363
        %10365 = vadd.xlane.f32.xlu0 %v10238
        %v10366 = vpop.xlane.xlu0 %10365
        %10367 = vadd.xlane.f32.xlu0 %v10240
        %v10368 = vpop.xlane.xlu0 %10367
        %10369 = vadd.xlane.f32.xlu0 %v10242
        %v10370 = vpop.xlane.xlu0 %10369
        %10371 = vadd.xlane.f32.xlu0 %v10244
        %v10372 = vpop.xlane.xlu0 %10371
        %10373 = vadd.xlane.f32.xlu0 %v10246
        %v10374 = vpop.xlane.xlu0 %10373
        %10375 = vadd.xlane.f32.xlu0 %v10248
        %v10376 = vpop.xlane.xlu0 %10375
        %10377 = vadd.xlane.f32.xlu0 %v10250
        %v10378 = vpop.xlane.xlu0 %10377
        %10379 = vadd.xlane.f32.xlu0 %v10252
        %v10380 = vpop.xlane.xlu0 %10379
        %10381 = vadd.xlane.f32.xlu0 %v10254
        %v10382 = vpop.xlane.xlu0 %10381
        %10383 = vadd.xlane.f32.xlu0 %v10256
        %v10384 = vpop.xlane.xlu0 %10383
        %10385 = vadd.xlane.f32.xlu0 %v10258
        %v10386 = vpop.xlane.xlu0 %10385
        %v10387 = vrcp.pop %v10260
        %v10388 = vrcp.pop %v10262
        %v10389 = vrcp.pop %v10264
        %v10390 = vrcp.pop %v10266
        %v10391 = vrcp.pop %v10268
        %v10392 = vrcp.pop %v10270
        %v10393 = vrcp.pop %v10272
        %v10394 = vrcp.pop %v10274
        %v10395 = vrcp.pop %v10276
        %v10396 = vrcp.pop %v10278
        %v10397 = vrcp.pop %v10280
        %v10398 = vrcp.pop %v10282
        %v10399 = vrcp.pop %v10284
        %v10400 = vrcp.pop %v10286
        %v10401 = vrcp.pop %v10288
        %v10402 = vrcp.pop %v10290
        %v10403 = vrcp.pop %v10292
        %v10404 = vrcp.pop %v10294
        %v10405 = vrcp.pop %v10296
        %v10406 = vrcp.pop %v10298
        %v10407 = vrcp.pop %v10300
        %v10408 = vrcp.pop %v10302
        %v10409 = vrcp.pop %v10304
        %v10410 = vrcp.pop %v10306
        %v10411 = vrcp.pop %v10308
        %v10412 = vrcp.pop %v10310
        %v10413 = vrcp.pop %v10312
        %v10414 = vrcp.pop %v10314
        %v10415 = vrcp.pop %v10316
        %v10416 = vrcp.pop %v10318
        %v10417 = vrcp.pop %v10320
        %v10418 = vrcp.pop %v10322
        %v10419 = vrcp.pop %v10324
        %v10420 = vrcp.pop %v10326
        %v10421 = vrcp.pop %v10328
        %v10422 = vrcp.pop %v10330
        %v10423 = vrcp.pop %v10332
        %v10424 = vrcp.pop %v10334
        %v10425 = vrcp.pop %v10336
        %v10426 = vrcp.pop %v10338
        %v10427 = vrcp.pop %v10340
        %v10428 = vrcp.pop %v10342
        %v10429 = vrcp.pop %v10344
        %v10430 = vrcp.pop %v10346
        %v10431 = vrcp.pop %v10348
        %v10432 = vrcp.pop %v10350
        %v10433 = vrcp.pop %v10352
        %v10434 = vrcp.pop %v10354
        %v10435 = vrcp.pop %v10356
        %v10436 = vrcp.pop %v10358
        %v10437 = vrcp.pop %v10360
        %v10438 = vrcp.pop %v10362
        %v10439 = vrcp.pop %v10364
        %v10440 = vrcp.pop %v10366
        %v10441 = vrcp.pop %v10368
        %v10442 = vrcp.pop %v10370
        %v10443 = vrcp.pop %v10372
        %v10444 = vrcp.pop %v10374
        %v10445 = vrcp.pop %v10376
        %v10446 = vrcp.pop %v10378
        %v10447 = vrcp.pop %v10380
        %v10448 = vrcp.pop %v10382
        %v10449 = vrcp.pop %v10384
        %v10450 = vrcp.pop %v10386
        %v10451 = vmul.f32 %v10132, %v10387
        %v10452 = vmul.f32 %v10134, %v10388
        %v10453 = vmul.f32 %v10136, %v10389
        %v10454 = vmul.f32 %v10138, %v10390
        %v10455 = vmul.f32 %v10140, %v10391
        %v10456 = vmul.f32 %v10142, %v10392
        %v10457 = vmul.f32 %v10144, %v10393
        %v10458 = vmul.f32 %v10146, %v10394
        %v10459 = vmul.f32 %v10148, %v10395
        %v10460 = vmul.f32 %v10150, %v10396
        %v10461 = vmul.f32 %v10152, %v10397
        %v10462 = vmul.f32 %v10154, %v10398
        %v10463 = vmul.f32 %v10156, %v10399
        %v10464 = vmul.f32 %v10158, %v10400
        %v10465 = vmul.f32 %v10160, %v10401
        %v10466 = vmul.f32 %v10162, %v10402
        %v10467 = vmul.f32 %v10164, %v10403
        %v10468 = vmul.f32 %v10166, %v10404
        %v10469 = vmul.f32 %v10168, %v10405
        %v10470 = vmul.f32 %v10170, %v10406
        %v10471 = vmul.f32 %v10172, %v10407
        %v10472 = vmul.f32 %v10174, %v10408
        %v10473 = vmul.f32 %v10176, %v10409
        %v10474 = vmul.f32 %v10178, %v10410
        %v10475 = vmul.f32 %v10180, %v10411
        %v10476 = vmul.f32 %v10182, %v10412
        %v10477 = vmul.f32 %v10184, %v10413
        %v10478 = vmul.f32 %v10186, %v10414
        %v10479 = vmul.f32 %v10188, %v10415
        %v10480 = vmul.f32 %v10190, %v10416
        %v10481 = vmul.f32 %v10192, %v10417
        %v10482 = vmul.f32 %v10194, %v10418
        %v10483 = vmul.f32 %v10196, %v10419
        %v10484 = vmul.f32 %v10198, %v10420
        %v10485 = vmul.f32 %v10200, %v10421
        %v10486 = vmul.f32 %v10202, %v10422
        %v10487 = vmul.f32 %v10204, %v10423
        %v10488 = vmul.f32 %v10206, %v10424
        %v10489 = vmul.f32 %v10208, %v10425
        %v10490 = vmul.f32 %v10210, %v10426
        %v10491 = vmul.f32 %v10212, %v10427
        %v10492 = vmul.f32 %v10214, %v10428
        %v10493 = vmul.f32 %v10216, %v10429
        %v10494 = vmul.f32 %v10218, %v10430
        %v10495 = vmul.f32 %v10220, %v10431
        %v10496 = vmul.f32 %v10222, %v10432
        %v10497 = vmul.f32 %v10224, %v10433
        %v10498 = vmul.f32 %v10226, %v10434
        %v10499 = vmul.f32 %v10228, %v10435
        %v10500 = vmul.f32 %v10230, %v10436
        %v10501 = vmul.f32 %v10232, %v10437
        %v10502 = vmul.f32 %v10234, %v10438
        %v10503 = vmul.f32 %v10236, %v10439
        %v10504 = vmul.f32 %v10238, %v10440
        %v10505 = vmul.f32 %v10240, %v10441
        %v10506 = vmul.f32 %v10242, %v10442
        %v10507 = vmul.f32 %v10244, %v10443
        %v10508 = vmul.f32 %v10246, %v10444
        %v10509 = vmul.f32 %v10248, %v10445
        %v10510 = vmul.f32 %v10250, %v10446
        %v10511 = vmul.f32 %v10252, %v10447
        %v10512 = vmul.f32 %v10254, %v10448
        %v10513 = vmul.f32 %v10256, %v10449
        %v10514 = vmul.f32 %v10258, %v10450
        %10515 = vst [vmem:[%s481] sm:$0xff] %v10451
        %10516 = vst [vmem:[%s481 + $0x8] sm:$0xff] %v10452
        %10517 = vst [vmem:[%s481 + $0x10] sm:$0xff] %v10453
        %10518 = vst [vmem:[%s481 + $0x18] sm:$0xff] %v10454
        %10519 = vst [vmem:[%s481 + $0x20] sm:$0xff] %v10455
        %10520 = vst [vmem:[%s481 + $0x28] sm:$0xff] %v10456
        %10521 = vst [vmem:[%s481 + $0x30] sm:$0xff] %v10457
        %10522 = vst [vmem:[%s481 + $0x38] sm:$0xff] %v10458
        %10523 = vst [vmem:[%s481 + $0x40] sm:$0xff] %v10459
        %10524 = vst [vmem:[%s481 + $0x48] sm:$0xff] %v10460
        %10525 = vst [vmem:[%s481 + $0x50] sm:$0xff] %v10461
        %10526 = vst [vmem:[%s481 + $0x58] sm:$0xff] %v10462
        %10527 = vst [vmem:[%s481 + $0x60] sm:$0xff] %v10463
        %10528 = vst [vmem:[%s481 + $0x68] sm:$0xff] %v10464
        %10529 = vst [vmem:[%s481 + $0x70] sm:$0xff] %v10465
        %10530 = vst [vmem:[%s481 + $0x78] sm:$0xff] %v10466
        %10531 = vst [vmem:[%s481 + $0x80] sm:$0xff] %v10467
        %10532 = vst [vmem:[%s481 + $0x88] sm:$0xff] %v10468
        %10533 = vst [vmem:[%s481 + $0x90] sm:$0xff] %v10469
        %10534 = vst [vmem:[%s481 + $0x98] sm:$0xff] %v10470
        %10535 = vst [vmem:[%s481 + $0xa0] sm:$0xff] %v10471
        %10536 = vst [vmem:[%s481 + $0xa8] sm:$0xff] %v10472
        %10537 = vst [vmem:[%s481 + $0xb0] sm:$0xff] %v10473
        %10538 = vst [vmem:[%s481 + $0xb8] sm:$0xff] %v10474
        %10539 = vst [vmem:[%s481 + $0xc0] sm:$0xff] %v10475
        %10540 = vst [vmem:[%s481 + $0xc8] sm:$0xff] %v10476
        %10541 = vst [vmem:[%s481 + $0xd0] sm:$0xff] %v10477
        %10542 = vst [vmem:[%s481 + $0xd8] sm:$0xff] %v10478
        %10543 = vst [vmem:[%s481 + $0xe0] sm:$0xff] %v10479
        %10544 = vst [vmem:[%s481 + $0xe8] sm:$0xff] %v10480
        %10545 = vst [vmem:[%s481 + $0xf0] sm:$0xff] %v10481
        %10546 = vst [vmem:[%s481 + $0xf8] sm:$0xff] %v10482
        %10547 = vst [vmem:[%s481 + $0x100] sm:$0xff] %v10483
        %10548 = vst [vmem:[%s481 + $0x108] sm:$0xff] %v10484
        %10549 = vst [vmem:[%s481 + $0x110] sm:$0xff] %v10485
        %10550 = vst [vmem:[%s481 + $0x118] sm:$0xff] %v10486
        %10551 = vst [vmem:[%s481 + $0x120] sm:$0xff] %v10487
        %10552 = vst [vmem:[%s481 + $0x128] sm:$0xff] %v10488
        %10553 = vst [vmem:[%s481 + $0x130] sm:$0xff] %v10489
        %10554 = vst [vmem:[%s481 + $0x138] sm:$0xff] %v10490
        %10555 = vst [vmem:[%s481 + $0x140] sm:$0xff] %v10491
        %10556 = vst [vmem:[%s481 + $0x148] sm:$0xff] %v10492
        %10557 = vst [vmem:[%s481 + $0x150] sm:$0xff] %v10493
        %10558 = vst [vmem:[%s481 + $0x158] sm:$0xff] %v10494
        %10559 = vst [vmem:[%s481 + $0x160] sm:$0xff] %v10495
        %10560 = vst [vmem:[%s481 + $0x168] sm:$0xff] %v10496
        %10561 = vst [vmem:[%s481 + $0x170] sm:$0xff] %v10497
        %10562 = vst [vmem:[%s481 + $0x178] sm:$0xff] %v10498
        %10563 = vst [vmem:[%s481 + $0x180] sm:$0xff] %v10499
        %10564 = vst [vmem:[%s481 + $0x188] sm:$0xff] %v10500
        %10565 = vst [vmem:[%s481 + $0x190] sm:$0xff] %v10501
        %10566 = vst [vmem:[%s481 + $0x198] sm:$0xff] %v10502
        %10567 = vst [vmem:[%s481 + $0x1a0] sm:$0xff] %v10503
        %10568 = vst [vmem:[%s481 + $0x1a8] sm:$0xff] %v10504
        %10569 = vst [vmem:[%s481 + $0x1b0] sm:$0xff] %v10505
        %10570 = vst [vmem:[%s481 + $0x1b8] sm:$0xff] %v10506
        %10571 = vst [vmem:[%s481 + $0x1c0] sm:$0xff] %v10507
        %10572 = vst [vmem:[%s481 + $0x1c8] sm:$0xff] %v10508
        %10573 = vst [vmem:[%s481 + $0x1d0] sm:$0xff] %v10509
        %10574 = vst [vmem:[%s481 + $0x1d8] sm:$0xff] %v10510
        %10575 = vst [vmem:[%s481 + $0x1e0] sm:$0xff] %v10511
        %10576 = vst [vmem:[%s481 + $0x1e8] sm:$0xff] %v10512
        %10577 = vst [vmem:[%s481 + $0x1f0] sm:$0xff] %v10513
        %10578 = vst [vmem:[%s481 + $0x1f8] sm:$0xff] %v10514
        %s10579 = sand.u32 %s254, 1
        %s10580 = scalar_lea.sflag [#allocation5], %s10579
        %s10581 = sand.u32 %s254, 1
        %s10582 = smul.addr %s10581, 512
        %s10583 = scalar_lea.vmem [#allocation10], %s10582
        // Predicated region
        $region118: #{tpu_custom_call.1} parent=96 // pred_check
          %p10584 = pneg %p264
        $region119: #{tpu_custom_call.1} parent=96 // pred_check_branch
          %10586 = sbr.rel (%p10584) target = $region121
        $region120: #{tpu_custom_call.1} parent=96 // pred_region
          %s10588 = ssub.s32 8192, 8192
          %10589 = vsyncadd %s10580, %s10588
          %s10590 = smul.addr %s26, 128
          %s10591 = scalar_lea.hbm %s10, %s10590
          %s10592 = sshll.u32 %s10583, 4
          %s10593 = int_to_ptr.vmem [resolvable:$true] %s10592
          %10598 = dma.vmem_to_hbm [thread:$0]  %s10593, 8192, %s10591, %s10580, 128, 512, 8
        $region121: #{tpu_custom_call.1} parent=96 // pred_fallthru
          _
      $region97: #{tpu_custom_call.1} parent=5 // pred_fallthru
        _
      %p10599 = scmp.le.s32.totalorder 2, %s21
      // Predicated region
      $region122: #{tpu_custom_call.1} parent=5 // pred_check
        %p10600 = pneg %p10599
      $region123: #{tpu_custom_call.1} parent=5 // pred_check_branch
        %10602 = sbr.rel (%p10600) target = $region125
      $region124: #{tpu_custom_call.1} parent=5 // pred_region
        %s10603 = ssub.s32 %s21, 2
        // Predicated region
        $region126: #{tpu_custom_call.1} parent=124 // pred_check
          %p10604 = pneg %p270
        $region127: #{tpu_custom_call.1} parent=124 // pred_check_branch
          %10606 = sbr.rel (%p10604) target = $region129
        $region128: #{tpu_custom_call.1} parent=124 // pred_region
          %s10607 = sand.u32 %s255, 1
          %s10608 = scalar_lea.sflag [#allocation5], %s10607
          %s10609 = sand.u32 %s255, 1
          %s10610 = smul.addr %s10609, 512
          %s10611 = scalar_lea.vmem [#allocation10], %s10610
          %10612 = dma.done %s10608, 8192
        $region129: #{tpu_custom_call.1} parent=124 // pred_fallthru
          _
      $region125: #{tpu_custom_call.1} parent=5 // pred_fallthru
        _
    $region6: #{tpu_custom_call.1} parent=1 // loop_footer
      %s25 = sadd.s32 1, %s21
    $region7: #{tpu_custom_call.1} parent=1 // loop_footer_branch
      %20 = sbr.rel target = $region3
    $region8: #{tpu_custom_call.1} parent=1 // loop_exit
      _
    %10613 = vsyncpa [#allocation4], 1
    %s10614 = scalar_lea.sflag [#allocation4], 1
    %10615 = vsyncpa %s10614, 1
    %10616 = vsyncpa [#allocation7], 1
    %10617 = vsyncpa [#allocation5], 1
    %s10618 = scalar_lea.sflag [#allocation5], 1
    %10619 = vsyncpa %s10618, 1

</llo_original>
